<compile_context>
chip_gen: v7x
topology: tpu7x:2x2x1
jax: 0.10.0
libtpu: 0.0.40
codegen_flags: <defaults>
</compile_context>

<pallas_src>
import math

import jax
import jax.numpy as jnp
from jax.experimental import pallas as pl
from jax.experimental.pallas import tpu as pltpu


# ---------------------------------------------------------------------------
# helpers
# ---------------------------------------------------------------------------
def _round_up(x, m):
    return ((x + m - 1) // m) * m


def _ln(x, g, b, eps=1e-5):
    mu = jnp.mean(x, axis=-1, keepdims=True)
    var = jnp.mean((x - mu) ** 2, axis=-1, keepdims=True)
    return (x - mu) * jax.lax.rsqrt(var + eps) * g + b


def _gelu_exact(x):
    # PyTorch nn.GELU default (erf based)
    return 0.5 * x * (1.0 + jax.lax.erf(x / math.sqrt(2.0)))


# Row order of the packed small-vector arrays (must match kernel unpacking).
#   vecs_h2 [9, H//2]: fpe_w1 | fpe_b1 | fpe_g1 | fpe_be1 | gpe_w1(2) | gpe_b1 | gpe_g1 | gpe_be1
#   vecs_h  [19, H]  : rows listed in _VH_ORDER
_VH_ORDER = ("fpe_b2", "fpe_g2", "fpe_be2", "gpe_b2", "gpe_g2", "gpe_be2",
             "lnl_g", "lnl_b", "lnv_g", "lnv_b", "lnf_g", "lnf_b",
             "bq", "bk", "bv", "bo", "vp_b1", "vp_b2", "ffn_b2")


# ---------------------------------------------------------------------------
# Pallas kernel: TB batch elements per grid step
# ---------------------------------------------------------------------------
def cross_attention_kernel(
    # per-step data blocks
    fpos_ref,    # [TB*F, 4] f32 : (local_pos, global_0, global_1, 0)
    tpos_ref,    # [TB, 4]   f32 : (global_0, global_1, 0, 0) -- text row
    lang_ref,    # [TB, H]   bf16
    vis_ref,     # [TB*F, H] bf16
    # resident packed vectors (f32)
    vh2_ref,     # [9, H//2]
    vh_ref,      # [19, H]   (row order = _VH_ORDER)
    ffn_b1_ref,  # [1, 4H]
    # resident bf16 weight matrices
    fpe_w2_ref, gpe_w2_ref, wq_ref, wkv_ref, wo_ref,
    vp_w1_ref, vp_w2_ref, ffn_w1_ref, ffn_w2_ref,
    # resident bf16 constants
    hm_ref,      # [H, NH]    head indicator
    hmt_ref,     # [NH, H]    transposed head indicator
    sel_ref,     # [TB, TB*F] block-diagonal frame selector
    # scalar (SMEM)
    alpha_ref,   # [1] f32 : sigmoid(fusion_alpha), precomputed in wrapper
    # output
    out_ref,     # [TB, H] f32
):
    f32, bf16 = jnp.float32, jnp.bfloat16
    TB, H = lang_ref.shape
    TF = vis_ref.shape[0]
    F = TF // TB
    NH = hm_ref.shape[1]
    HD = H // NH
    inv_scale = 1.0 / (math.sqrt(HD) + 1e-6)   # module: clamp THEN divide by sqrt(hd)+eps

    def bdot(x, w_ref):
        # bf16 x bf16 MXU matmul with f32 accumulation
        return jnp.dot(x.astype(bf16), w_ref[...], preferred_element_type=f32)

    vh2 = vh2_ref[...]
    vh = vh_ref[...]
    fpe_w1, fpe_b1, fpe_g1, fpe_be1 = vh2[0:1], vh2[1:2], vh2[2:3], vh2[3:4]
    gpe_w1 = vh2[4:6]                                    # [2, H//2]
    gpe_b1, gpe_g1, gpe_be1 = vh2[6:7], vh2[7:8], vh2[8:9]
    (fpe_b2, fpe_g2, fpe_be2, gpe_b2, gpe_g2, gpe_be2,
     lnl_g, lnl_b, lnv_g, lnv_b, lnf_g, lnf_b,
     bq, bk, bv, bo, vp_b1, vp_b2, ffn_b2) = [vh[i:i + 1] for i in range(19)]

    fpos = fpos_ref[...]
    tpos = tpos_ref[...]
    lang = lang_ref[...].astype(f32)                     # [TB, H]
    vis = vis_ref[...].astype(f32)                       # [TF, H]

    # ---- frame_pos_encoding: Linear(1,H/2) -> LN -> tanh -> Linear(H/2,H) -> LN
    h = fpos[:, 0:1] * fpe_w1 + fpe_b1                   # K=1 matmul as broadcast-mul
    h = jnp.tanh(_ln(h, fpe_g1, fpe_be1))
    h = bdot(h, fpe_w2_ref) + fpe_b2
    local_pos_emb = _ln(h, fpe_g2, fpe_be2)              # [TF, H]

    # ---- global_pos_encoding (shared weights): frame rows and text rows
    def global_pos(x2):                                  # x2: [N, 2]
        g = x2[:, 0:1] * gpe_w1[0:1, :] + x2[:, 1:2] * gpe_w1[1:2, :] + gpe_b1
        g = jnp.tanh(_ln(g, gpe_g1, gpe_be1))
        g = bdot(g, gpe_w2_ref) + gpe_b2
        return _ln(g, gpe_g2, gpe_be2)

    global_pos_emb = global_pos(fpos[:, 1:3])            # [TF, H]
    text_pos_emb = global_pos(tpos[:, 0:2])              # [TB, H]

    vis = vis + local_pos_emb + global_pos_emb
    lang = lang + text_pos_emb

    # ---- norms + q / fused k|v projections
    normed_lang = _ln(lang, lnl_g, lnl_b)                # [TB, H]
    normed_vision = _ln(vis, lnv_g, lnv_b)               # [TF, H]

    q = bdot(normed_lang, wq_ref) + bq                   # [TB, H]
    kv = bdot(normed_vision, wkv_ref)                    # [TF, 2H] fused key|value
    k = kv[:, :H] + bk
    v = kv[:, H:] + bv

    # ---- multi-head cross attention (query length == 1 per batch element)
    # per-head score contraction via the constant head indicator on the MXU
    # NOTE: F is a multiple of 8 in the demo, so the [TF,*] <-> [TB,F,*] reshapes
    # are native sublane-group splits (cheap).
    qk = (k.reshape(TB, F, H) * q.reshape(TB, 1, H)).reshape(TF, H)
    s = jnp.dot(qk.astype(bf16), hm_ref[...], preferred_element_type=f32)   # [TF, NH]
    s = jnp.clip(s.reshape(TB, F, NH), -10.0, 10.0) * inv_scale
    m = jnp.max(s, axis=1, keepdims=True)                                   # [TB, 1, NH]
    e = jnp.exp(s - m)
    p = e * pl.reciprocal(jnp.sum(e, axis=1, keepdims=True) + 1e-6, approx=True)
    p = jnp.nan_to_num(p, nan=0.0)
    p = jnp.clip(p, 0.0, 1.0)
    p = p * pl.reciprocal(jnp.sum(p, axis=1, keepdims=True) + 1e-6, approx=True)
    # attention_dropout: identity (eval mode)
    p_full = jnp.dot(p.reshape(TF, NH).astype(bf16), hmt_ref[...],
                     preferred_element_type=f32)                            # [TF, H]
    # frame reduction on the MXU via the block-diagonal selector
    attn_output = jnp.dot(sel_ref[...], (p_full * v).astype(bf16),
                          preferred_element_type=f32)                       # [TB, H]

    # ---- vision pooling: vision_pool(mean over frames of normed_vision)
    vis_mean = jnp.dot(sel_ref[...], normed_vision.astype(bf16),
                       preferred_element_type=f32) * (1.0 / F)              # [TB, H]
    vp = _gelu_exact(bdot(vis_mean, vp_w1_ref) + vp_b1)
    vision_pooled = bdot(vp, vp_w2_ref) + vp_b2                             # [TB, H]

    # ---- output projection + gated fusion (output_dropout: identity)
    fusion = bdot(attn_output, wo_ref) + bo                                 # [TB, H]
    alpha = jnp.full((1, 1), alpha_ref[0], f32)           # sigmoid applied in wrapper
    fusion = fusion + alpha * lang + (1.0 - alpha) * vision_pooled

    # ---- FFN block + residual
    normed_fusion = _ln(fusion, lnf_g, lnf_b)
    f1 = _gelu_exact(bdot(normed_fusion, ffn_w1_ref) + ffn_b1_ref[...])
    f2 = bdot(f1, ffn_w2_ref) + ffn_b2
    out_ref[...] = (f2 + fusion).astype(out_ref.dtype)                      # [TB, H]


# ---------------------------------------------------------------------------
# Parameter init (deterministic, synthetic) + one-time packing / casting
# ---------------------------------------------------------------------------
def init_params(key, hidden_size):
    H = hidden_size
    H2 = H // 2
    ks = jax.random.split(key, 16)

    def w(k, shape, scale=0.05):
        return (scale * jax.random.normal(k, shape)).astype(jnp.float32)

    zeros = lambda s: jnp.zeros(s, jnp.float32)
    ones = lambda s: jnp.ones(s, jnp.float32)

    return {
        # frame_pos_encoding
        "fpe_w1": w(ks[0], (1, H2)), "fpe_b1": zeros((1, H2)),
        "fpe_g1": ones((1, H2)), "fpe_be1": zeros((1, H2)),
        "fpe_w2": w(ks[1], (H2, H)), "fpe_b2": zeros((1, H)),
        "fpe_g2": ones((1, H)), "fpe_be2": zeros((1, H)),
        # global_pos_encoding
        "gpe_w1": w(ks[2], (2, H2)), "gpe_b1": zeros((1, H2)),
        "gpe_g1": ones((1, H2)), "gpe_be1": zeros((1, H2)),
        "gpe_w2": w(ks[3], (H2, H)), "gpe_b2": zeros((1, H)),
        "gpe_g2": ones((1, H)), "gpe_be2": zeros((1, H)),
        # layernorms
        "lnl_g": ones((1, H)), "lnl_b": zeros((1, H)),
        "lnv_g": ones((1, H)), "lnv_b": zeros((1, H)),
        "lnf_g": ones((1, H)), "lnf_b": zeros((1, H)),
        # attention projections ([in, out] layout)
        "wq": w(ks[4], (H, H)), "bq": zeros((1, H)),
        "wk": w(ks[5], (H, H)), "bk": zeros((1, H)),
        "wv": w(ks[6], (H, H)), "bv": zeros((1, H)),
        "wo": w(ks[7], (H, H)), "bo": zeros((1, H)),
        # vision pool
        "vp_w1": w(ks[8], (H, H)), "vp_b1": zeros((1, H)),
        "vp_w2": w(ks[9], (H, H)), "vp_b2": zeros((1, H)),
        # fusion alpha (raw parameter, like torch.tensor(0.5))
        "alpha": jnp.full((1,), 0.5, jnp.float32),
        # ffn
        "ffn_w1": w(ks[10], (H, 4 * H)), "ffn_b1": zeros((1, 4 * H)),
        "ffn_w2": w(ks[11], (4 * H, H)), "ffn_b2": zeros((1, H)),
    }


def prepare_params(params, num_heads):
    """One-time packing / bf16 casting (not redone per forward call)."""
    p = params
    H = p["wq"].shape[0]
    assert H % num_heads == 0, "hidden_size must be divisible by num_heads"
    f32, bf16 = jnp.float32, jnp.bfloat16

    vecs_h2 = jnp.concatenate(
        [p["fpe_w1"], p["fpe_b1"], p["fpe_g1"], p["fpe_be1"],
         p["gpe_w1"], p["gpe_b1"], p["gpe_g1"], p["gpe_be1"]], axis=0).astype(f32)
    vecs_h = jnp.concatenate([p[n] for n in _VH_ORDER], axis=0).astype(f32)

    hd = H // num_heads
    dim_head = jnp.arange(H, dtype=jnp.int32) // hd
    hm = (dim_head[:, None] == jnp.arange(num_heads, dtype=jnp.int32)[None, :]).astype(bf16)

    return {
        "num_heads": num_heads,
        "vecs_h2": vecs_h2,                           # [9, H/2]  f32
        "vecs_h": vecs_h,                             # [19, H]   f32
        "ffn_b1": p["ffn_b1"].astype(f32),            # [1, 4H]   f32
        "fpe_w2": p["fpe_w2"].astype(bf16),
        "gpe_w2": p["gpe_w2"].astype(bf16),
        "wq": p["wq"].astype(bf16),
        "wkv": jnp.concatenate([p["wk"], p["wv"]], axis=1).astype(bf16),   # [H, 2H]
        "wo": p["wo"].astype(bf16),
        "vp_w1": p["vp_w1"].astype(bf16),
        "vp_w2": p["vp_w2"].astype(bf16),
        "ffn_w1": p["ffn_w1"].astype(bf16),
        "ffn_w2": p["ffn_w2"].astype(bf16),
        "head_mask": hm,                              # [H, NH]  bf16
        "head_mask_t": hm.T,                          # [NH, H]  bf16
        "alpha_sig": jax.nn.sigmoid(p["alpha"]).reshape(1).astype(f32),
    }


# ---------------------------------------------------------------------------
# Wrapper: position glue (plain JAX) + pallas_call
# ---------------------------------------------------------------------------
def _choose_block_batch(batch):
    """Per-step batch tile: multiple of 8 (sublane tiling), <= 256 rows, and
    >= 2 grid steps when the batch allows (megacore / v7x dual-TensorCore)."""
    if batch <= 8:
        return batch                       # single step; block == full (tiny) batch
    steps = max(2, -(-batch // 256))
    return _round_up(-(-batch // steps), 8)


def _physical_vmem_bytes():
    try:
        v = getattr(pltpu.get_tpu_info(), "vmem_capacity_bytes", None)
        if v:
            return int(v)
    except Exception:
        pass
    return 64 * 1024 * 1024                # conservative default (v7x per-core VMEM)


def cross_attention_forward(prep, lang_out, vision_out, clip_info, *, block_batch=None):
    """prep = prepare_params(...); lang_out [B,1,H], vision_out [B,F,H] -> [B,H]."""
    B, F, H = vision_out.shape
    assert H % prep["num_heads"] == 0
    f32, bf16 = jnp.float32, jnp.bfloat16

    TB = _choose_block_batch(B) if block_batch is None else block_batch
    Bp = _round_up(B, TB)
    grid = (Bp // TB,)

    # ---- get_frame_positions (plain-JAX glue, vectorized over batch) ----
    local = jnp.clip(jnp.arange(F, dtype=f32) / (F - 1), 0.0, 1.0)            # [F]
    start = clip_info["clip_start_frame"].astype(f32)[:, None]                # [B,1]
    tot = clip_info["total_frames"].astype(f32)[:, None]                      # [B,1]
    fidx = jnp.clip(start + jnp.arange(F, dtype=f32)[None, :], 0.0, tot - 1.0)
    norm_pos = jnp.clip(jnp.log1p(fidx) / (jnp.log1p(tot) + 1e-6), 0.0, 1.0)  # [B,F]
    length_factor = jnp.clip(jnp.log1p(tot) / jnp.log1p(jnp.float32(1800.0)), 0.0, 1.0)
    fpos = jnp.stack([jnp.broadcast_to(local[None, :], (B, F)),
                      norm_pos,
                      jnp.broadcast_to(length_factor, (B, F)),
                      jnp.zeros((B, F), f32)], axis=-1)                       # [B,F,4]
    clip_prog = (clip_info["target_clip_idx"].astype(f32)
                 / clip_info["total_num_clips"].astype(f32))                  # [B]
    zeros_b = jnp.zeros((B,), f32)
    tpos = jnp.stack([clip_prog, clip_info["total_frames"].astype(f32) / 1800.0,
                      zeros_b, zeros_b], axis=-1)                             # [B,4]

    # bf16 activations at the call boundary (LN/softmax math is f32 in-kernel)
    lang2 = lang_out[:, 0, :].astype(bf16)                                    # [B,H]
    vis3 = vision_out.astype(bf16)                                            # [B,F,H]

    if Bp != B:                                   # pad batch to a multiple of TB
        pad = Bp - B
        fpos = jnp.pad(fpos, ((0, pad), (0, 0), (0, 0)))
        tpos = jnp.pad(tpos, ((0, pad), (0, 0)))
        lang2 = jnp.pad(lang2, ((0, pad), (0, 0)))
        vis3 = jnp.pad(vis3, ((0, pad), (0, 0), (0, 0)))

    fpos_flat = fpos.reshape(Bp * F, 4)
    vis_flat = vis3.reshape(Bp * F, H)

    # block-diagonal frame selector [TB, TB*F]: sel[b, b*F + f] = 1
    rows = jax.lax.broadcasted_iota(jnp.int32, (TB, TB * F), 0)
    cols = jax.lax.broadcasted_iota(jnp.int32, (TB, TB * F), 1)
    sel = (cols // F == rows).astype(bf16)

    resident = [prep["vecs_h2"], prep["vecs_h"], prep["ffn_b1"],
                prep["fpe_w2"], prep["gpe_w2"], prep["wq"], prep["wkv"], prep["wo"],
                prep["vp_w1"], prep["vp_w2"], prep["ffn_w1"], prep["ffn_w2"],
                prep["head_mask"], prep["head_mask_t"], sel]

    data_specs = [
        pl.BlockSpec((TB * F, 4), lambda i: (i, 0)),   # fpos
        pl.BlockSpec((TB, 4), lambda i: (i, 0)),       # tpos
        pl.BlockSpec((TB, H), lambda i: (i, 0)),       # lang
        pl.BlockSpec((TB * F, H), lambda i: (i, 0)),   # vis
    ]
    alpha_spec = pl.BlockSpec(memory_space=pltpu.MemorySpace.SMEM)
    out_spec = pl.BlockSpec((TB, H), lambda i: (i, 0))

    # ---- VMEM budget: single-buffered weights + double-buffered data blocks
    #      + f32-intermediate headroom, capped at 75% of physical VMEM.
    def nbytes(a):
        return int(a.size) * a.dtype.itemsize
    weight_bytes = sum(nbytes(a) for a in resident)
    step_bytes = (TB * F * 4 + TB * 4) * 4 + (TB * F * H + TB * H) * 2 + TB * H * 4
    scratch_bytes = 12 * TB * F * H * 4
    vmem_limit = weight_bytes + 2 * step_bytes + scratch_bytes + (4 << 20)
    vmem_limit = int(max(16 << 20, min(vmem_limit, (_physical_vmem_bytes() * 3) // 4)))
    # TODO(synk): for H >= 1024 on v7x (64 MiB VMEM), stream ffn_w1/ffn_w2 over an
    # extra 4H grid axis (or pltpu.emit_pipeline) instead of keeping them resident.

    def call(single_buffer_weights):
        if single_buffer_weights:
            # Weights are grid-invariant: request single buffering (halves their VMEM).
            res_specs = [pl.BlockSpec(a.shape, lambda i: (0, 0),
                                      pipeline_mode=pl.Buffered(1)) for a in resident]
        else:
            res_specs = [pl.BlockSpec(a.shape, lambda i: (0, 0)) for a in resident]
        return pl.pallas_call(
            cross_attention_kernel,
            out_shape=jax.ShapeDtypeStruct((Bp, H), jnp.float32),
            grid=grid,
            in_specs=data_specs + res_specs + [alpha_spec],
            out_specs=out_spec,
            compiler_params=pltpu.CompilerParams(
                dimension_semantics=("parallel",),
                vmem_limit_bytes=vmem_limit,
            ),
        )(fpos_flat, tpos, lang2, vis_flat, *resident, prep["alpha_sig"])

    try:
        out = call(True)
    except Exception:
        # Fallback if this jax build rejects single-buffered pipeline_mode;
        # identical numerics, just default double-buffered weight blocks.
        out = call(False)

    return out[:B]                          # [B, H] == fusion_emb.squeeze(1)


# ---------------------------------------------------------------------------
# Demo
# ---------------------------------------------------------------------------
if __name__ == "__main__":
    # Small demo shapes (production: H a multiple of 128, F a multiple of 8).
    B, F, H, NH = 16, 8, 32, 4

    key = jax.random.PRNGKey(0)
    k_params, k_lang, k_vis = jax.random.split(key, 3)

    params = init_params(k_params, H)
    prep = prepare_params(params, NH)

    lang_out = jax.random.normal(k_lang, (B, 1, H), jnp.float32)
    vision_out = jax.random.normal(k_vis, (B, F, H), jnp.float32)
    clip_info = {
        "clip_start_frame": (jnp.arange(B, dtype=jnp.int32) * 16) % 240,
        "total_frames": jnp.full((B,), 300, jnp.int32) + 30 * jnp.arange(B, dtype=jnp.int32),
        "target_clip_idx": jnp.arange(B, dtype=jnp.int32) % 5,
        "total_num_clips": jnp.full((B,), 10, jnp.int32),
    }

    out = cross_attention_forward(prep, lang_out, vision_out, clip_info)
    out = jax.block_until_ready(out)
    assert out.shape == (B, H) and bool(jnp.all(jnp.isfinite(out)))
    print("KERNEL_OK")
</pallas_src>

<mosaic_0001>
module attributes {stable_mosaic.version = 11 : i64} {
  func.func @cross_attention_kernel(%arg0: i32, %arg1: memref<64x4xf32, #tpu.memory_space<vmem>>, %arg2: memref<8x4xf32, #tpu.memory_space<vmem>>, %arg3: memref<8x32xbf16, #tpu.memory_space<vmem>>, %arg4: memref<64x32xbf16, #tpu.memory_space<vmem>>, %arg5: memref<9x16xf32, #tpu.memory_space<vmem>>, %arg6: memref<19x32xf32, #tpu.memory_space<vmem>>, %arg7: memref<1x128xf32, #tpu.memory_space<vmem>>, %arg8: memref<16x32xbf16, #tpu.memory_space<vmem>>, %arg9: memref<16x32xbf16, #tpu.memory_space<vmem>>, %arg10: memref<32x32xbf16, #tpu.memory_space<vmem>>, %arg11: memref<32x64xbf16, #tpu.memory_space<vmem>>, %arg12: memref<32x32xbf16, #tpu.memory_space<vmem>>, %arg13: memref<32x32xbf16, #tpu.memory_space<vmem>>, %arg14: memref<32x32xbf16, #tpu.memory_space<vmem>>, %arg15: memref<32x128xbf16, #tpu.memory_space<vmem>>, %arg16: memref<128x32xbf16, #tpu.memory_space<vmem>>, %arg17: memref<32x4xbf16, #tpu.memory_space<vmem>>, %arg18: memref<4x32xbf16, #tpu.memory_space<vmem>>, %arg19: memref<8x64xbf16, #tpu.memory_space<vmem>>, %arg20: memref<1xf32, #tpu.memory_space<smem>>, %arg21: memref<8x32xf32, #tpu.memory_space<vmem>>) attributes {dimension_semantics = [#tpu.dimension_semantics<parallel>], iteration_bounds = array<i64: 2>, scalar_prefetch = 0 : i64, scratch_operands = 0 : i64, tpu.core_type = #tpu.core_type<tc>, window_params = [{transform_indices = @transform_0, window_bounds = array<i64: 64, 4>}, {transform_indices = @transform_1, window_bounds = array<i64: 8, 4>}, {transform_indices = @transform_2, window_bounds = array<i64: 8, 32>}, {transform_indices = @transform_3, window_bounds = array<i64: 64, 32>}, {pipeline_mode = #tpu.pipeline_mode<synchronous>, transform_indices = @transform_4, window_bounds = array<i64: 9, 16>}, {pipeline_mode = #tpu.pipeline_mode<synchronous>, transform_indices = @transform_5, window_bounds = array<i64: 19, 32>}, {pipeline_mode = #tpu.pipeline_mode<synchronous>, transform_indices = @transform_6, window_bounds = array<i64: 1, 128>}, {pipeline_mode = #tpu.pipeline_mode<synchronous>, transform_indices = @transform_7, window_bounds = array<i64: 16, 32>}, {pipeline_mode = #tpu.pipeline_mode<synchronous>, transform_indices = @transform_8, window_bounds = array<i64: 16, 32>}, {pipeline_mode = #tpu.pipeline_mode<synchronous>, transform_indices = @transform_9, window_bounds = array<i64: 32, 32>}, {pipeline_mode = #tpu.pipeline_mode<synchronous>, transform_indices = @transform_10, window_bounds = array<i64: 32, 64>}, {pipeline_mode = #tpu.pipeline_mode<synchronous>, transform_indices = @transform_11, window_bounds = array<i64: 32, 32>}, {pipeline_mode = #tpu.pipeline_mode<synchronous>, transform_indices = @transform_12, window_bounds = array<i64: 32, 32>}, {pipeline_mode = #tpu.pipeline_mode<synchronous>, transform_indices = @transform_13, window_bounds = array<i64: 32, 32>}, {pipeline_mode = #tpu.pipeline_mode<synchronous>, transform_indices = @transform_14, window_bounds = array<i64: 32, 128>}, {pipeline_mode = #tpu.pipeline_mode<synchronous>, transform_indices = @transform_15, window_bounds = array<i64: 128, 32>}, {pipeline_mode = #tpu.pipeline_mode<synchronous>, transform_indices = @transform_16, window_bounds = array<i64: 32, 4>}, {pipeline_mode = #tpu.pipeline_mode<synchronous>, transform_indices = @transform_17, window_bounds = array<i64: 4, 32>}, {pipeline_mode = #tpu.pipeline_mode<synchronous>, transform_indices = @transform_18, window_bounds = array<i64: 8, 64>}, {transform_indices = @transform_19, window_bounds = array<i64: 1>}, {transform_indices = @transform_20, window_bounds = array<i64: 8, 32>}]} {
    %c0 = arith.constant 0 : index
    %c0_0 = arith.constant 0 : index
    %0 = vector.load %arg5[%c0, %c0_0] : memref<9x16xf32, #tpu.memory_space<vmem>>, vector<9x16xf32>
    %c0_1 = arith.constant 0 : index
    %c0_2 = arith.constant 0 : index
    %1 = vector.load %arg6[%c0_1, %c0_2] : memref<19x32xf32, #tpu.memory_space<vmem>>, vector<19x32xf32>
    %2 = vector.extract_strided_slice %0 {offsets = [0, 0], sizes = [1, 16], strides = [1, 1]} : vector<9x16xf32> to vector<1x16xf32>
    %3 = vector.extract_strided_slice %0 {offsets = [1, 0], sizes = [1, 16], strides = [1, 1]} : vector<9x16xf32> to vector<1x16xf32>
    %4 = vector.extract_strided_slice %0 {offsets = [2, 0], sizes = [1, 16], strides = [1, 1]} : vector<9x16xf32> to vector<1x16xf32>
    %5 = vector.extract_strided_slice %0 {offsets = [3, 0], sizes = [1, 16], strides = [1, 1]} : vector<9x16xf32> to vector<1x16xf32>
    %6 = vector.extract_strided_slice %0 {offsets = [4, 0], sizes = [2, 16], strides = [1, 1]} : vector<9x16xf32> to vector<2x16xf32>
    %7 = vector.extract_strided_slice %0 {offsets = [6, 0], sizes = [1, 16], strides = [1, 1]} : vector<9x16xf32> to vector<1x16xf32>
    %8 = vector.extract_strided_slice %0 {offsets = [7, 0], sizes = [1, 16], strides = [1, 1]} : vector<9x16xf32> to vector<1x16xf32>
    %9 = vector.extract_strided_slice %0 {offsets = [8, 0], sizes = [1, 16], strides = [1, 1]} : vector<9x16xf32> to vector<1x16xf32>
    %10 = vector.extract_strided_slice %1 {offsets = [0, 0], sizes = [1, 32], strides = [1, 1]} : vector<19x32xf32> to vector<1x32xf32>
    %11 = vector.extract_strided_slice %1 {offsets = [1, 0], sizes = [1, 32], strides = [1, 1]} : vector<19x32xf32> to vector<1x32xf32>
    %12 = vector.extract_strided_slice %1 {offsets = [2, 0], sizes = [1, 32], strides = [1, 1]} : vector<19x32xf32> to vector<1x32xf32>
    %13 = vector.extract_strided_slice %1 {offsets = [3, 0], sizes = [1, 32], strides = [1, 1]} : vector<19x32xf32> to vector<1x32xf32>
    %14 = vector.extract_strided_slice %1 {offsets = [4, 0], sizes = [1, 32], strides = [1, 1]} : vector<19x32xf32> to vector<1x32xf32>
    %15 = vector.extract_strided_slice %1 {offsets = [5, 0], sizes = [1, 32], strides = [1, 1]} : vector<19x32xf32> to vector<1x32xf32>
    %16 = vector.extract_strided_slice %1 {offsets = [6, 0], sizes = [1, 32], strides = [1, 1]} : vector<19x32xf32> to vector<1x32xf32>
    %17 = vector.extract_strided_slice %1 {offsets = [7, 0], sizes = [1, 32], strides = [1, 1]} : vector<19x32xf32> to vector<1x32xf32>
    %18 = vector.extract_strided_slice %1 {offsets = [8, 0], sizes = [1, 32], strides = [1, 1]} : vector<19x32xf32> to vector<1x32xf32>
    %19 = vector.extract_strided_slice %1 {offsets = [9, 0], sizes = [1, 32], strides = [1, 1]} : vector<19x32xf32> to vector<1x32xf32>
    %20 = vector.extract_strided_slice %1 {offsets = [10, 0], sizes = [1, 32], strides = [1, 1]} : vector<19x32xf32> to vector<1x32xf32>
    %21 = vector.extract_strided_slice %1 {offsets = [11, 0], sizes = [1, 32], strides = [1, 1]} : vector<19x32xf32> to vector<1x32xf32>
    %22 = vector.extract_strided_slice %1 {offsets = [12, 0], sizes = [1, 32], strides = [1, 1]} : vector<19x32xf32> to vector<1x32xf32>
    %23 = vector.extract_strided_slice %1 {offsets = [13, 0], sizes = [1, 32], strides = [1, 1]} : vector<19x32xf32> to vector<1x32xf32>
    %24 = vector.extract_strided_slice %1 {offsets = [14, 0], sizes = [1, 32], strides = [1, 1]} : vector<19x32xf32> to vector<1x32xf32>
    %25 = vector.extract_strided_slice %1 {offsets = [15, 0], sizes = [1, 32], strides = [1, 1]} : vector<19x32xf32> to vector<1x32xf32>
    %26 = vector.extract_strided_slice %1 {offsets = [16, 0], sizes = [1, 32], strides = [1, 1]} : vector<19x32xf32> to vector<1x32xf32>
    %27 = vector.extract_strided_slice %1 {offsets = [17, 0], sizes = [1, 32], strides = [1, 1]} : vector<19x32xf32> to vector<1x32xf32>
    %28 = vector.extract_strided_slice %1 {offsets = [18, 0], sizes = [1, 32], strides = [1, 1]} : vector<19x32xf32> to vector<1x32xf32>
    %c0_3 = arith.constant 0 : index
    %c0_4 = arith.constant 0 : index
    %29 = vector.load %arg1[%c0_3, %c0_4] : memref<64x4xf32, #tpu.memory_space<vmem>>, vector<64x4xf32>
    %c0_5 = arith.constant 0 : index
    %c0_6 = arith.constant 0 : index
    %30 = vector.load %arg2[%c0_5, %c0_6] : memref<8x4xf32, #tpu.memory_space<vmem>>, vector<8x4xf32>
    %c0_7 = arith.constant 0 : index
    %c0_8 = arith.constant 0 : index
    %31 = vector.load %arg3[%c0_7, %c0_8] : memref<8x32xbf16, #tpu.memory_space<vmem>>, vector<8x32xbf16>
    %32 = arith.extf %31 : vector<8x32xbf16> to vector<8x32xf32>
    %c0_9 = arith.constant 0 : index
    %c0_10 = arith.constant 0 : index
    %33 = vector.load %arg4[%c0_9, %c0_10] : memref<64x32xbf16, #tpu.memory_space<vmem>>, vector<64x32xbf16>
    %34 = arith.extf %33 : vector<64x32xbf16> to vector<64x32xf32>
    %35 = vector.extract_strided_slice %29 {offsets = [0, 0], sizes = [64, 1], strides = [1, 1]} : vector<64x4xf32> to vector<64x1xf32>
    %36 = vector.broadcast %35 : vector<64x1xf32> to vector<64x16xf32>
    %37 = vector.broadcast %2 : vector<1x16xf32> to vector<64x16xf32>
    %38 = arith.mulf %36, %37 : vector<64x16xf32>
    %39 = vector.broadcast %3 : vector<1x16xf32> to vector<64x16xf32>
    %40 = arith.addf %38, %39 : vector<64x16xf32>
    %cst = arith.constant dense<0.000000e+00> : vector<64xf32>
    %41 = vector.multi_reduction <add>, %40, %cst [1] : vector<64x16xf32> to vector<64xf32>
    %42 = vector.shape_cast %41 : vector<64xf32> to vector<64x1xf32>
    %cst_11 = arith.constant 1.600000e+01 : f32
    %43 = vector.broadcast %cst_11 : f32 to vector<64x1xf32>
    %44 = arith.divf %42, %43 : vector<64x1xf32>
    %45 = vector.broadcast %44 : vector<64x1xf32> to vector<64x16xf32>
    %46 = arith.subf %40, %45 : vector<64x16xf32>
    %47 = arith.mulf %46, %46 : vector<64x16xf32>
    %cst_12 = arith.constant dense<0.000000e+00> : vector<64xf32>
    %48 = vector.multi_reduction <add>, %47, %cst_12 [1] : vector<64x16xf32> to vector<64xf32>
    %49 = vector.shape_cast %48 : vector<64xf32> to vector<64x1xf32>
    %cst_13 = arith.constant 1.600000e+01 : f32
    %50 = vector.broadcast %cst_13 : f32 to vector<64x1xf32>
    %51 = arith.divf %49, %50 : vector<64x1xf32>
    %52 = vector.broadcast %44 : vector<64x1xf32> to vector<64x16xf32>
    %53 = arith.subf %40, %52 : vector<64x16xf32>
    %cst_14 = arith.constant 9.99999974E-6 : f32
    %54 = vector.broadcast %cst_14 : f32 to vector<64x1xf32>
    %55 = arith.addf %51, %54 : vector<64x1xf32>
    %56 = math.rsqrt %55 : vector<64x1xf32>
    %57 = vector.broadcast %56 : vector<64x1xf32> to vector<64x16xf32>
    %58 = arith.mulf %53, %57 : vector<64x16xf32>
    %59 = vector.broadcast %4 : vector<1x16xf32> to vector<64x16xf32>
    %60 = arith.mulf %58, %59 : vector<64x16xf32>
    %61 = vector.broadcast %5 : vector<1x16xf32> to vector<64x16xf32>
    %62 = arith.addf %60, %61 : vector<64x16xf32>
    %63 = math.tanh %62 : vector<64x16xf32>
    %64 = arith.truncf %63 : vector<64x16xf32> to vector<64x16xbf16>
    %c0_15 = arith.constant 0 : index
    %c0_16 = arith.constant 0 : index
    %65 = vector.load %arg8[%c0_15, %c0_16] : memref<16x32xbf16, #tpu.memory_space<vmem>>, vector<16x32xbf16>
    %cst_17 = arith.constant dense<0.000000e+00> : vector<64x32xf32>
    %66 = tpu.matmul %64, %65, %cst_17 {dimension_numbers = #tpu.dot_dimension_numbers<[1], [0], [0], [1], [0, 0, 1, 1], [], []>} : vector<64x16xbf16>, vector<16x32xbf16>, vector<64x32xf32> -> vector<64x32xf32>
    %67 = vector.broadcast %10 : vector<1x32xf32> to vector<64x32xf32>
    %68 = arith.addf %66, %67 : vector<64x32xf32>
    %cst_18 = arith.constant dense<0.000000e+00> : vector<64xf32>
    %69 = vector.multi_reduction <add>, %68, %cst_18 [1] : vector<64x32xf32> to vector<64xf32>
    %70 = vector.shape_cast %69 : vector<64xf32> to vector<64x1xf32>
    %cst_19 = arith.constant 3.200000e+01 : f32
    %71 = vector.broadcast %cst_19 : f32 to vector<64x1xf32>
    %72 = arith.divf %70, %71 : vector<64x1xf32>
    %73 = vector.broadcast %72 : vector<64x1xf32> to vector<64x32xf32>
    %74 = arith.subf %68, %73 : vector<64x32xf32>
    %75 = arith.mulf %74, %74 : vector<64x32xf32>
    %cst_20 = arith.constant dense<0.000000e+00> : vector<64xf32>
    %76 = vector.multi_reduction <add>, %75, %cst_20 [1] : vector<64x32xf32> to vector<64xf32>
    %77 = vector.shape_cast %76 : vector<64xf32> to vector<64x1xf32>
    %cst_21 = arith.constant 3.200000e+01 : f32
    %78 = vector.broadcast %cst_21 : f32 to vector<64x1xf32>
    %79 = arith.divf %77, %78 : vector<64x1xf32>
    %80 = vector.broadcast %72 : vector<64x1xf32> to vector<64x32xf32>
    %81 = arith.subf %68, %80 : vector<64x32xf32>
    %cst_22 = arith.constant 9.99999974E-6 : f32
    %82 = vector.broadcast %cst_22 : f32 to vector<64x1xf32>
    %83 = arith.addf %79, %82 : vector<64x1xf32>
    %84 = math.rsqrt %83 : vector<64x1xf32>
    %85 = vector.broadcast %84 : vector<64x1xf32> to vector<64x32xf32>
    %86 = arith.mulf %81, %85 : vector<64x32xf32>
    %87 = vector.broadcast %11 : vector<1x32xf32> to vector<64x32xf32>
    %88 = arith.mulf %86, %87 : vector<64x32xf32>
    %89 = vector.broadcast %12 : vector<1x32xf32> to vector<64x32xf32>
    %90 = arith.addf %88, %89 : vector<64x32xf32>
    %91 = vector.extract_strided_slice %29 {offsets = [0, 1], sizes = [64, 2], strides = [1, 1]} : vector<64x4xf32> to vector<64x2xf32>
    %92 = vector.extract_strided_slice %91 {offsets = [0, 0], sizes = [64, 1], strides = [1, 1]} : vector<64x2xf32> to vector<64x1xf32>
    %93 = vector.extract_strided_slice %6 {offsets = [0, 0], sizes = [1, 16], strides = [1, 1]} : vector<2x16xf32> to vector<1x16xf32>
    %94 = vector.broadcast %92 : vector<64x1xf32> to vector<64x16xf32>
    %95 = vector.broadcast %93 : vector<1x16xf32> to vector<64x16xf32>
    %96 = arith.mulf %94, %95 : vector<64x16xf32>
    %97 = vector.extract_strided_slice %91 {offsets = [0, 1], sizes = [64, 1], strides = [1, 1]} : vector<64x2xf32> to vector<64x1xf32>
    %98 = vector.extract_strided_slice %6 {offsets = [1, 0], sizes = [1, 16], strides = [1, 1]} : vector<2x16xf32> to vector<1x16xf32>
    %99 = vector.broadcast %97 : vector<64x1xf32> to vector<64x16xf32>
    %100 = vector.broadcast %98 : vector<1x16xf32> to vector<64x16xf32>
    %101 = arith.mulf %99, %100 : vector<64x16xf32>
    %102 = arith.addf %96, %101 : vector<64x16xf32>
    %103 = vector.broadcast %7 : vector<1x16xf32> to vector<64x16xf32>
    %104 = arith.addf %102, %103 : vector<64x16xf32>
    %cst_23 = arith.constant dense<0.000000e+00> : vector<64xf32>
    %105 = vector.multi_reduction <add>, %104, %cst_23 [1] : vector<64x16xf32> to vector<64xf32>
    %106 = vector.shape_cast %105 : vector<64xf32> to vector<64x1xf32>
    %cst_24 = arith.constant 1.600000e+01 : f32
    %107 = vector.broadcast %cst_24 : f32 to vector<64x1xf32>
    %108 = arith.divf %106, %107 : vector<64x1xf32>
    %109 = vector.broadcast %108 : vector<64x1xf32> to vector<64x16xf32>
    %110 = arith.subf %104, %109 : vector<64x16xf32>
    %111 = arith.mulf %110, %110 : vector<64x16xf32>
    %cst_25 = arith.constant dense<0.000000e+00> : vector<64xf32>
    %112 = vector.multi_reduction <add>, %111, %cst_25 [1] : vector<64x16xf32> to vector<64xf32>
    %113 = vector.shape_cast %112 : vector<64xf32> to vector<64x1xf32>
    %cst_26 = arith.constant 1.600000e+01 : f32
    %114 = vector.broadcast %cst_26 : f32 to vector<64x1xf32>
    %115 = arith.divf %113, %114 : vector<64x1xf32>
    %116 = vector.broadcast %108 : vector<64x1xf32> to vector<64x16xf32>
    %117 = arith.subf %104, %116 : vector<64x16xf32>
    %cst_27 = arith.constant 9.99999974E-6 : f32
    %118 = vector.broadcast %cst_27 : f32 to vector<64x1xf32>
    %119 = arith.addf %115, %118 : vector<64x1xf32>
    %120 = math.rsqrt %119 : vector<64x1xf32>
    %121 = vector.broadcast %120 : vector<64x1xf32> to vector<64x16xf32>
    %122 = arith.mulf %117, %121 : vector<64x16xf32>
    %123 = vector.broadcast %8 : vector<1x16xf32> to vector<64x16xf32>
    %124 = arith.mulf %122, %123 : vector<64x16xf32>
    %125 = vector.broadcast %9 : vector<1x16xf32> to vector<64x16xf32>
    %126 = arith.addf %124, %125 : vector<64x16xf32>
    %127 = math.tanh %126 : vector<64x16xf32>
    %128 = arith.truncf %127 : vector<64x16xf32> to vector<64x16xbf16>
    %c0_28 = arith.constant 0 : index
    %c0_29 = arith.constant 0 : index
    %129 = vector.load %arg9[%c0_28, %c0_29] : memref<16x32xbf16, #tpu.memory_space<vmem>>, vector<16x32xbf16>
    %cst_30 = arith.constant dense<0.000000e+00> : vector<64x32xf32>
    %130 = tpu.matmul %128, %129, %cst_30 {dimension_numbers = #tpu.dot_dimension_numbers<[1], [0], [0], [1], [0, 0, 1, 1], [], []>} : vector<64x16xbf16>, vector<16x32xbf16>, vector<64x32xf32> -> vector<64x32xf32>
    %131 = vector.broadcast %13 : vector<1x32xf32> to vector<64x32xf32>
    %132 = arith.addf %130, %131 : vector<64x32xf32>
    %cst_31 = arith.constant dense<0.000000e+00> : vector<64xf32>
    %133 = vector.multi_reduction <add>, %132, %cst_31 [1] : vector<64x32xf32> to vector<64xf32>
    %134 = vector.shape_cast %133 : vector<64xf32> to vector<64x1xf32>
    %cst_32 = arith.constant 3.200000e+01 : f32
    %135 = vector.broadcast %cst_32 : f32 to vector<64x1xf32>
    %136 = arith.divf %134, %135 : vector<64x1xf32>
    %137 = vector.broadcast %136 : vector<64x1xf32> to vector<64x32xf32>
    %138 = arith.subf %132, %137 : vector<64x32xf32>
    %139 = arith.mulf %138, %138 : vector<64x32xf32>
    %cst_33 = arith.constant dense<0.000000e+00> : vector<64xf32>
    %140 = vector.multi_reduction <add>, %139, %cst_33 [1] : vector<64x32xf32> to vector<64xf32>
    %141 = vector.shape_cast %140 : vector<64xf32> to vector<64x1xf32>
    %cst_34 = arith.constant 3.200000e+01 : f32
    %142 = vector.broadcast %cst_34 : f32 to vector<64x1xf32>
    %143 = arith.divf %141, %142 : vector<64x1xf32>
    %144 = vector.broadcast %136 : vector<64x1xf32> to vector<64x32xf32>
    %145 = arith.subf %132, %144 : vector<64x32xf32>
    %cst_35 = arith.constant 9.99999974E-6 : f32
    %146 = vector.broadcast %cst_35 : f32 to vector<64x1xf32>
    %147 = arith.addf %143, %146 : vector<64x1xf32>
    %148 = math.rsqrt %147 : vector<64x1xf32>
    %149 = vector.broadcast %148 : vector<64x1xf32> to vector<64x32xf32>
    %150 = arith.mulf %145, %149 : vector<64x32xf32>
    %151 = vector.broadcast %14 : vector<1x32xf32> to vector<64x32xf32>
    %152 = arith.mulf %150, %151 : vector<64x32xf32>
    %153 = vector.broadcast %15 : vector<1x32xf32> to vector<64x32xf32>
    %154 = arith.addf %152, %153 : vector<64x32xf32>
    %155 = vector.extract_strided_slice %30 {offsets = [0, 0], sizes = [8, 2], strides = [1, 1]} : vector<8x4xf32> to vector<8x2xf32>
    %156 = vector.extract_strided_slice %155 {offsets = [0, 0], sizes = [8, 1], strides = [1, 1]} : vector<8x2xf32> to vector<8x1xf32>
    %157 = vector.extract_strided_slice %6 {offsets = [0, 0], sizes = [1, 16], strides = [1, 1]} : vector<2x16xf32> to vector<1x16xf32>
    %158 = vector.broadcast %156 : vector<8x1xf32> to vector<8x16xf32>
    %159 = vector.broadcast %157 : vector<1x16xf32> to vector<8x16xf32>
    %160 = arith.mulf %158, %159 : vector<8x16xf32>
    %161 = vector.extract_strided_slice %155 {offsets = [0, 1], sizes = [8, 1], strides = [1, 1]} : vector<8x2xf32> to vector<8x1xf32>
    %162 = vector.extract_strided_slice %6 {offsets = [1, 0], sizes = [1, 16], strides = [1, 1]} : vector<2x16xf32> to vector<1x16xf32>
    %163 = vector.broadcast %161 : vector<8x1xf32> to vector<8x16xf32>
    %164 = vector.broadcast %162 : vector<1x16xf32> to vector<8x16xf32>
    %165 = arith.mulf %163, %164 : vector<8x16xf32>
    %166 = arith.addf %160, %165 : vector<8x16xf32>
    %167 = vector.broadcast %7 : vector<1x16xf32> to vector<8x16xf32>
    %168 = arith.addf %166, %167 : vector<8x16xf32>
    %cst_36 = arith.constant dense<0.000000e+00> : vector<8xf32>
    %169 = vector.multi_reduction <add>, %168, %cst_36 [1] : vector<8x16xf32> to vector<8xf32>
    %170 = vector.shape_cast %169 : vector<8xf32> to vector<8x1xf32>
    %cst_37 = arith.constant 1.600000e+01 : f32
    %171 = vector.broadcast %cst_37 : f32 to vector<8x1xf32>
    %172 = arith.divf %170, %171 : vector<8x1xf32>
    %173 = vector.broadcast %172 : vector<8x1xf32> to vector<8x16xf32>
    %174 = arith.subf %168, %173 : vector<8x16xf32>
    %175 = arith.mulf %174, %174 : vector<8x16xf32>
    %cst_38 = arith.constant dense<0.000000e+00> : vector<8xf32>
    %176 = vector.multi_reduction <add>, %175, %cst_38 [1] : vector<8x16xf32> to vector<8xf32>
    %177 = vector.shape_cast %176 : vector<8xf32> to vector<8x1xf32>
    %cst_39 = arith.constant 1.600000e+01 : f32
    %178 = vector.broadcast %cst_39 : f32 to vector<8x1xf32>
    %179 = arith.divf %177, %178 : vector<8x1xf32>
    %180 = vector.broadcast %172 : vector<8x1xf32> to vector<8x16xf32>
    %181 = arith.subf %168, %180 : vector<8x16xf32>
    %cst_40 = arith.constant 9.99999974E-6 : f32
    %182 = vector.broadcast %cst_40 : f32 to vector<8x1xf32>
    %183 = arith.addf %179, %182 : vector<8x1xf32>
    %184 = math.rsqrt %183 : vector<8x1xf32>
    %185 = vector.broadcast %184 : vector<8x1xf32> to vector<8x16xf32>
    %186 = arith.mulf %181, %185 : vector<8x16xf32>
    %187 = vector.broadcast %8 : vector<1x16xf32> to vector<8x16xf32>
    %188 = arith.mulf %186, %187 : vector<8x16xf32>
    %189 = vector.broadcast %9 : vector<1x16xf32> to vector<8x16xf32>
    %190 = arith.addf %188, %189 : vector<8x16xf32>
    %191 = math.tanh %190 : vector<8x16xf32>
    %192 = arith.truncf %191 : vector<8x16xf32> to vector<8x16xbf16>
    %c0_41 = arith.constant 0 : index
    %c0_42 = arith.constant 0 : index
    %193 = vector.load %arg9[%c0_41, %c0_42] : memref<16x32xbf16, #tpu.memory_space<vmem>>, vector<16x32xbf16>
    %cst_43 = arith.constant dense<0.000000e+00> : vector<8x32xf32>
    %194 = tpu.matmul %192, %193, %cst_43 {dimension_numbers = #tpu.dot_dimension_numbers<[1], [0], [0], [1], [0, 0, 1, 1], [], []>} : vector<8x16xbf16>, vector<16x32xbf16>, vector<8x32xf32> -> vector<8x32xf32>
    %195 = vector.broadcast %13 : vector<1x32xf32> to vector<8x32xf32>
    %196 = arith.addf %194, %195 : vector<8x32xf32>
    %cst_44 = arith.constant dense<0.000000e+00> : vector<8xf32>
    %197 = vector.multi_reduction <add>, %196, %cst_44 [1] : vector<8x32xf32> to vector<8xf32>
    %198 = vector.shape_cast %197 : vector<8xf32> to vector<8x1xf32>
    %cst_45 = arith.constant 3.200000e+01 : f32
    %199 = vector.broadcast %cst_45 : f32 to vector<8x1xf32>
    %200 = arith.divf %198, %199 : vector<8x1xf32>
    %201 = vector.broadcast %200 : vector<8x1xf32> to vector<8x32xf32>
    %202 = arith.subf %196, %201 : vector<8x32xf32>
    %203 = arith.mulf %202, %202 : vector<8x32xf32>
    %cst_46 = arith.constant dense<0.000000e+00> : vector<8xf32>
    %204 = vector.multi_reduction <add>, %203, %cst_46 [1] : vector<8x32xf32> to vector<8xf32>
    %205 = vector.shape_cast %204 : vector<8xf32> to vector<8x1xf32>
    %cst_47 = arith.constant 3.200000e+01 : f32
    %206 = vector.broadcast %cst_47 : f32 to vector<8x1xf32>
    %207 = arith.divf %205, %206 : vector<8x1xf32>
    %208 = vector.broadcast %200 : vector<8x1xf32> to vector<8x32xf32>
    %209 = arith.subf %196, %208 : vector<8x32xf32>
    %cst_48 = arith.constant 9.99999974E-6 : f32
    %210 = vector.broadcast %cst_48 : f32 to vector<8x1xf32>
    %211 = arith.addf %207, %210 : vector<8x1xf32>
    %212 = math.rsqrt %211 : vector<8x1xf32>
    %213 = vector.broadcast %212 : vector<8x1xf32> to vector<8x32xf32>
    %214 = arith.mulf %209, %213 : vector<8x32xf32>
    %215 = vector.broadcast %14 : vector<1x32xf32> to vector<8x32xf32>
    %216 = arith.mulf %214, %215 : vector<8x32xf32>
    %217 = vector.broadcast %15 : vector<1x32xf32> to vector<8x32xf32>
    %218 = arith.addf %216, %217 : vector<8x32xf32>
    %219 = arith.addf %34, %90 : vector<64x32xf32>
    %220 = arith.addf %219, %154 : vector<64x32xf32>
    %221 = arith.addf %32, %218 : vector<8x32xf32>
    %cst_49 = arith.constant dense<0.000000e+00> : vector<8xf32>
    %222 = vector.multi_reduction <add>, %221, %cst_49 [1] : vector<8x32xf32> to vector<8xf32>
    %223 = vector.shape_cast %222 : vector<8xf32> to vector<8x1xf32>
    %cst_50 = arith.constant 3.200000e+01 : f32
    %224 = vector.broadcast %cst_50 : f32 to vector<8x1xf32>
    %225 = arith.divf %223, %224 : vector<8x1xf32>
    %226 = vector.broadcast %225 : vector<8x1xf32> to vector<8x32xf32>
    %227 = arith.subf %221, %226 : vector<8x32xf32>
    %228 = arith.mulf %227, %227 : vector<8x32xf32>
    %cst_51 = arith.constant dense<0.000000e+00> : vector<8xf32>
    %229 = vector.multi_reduction <add>, %228, %cst_51 [1] : vector<8x32xf32> to vector<8xf32>
    %230 = vector.shape_cast %229 : vector<8xf32> to vector<8x1xf32>
    %cst_52 = arith.constant 3.200000e+01 : f32
    %231 = vector.broadcast %cst_52 : f32 to vector<8x1xf32>
    %232 = arith.divf %230, %231 : vector<8x1xf32>
    %233 = vector.broadcast %225 : vector<8x1xf32> to vector<8x32xf32>
    %234 = arith.subf %221, %233 : vector<8x32xf32>
    %cst_53 = arith.constant 9.99999974E-6 : f32
    %235 = vector.broadcast %cst_53 : f32 to vector<8x1xf32>
    %236 = arith.addf %232, %235 : vector<8x1xf32>
    %237 = math.rsqrt %236 : vector<8x1xf32>
    %238 = vector.broadcast %237 : vector<8x1xf32> to vector<8x32xf32>
    %239 = arith.mulf %234, %238 : vector<8x32xf32>
    %240 = vector.broadcast %16 : vector<1x32xf32> to vector<8x32xf32>
    %241 = arith.mulf %239, %240 : vector<8x32xf32>
    %242 = vector.broadcast %17 : vector<1x32xf32> to vector<8x32xf32>
    %243 = arith.addf %241, %242 : vector<8x32xf32>
    %cst_54 = arith.constant dense<0.000000e+00> : vector<64xf32>
    %244 = vector.multi_reduction <add>, %220, %cst_54 [1] : vector<64x32xf32> to vector<64xf32>
    %245 = vector.shape_cast %244 : vector<64xf32> to vector<64x1xf32>
    %cst_55 = arith.constant 3.200000e+01 : f32
    %246 = vector.broadcast %cst_55 : f32 to vector<64x1xf32>
    %247 = arith.divf %245, %246 : vector<64x1xf32>
    %248 = vector.broadcast %247 : vector<64x1xf32> to vector<64x32xf32>
    %249 = arith.subf %220, %248 : vector<64x32xf32>
    %250 = arith.mulf %249, %249 : vector<64x32xf32>
    %cst_56 = arith.constant dense<0.000000e+00> : vector<64xf32>
    %251 = vector.multi_reduction <add>, %250, %cst_56 [1] : vector<64x32xf32> to vector<64xf32>
    %252 = vector.shape_cast %251 : vector<64xf32> to vector<64x1xf32>
    %cst_57 = arith.constant 3.200000e+01 : f32
    %253 = vector.broadcast %cst_57 : f32 to vector<64x1xf32>
    %254 = arith.divf %252, %253 : vector<64x1xf32>
    %255 = vector.broadcast %247 : vector<64x1xf32> to vector<64x32xf32>
    %256 = arith.subf %220, %255 : vector<64x32xf32>
    %cst_58 = arith.constant 9.99999974E-6 : f32
    %257 = vector.broadcast %cst_58 : f32 to vector<64x1xf32>
    %258 = arith.addf %254, %257 : vector<64x1xf32>
    %259 = math.rsqrt %258 : vector<64x1xf32>
    %260 = vector.broadcast %259 : vector<64x1xf32> to vector<64x32xf32>
    %261 = arith.mulf %256, %260 : vector<64x32xf32>
    %262 = vector.broadcast %18 : vector<1x32xf32> to vector<64x32xf32>
    %263 = arith.mulf %261, %262 : vector<64x32xf32>
    %264 = vector.broadcast %19 : vector<1x32xf32> to vector<64x32xf32>
    %265 = arith.addf %263, %264 : vector<64x32xf32>
    %266 = arith.truncf %243 : vector<8x32xf32> to vector<8x32xbf16>
    %c0_59 = arith.constant 0 : index
    %c0_60 = arith.constant 0 : index
    %267 = vector.load %arg10[%c0_59, %c0_60] : memref<32x32xbf16, #tpu.memory_space<vmem>>, vector<32x32xbf16>
    %cst_61 = arith.constant dense<0.000000e+00> : vector<8x32xf32>
    %268 = tpu.matmul %266, %267, %cst_61 {dimension_numbers = #tpu.dot_dimension_numbers<[1], [0], [0], [1], [0, 0, 1, 1], [], []>} : vector<8x32xbf16>, vector<32x32xbf16>, vector<8x32xf32> -> vector<8x32xf32>
    %269 = vector.broadcast %22 : vector<1x32xf32> to vector<8x32xf32>
    %270 = arith.addf %268, %269 : vector<8x32xf32>
    %271 = arith.truncf %265 : vector<64x32xf32> to vector<64x32xbf16>
    %c0_62 = arith.constant 0 : index
    %c0_63 = arith.constant 0 : index
    %272 = vector.load %arg11[%c0_62, %c0_63] : memref<32x64xbf16, #tpu.memory_space<vmem>>, vector<32x64xbf16>
    %cst_64 = arith.constant dense<0.000000e+00> : vector<64x64xf32>
    %273 = tpu.matmul %271, %272, %cst_64 {dimension_numbers = #tpu.dot_dimension_numbers<[1], [0], [0], [1], [0, 0, 1, 1], [], []>} : vector<64x32xbf16>, vector<32x64xbf16>, vector<64x64xf32> -> vector<64x64xf32>
    %274 = vector.extract_strided_slice %273 {offsets = [0, 0], sizes = [64, 32], strides = [1, 1]} : vector<64x64xf32> to vector<64x32xf32>
    %275 = vector.broadcast %23 : vector<1x32xf32> to vector<64x32xf32>
    %276 = arith.addf %274, %275 : vector<64x32xf32>
    %277 = vector.extract_strided_slice %273 {offsets = [0, 32], sizes = [64, 32], strides = [1, 1]} : vector<64x64xf32> to vector<64x32xf32>
    %278 = vector.broadcast %24 : vector<1x32xf32> to vector<64x32xf32>
    %279 = arith.addf %277, %278 : vector<64x32xf32>
    %280 = vector.shape_cast %276 : vector<64x32xf32> to vector<8x8x32xf32>
    %281 = vector.shape_cast %270 : vector<8x32xf32> to vector<8x1x32xf32>
    %282 = vector.broadcast %281 : vector<8x1x32xf32> to vector<8x8x32xf32>
    %283 = arith.mulf %280, %282 : vector<8x8x32xf32>
    %284 = vector.shape_cast %283 : vector<8x8x32xf32> to vector<64x32xf32>
    %285 = arith.truncf %284 : vector<64x32xf32> to vector<64x32xbf16>
    %c0_65 = arith.constant 0 : index
    %c0_66 = arith.constant 0 : index
    %286 = vector.load %arg17[%c0_65, %c0_66] : memref<32x4xbf16, #tpu.memory_space<vmem>>, vector<32x4xbf16>
    %cst_67 = arith.constant dense<0.000000e+00> : vector<64x4xf32>
    %287 = tpu.matmul %285, %286, %cst_67 {dimension_numbers = #tpu.dot_dimension_numbers<[1], [0], [0], [1], [0, 0, 1, 1], [], []>} : vector<64x32xbf16>, vector<32x4xbf16>, vector<64x4xf32> -> vector<64x4xf32>
    %288 = vector.shape_cast %287 : vector<64x4xf32> to vector<8x8x4xf32>
    %cst_68 = arith.constant -1.000000e+01 : f32
    %cst_69 = arith.constant 1.000000e+01 : f32
    %289 = vector.broadcast %cst_68 : f32 to vector<8x8x4xf32>
    %290 = arith.maximumf %289, %288 : vector<8x8x4xf32>
    %291 = vector.broadcast %cst_69 : f32 to vector<8x8x4xf32>
    %292 = arith.minimumf %291, %290 : vector<8x8x4xf32>
    %cst_70 = arith.constant 0.353553265 : f32
    %293 = vector.broadcast %cst_70 : f32 to vector<8x8x4xf32>
    %294 = arith.mulf %292, %293 : vector<8x8x4xf32>
    %cst_71 = arith.constant dense<0xFF800000> : vector<8x4xf32>
    %295 = vector.multi_reduction <maximumf>, %294, %cst_71 [1] : vector<8x8x4xf32> to vector<8x4xf32>
    %296 = vector.shape_cast %295 : vector<8x4xf32> to vector<8x1x4xf32>
    %297 = vector.broadcast %296 : vector<8x1x4xf32> to vector<8x8x4xf32>
    %298 = arith.subf %294, %297 : vector<8x8x4xf32>
    %299 = math.exp %298 : vector<8x8x4xf32>
    %cst_72 = arith.constant dense<0.000000e+00> : vector<8x4xf32>
    %300 = vector.multi_reduction <add>, %299, %cst_72 [1] : vector<8x8x4xf32> to vector<8x4xf32>
    %301 = vector.shape_cast %300 : vector<8x4xf32> to vector<8x1x4xf32>
    %cst_73 = arith.constant 9.99999997E-7 : f32
    %302 = vector.broadcast %cst_73 : f32 to vector<8x1x4xf32>
    %303 = arith.addf %301, %302 : vector<8x1x4xf32>
    %304 = tpu.reciprocal %303 {approx = true} : vector<8x1x4xf32> -> vector<8x1x4xf32>
    %305 = vector.broadcast %304 : vector<8x1x4xf32> to vector<8x8x4xf32>
    %306 = arith.mulf %299, %305 : vector<8x8x4xf32>
    %cst_74 = arith.constant 0.000000e+00 : f32
    %307 = arith.cmpf one, %306, %306 : vector<8x8x4xf32>
    %308 = vector.broadcast %cst_74 : f32 to vector<8x8x4xf32>
    %309 = arith.select %307, %308, %306 : vector<8x8x4xi1>, vector<8x8x4xf32>
    %cst_75 = arith.constant 0x7F800000 : f32
    %310 = vector.broadcast %cst_75 : f32 to vector<8x8x4xf32>
    %311 = arith.cmpf oeq, %309, %310 : vector<8x8x4xf32>
    %cst_76 = arith.constant 3.40282347E+38 : f32
    %312 = vector.broadcast %cst_76 : f32 to vector<8x8x4xf32>
    %313 = arith.select %311, %312, %309 : vector<8x8x4xi1>, vector<8x8x4xf32>
    %cst_77 = arith.constant 0xFF800000 : f32
    %314 = vector.broadcast %cst_77 : f32 to vector<8x8x4xf32>
    %315 = arith.cmpf oeq, %313, %314 : vector<8x8x4xf32>
    %cst_78 = arith.constant -3.40282347E+38 : f32
    %316 = vector.broadcast %cst_78 : f32 to vector<8x8x4xf32>
    %317 = arith.select %315, %316, %313 : vector<8x8x4xi1>, vector<8x8x4xf32>
    %cst_79 = arith.constant 0.000000e+00 : f32
    %cst_80 = arith.constant 1.000000e+00 : f32
    %318 = vector.broadcast %cst_79 : f32 to vector<8x8x4xf32>
    %319 = arith.maximumf %318, %317 : vector<8x8x4xf32>
    %320 = vector.broadcast %cst_80 : f32 to vector<8x8x4xf32>
    %321 = arith.minimumf %320, %319 : vector<8x8x4xf32>
    %cst_81 = arith.constant dense<0.000000e+00> : vector<8x4xf32>
    %322 = vector.multi_reduction <add>, %321, %cst_81 [1] : vector<8x8x4xf32> to vector<8x4xf32>
    %323 = vector.shape_cast %322 : vector<8x4xf32> to vector<8x1x4xf32>
    %cst_82 = arith.constant 9.99999997E-7 : f32
    %324 = vector.broadcast %cst_82 : f32 to vector<8x1x4xf32>
    %325 = arith.addf %323, %324 : vector<8x1x4xf32>
    %326 = tpu.reciprocal %325 {approx = true} : vector<8x1x4xf32> -> vector<8x1x4xf32>
    %327 = vector.broadcast %326 : vector<8x1x4xf32> to vector<8x8x4xf32>
    %328 = arith.mulf %321, %327 : vector<8x8x4xf32>
    %329 = vector.shape_cast %328 : vector<8x8x4xf32> to vector<64x4xf32>
    %330 = arith.truncf %329 : vector<64x4xf32> to vector<64x4xbf16>
    %c0_83 = arith.constant 0 : index
    %c0_84 = arith.constant 0 : index
    %331 = vector.load %arg18[%c0_83, %c0_84] : memref<4x32xbf16, #tpu.memory_space<vmem>>, vector<4x32xbf16>
    %cst_85 = arith.constant dense<0.000000e+00> : vector<64x32xf32>
    %332 = tpu.matmul %330, %331, %cst_85 {dimension_numbers = #tpu.dot_dimension_numbers<[1], [0], [0], [1], [0, 0, 1, 1], [], []>} : vector<64x4xbf16>, vector<4x32xbf16>, vector<64x32xf32> -> vector<64x32xf32>
    %c0_86 = arith.constant 0 : index
    %c0_87 = arith.constant 0 : index
    %333 = vector.load %arg19[%c0_86, %c0_87] : memref<8x64xbf16, #tpu.memory_space<vmem>>, vector<8x64xbf16>
    %334 = arith.mulf %332, %279 : vector<64x32xf32>
    %335 = arith.truncf %334 : vector<64x32xf32> to vector<64x32xbf16>
    %cst_88 = arith.constant dense<0.000000e+00> : vector<8x32xf32>
    %336 = tpu.matmul %333, %335, %cst_88 {dimension_numbers = #tpu.dot_dimension_numbers<[1], [0], [0], [1], [0, 0, 1, 1], [], []>} : vector<8x64xbf16>, vector<64x32xbf16>, vector<8x32xf32> -> vector<8x32xf32>
    %c0_89 = arith.constant 0 : index
    %c0_90 = arith.constant 0 : index
    %337 = vector.load %arg19[%c0_89, %c0_90] : memref<8x64xbf16, #tpu.memory_space<vmem>>, vector<8x64xbf16>
    %338 = arith.truncf %265 : vector<64x32xf32> to vector<64x32xbf16>
    %cst_91 = arith.constant dense<0.000000e+00> : vector<8x32xf32>
    %339 = tpu.matmul %337, %338, %cst_91 {dimension_numbers = #tpu.dot_dimension_numbers<[1], [0], [0], [1], [0, 0, 1, 1], [], []>} : vector<8x64xbf16>, vector<64x32xbf16>, vector<8x32xf32> -> vector<8x32xf32>
    %cst_92 = arith.constant 1.250000e-01 : f32
    %340 = vector.broadcast %cst_92 : f32 to vector<8x32xf32>
    %341 = arith.mulf %339, %340 : vector<8x32xf32>
    %342 = arith.truncf %341 : vector<8x32xf32> to vector<8x32xbf16>
    %c0_93 = arith.constant 0 : index
    %c0_94 = arith.constant 0 : index
    %343 = vector.load %arg13[%c0_93, %c0_94] : memref<32x32xbf16, #tpu.memory_space<vmem>>, vector<32x32xbf16>
    %cst_95 = arith.constant dense<0.000000e+00> : vector<8x32xf32>
    %344 = tpu.matmul %342, %343, %cst_95 {dimension_numbers = #tpu.dot_dimension_numbers<[1], [0], [0], [1], [0, 0, 1, 1], [], []>} : vector<8x32xbf16>, vector<32x32xbf16>, vector<8x32xf32> -> vector<8x32xf32>
    %345 = vector.broadcast %26 : vector<1x32xf32> to vector<8x32xf32>
    %346 = arith.addf %344, %345 : vector<8x32xf32>
    %cst_96 = arith.constant 5.000000e-01 : f32
    %347 = vector.broadcast %cst_96 : f32 to vector<8x32xf32>
    %348 = arith.mulf %347, %346 : vector<8x32xf32>
    %cst_97 = arith.constant 1.41421354 : f32
    %349 = vector.broadcast %cst_97 : f32 to vector<8x32xf32>
    %350 = arith.divf %346, %349 : vector<8x32xf32>
    %351 = math.erf %350 : vector<8x32xf32>
    %cst_98 = arith.constant 1.000000e+00 : f32
    %352 = vector.broadcast %cst_98 : f32 to vector<8x32xf32>
    %353 = arith.addf %352, %351 : vector<8x32xf32>
    %354 = arith.mulf %348, %353 : vector<8x32xf32>
    %355 = arith.truncf %354 : vector<8x32xf32> to vector<8x32xbf16>
    %c0_99 = arith.constant 0 : index
    %c0_100 = arith.constant 0 : index
    %356 = vector.load %arg14[%c0_99, %c0_100] : memref<32x32xbf16, #tpu.memory_space<vmem>>, vector<32x32xbf16>
    %cst_101 = arith.constant dense<0.000000e+00> : vector<8x32xf32>
    %357 = tpu.matmul %355, %356, %cst_101 {dimension_numbers = #tpu.dot_dimension_numbers<[1], [0], [0], [1], [0, 0, 1, 1], [], []>} : vector<8x32xbf16>, vector<32x32xbf16>, vector<8x32xf32> -> vector<8x32xf32>
    %358 = vector.broadcast %27 : vector<1x32xf32> to vector<8x32xf32>
    %359 = arith.addf %357, %358 : vector<8x32xf32>
    %360 = arith.truncf %336 : vector<8x32xf32> to vector<8x32xbf16>
    %c0_102 = arith.constant 0 : index
    %c0_103 = arith.constant 0 : index
    %361 = vector.load %arg12[%c0_102, %c0_103] : memref<32x32xbf16, #tpu.memory_space<vmem>>, vector<32x32xbf16>
    %cst_104 = arith.constant dense<0.000000e+00> : vector<8x32xf32>
    %362 = tpu.matmul %360, %361, %cst_104 {dimension_numbers = #tpu.dot_dimension_numbers<[1], [0], [0], [1], [0, 0, 1, 1], [], []>} : vector<8x32xbf16>, vector<32x32xbf16>, vector<8x32xf32> -> vector<8x32xf32>
    %363 = vector.broadcast %25 : vector<1x32xf32> to vector<8x32xf32>
    %364 = arith.addf %362, %363 : vector<8x32xf32>
    %c0_105 = arith.constant 0 : index
    %365 = memref.load %arg20[%c0_105] : memref<1xf32, #tpu.memory_space<smem>>
    %366 = vector.broadcast %365 : f32 to vector<1x1xf32>
    %367 = vector.broadcast %366 : vector<1x1xf32> to vector<8x32xf32>
    %368 = arith.mulf %367, %221 : vector<8x32xf32>
    %369 = arith.addf %364, %368 : vector<8x32xf32>
    %cst_106 = arith.constant 1.000000e+00 : f32
    %370 = vector.broadcast %cst_106 : f32 to vector<1x1xf32>
    %371 = arith.subf %370, %366 : vector<1x1xf32>
    %372 = vector.broadcast %371 : vector<1x1xf32> to vector<8x32xf32>
    %373 = arith.mulf %372, %359 : vector<8x32xf32>
    %374 = arith.addf %369, %373 : vector<8x32xf32>
    %cst_107 = arith.constant dense<0.000000e+00> : vector<8xf32>
    %375 = vector.multi_reduction <add>, %374, %cst_107 [1] : vector<8x32xf32> to vector<8xf32>
    %376 = vector.shape_cast %375 : vector<8xf32> to vector<8x1xf32>
    %cst_108 = arith.constant 3.200000e+01 : f32
    %377 = vector.broadcast %cst_108 : f32 to vector<8x1xf32>
    %378 = arith.divf %376, %377 : vector<8x1xf32>
    %379 = vector.broadcast %378 : vector<8x1xf32> to vector<8x32xf32>
    %380 = arith.subf %374, %379 : vector<8x32xf32>
    %381 = arith.mulf %380, %380 : vector<8x32xf32>
    %cst_109 = arith.constant dense<0.000000e+00> : vector<8xf32>
    %382 = vector.multi_reduction <add>, %381, %cst_109 [1] : vector<8x32xf32> to vector<8xf32>
    %383 = vector.shape_cast %382 : vector<8xf32> to vector<8x1xf32>
    %cst_110 = arith.constant 3.200000e+01 : f32
    %384 = vector.broadcast %cst_110 : f32 to vector<8x1xf32>
    %385 = arith.divf %383, %384 : vector<8x1xf32>
    %386 = vector.broadcast %378 : vector<8x1xf32> to vector<8x32xf32>
    %387 = arith.subf %374, %386 : vector<8x32xf32>
    %cst_111 = arith.constant 9.99999974E-6 : f32
    %388 = vector.broadcast %cst_111 : f32 to vector<8x1xf32>
    %389 = arith.addf %385, %388 : vector<8x1xf32>
    %390 = math.rsqrt %389 : vector<8x1xf32>
    %391 = vector.broadcast %390 : vector<8x1xf32> to vector<8x32xf32>
    %392 = arith.mulf %387, %391 : vector<8x32xf32>
    %393 = vector.broadcast %20 : vector<1x32xf32> to vector<8x32xf32>
    %394 = arith.mulf %392, %393 : vector<8x32xf32>
    %395 = vector.broadcast %21 : vector<1x32xf32> to vector<8x32xf32>
    %396 = arith.addf %394, %395 : vector<8x32xf32>
    %397 = arith.truncf %396 : vector<8x32xf32> to vector<8x32xbf16>
    %c0_112 = arith.constant 0 : index
    %c0_113 = arith.constant 0 : index
    %398 = vector.load %arg15[%c0_112, %c0_113] : memref<32x128xbf16, #tpu.memory_space<vmem>>, vector<32x128xbf16>
    %cst_114 = arith.constant dense<0.000000e+00> : vector<8x128xf32>
    %399 = tpu.matmul %397, %398, %cst_114 {dimension_numbers = #tpu.dot_dimension_numbers<[1], [0], [0], [1], [0, 0, 1, 1], [], []>} : vector<8x32xbf16>, vector<32x128xbf16>, vector<8x128xf32> -> vector<8x128xf32>
    %c0_115 = arith.constant 0 : index
    %c0_116 = arith.constant 0 : index
    %400 = vector.load %arg7[%c0_115, %c0_116] : memref<1x128xf32, #tpu.memory_space<vmem>>, vector<1x128xf32>
    %401 = vector.broadcast %400 : vector<1x128xf32> to vector<8x128xf32>
    %402 = arith.addf %399, %401 : vector<8x128xf32>
    %cst_117 = arith.constant 5.000000e-01 : f32
    %403 = vector.broadcast %cst_117 : f32 to vector<8x128xf32>
    %404 = arith.mulf %403, %402 : vector<8x128xf32>
    %cst_118 = arith.constant 1.41421354 : f32
    %405 = vector.broadcast %cst_118 : f32 to vector<8x128xf32>
    %406 = arith.divf %402, %405 : vector<8x128xf32>
    %407 = math.erf %406 : vector<8x128xf32>
    %cst_119 = arith.constant 1.000000e+00 : f32
    %408 = vector.broadcast %cst_119 : f32 to vector<8x128xf32>
    %409 = arith.addf %408, %407 : vector<8x128xf32>
    %410 = arith.mulf %404, %409 : vector<8x128xf32>
    %411 = arith.truncf %410 : vector<8x128xf32> to vector<8x128xbf16>
    %c0_120 = arith.constant 0 : index
    %c0_121 = arith.constant 0 : index
    %412 = vector.load %arg16[%c0_120, %c0_121] : memref<128x32xbf16, #tpu.memory_space<vmem>>, vector<128x32xbf16>
    %cst_122 = arith.constant dense<0.000000e+00> : vector<8x32xf32>
    %413 = tpu.matmul %411, %412, %cst_122 {dimension_numbers = #tpu.dot_dimension_numbers<[1], [0], [0], [1], [0, 0, 1, 1], [], []>} : vector<8x128xbf16>, vector<128x32xbf16>, vector<8x32xf32> -> vector<8x32xf32>
    %414 = vector.broadcast %28 : vector<1x32xf32> to vector<8x32xf32>
    %415 = arith.addf %413, %414 : vector<8x32xf32>
    %416 = arith.addf %415, %374 : vector<8x32xf32>
    %c0_123 = arith.constant 0 : index
    %c0_124 = arith.constant 0 : index
    %417 = vector.load %arg21[%c0_123, %c0_124] : memref<8x32xf32, #tpu.memory_space<vmem>>, vector<8x32xf32>
    tpu.vector_store %arg21[%c0_123, %c0_124], %416 {strides = array<i32>} : memref<8x32xf32, #tpu.memory_space<vmem>>, vector<8x32xf32>,
    return
  }
  func.func @transform_0(%arg0: i32) -> (i32, i32) {
    %c0_i32 = arith.constant 0 : i32
    %c0_i32_0 = arith.constant 0 : i32
    return %arg0, %c0_i32 : i32, i32
  }
  func.func @transform_1(%arg0: i32) -> (i32, i32) {
    %c0_i32 = arith.constant 0 : i32
    %c0_i32_0 = arith.constant 0 : i32
    return %arg0, %c0_i32 : i32, i32
  }
  func.func @transform_2(%arg0: i32) -> (i32, i32) {
    %c0_i32 = arith.constant 0 : i32
    %c0_i32_0 = arith.constant 0 : i32
    return %arg0, %c0_i32 : i32, i32
  }
  func.func @transform_3(%arg0: i32) -> (i32, i32) {
    %c0_i32 = arith.constant 0 : i32
    %c0_i32_0 = arith.constant 0 : i32
    return %arg0, %c0_i32 : i32, i32
  }
  func.func @transform_4(%arg0: i32) -> (i32, i32) {
    %c0_i32 = arith.constant 0 : i32
    %c0_i32_0 = arith.constant 0 : i32
    %c0_i32_1 = arith.constant 0 : i32
    return %c0_i32, %c0_i32_0 : i32, i32
  }
  func.func @transform_5(%arg0: i32) -> (i32, i32) {
    %c0_i32 = arith.constant 0 : i32
    %c0_i32_0 = arith.constant 0 : i32
    %c0_i32_1 = arith.constant 0 : i32
    return %c0_i32, %c0_i32_0 : i32, i32
  }
  func.func @transform_6(%arg0: i32) -> (i32, i32) {
    %c0_i32 = arith.constant 0 : i32
    %c0_i32_0 = arith.constant 0 : i32
    %c0_i32_1 = arith.constant 0 : i32
    return %c0_i32, %c0_i32_0 : i32, i32
  }
  func.func @transform_7(%arg0: i32) -> (i32, i32) {
    %c0_i32 = arith.constant 0 : i32
    %c0_i32_0 = arith.constant 0 : i32
    %c0_i32_1 = arith.constant 0 : i32
    return %c0_i32, %c0_i32_0 : i32, i32
  }
  func.func @transform_8(%arg0: i32) -> (i32, i32) {
    %c0_i32 = arith.constant 0 : i32
    %c0_i32_0 = arith.constant 0 : i32
    %c0_i32_1 = arith.constant 0 : i32
    return %c0_i32, %c0_i32_0 : i32, i32
  }
  func.func @transform_9(%arg0: i32) -> (i32, i32) {
    %c0_i32 = arith.constant 0 : i32
    %c0_i32_0 = arith.constant 0 : i32
    %c0_i32_1 = arith.constant 0 : i32
    return %c0_i32, %c0_i32_0 : i32, i32
  }
  func.func @transform_10(%arg0: i32) -> (i32, i32) {
    %c0_i32 = arith.constant 0 : i32
    %c0_i32_0 = arith.constant 0 : i32
    %c0_i32_1 = arith.constant 0 : i32
    return %c0_i32, %c0_i32_0 : i32, i32
  }
  func.func @transform_11(%arg0: i32) -> (i32, i32) {
    %c0_i32 = arith.constant 0 : i32
    %c0_i32_0 = arith.constant 0 : i32
    %c0_i32_1 = arith.constant 0 : i32
    return %c0_i32, %c0_i32_0 : i32, i32
  }
  func.func @transform_12(%arg0: i32) -> (i32, i32) {
    %c0_i32 = arith.constant 0 : i32
    %c0_i32_0 = arith.constant 0 : i32
    %c0_i32_1 = arith.constant 0 : i32
    return %c0_i32, %c0_i32_0 : i32, i32
  }
  func.func @transform_13(%arg0: i32) -> (i32, i32) {
    %c0_i32 = arith.constant 0 : i32
    %c0_i32_0 = arith.constant 0 : i32
    %c0_i32_1 = arith.constant 0 : i32
    return %c0_i32, %c0_i32_0 : i32, i32
  }
  func.func @transform_14(%arg0: i32) -> (i32, i32) {
    %c0_i32 = arith.constant 0 : i32
    %c0_i32_0 = arith.constant 0 : i32
    %c0_i32_1 = arith.constant 0 : i32
    return %c0_i32, %c0_i32_0 : i32, i32
  }
  func.func @transform_15(%arg0: i32) -> (i32, i32) {
    %c0_i32 = arith.constant 0 : i32
    %c0_i32_0 = arith.constant 0 : i32
    %c0_i32_1 = arith.constant 0 : i32
    return %c0_i32, %c0_i32_0 : i32, i32
  }
  func.func @transform_16(%arg0: i32) -> (i32, i32) {
    %c0_i32 = arith.constant 0 : i32
    %c0_i32_0 = arith.constant 0 : i32
    %c0_i32_1 = arith.constant 0 : i32
    return %c0_i32, %c0_i32_0 : i32, i32
  }
  func.func @transform_17(%arg0: i32) -> (i32, i32) {
    %c0_i32 = arith.constant 0 : i32
    %c0_i32_0 = arith.constant 0 : i32
    %c0_i32_1 = arith.constant 0 : i32
    return %c0_i32, %c0_i32_0 : i32, i32
  }
  func.func @transform_18(%arg0: i32) -> (i32, i32) {
    %c0_i32 = arith.constant 0 : i32
    %c0_i32_0 = arith.constant 0 : i32
    %c0_i32_1 = arith.constant 0 : i32
    return %c0_i32, %c0_i32_0 : i32, i32
  }
  func.func @transform_19(%arg0: i32) -> i32 {
    %c0_i32 = arith.constant 0 : i32
    %c0_i32_0 = arith.constant 0 : i32
    return %c0_i32 : i32
  }
  func.func @transform_20(%arg0: i32) -> (i32, i32) {
    %c0_i32 = arith.constant 0 : i32
    %c0_i32_0 = arith.constant 0 : i32
    return %arg0, %c0_i32 : i32, i32
  }
}

module attributes {stable_mosaic.version = 11 : i64} {
  func.func @cross_attention_kernel(%arg0: i32, %arg1: memref<64x4xf32, #tpu.memory_space<vmem>>, %arg2: memref<8x4xf32, #tpu.memory_space<vmem>>, %arg3: memref<8x32xbf16, #tpu.memory_space<vmem>>, %arg4: memref<64x32xbf16, #tpu.memory_space<vmem>>, %arg5: memref<9x16xf32, #tpu.memory_space<vmem>>, %arg6: memref<19x32xf32, #tpu.memory_space<vmem>>, %arg7: memref<1x128xf32, #tpu.memory_space<vmem>>, %arg8: memref<16x32xbf16, #tpu.memory_space<vmem>>, %arg9: memref<16x32xbf16, #tpu.memory_space<vmem>>, %arg10: memref<32x32xbf16, #tpu.memory_space<vmem>>, %arg11: memref<32x64xbf16, #tpu.memory_space<vmem>>, %arg12: memref<32x32xbf16, #tpu.memory_space<vmem>>, %arg13: memref<32x32xbf16, #tpu.memory_space<vmem>>, %arg14: memref<32x32xbf16, #tpu.memory_space<vmem>>, %arg15: memref<32x128xbf16, #tpu.memory_space<vmem>>, %arg16: memref<128x32xbf16, #tpu.memory_space<vmem>>, %arg17: memref<32x4xbf16, #tpu.memory_space<vmem>>, %arg18: memref<4x32xbf16, #tpu.memory_space<vmem>>, %arg19: memref<8x64xbf16, #tpu.memory_space<vmem>>, %arg20: memref<1xf32, #tpu.memory_space<smem>>, %arg21: memref<8x32xf32, #tpu.memory_space<vmem>>) attributes {dimension_semantics = [#tpu.dimension_semantics<parallel>], iteration_bounds = array<i64: 2>, scalar_prefetch = 0 : i64, scratch_operands = 0 : i64, tpu.core_type = #tpu.core_type<tc>, window_params = [{transform_indices = @transform_0, window_bounds = array<i64: 64, 4>}, {transform_indices = @transform_1, window_bounds = array<i64: 8, 4>}, {transform_indices = @transform_2, window_bounds = array<i64: 8, 32>}, {transform_indices = @transform_3, window_bounds = array<i64: 64, 32>}, {pipeline_mode = #tpu.pipeline_mode<synchronous>, transform_indices = @transform_4, window_bounds = array<i64: 9, 16>}, {pipeline_mode = #tpu.pipeline_mode<synchronous>, transform_indices = @transform_5, window_bounds = array<i64: 19, 32>}, {pipeline_mode = #tpu.pipeline_mode<synchronous>, transform_indices = @transform_6, window_bounds = array<i64: 1, 128>}, {pipeline_mode = #tpu.pipeline_mode<synchronous>, transform_indices = @transform_7, window_bounds = array<i64: 16, 32>}, {pipeline_mode = #tpu.pipeline_mode<synchronous>, transform_indices = @transform_8, window_bounds = array<i64: 16, 32>}, {pipeline_mode = #tpu.pipeline_mode<synchronous>, transform_indices = @transform_9, window_bounds = array<i64: 32, 32>}, {pipeline_mode = #tpu.pipeline_mode<synchronous>, transform_indices = @transform_10, window_bounds = array<i64: 32, 64>}, {pipeline_mode = #tpu.pipeline_mode<synchronous>, transform_indices = @transform_11, window_bounds = array<i64: 32, 32>}, {pipeline_mode = #tpu.pipeline_mode<synchronous>, transform_indices = @transform_12, window_bounds = array<i64: 32, 32>}, {pipeline_mode = #tpu.pipeline_mode<synchronous>, transform_indices = @transform_13, window_bounds = array<i64: 32, 32>}, {pipeline_mode = #tpu.pipeline_mode<synchronous>, transform_indices = @transform_14, window_bounds = array<i64: 32, 128>}, {pipeline_mode = #tpu.pipeline_mode<synchronous>, transform_indices = @transform_15, window_bounds = array<i64: 128, 32>}, {pipeline_mode = #tpu.pipeline_mode<synchronous>, transform_indices = @transform_16, window_bounds = array<i64: 32, 4>}, {pipeline_mode = #tpu.pipeline_mode<synchronous>, transform_indices = @transform_17, window_bounds = array<i64: 4, 32>}, {pipeline_mode = #tpu.pipeline_mode<synchronous>, transform_indices = @transform_18, window_bounds = array<i64: 8, 64>}, {transform_indices = @transform_19, window_bounds = array<i64: 1>}, {transform_indices = @transform_20, window_bounds = array<i64: 8, 32>}]} {
    %c0 = arith.constant 0 : index
    %c0_0 = arith.constant 0 : index
    %0 = vector.load %arg5[%c0, %c0_0] : memref<9x16xf32, #tpu.memory_space<vmem>>, vector<9x16xf32>
    %c0_1 = arith.constant 0 : index
    %c0_2 = arith.constant 0 : index
    %1 = vector.load %arg6[%c0_1, %c0_2] : memref<19x32xf32, #tpu.memory_space<vmem>>, vector<19x32xf32>
    %2 = vector.extract_strided_slice %0 {offsets = [0, 0], sizes = [1, 16], strides = [1, 1]} : vector<9x16xf32> to vector<1x16xf32>
    %3 = vector.extract_strided_slice %0 {offsets = [1, 0], sizes = [1, 16], strides = [1, 1]} : vector<9x16xf32> to vector<1x16xf32>
    %4 = vector.extract_strided_slice %0 {offsets = [2, 0], sizes = [1, 16], strides = [1, 1]} : vector<9x16xf32> to vector<1x16xf32>
    %5 = vector.extract_strided_slice %0 {offsets = [3, 0], sizes = [1, 16], strides = [1, 1]} : vector<9x16xf32> to vector<1x16xf32>
    %6 = vector.extract_strided_slice %0 {offsets = [4, 0], sizes = [2, 16], strides = [1, 1]} : vector<9x16xf32> to vector<2x16xf32>
    %7 = vector.extract_strided_slice %0 {offsets = [6, 0], sizes = [1, 16], strides = [1, 1]} : vector<9x16xf32> to vector<1x16xf32>
    %8 = vector.extract_strided_slice %0 {offsets = [7, 0], sizes = [1, 16], strides = [1, 1]} : vector<9x16xf32> to vector<1x16xf32>
    %9 = vector.extract_strided_slice %0 {offsets = [8, 0], sizes = [1, 16], strides = [1, 1]} : vector<9x16xf32> to vector<1x16xf32>
    %10 = vector.extract_strided_slice %1 {offsets = [0, 0], sizes = [1, 32], strides = [1, 1]} : vector<19x32xf32> to vector<1x32xf32>
    %11 = vector.extract_strided_slice %1 {offsets = [1, 0], sizes = [1, 32], strides = [1, 1]} : vector<19x32xf32> to vector<1x32xf32>
    %12 = vector.extract_strided_slice %1 {offsets = [2, 0], sizes = [1, 32], strides = [1, 1]} : vector<19x32xf32> to vector<1x32xf32>
    %13 = vector.extract_strided_slice %1 {offsets = [3, 0], sizes = [1, 32], strides = [1, 1]} : vector<19x32xf32> to vector<1x32xf32>
    %14 = vector.extract_strided_slice %1 {offsets = [4, 0], sizes = [1, 32], strides = [1, 1]} : vector<19x32xf32> to vector<1x32xf32>
    %15 = vector.extract_strided_slice %1 {offsets = [5, 0], sizes = [1, 32], strides = [1, 1]} : vector<19x32xf32> to vector<1x32xf32>
    %16 = vector.extract_strided_slice %1 {offsets = [6, 0], sizes = [1, 32], strides = [1, 1]} : vector<19x32xf32> to vector<1x32xf32>
    %17 = vector.extract_strided_slice %1 {offsets = [7, 0], sizes = [1, 32], strides = [1, 1]} : vector<19x32xf32> to vector<1x32xf32>
    %18 = vector.extract_strided_slice %1 {offsets = [8, 0], sizes = [1, 32], strides = [1, 1]} : vector<19x32xf32> to vector<1x32xf32>
    %19 = vector.extract_strided_slice %1 {offsets = [9, 0], sizes = [1, 32], strides = [1, 1]} : vector<19x32xf32> to vector<1x32xf32>
    %20 = vector.extract_strided_slice %1 {offsets = [10, 0], sizes = [1, 32], strides = [1, 1]} : vector<19x32xf32> to vector<1x32xf32>
    %21 = vector.extract_strided_slice %1 {offsets = [11, 0], sizes = [1, 32], strides = [1, 1]} : vector<19x32xf32> to vector<1x32xf32>
    %22 = vector.extract_strided_slice %1 {offsets = [12, 0], sizes = [1, 32], strides = [1, 1]} : vector<19x32xf32> to vector<1x32xf32>
    %23 = vector.extract_strided_slice %1 {offsets = [13, 0], sizes = [1, 32], strides = [1, 1]} : vector<19x32xf32> to vector<1x32xf32>
    %24 = vector.extract_strided_slice %1 {offsets = [14, 0], sizes = [1, 32], strides = [1, 1]} : vector<19x32xf32> to vector<1x32xf32>
    %25 = vector.extract_strided_slice %1 {offsets = [15, 0], sizes = [1, 32], strides = [1, 1]} : vector<19x32xf32> to vector<1x32xf32>
    %26 = vector.extract_strided_slice %1 {offsets = [16, 0], sizes = [1, 32], strides = [1, 1]} : vector<19x32xf32> to vector<1x32xf32>
    %27 = vector.extract_strided_slice %1 {offsets = [17, 0], sizes = [1, 32], strides = [1, 1]} : vector<19x32xf32> to vector<1x32xf32>
    %28 = vector.extract_strided_slice %1 {offsets = [18, 0], sizes = [1, 32], strides = [1, 1]} : vector<19x32xf32> to vector<1x32xf32>
    %c0_3 = arith.constant 0 : index
    %c0_4 = arith.constant 0 : index
    %29 = vector.load %arg1[%c0_3, %c0_4] : memref<64x4xf32, #tpu.memory_space<vmem>>, vector<64x4xf32>
    %c0_5 = arith.constant 0 : index
    %c0_6 = arith.constant 0 : index
    %30 = vector.load %arg2[%c0_5, %c0_6] : memref<8x4xf32, #tpu.memory_space<vmem>>, vector<8x4xf32>
    %c0_7 = arith.constant 0 : index
    %c0_8 = arith.constant 0 : index
    %31 = vector.load %arg3[%c0_7, %c0_8] : memref<8x32xbf16, #tpu.memory_space<vmem>>, vector<8x32xbf16>
    %32 = arith.extf %31 : vector<8x32xbf16> to vector<8x32xf32>
    %c0_9 = arith.constant 0 : index
    %c0_10 = arith.constant 0 : index
    %33 = vector.load %arg4[%c0_9, %c0_10] : memref<64x32xbf16, #tpu.memory_space<vmem>>, vector<64x32xbf16>
    %34 = arith.extf %33 : vector<64x32xbf16> to vector<64x32xf32>
    %35 = vector.extract_strided_slice %29 {offsets = [0, 0], sizes = [64, 1], strides = [1, 1]} : vector<64x4xf32> to vector<64x1xf32>
    %36 = vector.broadcast %35 : vector<64x1xf32> to vector<64x16xf32>
    %37 = vector.broadcast %2 : vector<1x16xf32> to vector<64x16xf32>
    %38 = arith.mulf %36, %37 : vector<64x16xf32>
    %39 = vector.broadcast %3 : vector<1x16xf32> to vector<64x16xf32>
    %40 = arith.addf %38, %39 : vector<64x16xf32>
    %cst = arith.constant dense<0.000000e+00> : vector<64xf32>
    %41 = vector.multi_reduction <add>, %40, %cst [1] : vector<64x16xf32> to vector<64xf32>
    %42 = vector.shape_cast %41 : vector<64xf32> to vector<64x1xf32>
    %cst_11 = arith.constant 1.600000e+01 : f32
    %43 = vector.broadcast %cst_11 : f32 to vector<64x1xf32>
    %44 = arith.divf %42, %43 : vector<64x1xf32>
    %45 = vector.broadcast %44 : vector<64x1xf32> to vector<64x16xf32>
    %46 = arith.subf %40, %45 : vector<64x16xf32>
    %47 = arith.mulf %46, %46 : vector<64x16xf32>
    %cst_12 = arith.constant dense<0.000000e+00> : vector<64xf32>
    %48 = vector.multi_reduction <add>, %47, %cst_12 [1] : vector<64x16xf32> to vector<64xf32>
    %49 = vector.shape_cast %48 : vector<64xf32> to vector<64x1xf32>
    %cst_13 = arith.constant 1.600000e+01 : f32
    %50 = vector.broadcast %cst_13 : f32 to vector<64x1xf32>
    %51 = arith.divf %49, %50 : vector<64x1xf32>
    %52 = vector.broadcast %44 : vector<64x1xf32> to vector<64x16xf32>
    %53 = arith.subf %40, %52 : vector<64x16xf32>
    %cst_14 = arith.constant 9.99999974E-6 : f32
    %54 = vector.broadcast %cst_14 : f32 to vector<64x1xf32>
    %55 = arith.addf %51, %54 : vector<64x1xf32>
    %56 = math.rsqrt %55 : vector<64x1xf32>
    %57 = vector.broadcast %56 : vector<64x1xf32> to vector<64x16xf32>
    %58 = arith.mulf %53, %57 : vector<64x16xf32>
    %59 = vector.broadcast %4 : vector<1x16xf32> to vector<64x16xf32>
    %60 = arith.mulf %58, %59 : vector<64x16xf32>
    %61 = vector.broadcast %5 : vector<1x16xf32> to vector<64x16xf32>
    %62 = arith.addf %60, %61 : vector<64x16xf32>
    %63 = math.tanh %62 : vector<64x16xf32>
    %64 = arith.truncf %63 : vector<64x16xf32> to vector<64x16xbf16>
    %c0_15 = arith.constant 0 : index
    %c0_16 = arith.constant 0 : index
    %65 = vector.load %arg8[%c0_15, %c0_16] : memref<16x32xbf16, #tpu.memory_space<vmem>>, vector<16x32xbf16>
    %cst_17 = arith.constant dense<0.000000e+00> : vector<64x32xf32>
    %66 = tpu.matmul %64, %65, %cst_17 {dimension_numbers = #tpu.dot_dimension_numbers<[1], [0], [0], [1], [0, 0, 1, 1], [], []>} : vector<64x16xbf16>, vector<16x32xbf16>, vector<64x32xf32> -> vector<64x32xf32>
    %67 = vector.broadcast %10 : vector<1x32xf32> to vector<64x32xf32>
    %68 = arith.addf %66, %67 : vector<64x32xf32>
    %cst_18 = arith.constant dense<0.000000e+00> : vector<64xf32>
    %69 = vector.multi_reduction <add>, %68, %cst_18 [1] : vector<64x32xf32> to vector<64xf32>
    %70 = vector.shape_cast %69 : vector<64xf32> to vector<64x1xf32>
    %cst_19 = arith.constant 3.200000e+01 : f32
    %71 = vector.broadcast %cst_19 : f32 to vector<64x1xf32>
    %72 = arith.divf %70, %71 : vector<64x1xf32>
    %73 = vector.broadcast %72 : vector<64x1xf32> to vector<64x32xf32>
    %74 = arith.subf %68, %73 : vector<64x32xf32>
    %75 = arith.mulf %74, %74 : vector<64x32xf32>
    %cst_20 = arith.constant dense<0.000000e+00> : vector<64xf32>
    %76 = vector.multi_reduction <add>, %75, %cst_20 [1] : vector<64x32xf32> to vector<64xf32>
    %77 = vector.shape_cast %76 : vector<64xf32> to vector<64x1xf32>
    %cst_21 = arith.constant 3.200000e+01 : f32
    %78 = vector.broadcast %cst_21 : f32 to vector<64x1xf32>
    %79 = arith.divf %77, %78 : vector<64x1xf32>
    %80 = vector.broadcast %72 : vector<64x1xf32> to vector<64x32xf32>
    %81 = arith.subf %68, %80 : vector<64x32xf32>
    %cst_22 = arith.constant 9.99999974E-6 : f32
    %82 = vector.broadcast %cst_22 : f32 to vector<64x1xf32>
    %83 = arith.addf %79, %82 : vector<64x1xf32>
    %84 = math.rsqrt %83 : vector<64x1xf32>
    %85 = vector.broadcast %84 : vector<64x1xf32> to vector<64x32xf32>
    %86 = arith.mulf %81, %85 : vector<64x32xf32>
    %87 = vector.broadcast %11 : vector<1x32xf32> to vector<64x32xf32>
    %88 = arith.mulf %86, %87 : vector<64x32xf32>
    %89 = vector.broadcast %12 : vector<1x32xf32> to vector<64x32xf32>
    %90 = arith.addf %88, %89 : vector<64x32xf32>
    %91 = vector.extract_strided_slice %29 {offsets = [0, 1], sizes = [64, 2], strides = [1, 1]} : vector<64x4xf32> to vector<64x2xf32>
    %92 = vector.extract_strided_slice %91 {offsets = [0, 0], sizes = [64, 1], strides = [1, 1]} : vector<64x2xf32> to vector<64x1xf32>
    %93 = vector.extract_strided_slice %6 {offsets = [0, 0], sizes = [1, 16], strides = [1, 1]} : vector<2x16xf32> to vector<1x16xf32>
    %94 = vector.broadcast %92 : vector<64x1xf32> to vector<64x16xf32>
    %95 = vector.broadcast %93 : vector<1x16xf32> to vector<64x16xf32>
    %96 = arith.mulf %94, %95 : vector<64x16xf32>
    %97 = vector.extract_strided_slice %91 {offsets = [0, 1], sizes = [64, 1], strides = [1, 1]} : vector<64x2xf32> to vector<64x1xf32>
    %98 = vector.extract_strided_slice %6 {offsets = [1, 0], sizes = [1, 16], strides = [1, 1]} : vector<2x16xf32> to vector<1x16xf32>
    %99 = vector.broadcast %97 : vector<64x1xf32> to vector<64x16xf32>
    %100 = vector.broadcast %98 : vector<1x16xf32> to vector<64x16xf32>
    %101 = arith.mulf %99, %100 : vector<64x16xf32>
    %102 = arith.addf %96, %101 : vector<64x16xf32>
    %103 = vector.broadcast %7 : vector<1x16xf32> to vector<64x16xf32>
    %104 = arith.addf %102, %103 : vector<64x16xf32>
    %cst_23 = arith.constant dense<0.000000e+00> : vector<64xf32>
    %105 = vector.multi_reduction <add>, %104, %cst_23 [1] : vector<64x16xf32> to vector<64xf32>
    %106 = vector.shape_cast %105 : vector<64xf32> to vector<64x1xf32>
    %cst_24 = arith.constant 1.600000e+01 : f32
    %107 = vector.broadcast %cst_24 : f32 to vector<64x1xf32>
    %108 = arith.divf %106, %107 : vector<64x1xf32>
    %109 = vector.broadcast %108 : vector<64x1xf32> to vector<64x16xf32>
    %110 = arith.subf %104, %109 : vector<64x16xf32>
    %111 = arith.mulf %110, %110 : vector<64x16xf32>
    %cst_25 = arith.constant dense<0.000000e+00> : vector<64xf32>
    %112 = vector.multi_reduction <add>, %111, %cst_25 [1] : vector<64x16xf32> to vector<64xf32>
    %113 = vector.shape_cast %112 : vector<64xf32> to vector<64x1xf32>
    %cst_26 = arith.constant 1.600000e+01 : f32
    %114 = vector.broadcast %cst_26 : f32 to vector<64x1xf32>
    %115 = arith.divf %113, %114 : vector<64x1xf32>
    %116 = vector.broadcast %108 : vector<64x1xf32> to vector<64x16xf32>
    %117 = arith.subf %104, %116 : vector<64x16xf32>
    %cst_27 = arith.constant 9.99999974E-6 : f32
    %118 = vector.broadcast %cst_27 : f32 to vector<64x1xf32>
    %119 = arith.addf %115, %118 : vector<64x1xf32>
    %120 = math.rsqrt %119 : vector<64x1xf32>
    %121 = vector.broadcast %120 : vector<64x1xf32> to vector<64x16xf32>
    %122 = arith.mulf %117, %121 : vector<64x16xf32>
    %123 = vector.broadcast %8 : vector<1x16xf32> to vector<64x16xf32>
    %124 = arith.mulf %122, %123 : vector<64x16xf32>
    %125 = vector.broadcast %9 : vector<1x16xf32> to vector<64x16xf32>
    %126 = arith.addf %124, %125 : vector<64x16xf32>
    %127 = math.tanh %126 : vector<64x16xf32>
    %128 = arith.truncf %127 : vector<64x16xf32> to vector<64x16xbf16>
    %c0_28 = arith.constant 0 : index
    %c0_29 = arith.constant 0 : index
    %129 = vector.load %arg9[%c0_28, %c0_29] : memref<16x32xbf16, #tpu.memory_space<vmem>>, vector<16x32xbf16>
    %cst_30 = arith.constant dense<0.000000e+00> : vector<64x32xf32>
    %130 = tpu.matmul %128, %129, %cst_30 {dimension_numbers = #tpu.dot_dimension_numbers<[1], [0], [0], [1], [0, 0, 1, 1], [], []>} : vector<64x16xbf16>, vector<16x32xbf16>, vector<64x32xf32> -> vector<64x32xf32>
    %131 = vector.broadcast %13 : vector<1x32xf32> to vector<64x32xf32>
    %132 = arith.addf %130, %131 : vector<64x32xf32>
    %cst_31 = arith.constant dense<0.000000e+00> : vector<64xf32>
    %133 = vector.multi_reduction <add>, %132, %cst_31 [1] : vector<64x32xf32> to vector<64xf32>
    %134 = vector.shape_cast %133 : vector<64xf32> to vector<64x1xf32>
    %cst_32 = arith.constant 3.200000e+01 : f32
    %135 = vector.broadcast %cst_32 : f32 to vector<64x1xf32>
    %136 = arith.divf %134, %135 : vector<64x1xf32>
    %137 = vector.broadcast %136 : vector<64x1xf32> to vector<64x32xf32>
    %138 = arith.subf %132, %137 : vector<64x32xf32>
    %139 = arith.mulf %138, %138 : vector<64x32xf32>
    %cst_33 = arith.constant dense<0.000000e+00> : vector<64xf32>
    %140 = vector.multi_reduction <add>, %139, %cst_33 [1] : vector<64x32xf32> to vector<64xf32>
    %141 = vector.shape_cast %140 : vector<64xf32> to vector<64x1xf32>
    %cst_34 = arith.constant 3.200000e+01 : f32
    %142 = vector.broadcast %cst_34 : f32 to vector<64x1xf32>
    %143 = arith.divf %141, %142 : vector<64x1xf32>
    %144 = vector.broadcast %136 : vector<64x1xf32> to vector<64x32xf32>
    %145 = arith.subf %132, %144 : vector<64x32xf32>
    %cst_35 = arith.constant 9.99999974E-6 : f32
    %146 = vector.broadcast %cst_35 : f32 to vector<64x1xf32>
    %147 = arith.addf %143, %146 : vector<64x1xf32>
    %148 = math.rsqrt %147 : vector<64x1xf32>
    %149 = vector.broadcast %148 : vector<64x1xf32> to vector<64x32xf32>
    %150 = arith.mulf %145, %149 : vector<64x32xf32>
    %151 = vector.broadcast %14 : vector<1x32xf32> to vector<64x32xf32>
    %152 = arith.mulf %150, %151 : vector<64x32xf32>
    %153 = vector.broadcast %15 : vector<1x32xf32> to vector<64x32xf32>
    %154 = arith.addf %152, %153 : vector<64x32xf32>
    %155 = vector.extract_strided_slice %30 {offsets = [0, 0], sizes = [8, 2], strides = [1, 1]} : vector<8x4xf32> to vector<8x2xf32>
    %156 = vector.extract_strided_slice %155 {offsets = [0, 0], sizes = [8, 1], strides = [1, 1]} : vector<8x2xf32> to vector<8x1xf32>
    %157 = vector.extract_strided_slice %6 {offsets = [0, 0], sizes = [1, 16], strides = [1, 1]} : vector<2x16xf32> to vector<1x16xf32>
    %158 = vector.broadcast %156 : vector<8x1xf32> to vector<8x16xf32>
    %159 = vector.broadcast %157 : vector<1x16xf32> to vector<8x16xf32>
    %160 = arith.mulf %158, %159 : vector<8x16xf32>
    %161 = vector.extract_strided_slice %155 {offsets = [0, 1], sizes = [8, 1], strides = [1, 1]} : vector<8x2xf32> to vector<8x1xf32>
    %162 = vector.extract_strided_slice %6 {offsets = [1, 0], sizes = [1, 16], strides = [1, 1]} : vector<2x16xf32> to vector<1x16xf32>
    %163 = vector.broadcast %161 : vector<8x1xf32> to vector<8x16xf32>
    %164 = vector.broadcast %162 : vector<1x16xf32> to vector<8x16xf32>
    %165 = arith.mulf %163, %164 : vector<8x16xf32>
    %166 = arith.addf %160, %165 : vector<8x16xf32>
    %167 = vector.broadcast %7 : vector<1x16xf32> to vector<8x16xf32>
    %168 = arith.addf %166, %167 : vector<8x16xf32>
    %cst_36 = arith.constant dense<0.000000e+00> : vector<8xf32>
    %169 = vector.multi_reduction <add>, %168, %cst_36 [1] : vector<8x16xf32> to vector<8xf32>
    %170 = vector.shape_cast %169 : vector<8xf32> to vector<8x1xf32>
    %cst_37 = arith.constant 1.600000e+01 : f32
    %171 = vector.broadcast %cst_37 : f32 to vector<8x1xf32>
    %172 = arith.divf %170, %171 : vector<8x1xf32>
    %173 = vector.broadcast %172 : vector<8x1xf32> to vector<8x16xf32>
    %174 = arith.subf %168, %173 : vector<8x16xf32>
    %175 = arith.mulf %174, %174 : vector<8x16xf32>
    %cst_38 = arith.constant dense<0.000000e+00> : vector<8xf32>
    %176 = vector.multi_reduction <add>, %175, %cst_38 [1] : vector<8x16xf32> to vector<8xf32>
    %177 = vector.shape_cast %176 : vector<8xf32> to vector<8x1xf32>
    %cst_39 = arith.constant 1.600000e+01 : f32
    %178 = vector.broadcast %cst_39 : f32 to vector<8x1xf32>
    %179 = arith.divf %177, %178 : vector<8x1xf32>
    %180 = vector.broadcast %172 : vector<8x1xf32> to vector<8x16xf32>
    %181 = arith.subf %168, %180 : vector<8x16xf32>
    %cst_40 = arith.constant 9.99999974E-6 : f32
    %182 = vector.broadcast %cst_40 : f32 to vector<8x1xf32>
    %183 = arith.addf %179, %182 : vector<8x1xf32>
    %184 = math.rsqrt %183 : vector<8x1xf32>
    %185 = vector.broadcast %184 : vector<8x1xf32> to vector<8x16xf32>
    %186 = arith.mulf %181, %185 : vector<8x16xf32>
    %187 = vector.broadcast %8 : vector<1x16xf32> to vector<8x16xf32>
    %188 = arith.mulf %186, %187 : vector<8x16xf32>
    %189 = vector.broadcast %9 : vector<1x16xf32> to vector<8x16xf32>
    %190 = arith.addf %188, %189 : vector<8x16xf32>
    %191 = math.tanh %190 : vector<8x16xf32>
    %192 = arith.truncf %191 : vector<8x16xf32> to vector<8x16xbf16>
    %c0_41 = arith.constant 0 : index
    %c0_42 = arith.constant 0 : index
    %193 = vector.load %arg9[%c0_41, %c0_42] : memref<16x32xbf16, #tpu.memory_space<vmem>>, vector<16x32xbf16>
    %cst_43 = arith.constant dense<0.000000e+00> : vector<8x32xf32>
    %194 = tpu.matmul %192, %193, %cst_43 {dimension_numbers = #tpu.dot_dimension_numbers<[1], [0], [0], [1], [0, 0, 1, 1], [], []>} : vector<8x16xbf16>, vector<16x32xbf16>, vector<8x32xf32> -> vector<8x32xf32>
    %195 = vector.broadcast %13 : vector<1x32xf32> to vector<8x32xf32>
    %196 = arith.addf %194, %195 : vector<8x32xf32>
    %cst_44 = arith.constant dense<0.000000e+00> : vector<8xf32>
    %197 = vector.multi_reduction <add>, %196, %cst_44 [1] : vector<8x32xf32> to vector<8xf32>
    %198 = vector.shape_cast %197 : vector<8xf32> to vector<8x1xf32>
    %cst_45 = arith.constant 3.200000e+01 : f32
    %199 = vector.broadcast %cst_45 : f32 to vector<8x1xf32>
    %200 = arith.divf %198, %199 : vector<8x1xf32>
    %201 = vector.broadcast %200 : vector<8x1xf32> to vector<8x32xf32>
    %202 = arith.subf %196, %201 : vector<8x32xf32>
    %203 = arith.mulf %202, %202 : vector<8x32xf32>
    %cst_46 = arith.constant dense<0.000000e+00> : vector<8xf32>
    %204 = vector.multi_reduction <add>, %203, %cst_46 [1] : vector<8x32xf32> to vector<8xf32>
    %205 = vector.shape_cast %204 : vector<8xf32> to vector<8x1xf32>
    %cst_47 = arith.constant 3.200000e+01 : f32
    %206 = vector.broadcast %cst_47 : f32 to vector<8x1xf32>
    %207 = arith.divf %205, %206 : vector<8x1xf32>
    %208 = vector.broadcast %200 : vector<8x1xf32> to vector<8x32xf32>
    %209 = arith.subf %196, %208 : vector<8x32xf32>
    %cst_48 = arith.constant 9.99999974E-6 : f32
    %210 = vector.broadcast %cst_48 : f32 to vector<8x1xf32>
    %211 = arith.addf %207, %210 : vector<8x1xf32>
    %212 = math.rsqrt %211 : vector<8x1xf32>
    %213 = vector.broadcast %212 : vector<8x1xf32> to vector<8x32xf32>
    %214 = arith.mulf %209, %213 : vector<8x32xf32>
    %215 = vector.broadcast %14 : vector<1x32xf32> to vector<8x32xf32>
    %216 = arith.mulf %214, %215 : vector<8x32xf32>
    %217 = vector.broadcast %15 : vector<1x32xf32> to vector<8x32xf32>
    %218 = arith.addf %216, %217 : vector<8x32xf32>
    %219 = arith.addf %34, %90 : vector<64x32xf32>
    %220 = arith.addf %219, %154 : vector<64x32xf32>
    %221 = arith.addf %32, %218 : vector<8x32xf32>
    %cst_49 = arith.constant dense<0.000000e+00> : vector<8xf32>
    %222 = vector.multi_reduction <add>, %221, %cst_49 [1] : vector<8x32xf32> to vector<8xf32>
    %223 = vector.shape_cast %222 : vector<8xf32> to vector<8x1xf32>
    %cst_50 = arith.constant 3.200000e+01 : f32
    %224 = vector.broadcast %cst_50 : f32 to vector<8x1xf32>
    %225 = arith.divf %223, %224 : vector<8x1xf32>
    %226 = vector.broadcast %225 : vector<8x1xf32> to vector<8x32xf32>
    %227 = arith.subf %221, %226 : vector<8x32xf32>
    %228 = arith.mulf %227, %227 : vector<8x32xf32>
    %cst_51 = arith.constant dense<0.000000e+00> : vector<8xf32>
    %229 = vector.multi_reduction <add>, %228, %cst_51 [1] : vector<8x32xf32> to vector<8xf32>
    %230 = vector.shape_cast %229 : vector<8xf32> to vector<8x1xf32>
    %cst_52 = arith.constant 3.200000e+01 : f32
    %231 = vector.broadcast %cst_52 : f32 to vector<8x1xf32>
    %232 = arith.divf %230, %231 : vector<8x1xf32>
    %233 = vector.broadcast %225 : vector<8x1xf32> to vector<8x32xf32>
    %234 = arith.subf %221, %233 : vector<8x32xf32>
    %cst_53 = arith.constant 9.99999974E-6 : f32
    %235 = vector.broadcast %cst_53 : f32 to vector<8x1xf32>
    %236 = arith.addf %232, %235 : vector<8x1xf32>
    %237 = math.rsqrt %236 : vector<8x1xf32>
    %238 = vector.broadcast %237 : vector<8x1xf32> to vector<8x32xf32>
    %239 = arith.mulf %234, %238 : vector<8x32xf32>
    %240 = vector.broadcast %16 : vector<1x32xf32> to vector<8x32xf32>
    %241 = arith.mulf %239, %240 : vector<8x32xf32>
    %242 = vector.broadcast %17 : vector<1x32xf32> to vector<8x32xf32>
    %243 = arith.addf %241, %242 : vector<8x32xf32>
    %cst_54 = arith.constant dense<0.000000e+00> : vector<64xf32>
    %244 = vector.multi_reduction <add>, %220, %cst_54 [1] : vector<64x32xf32> to vector<64xf32>
    %245 = vector.shape_cast %244 : vector<64xf32> to vector<64x1xf32>
    %cst_55 = arith.constant 3.200000e+01 : f32
    %246 = vector.broadcast %cst_55 : f32 to vector<64x1xf32>
    %247 = arith.divf %245, %246 : vector<64x1xf32>
    %248 = vector.broadcast %247 : vector<64x1xf32> to vector<64x32xf32>
    %249 = arith.subf %220, %248 : vector<64x32xf32>
    %250 = arith.mulf %249, %249 : vector<64x32xf32>
    %cst_56 = arith.constant dense<0.000000e+00> : vector<64xf32>
    %251 = vector.multi_reduction <add>, %250, %cst_56 [1] : vector<64x32xf32> to vector<64xf32>
    %252 = vector.shape_cast %251 : vector<64xf32> to vector<64x1xf32>
    %cst_57 = arith.constant 3.200000e+01 : f32
    %253 = vector.broadcast %cst_57 : f32 to vector<64x1xf32>
    %254 = arith.divf %252, %253 : vector<64x1xf32>
    %255 = vector.broadcast %247 : vector<64x1xf32> to vector<64x32xf32>
    %256 = arith.subf %220, %255 : vector<64x32xf32>
    %cst_58 = arith.constant 9.99999974E-6 : f32
    %257 = vector.broadcast %cst_58 : f32 to vector<64x1xf32>
    %258 = arith.addf %254, %257 : vector<64x1xf32>
    %259 = math.rsqrt %258 : vector<64x1xf32>
    %260 = vector.broadcast %259 : vector<64x1xf32> to vector<64x32xf32>
    %261 = arith.mulf %256, %260 : vector<64x32xf32>
    %262 = vector.broadcast %18 : vector<1x32xf32> to vector<64x32xf32>
    %263 = arith.mulf %261, %262 : vector<64x32xf32>
    %264 = vector.broadcast %19 : vector<1x32xf32> to vector<64x32xf32>
    %265 = arith.addf %263, %264 : vector<64x32xf32>
    %266 = arith.truncf %243 : vector<8x32xf32> to vector<8x32xbf16>
    %c0_59 = arith.constant 0 : index
    %c0_60 = arith.constant 0 : index
    %267 = vector.load %arg10[%c0_59, %c0_60] : memref<32x32xbf16, #tpu.memory_space<vmem>>, vector<32x32xbf16>
    %cst_61 = arith.constant dense<0.000000e+00> : vector<8x32xf32>
    %268 = tpu.matmul %266, %267, %cst_61 {dimension_numbers = #tpu.dot_dimension_numbers<[1], [0], [0], [1], [0, 0, 1, 1], [], []>} : vector<8x32xbf16>, vector<32x32xbf16>, vector<8x32xf32> -> vector<8x32xf32>
    %269 = vector.broadcast %22 : vector<1x32xf32> to vector<8x32xf32>
    %270 = arith.addf %268, %269 : vector<8x32xf32>
    %271 = arith.truncf %265 : vector<64x32xf32> to vector<64x32xbf16>
    %c0_62 = arith.constant 0 : index
    %c0_63 = arith.constant 0 : index
    %272 = vector.load %arg11[%c0_62, %c0_63] : memref<32x64xbf16, #tpu.memory_space<vmem>>, vector<32x64xbf16>
    %cst_64 = arith.constant dense<0.000000e+00> : vector<64x64xf32>
    %273 = tpu.matmul %271, %272, %cst_64 {dimension_numbers = #tpu.dot_dimension_numbers<[1], [0], [0], [1], [0, 0, 1, 1], [], []>} : vector<64x32xbf16>, vector<32x64xbf16>, vector<64x64xf32> -> vector<64x64xf32>
    %274 = vector.extract_strided_slice %273 {offsets = [0, 0], sizes = [64, 32], strides = [1, 1]} : vector<64x64xf32> to vector<64x32xf32>
    %275 = vector.broadcast %23 : vector<1x32xf32> to vector<64x32xf32>
    %276 = arith.addf %274, %275 : vector<64x32xf32>
    %277 = vector.extract_strided_slice %273 {offsets = [0, 32], sizes = [64, 32], strides = [1, 1]} : vector<64x64xf32> to vector<64x32xf32>
    %278 = vector.broadcast %24 : vector<1x32xf32> to vector<64x32xf32>
    %279 = arith.addf %277, %278 : vector<64x32xf32>
    %280 = vector.shape_cast %276 : vector<64x32xf32> to vector<8x8x32xf32>
    %281 = vector.shape_cast %270 : vector<8x32xf32> to vector<8x1x32xf32>
    %282 = vector.broadcast %281 : vector<8x1x32xf32> to vector<8x8x32xf32>
    %283 = arith.mulf %280, %282 : vector<8x8x32xf32>
    %284 = vector.shape_cast %283 : vector<8x8x32xf32> to vector<64x32xf32>
    %285 = arith.truncf %284 : vector<64x32xf32> to vector<64x32xbf16>
    %c0_65 = arith.constant 0 : index
    %c0_66 = arith.constant 0 : index
    %286 = vector.load %arg17[%c0_65, %c0_66] : memref<32x4xbf16, #tpu.memory_space<vmem>>, vector<32x4xbf16>
    %cst_67 = arith.constant dense<0.000000e+00> : vector<64x4xf32>
    %287 = tpu.matmul %285, %286, %cst_67 {dimension_numbers = #tpu.dot_dimension_numbers<[1], [0], [0], [1], [0, 0, 1, 1], [], []>} : vector<64x32xbf16>, vector<32x4xbf16>, vector<64x4xf32> -> vector<64x4xf32>
    %288 = vector.shape_cast %287 : vector<64x4xf32> to vector<8x8x4xf32>
    %cst_68 = arith.constant -1.000000e+01 : f32
    %cst_69 = arith.constant 1.000000e+01 : f32
    %289 = vector.broadcast %cst_68 : f32 to vector<8x8x4xf32>
    %290 = arith.maximumf %289, %288 : vector<8x8x4xf32>
    %291 = vector.broadcast %cst_69 : f32 to vector<8x8x4xf32>
    %292 = arith.minimumf %291, %290 : vector<8x8x4xf32>
    %cst_70 = arith.constant 0.353553265 : f32
    %293 = vector.broadcast %cst_70 : f32 to vector<8x8x4xf32>
    %294 = arith.mulf %292, %293 : vector<8x8x4xf32>
    %cst_71 = arith.constant dense<0xFF800000> : vector<8x4xf32>
    %295 = vector.multi_reduction <maximumf>, %294, %cst_71 [1] : vector<8x8x4xf32> to vector<8x4xf32>
    %296 = vector.shape_cast %295 : vector<8x4xf32> to vector<8x1x4xf32>
    %297 = vector.broadcast %296 : vector<8x1x4xf32> to vector<8x8x4xf32>
    %298 = arith.subf %294, %297 : vector<8x8x4xf32>
    %299 = math.exp %298 : vector<8x8x4xf32>
    %cst_72 = arith.constant dense<0.000000e+00> : vector<8x4xf32>
    %300 = vector.multi_reduction <add>, %299, %cst_72 [1] : vector<8x8x4xf32> to vector<8x4xf32>
    %301 = vector.shape_cast %300 : vector<8x4xf32> to vector<8x1x4xf32>
    %cst_73 = arith.constant 9.99999997E-7 : f32
    %302 = vector.broadcast %cst_73 : f32 to vector<8x1x4xf32>
    %303 = arith.addf %301, %302 : vector<8x1x4xf32>
    %304 = tpu.reciprocal %303 {approx = true} : vector<8x1x4xf32> -> vector<8x1x4xf32>
    %305 = vector.broadcast %304 : vector<8x1x4xf32> to vector<8x8x4xf32>
    %306 = arith.mulf %299, %305 : vector<8x8x4xf32>
    %cst_74 = arith.constant 0.000000e+00 : f32
    %307 = arith.cmpf one, %306, %306 : vector<8x8x4xf32>
    %308 = vector.broadcast %cst_74 : f32 to vector<8x8x4xf32>
    %309 = arith.select %307, %308, %306 : vector<8x8x4xi1>, vector<8x8x4xf32>
    %cst_75 = arith.constant 0x7F800000 : f32
    %310 = vector.broadcast %cst_75 : f32 to vector<8x8x4xf32>
    %311 = arith.cmpf oeq, %309, %310 : vector<8x8x4xf32>
    %cst_76 = arith.constant 3.40282347E+38 : f32
    %312 = vector.broadcast %cst_76 : f32 to vector<8x8x4xf32>
    %313 = arith.select %311, %312, %309 : vector<8x8x4xi1>, vector<8x8x4xf32>
    %cst_77 = arith.constant 0xFF800000 : f32
    %314 = vector.broadcast %cst_77 : f32 to vector<8x8x4xf32>
    %315 = arith.cmpf oeq, %313, %314 : vector<8x8x4xf32>
    %cst_78 = arith.constant -3.40282347E+38 : f32
    %316 = vector.broadcast %cst_78 : f32 to vector<8x8x4xf32>
    %317 = arith.select %315, %316, %313 : vector<8x8x4xi1>, vector<8x8x4xf32>
    %cst_79 = arith.constant 0.000000e+00 : f32
    %cst_80 = arith.constant 1.000000e+00 : f32
    %318 = vector.broadcast %cst_79 : f32 to vector<8x8x4xf32>
    %319 = arith.maximumf %318, %317 : vector<8x8x4xf32>
    %320 = vector.broadcast %cst_80 : f32 to vector<8x8x4xf32>
    %321 = arith.minimumf %320, %319 : vector<8x8x4xf32>
    %cst_81 = arith.constant dense<0.000000e+00> : vector<8x4xf32>
    %322 = vector.multi_reduction <add>, %321, %cst_81 [1] : vector<8x8x4xf32> to vector<8x4xf32>
    %323 = vector.shape_cast %322 : vector<8x4xf32> to vector<8x1x4xf32>
    %cst_82 = arith.constant 9.99999997E-7 : f32
    %324 = vector.broadcast %cst_82 : f32 to vector<8x1x4xf32>
    %325 = arith.addf %323, %324 : vector<8x1x4xf32>
    %326 = tpu.reciprocal %325 {approx = true} : vector<8x1x4xf32> -> vector<8x1x4xf32>
    %327 = vector.broadcast %326 : vector<8x1x4xf32> to vector<8x8x4xf32>
    %328 = arith.mulf %321, %327 : vector<8x8x4xf32>
    %329 = vector.shape_cast %328 : vector<8x8x4xf32> to vector<64x4xf32>
    %330 = arith.truncf %329 : vector<64x4xf32> to vector<64x4xbf16>
    %c0_83 = arith.constant 0 : index
    %c0_84 = arith.constant 0 : index
    %331 = vector.load %arg18[%c0_83, %c0_84] : memref<4x32xbf16, #tpu.memory_space<vmem>>, vector<4x32xbf16>
    %cst_85 = arith.constant dense<0.000000e+00> : vector<64x32xf32>
    %332 = tpu.matmul %330, %331, %cst_85 {dimension_numbers = #tpu.dot_dimension_numbers<[1], [0], [0], [1], [0, 0, 1, 1], [], []>} : vector<64x4xbf16>, vector<4x32xbf16>, vector<64x32xf32> -> vector<64x32xf32>
    %c0_86 = arith.constant 0 : index
    %c0_87 = arith.constant 0 : index
    %333 = vector.load %arg19[%c0_86, %c0_87] : memref<8x64xbf16, #tpu.memory_space<vmem>>, vector<8x64xbf16>
    %334 = arith.mulf %332, %279 : vector<64x32xf32>
    %335 = arith.truncf %334 : vector<64x32xf32> to vector<64x32xbf16>
    %cst_88 = arith.constant dense<0.000000e+00> : vector<8x32xf32>
    %336 = tpu.matmul %333, %335, %cst_88 {dimension_numbers = #tpu.dot_dimension_numbers<[1], [0], [0], [1], [0, 0, 1, 1], [], []>} : vector<8x64xbf16>, vector<64x32xbf16>, vector<8x32xf32> -> vector<8x32xf32>
    %c0_89 = arith.constant 0 : index
    %c0_90 = arith.constant 0 : index
    %337 = vector.load %arg19[%c0_89, %c0_90] : memref<8x64xbf16, #tpu.memory_space<vmem>>, vector<8x64xbf16>
    %338 = arith.truncf %265 : vector<64x32xf32> to vector<64x32xbf16>
    %cst_91 = arith.constant dense<0.000000e+00> : vector<8x32xf32>
    %339 = tpu.matmul %337, %338, %cst_91 {dimension_numbers = #tpu.dot_dimension_numbers<[1], [0], [0], [1], [0, 0, 1, 1], [], []>} : vector<8x64xbf16>, vector<64x32xbf16>, vector<8x32xf32> -> vector<8x32xf32>
    %cst_92 = arith.constant 1.250000e-01 : f32
    %340 = vector.broadcast %cst_92 : f32 to vector<8x32xf32>
    %341 = arith.mulf %339, %340 : vector<8x32xf32>
    %342 = arith.truncf %341 : vector<8x32xf32> to vector<8x32xbf16>
    %c0_93 = arith.constant 0 : index
    %c0_94 = arith.constant 0 : index
    %343 = vector.load %arg13[%c0_93, %c0_94] : memref<32x32xbf16, #tpu.memory_space<vmem>>, vector<32x32xbf16>
    %cst_95 = arith.constant dense<0.000000e+00> : vector<8x32xf32>
    %344 = tpu.matmul %342, %343, %cst_95 {dimension_numbers = #tpu.dot_dimension_numbers<[1], [0], [0], [1], [0, 0, 1, 1], [], []>} : vector<8x32xbf16>, vector<32x32xbf16>, vector<8x32xf32> -> vector<8x32xf32>
    %345 = vector.broadcast %26 : vector<1x32xf32> to vector<8x32xf32>
    %346 = arith.addf %344, %345 : vector<8x32xf32>
    %cst_96 = arith.constant 5.000000e-01 : f32
    %347 = vector.broadcast %cst_96 : f32 to vector<8x32xf32>
    %348 = arith.mulf %347, %346 : vector<8x32xf32>
    %cst_97 = arith.constant 1.41421354 : f32
    %349 = vector.broadcast %cst_97 : f32 to vector<8x32xf32>
    %350 = arith.divf %346, %349 : vector<8x32xf32>
    %351 = math.erf %350 : vector<8x32xf32>
    %cst_98 = arith.constant 1.000000e+00 : f32
    %352 = vector.broadcast %cst_98 : f32 to vector<8x32xf32>
    %353 = arith.addf %352, %351 : vector<8x32xf32>
    %354 = arith.mulf %348, %353 : vector<8x32xf32>
    %355 = arith.truncf %354 : vector<8x32xf32> to vector<8x32xbf16>
    %c0_99 = arith.constant 0 : index
    %c0_100 = arith.constant 0 : index
    %356 = vector.load %arg14[%c0_99, %c0_100] : memref<32x32xbf16, #tpu.memory_space<vmem>>, vector<32x32xbf16>
    %cst_101 = arith.constant dense<0.000000e+00> : vector<8x32xf32>
    %357 = tpu.matmul %355, %356, %cst_101 {dimension_numbers = #tpu.dot_dimension_numbers<[1], [0], [0], [1], [0, 0, 1, 1], [], []>} : vector<8x32xbf16>, vector<32x32xbf16>, vector<8x32xf32> -> vector<8x32xf32>
    %358 = vector.broadcast %27 : vector<1x32xf32> to vector<8x32xf32>
    %359 = arith.addf %357, %358 : vector<8x32xf32>
    %360 = arith.truncf %336 : vector<8x32xf32> to vector<8x32xbf16>
    %c0_102 = arith.constant 0 : index
    %c0_103 = arith.constant 0 : index
    %361 = vector.load %arg12[%c0_102, %c0_103] : memref<32x32xbf16, #tpu.memory_space<vmem>>, vector<32x32xbf16>
    %cst_104 = arith.constant dense<0.000000e+00> : vector<8x32xf32>
    %362 = tpu.matmul %360, %361, %cst_104 {dimension_numbers = #tpu.dot_dimension_numbers<[1], [0], [0], [1], [0, 0, 1, 1], [], []>} : vector<8x32xbf16>, vector<32x32xbf16>, vector<8x32xf32> -> vector<8x32xf32>
    %363 = vector.broadcast %25 : vector<1x32xf32> to vector<8x32xf32>
    %364 = arith.addf %362, %363 : vector<8x32xf32>
    %c0_105 = arith.constant 0 : index
    %365 = memref.load %arg20[%c0_105] : memref<1xf32, #tpu.memory_space<smem>>
    %366 = vector.broadcast %365 : f32 to vector<1x1xf32>
    %367 = vector.broadcast %366 : vector<1x1xf32> to vector<8x32xf32>
    %368 = arith.mulf %367, %221 : vector<8x32xf32>
    %369 = arith.addf %364, %368 : vector<8x32xf32>
    %cst_106 = arith.constant 1.000000e+00 : f32
    %370 = vector.broadcast %cst_106 : f32 to vector<1x1xf32>
    %371 = arith.subf %370, %366 : vector<1x1xf32>
    %372 = vector.broadcast %371 : vector<1x1xf32> to vector<8x32xf32>
    %373 = arith.mulf %372, %359 : vector<8x32xf32>
    %374 = arith.addf %369, %373 : vector<8x32xf32>
    %cst_107 = arith.constant dense<0.000000e+00> : vector<8xf32>
    %375 = vector.multi_reduction <add>, %374, %cst_107 [1] : vector<8x32xf32> to vector<8xf32>
    %376 = vector.shape_cast %375 : vector<8xf32> to vector<8x1xf32>
    %cst_108 = arith.constant 3.200000e+01 : f32
    %377 = vector.broadcast %cst_108 : f32 to vector<8x1xf32>
    %378 = arith.divf %376, %377 : vector<8x1xf32>
    %379 = vector.broadcast %378 : vector<8x1xf32> to vector<8x32xf32>
    %380 = arith.subf %374, %379 : vector<8x32xf32>
    %381 = arith.mulf %380, %380 : vector<8x32xf32>
    %cst_109 = arith.constant dense<0.000000e+00> : vector<8xf32>
    %382 = vector.multi_reduction <add>, %381, %cst_109 [1] : vector<8x32xf32> to vector<8xf32>
    %383 = vector.shape_cast %382 : vector<8xf32> to vector<8x1xf32>
    %cst_110 = arith.constant 3.200000e+01 : f32
    %384 = vector.broadcast %cst_110 : f32 to vector<8x1xf32>
    %385 = arith.divf %383, %384 : vector<8x1xf32>
    %386 = vector.broadcast %378 : vector<8x1xf32> to vector<8x32xf32>
    %387 = arith.subf %374, %386 : vector<8x32xf32>
    %cst_111 = arith.constant 9.99999974E-6 : f32
    %388 = vector.broadcast %cst_111 : f32 to vector<8x1xf32>
    %389 = arith.addf %385, %388 : vector<8x1xf32>
    %390 = math.rsqrt %389 : vector<8x1xf32>
    %391 = vector.broadcast %390 : vector<8x1xf32> to vector<8x32xf32>
    %392 = arith.mulf %387, %391 : vector<8x32xf32>
    %393 = vector.broadcast %20 : vector<1x32xf32> to vector<8x32xf32>
    %394 = arith.mulf %392, %393 : vector<8x32xf32>
    %395 = vector.broadcast %21 : vector<1x32xf32> to vector<8x32xf32>
    %396 = arith.addf %394, %395 : vector<8x32xf32>
    %397 = arith.truncf %396 : vector<8x32xf32> to vector<8x32xbf16>
    %c0_112 = arith.constant 0 : index
    %c0_113 = arith.constant 0 : index
    %398 = vector.load %arg15[%c0_112, %c0_113] : memref<32x128xbf16, #tpu.memory_space<vmem>>, vector<32x128xbf16>
    %cst_114 = arith.constant dense<0.000000e+00> : vector<8x128xf32>
    %399 = tpu.matmul %397, %398, %cst_114 {dimension_numbers = #tpu.dot_dimension_numbers<[1], [0], [0], [1], [0, 0, 1, 1], [], []>} : vector<8x32xbf16>, vector<32x128xbf16>, vector<8x128xf32> -> vector<8x128xf32>
    %c0_115 = arith.constant 0 : index
    %c0_116 = arith.constant 0 : index
    %400 = vector.load %arg7[%c0_115, %c0_116] : memref<1x128xf32, #tpu.memory_space<vmem>>, vector<1x128xf32>
    %401 = vector.broadcast %400 : vector<1x128xf32> to vector<8x128xf32>
    %402 = arith.addf %399, %401 : vector<8x128xf32>
    %cst_117 = arith.constant 5.000000e-01 : f32
    %403 = vector.broadcast %cst_117 : f32 to vector<8x128xf32>
    %404 = arith.mulf %403, %402 : vector<8x128xf32>
    %cst_118 = arith.constant 1.41421354 : f32
    %405 = vector.broadcast %cst_118 : f32 to vector<8x128xf32>
    %406 = arith.divf %402, %405 : vector<8x128xf32>
    %407 = math.erf %406 : vector<8x128xf32>
    %cst_119 = arith.constant 1.000000e+00 : f32
    %408 = vector.broadcast %cst_119 : f32 to vector<8x128xf32>
    %409 = arith.addf %408, %407 : vector<8x128xf32>
    %410 = arith.mulf %404, %409 : vector<8x128xf32>
    %411 = arith.truncf %410 : vector<8x128xf32> to vector<8x128xbf16>
    %c0_120 = arith.constant 0 : index
    %c0_121 = arith.constant 0 : index
    %412 = vector.load %arg16[%c0_120, %c0_121] : memref<128x32xbf16, #tpu.memory_space<vmem>>, vector<128x32xbf16>
    %cst_122 = arith.constant dense<0.000000e+00> : vector<8x32xf32>
    %413 = tpu.matmul %411, %412, %cst_122 {dimension_numbers = #tpu.dot_dimension_numbers<[1], [0], [0], [1], [0, 0, 1, 1], [], []>} : vector<8x128xbf16>, vector<128x32xbf16>, vector<8x32xf32> -> vector<8x32xf32>
    %414 = vector.broadcast %28 : vector<1x32xf32> to vector<8x32xf32>
    %415 = arith.addf %413, %414 : vector<8x32xf32>
    %416 = arith.addf %415, %374 : vector<8x32xf32>
    %c0_123 = arith.constant 0 : index
    %c0_124 = arith.constant 0 : index
    %417 = vector.load %arg21[%c0_123, %c0_124] : memref<8x32xf32, #tpu.memory_space<vmem>>, vector<8x32xf32>
    tpu.vector_store %arg21[%c0_123, %c0_124], %416 {strides = array<i32>} : memref<8x32xf32, #tpu.memory_space<vmem>>, vector<8x32xf32>,
    return
  }
  func.func @transform_0(%arg0: i32) -> (i32, i32) {
    %c0_i32 = arith.constant 0 : i32
    %c0_i32_0 = arith.constant 0 : i32
    return %arg0, %c0_i32 : i32, i32
  }
  func.func @transform_1(%arg0: i32) -> (i32, i32) {
    %c0_i32 = arith.constant 0 : i32
    %c0_i32_0 = arith.constant 0 : i32
    return %arg0, %c0_i32 : i32, i32
  }
  func.func @transform_2(%arg0: i32) -> (i32, i32) {
    %c0_i32 = arith.constant 0 : i32
    %c0_i32_0 = arith.constant 0 : i32
    return %arg0, %c0_i32 : i32, i32
  }
  func.func @transform_3(%arg0: i32) -> (i32, i32) {
    %c0_i32 = arith.constant 0 : i32
    %c0_i32_0 = arith.constant 0 : i32
    return %arg0, %c0_i32 : i32, i32
  }
  func.func @transform_4(%arg0: i32) -> (i32, i32) {
    %c0_i32 = arith.constant 0 : i32
    %c0_i32_0 = arith.constant 0 : i32
    %c0_i32_1 = arith.constant 0 : i32
    return %c0_i32, %c0_i32_0 : i32, i32
  }
  func.func @transform_5(%arg0: i32) -> (i32, i32) {
    %c0_i32 = arith.constant 0 : i32
    %c0_i32_0 = arith.constant 0 : i32
    %c0_i32_1 = arith.constant 0 : i32
    return %c0_i32, %c0_i32_0 : i32, i32
  }
  func.func @transform_6(%arg0: i32) -> (i32, i32) {
    %c0_i32 = arith.constant 0 : i32
    %c0_i32_0 = arith.constant 0 : i32
    %c0_i32_1 = arith.constant 0 : i32
    return %c0_i32, %c0_i32_0 : i32, i32
  }
  func.func @transform_7(%arg0: i32) -> (i32, i32) {
    %c0_i32 = arith.constant 0 : i32
    %c0_i32_0 = arith.constant 0 : i32
    %c0_i32_1 = arith.constant 0 : i32
    return %c0_i32, %c0_i32_0 : i32, i32
  }
  func.func @transform_8(%arg0: i32) -> (i32, i32) {
    %c0_i32 = arith.constant 0 : i32
    %c0_i32_0 = arith.constant 0 : i32
    %c0_i32_1 = arith.constant 0 : i32
    return %c0_i32, %c0_i32_0 : i32, i32
  }
  func.func @transform_9(%arg0: i32) -> (i32, i32) {
    %c0_i32 = arith.constant 0 : i32
    %c0_i32_0 = arith.constant 0 : i32
    %c0_i32_1 = arith.constant 0 : i32
    return %c0_i32, %c0_i32_0 : i32, i32
  }
  func.func @transform_10(%arg0: i32) -> (i32, i32) {
    %c0_i32 = arith.constant 0 : i32
    %c0_i32_0 = arith.constant 0 : i32
    %c0_i32_1 = arith.constant 0 : i32
    return %c0_i32, %c0_i32_0 : i32, i32
  }
  func.func @transform_11(%arg0: i32) -> (i32, i32) {
    %c0_i32 = arith.constant 0 : i32
    %c0_i32_0 = arith.constant 0 : i32
    %c0_i32_1 = arith.constant 0 : i32
    return %c0_i32, %c0_i32_0 : i32, i32
  }
  func.func @transform_12(%arg0: i32) -> (i32, i32) {
    %c0_i32 = arith.constant 0 : i32
    %c0_i32_0 = arith.constant 0 : i32
    %c0_i32_1 = arith.constant 0 : i32
    return %c0_i32, %c0_i32_0 : i32, i32
  }
  func.func @transform_13(%arg0: i32) -> (i32, i32) {
    %c0_i32 = arith.constant 0 : i32
    %c0_i32_0 = arith.constant 0 : i32
    %c0_i32_1 = arith.constant 0 : i32
    return %c0_i32, %c0_i32_0 : i32, i32
  }
  func.func @transform_14(%arg0: i32) -> (i32, i32) {
    %c0_i32 = arith.constant 0 : i32
    %c0_i32_0 = arith.constant 0 : i32
    %c0_i32_1 = arith.constant 0 : i32
    return %c0_i32, %c0_i32_0 : i32, i32
  }
  func.func @transform_15(%arg0: i32) -> (i32, i32) {
    %c0_i32 = arith.constant 0 : i32
    %c0_i32_0 = arith.constant 0 : i32
    %c0_i32_1 = arith.constant 0 : i32
    return %c0_i32, %c0_i32_0 : i32, i32
  }
  func.func @transform_16(%arg0: i32) -> (i32, i32) {
    %c0_i32 = arith.constant 0 : i32
    %c0_i32_0 = arith.constant 0 : i32
    %c0_i32_1 = arith.constant 0 : i32
    return %c0_i32, %c0_i32_0 : i32, i32
  }
  func.func @transform_17(%arg0: i32) -> (i32, i32) {
    %c0_i32 = arith.constant 0 : i32
    %c0_i32_0 = arith.constant 0 : i32
    %c0_i32_1 = arith.constant 0 : i32
    return %c0_i32, %c0_i32_0 : i32, i32
  }
  func.func @transform_18(%arg0: i32) -> (i32, i32) {
    %c0_i32 = arith.constant 0 : i32
    %c0_i32_0 = arith.constant 0 : i32
    %c0_i32_1 = arith.constant 0 : i32
    return %c0_i32, %c0_i32_0 : i32, i32
  }
  func.func @transform_19(%arg0: i32) -> i32 {
    %c0_i32 = arith.constant 0 : i32
    %c0_i32_0 = arith.constant 0 : i32
    return %c0_i32 : i32
  }
  func.func @transform_20(%arg0: i32) -> (i32, i32) {
    %c0_i32 = arith.constant 0 : i32
    %c0_i32_0 = arith.constant 0 : i32
    return %arg0, %c0_i32 : i32, i32
  }
}

</mosaic_0001>

<llo_original>
// kernel: tpu_custom_call.1
$region0: #{tpu_custom_call.1}
  #allocation0 [shape = 'u32[]', space=smem, size = 0x4, offset = 0x4, fixed_abs, tag = 'smem constant byte address 0x4 - core index']
  #allocation1 [shape = 'u32[144,128]{1,0:T(1,128)}', space=vmem, size = 0x12000, scoped, tag = 'internal scratch']
  #allocation2 [shape = 'f32[1]{0:T(128)S(6)}', space=smem, size = 0x200, scoped, tag = 'scoped memory for tpu_custom_call.1']
  %s0 = inlined_call_operand.vmem [shape: f32[128,4], index: 0, kind: input, shape index: {}]
  %s1 = inlined_call_operand.vmem [shape: f32[16,4], index: 1, kind: input, shape index: {}]
  %s2 = inlined_call_operand.vmem [shape: bf16[16,32], index: 2, kind: input, shape index: {}]
  %s3 = inlined_call_operand.vmem [shape: bf16[128,32], index: 3, kind: input, shape index: {}]
  %s4 = inlined_call_operand.vmem [shape: f32[9,16], index: 4, kind: input, shape index: {}]
  %s5 = inlined_call_operand.vmem [shape: f32[19,32], index: 5, kind: input, shape index: {}]
  %s6 = inlined_call_operand.vmem [shape: f32[1,128], index: 6, kind: input, shape index: {}]
  %s7 = inlined_call_operand.vmem [shape: bf16[16,32], index: 7, kind: input, shape index: {}]
  %s8 = inlined_call_operand.vmem [shape: bf16[16,32], index: 8, kind: input, shape index: {}]
  %s9 = inlined_call_operand.vmem [shape: bf16[32,32], index: 9, kind: input, shape index: {}]
  %s10 = inlined_call_operand.vmem [shape: bf16[32,64], index: 10, kind: input, shape index: {}]
  %s11 = inlined_call_operand.vmem [shape: bf16[32,32], index: 11, kind: input, shape index: {}]
  %s12 = inlined_call_operand.vmem [shape: bf16[32,32], index: 12, kind: input, shape index: {}]
  %s13 = inlined_call_operand.vmem [shape: bf16[32,32], index: 13, kind: input, shape index: {}]
  %s14 = inlined_call_operand.vmem [shape: bf16[32,128], index: 14, kind: input, shape index: {}]
  %s15 = inlined_call_operand.vmem [shape: bf16[128,32], index: 15, kind: input, shape index: {}]
  %s16 = inlined_call_operand.vmem [shape: bf16[32,4], index: 16, kind: input, shape index: {}]
  %s17 = inlined_call_operand.vmem [shape: bf16[4,32], index: 17, kind: input, shape index: {}]
  %s18 = inlined_call_operand.vmem [shape: bf16[8,64], index: 18, kind: input, shape index: {}]
  %s19 = inlined_call_operand.<no memory space> [shape: f32[1], index: 19, kind: input, shape index: {}]
  %s20 = inlined_call_operand.hbm [shape: f32[16,32], index: 20, kind: output, shape index: {}]
  %s21 = sld [smem:[#allocation0]]
  $region113: #{tpu_custom_call.1} parent=0
    _
  %s23 = ssub.s32 1, %s21
  %s24 = scalar_select 0, %s23, %s21
  %25 = sst [smem:[#allocation2]] %s19
  $region1: #{tpu_custom_call.1} parent=0
    #allocation3 [shape = 'u8[8192]{0}', space=vmem, size = 0x2000, scoped, tag = 'output window, operand 0']
    #allocation4 [shape = 's32[2]{0}', space=sflag, size = 0x8, scoped, tag = 'scoped memory for tpu_custom_call.1']
    %26 = vsyncpa [#allocation4], 0
    %s27 = scalar_lea.sflag [#allocation4], 1
    %28 = vsyncpa %s27, 0
    loop: start=0, step=1, limit=4
    $region2: #{tpu_custom_call.1} parent=1 // loop_pre_header
      _
    $region3: #{tpu_custom_call.1} parent=1 // loop_header
      %s30 = sphi 0, %s34
      %p31 = scmp.ge.s32.totalorder %s30, 4
      %s40 = sphi 0, %s42
      %s43 = sphi 0, %s40
      %s44 = sphi 0, %s43
      %s60 = sphi 0, %s44
      %s66 = sphi 0, %s68
      %s69 = sphi 0, %s66
      %s70 = sphi 0, %s69
      %s86 = sphi 0, %s70
      %s92 = sphi 0, %s94
      %s95 = sphi 0, %s92
      %s96 = sphi 0, %s95
      %s112 = sphi 0, %s96
      %s118 = sphi 0, %s120
      %s121 = sphi 0, %s118
      %s122 = sphi 0, %s121
      %s138 = sphi 0, %s122
      %s142 = sphi 0, %s142
      %s144 = sphi 0, %s142
      %s145 = sphi 0, %s144
      %s159 = sphi 0, %s145
      %s163 = sphi 0, %s163
      %s165 = sphi 0, %s163
      %s166 = sphi 0, %s165
      %s180 = sphi 0, %s166
      %s184 = sphi 0, %s184
      %s186 = sphi 0, %s184
      %s187 = sphi 0, %s186
      %s201 = sphi 0, %s187
      %s205 = sphi 0, %s205
      %s207 = sphi 0, %s205
      %s208 = sphi 0, %s207
      %s222 = sphi 0, %s208
      %s226 = sphi 0, %s226
      %s228 = sphi 0, %s226
      %s229 = sphi 0, %s228
      %s243 = sphi 0, %s229
      %s247 = sphi 0, %s247
      %s249 = sphi 0, %s247
      %s250 = sphi 0, %s249
      %s264 = sphi 0, %s250
      %s268 = sphi 0, %s268
      %s270 = sphi 0, %s268
      %s271 = sphi 0, %s270
      %s285 = sphi 0, %s271
      %s289 = sphi 0, %s289
      %s291 = sphi 0, %s289
      %s292 = sphi 0, %s291
      %s306 = sphi 0, %s292
      %s310 = sphi 0, %s310
      %s312 = sphi 0, %s310
      %s313 = sphi 0, %s312
      %s327 = sphi 0, %s313
      %s331 = sphi 0, %s331
      %s333 = sphi 0, %s331
      %s334 = sphi 0, %s333
      %s348 = sphi 0, %s334
      %s352 = sphi 0, %s352
      %s354 = sphi 0, %s352
      %s355 = sphi 0, %s354
      %s369 = sphi 0, %s355
      %s373 = sphi 0, %s373
      %s375 = sphi 0, %s373
      %s376 = sphi 0, %s375
      %s390 = sphi 0, %s376
      %s394 = sphi 0, %s394
      %s396 = sphi 0, %s394
      %s397 = sphi 0, %s396
      %s411 = sphi 0, %s397
      %s415 = sphi 0, %s415
      %s417 = sphi 0, %s415
      %s418 = sphi 0, %s417
      %s432 = sphi 0, %s418
      %s436 = sphi 0, %s436
      %s438 = sphi 0, %s436
      %s439 = sphi 0, %s438
      %s453 = sphi 0, %s439
      %s457 = sphi 0, %s457
      %s459 = sphi 0, %s457
      %s460 = sphi 0, %s459
      %s474 = sphi 0, %s460
      %s480 = sphi 0, %s482
      %s483 = sphi 0, %s480
      %s484 = sphi 0, %s483
      %s500 = sphi 0, %s484
    $region4: #{tpu_custom_call.1} parent=1 // loop_header_branch
      %33 = sbr.rel (%p31) target = $region8
    $region5: #{tpu_custom_call.1} parent=1 // loop_body
      %s35 = ssub.s32 %s30, 1
      %s36 = ssub.s32 %s30, 2
      %s37 = sadd.s32 %s30, 1
      %s38 = ssub.s32 %s30, %s37
      %p39 = scmp.eq.s32.totalorder %s38, 0
      %s41 = sadd.s32 %s40, 1
      %s42 = scalar_select %p39, %s40, %s41
      %p45 = pneg %p39
      %p46 = scmp.eq.s32.totalorder %s30, 1
      %p47 = por %p45, %p46
      %p48 = scmp.ne.s32.totalorder %s40, %s43
      %p49 = scmp.eq.s32.totalorder %s30, 0
      %p50 = por %p48, %p49
      %p51 = scmp.ne.s32.totalorder %s40, %s43
      %p52 = scmp.eq.s32.totalorder %s35, 1
      %p53 = por %p51, %p52
      %p54 = scmp.ne.s32.totalorder %s43, %s44
      %p55 = scmp.eq.s32.totalorder %s35, 0
      %p56 = por %p54, %p55
      %p57 = scmp.ne.s32.totalorder %s43, %s44
      %p58 = scmp.eq.s32.totalorder %s36, 1
      %p59 = por %p57, %p58
      %p61 = scmp.ne.s32.totalorder %s44, %s60
      %p62 = scmp.eq.s32.totalorder %s36, 0
      %p63 = por %p61, %p62
      %s64 = ssub.s32 %s30, %s37
      %p65 = scmp.eq.s32.totalorder %s64, 0
      %s67 = sadd.s32 %s66, 1
      %s68 = scalar_select %p65, %s66, %s67
      %p71 = pneg %p65
      %p72 = scmp.eq.s32.totalorder %s30, 1
      %p73 = por %p71, %p72
      %p74 = scmp.ne.s32.totalorder %s66, %s69
      %p75 = scmp.eq.s32.totalorder %s30, 0
      %p76 = por %p74, %p75
      %p77 = scmp.ne.s32.totalorder %s66, %s69
      %p78 = scmp.eq.s32.totalorder %s35, 1
      %p79 = por %p77, %p78
      %p80 = scmp.ne.s32.totalorder %s69, %s70
      %p81 = scmp.eq.s32.totalorder %s35, 0
      %p82 = por %p80, %p81
      %p83 = scmp.ne.s32.totalorder %s69, %s70
      %p84 = scmp.eq.s32.totalorder %s36, 1
      %p85 = por %p83, %p84
      %p87 = scmp.ne.s32.totalorder %s70, %s86
      %p88 = scmp.eq.s32.totalorder %s36, 0
      %p89 = por %p87, %p88
      %s90 = ssub.s32 %s30, %s37
      %p91 = scmp.eq.s32.totalorder %s90, 0
      %s93 = sadd.s32 %s92, 1
      %s94 = scalar_select %p91, %s92, %s93
      %p97 = pneg %p91
      %p98 = scmp.eq.s32.totalorder %s30, 1
      %p99 = por %p97, %p98
      %p100 = scmp.ne.s32.totalorder %s92, %s95
      %p101 = scmp.eq.s32.totalorder %s30, 0
      %p102 = por %p100, %p101
      %p103 = scmp.ne.s32.totalorder %s92, %s95
      %p104 = scmp.eq.s32.totalorder %s35, 1
      %p105 = por %p103, %p104
      %p106 = scmp.ne.s32.totalorder %s95, %s96
      %p107 = scmp.eq.s32.totalorder %s35, 0
      %p108 = por %p106, %p107
      %p109 = scmp.ne.s32.totalorder %s95, %s96
      %p110 = scmp.eq.s32.totalorder %s36, 1
      %p111 = por %p109, %p110
      %p113 = scmp.ne.s32.totalorder %s96, %s112
      %p114 = scmp.eq.s32.totalorder %s36, 0
      %p115 = por %p113, %p114
      %s116 = ssub.s32 %s30, %s37
      %p117 = scmp.eq.s32.totalorder %s116, 0
      %s119 = sadd.s32 %s118, 1
      %s120 = scalar_select %p117, %s118, %s119
      %p123 = pneg %p117
      %p124 = scmp.eq.s32.totalorder %s30, 1
      %p125 = por %p123, %p124
      %p126 = scmp.ne.s32.totalorder %s118, %s121
      %p127 = scmp.eq.s32.totalorder %s30, 0
      %p128 = por %p126, %p127
      %p129 = scmp.ne.s32.totalorder %s118, %s121
      %p130 = scmp.eq.s32.totalorder %s35, 1
      %p131 = por %p129, %p130
      %p132 = scmp.ne.s32.totalorder %s121, %s122
      %p133 = scmp.eq.s32.totalorder %s35, 0
      %p134 = por %p132, %p133
      %p135 = scmp.ne.s32.totalorder %s121, %s122
      %p136 = scmp.eq.s32.totalorder %s36, 1
      %p137 = por %p135, %p136
      %p139 = scmp.ne.s32.totalorder %s122, %s138
      %p140 = scmp.eq.s32.totalorder %s36, 0
      %p141 = por %p139, %p140
      %s143 = sadd.s32 %s142, 1
      %p146 = scmp.eq.s32.totalorder %s30, 1
      %p147 = scmp.ne.s32.totalorder %s142, %s144
      %p148 = scmp.eq.s32.totalorder %s30, 0
      %p149 = por %p147, %p148
      %p150 = scmp.ne.s32.totalorder %s142, %s144
      %p151 = scmp.eq.s32.totalorder %s35, 1
      %p152 = por %p150, %p151
      %p153 = scmp.ne.s32.totalorder %s144, %s145
      %p154 = scmp.eq.s32.totalorder %s35, 0
      %p155 = por %p153, %p154
      %p156 = scmp.ne.s32.totalorder %s144, %s145
      %p157 = scmp.eq.s32.totalorder %s36, 1
      %p158 = por %p156, %p157
      %p160 = scmp.ne.s32.totalorder %s145, %s159
      %p161 = scmp.eq.s32.totalorder %s36, 0
      %p162 = por %p160, %p161
      %s164 = sadd.s32 %s163, 1
      %p167 = scmp.eq.s32.totalorder %s30, 1
      %p168 = scmp.ne.s32.totalorder %s163, %s165
      %p169 = scmp.eq.s32.totalorder %s30, 0
      %p170 = por %p168, %p169
      %p171 = scmp.ne.s32.totalorder %s163, %s165
      %p172 = scmp.eq.s32.totalorder %s35, 1
      %p173 = por %p171, %p172
      %p174 = scmp.ne.s32.totalorder %s165, %s166
      %p175 = scmp.eq.s32.totalorder %s35, 0
      %p176 = por %p174, %p175
      %p177 = scmp.ne.s32.totalorder %s165, %s166
      %p178 = scmp.eq.s32.totalorder %s36, 1
      %p179 = por %p177, %p178
      %p181 = scmp.ne.s32.totalorder %s166, %s180
      %p182 = scmp.eq.s32.totalorder %s36, 0
      %p183 = por %p181, %p182
      %s185 = sadd.s32 %s184, 1
      %p188 = scmp.eq.s32.totalorder %s30, 1
      %p189 = scmp.ne.s32.totalorder %s184, %s186
      %p190 = scmp.eq.s32.totalorder %s30, 0
      %p191 = por %p189, %p190
      %p192 = scmp.ne.s32.totalorder %s184, %s186
      %p193 = scmp.eq.s32.totalorder %s35, 1
      %p194 = por %p192, %p193
      %p195 = scmp.ne.s32.totalorder %s186, %s187
      %p196 = scmp.eq.s32.totalorder %s35, 0
      %p197 = por %p195, %p196
      %p198 = scmp.ne.s32.totalorder %s186, %s187
      %p199 = scmp.eq.s32.totalorder %s36, 1
      %p200 = por %p198, %p199
      %p202 = scmp.ne.s32.totalorder %s187, %s201
      %p203 = scmp.eq.s32.totalorder %s36, 0
      %p204 = por %p202, %p203
      %s206 = sadd.s32 %s205, 1
      %p209 = scmp.eq.s32.totalorder %s30, 1
      %p210 = scmp.ne.s32.totalorder %s205, %s207
      %p211 = scmp.eq.s32.totalorder %s30, 0
      %p212 = por %p210, %p211
      %p213 = scmp.ne.s32.totalorder %s205, %s207
      %p214 = scmp.eq.s32.totalorder %s35, 1
      %p215 = por %p213, %p214
      %p216 = scmp.ne.s32.totalorder %s207, %s208
      %p217 = scmp.eq.s32.totalorder %s35, 0
      %p218 = por %p216, %p217
      %p219 = scmp.ne.s32.totalorder %s207, %s208
      %p220 = scmp.eq.s32.totalorder %s36, 1
      %p221 = por %p219, %p220
      %p223 = scmp.ne.s32.totalorder %s208, %s222
      %p224 = scmp.eq.s32.totalorder %s36, 0
      %p225 = por %p223, %p224
      %s227 = sadd.s32 %s226, 1
      %p230 = scmp.eq.s32.totalorder %s30, 1
      %p231 = scmp.ne.s32.totalorder %s226, %s228
      %p232 = scmp.eq.s32.totalorder %s30, 0
      %p233 = por %p231, %p232
      %p234 = scmp.ne.s32.totalorder %s226, %s228
      %p235 = scmp.eq.s32.totalorder %s35, 1
      %p236 = por %p234, %p235
      %p237 = scmp.ne.s32.totalorder %s228, %s229
      %p238 = scmp.eq.s32.totalorder %s35, 0
      %p239 = por %p237, %p238
      %p240 = scmp.ne.s32.totalorder %s228, %s229
      %p241 = scmp.eq.s32.totalorder %s36, 1
      %p242 = por %p240, %p241
      %p244 = scmp.ne.s32.totalorder %s229, %s243
      %p245 = scmp.eq.s32.totalorder %s36, 0
      %p246 = por %p244, %p245
      %s248 = sadd.s32 %s247, 1
      %p251 = scmp.eq.s32.totalorder %s30, 1
      %p252 = scmp.ne.s32.totalorder %s247, %s249
      %p253 = scmp.eq.s32.totalorder %s30, 0
      %p254 = por %p252, %p253
      %p255 = scmp.ne.s32.totalorder %s247, %s249
      %p256 = scmp.eq.s32.totalorder %s35, 1
      %p257 = por %p255, %p256
      %p258 = scmp.ne.s32.totalorder %s249, %s250
      %p259 = scmp.eq.s32.totalorder %s35, 0
      %p260 = por %p258, %p259
      %p261 = scmp.ne.s32.totalorder %s249, %s250
      %p262 = scmp.eq.s32.totalorder %s36, 1
      %p263 = por %p261, %p262
      %p265 = scmp.ne.s32.totalorder %s250, %s264
      %p266 = scmp.eq.s32.totalorder %s36, 0
      %p267 = por %p265, %p266
      %s269 = sadd.s32 %s268, 1
      %p272 = scmp.eq.s32.totalorder %s30, 1
      %p273 = scmp.ne.s32.totalorder %s268, %s270
      %p274 = scmp.eq.s32.totalorder %s30, 0
      %p275 = por %p273, %p274
      %p276 = scmp.ne.s32.totalorder %s268, %s270
      %p277 = scmp.eq.s32.totalorder %s35, 1
      %p278 = por %p276, %p277
      %p279 = scmp.ne.s32.totalorder %s270, %s271
      %p280 = scmp.eq.s32.totalorder %s35, 0
      %p281 = por %p279, %p280
      %p282 = scmp.ne.s32.totalorder %s270, %s271
      %p283 = scmp.eq.s32.totalorder %s36, 1
      %p284 = por %p282, %p283
      %p286 = scmp.ne.s32.totalorder %s271, %s285
      %p287 = scmp.eq.s32.totalorder %s36, 0
      %p288 = por %p286, %p287
      %s290 = sadd.s32 %s289, 1
      %p293 = scmp.eq.s32.totalorder %s30, 1
      %p294 = scmp.ne.s32.totalorder %s289, %s291
      %p295 = scmp.eq.s32.totalorder %s30, 0
      %p296 = por %p294, %p295
      %p297 = scmp.ne.s32.totalorder %s289, %s291
      %p298 = scmp.eq.s32.totalorder %s35, 1
      %p299 = por %p297, %p298
      %p300 = scmp.ne.s32.totalorder %s291, %s292
      %p301 = scmp.eq.s32.totalorder %s35, 0
      %p302 = por %p300, %p301
      %p303 = scmp.ne.s32.totalorder %s291, %s292
      %p304 = scmp.eq.s32.totalorder %s36, 1
      %p305 = por %p303, %p304
      %p307 = scmp.ne.s32.totalorder %s292, %s306
      %p308 = scmp.eq.s32.totalorder %s36, 0
      %p309 = por %p307, %p308
      %s311 = sadd.s32 %s310, 1
      %p314 = scmp.eq.s32.totalorder %s30, 1
      %p315 = scmp.ne.s32.totalorder %s310, %s312
      %p316 = scmp.eq.s32.totalorder %s30, 0
      %p317 = por %p315, %p316
      %p318 = scmp.ne.s32.totalorder %s310, %s312
      %p319 = scmp.eq.s32.totalorder %s35, 1
      %p320 = por %p318, %p319
      %p321 = scmp.ne.s32.totalorder %s312, %s313
      %p322 = scmp.eq.s32.totalorder %s35, 0
      %p323 = por %p321, %p322
      %p324 = scmp.ne.s32.totalorder %s312, %s313
      %p325 = scmp.eq.s32.totalorder %s36, 1
      %p326 = por %p324, %p325
      %p328 = scmp.ne.s32.totalorder %s313, %s327
      %p329 = scmp.eq.s32.totalorder %s36, 0
      %p330 = por %p328, %p329
      %s332 = sadd.s32 %s331, 1
      %p335 = scmp.eq.s32.totalorder %s30, 1
      %p336 = scmp.ne.s32.totalorder %s331, %s333
      %p337 = scmp.eq.s32.totalorder %s30, 0
      %p338 = por %p336, %p337
      %p339 = scmp.ne.s32.totalorder %s331, %s333
      %p340 = scmp.eq.s32.totalorder %s35, 1
      %p341 = por %p339, %p340
      %p342 = scmp.ne.s32.totalorder %s333, %s334
      %p343 = scmp.eq.s32.totalorder %s35, 0
      %p344 = por %p342, %p343
      %p345 = scmp.ne.s32.totalorder %s333, %s334
      %p346 = scmp.eq.s32.totalorder %s36, 1
      %p347 = por %p345, %p346
      %p349 = scmp.ne.s32.totalorder %s334, %s348
      %p350 = scmp.eq.s32.totalorder %s36, 0
      %p351 = por %p349, %p350
      %s353 = sadd.s32 %s352, 1
      %p356 = scmp.eq.s32.totalorder %s30, 1
      %p357 = scmp.ne.s32.totalorder %s352, %s354
      %p358 = scmp.eq.s32.totalorder %s30, 0
      %p359 = por %p357, %p358
      %p360 = scmp.ne.s32.totalorder %s352, %s354
      %p361 = scmp.eq.s32.totalorder %s35, 1
      %p362 = por %p360, %p361
      %p363 = scmp.ne.s32.totalorder %s354, %s355
      %p364 = scmp.eq.s32.totalorder %s35, 0
      %p365 = por %p363, %p364
      %p366 = scmp.ne.s32.totalorder %s354, %s355
      %p367 = scmp.eq.s32.totalorder %s36, 1
      %p368 = por %p366, %p367
      %p370 = scmp.ne.s32.totalorder %s355, %s369
      %p371 = scmp.eq.s32.totalorder %s36, 0
      %p372 = por %p370, %p371
      %s374 = sadd.s32 %s373, 1
      %p377 = scmp.eq.s32.totalorder %s30, 1
      %p378 = scmp.ne.s32.totalorder %s373, %s375
      %p379 = scmp.eq.s32.totalorder %s30, 0
      %p380 = por %p378, %p379
      %p381 = scmp.ne.s32.totalorder %s373, %s375
      %p382 = scmp.eq.s32.totalorder %s35, 1
      %p383 = por %p381, %p382
      %p384 = scmp.ne.s32.totalorder %s375, %s376
      %p385 = scmp.eq.s32.totalorder %s35, 0
      %p386 = por %p384, %p385
      %p387 = scmp.ne.s32.totalorder %s375, %s376
      %p388 = scmp.eq.s32.totalorder %s36, 1
      %p389 = por %p387, %p388
      %p391 = scmp.ne.s32.totalorder %s376, %s390
      %p392 = scmp.eq.s32.totalorder %s36, 0
      %p393 = por %p391, %p392
      %s395 = sadd.s32 %s394, 1
      %p398 = scmp.eq.s32.totalorder %s30, 1
      %p399 = scmp.ne.s32.totalorder %s394, %s396
      %p400 = scmp.eq.s32.totalorder %s30, 0
      %p401 = por %p399, %p400
      %p402 = scmp.ne.s32.totalorder %s394, %s396
      %p403 = scmp.eq.s32.totalorder %s35, 1
      %p404 = por %p402, %p403
      %p405 = scmp.ne.s32.totalorder %s396, %s397
      %p406 = scmp.eq.s32.totalorder %s35, 0
      %p407 = por %p405, %p406
      %p408 = scmp.ne.s32.totalorder %s396, %s397
      %p409 = scmp.eq.s32.totalorder %s36, 1
      %p410 = por %p408, %p409
      %p412 = scmp.ne.s32.totalorder %s397, %s411
      %p413 = scmp.eq.s32.totalorder %s36, 0
      %p414 = por %p412, %p413
      %s416 = sadd.s32 %s415, 1
      %p419 = scmp.eq.s32.totalorder %s30, 1
      %p420 = scmp.ne.s32.totalorder %s415, %s417
      %p421 = scmp.eq.s32.totalorder %s30, 0
      %p422 = por %p420, %p421
      %p423 = scmp.ne.s32.totalorder %s415, %s417
      %p424 = scmp.eq.s32.totalorder %s35, 1
      %p425 = por %p423, %p424
      %p426 = scmp.ne.s32.totalorder %s417, %s418
      %p427 = scmp.eq.s32.totalorder %s35, 0
      %p428 = por %p426, %p427
      %p429 = scmp.ne.s32.totalorder %s417, %s418
      %p430 = scmp.eq.s32.totalorder %s36, 1
      %p431 = por %p429, %p430
      %p433 = scmp.ne.s32.totalorder %s418, %s432
      %p434 = scmp.eq.s32.totalorder %s36, 0
      %p435 = por %p433, %p434
      %s437 = sadd.s32 %s436, 1
      %p440 = scmp.eq.s32.totalorder %s30, 1
      %p441 = scmp.ne.s32.totalorder %s436, %s438
      %p442 = scmp.eq.s32.totalorder %s30, 0
      %p443 = por %p441, %p442
      %p444 = scmp.ne.s32.totalorder %s436, %s438
      %p445 = scmp.eq.s32.totalorder %s35, 1
      %p446 = por %p444, %p445
      %p447 = scmp.ne.s32.totalorder %s438, %s439
      %p448 = scmp.eq.s32.totalorder %s35, 0
      %p449 = por %p447, %p448
      %p450 = scmp.ne.s32.totalorder %s438, %s439
      %p451 = scmp.eq.s32.totalorder %s36, 1
      %p452 = por %p450, %p451
      %p454 = scmp.ne.s32.totalorder %s439, %s453
      %p455 = scmp.eq.s32.totalorder %s36, 0
      %p456 = por %p454, %p455
      %s458 = sadd.s32 %s457, 1
      %p461 = scmp.eq.s32.totalorder %s30, 1
      %p462 = scmp.ne.s32.totalorder %s457, %s459
      %p463 = scmp.eq.s32.totalorder %s30, 0
      %p464 = por %p462, %p463
      %p465 = scmp.ne.s32.totalorder %s457, %s459
      %p466 = scmp.eq.s32.totalorder %s35, 1
      %p467 = por %p465, %p466
      %p468 = scmp.ne.s32.totalorder %s459, %s460
      %p469 = scmp.eq.s32.totalorder %s35, 0
      %p470 = por %p468, %p469
      %p471 = scmp.ne.s32.totalorder %s459, %s460
      %p472 = scmp.eq.s32.totalorder %s36, 1
      %p473 = por %p471, %p472
      %p475 = scmp.ne.s32.totalorder %s460, %s474
      %p476 = scmp.eq.s32.totalorder %s36, 0
      %p477 = por %p475, %p476
      %s478 = ssub.s32 %s30, %s37
      %p479 = scmp.eq.s32.totalorder %s478, 0
      %s481 = sadd.s32 %s480, 1
      %s482 = scalar_select %p479, %s480, %s481
      %p485 = pneg %p479
      %p486 = scmp.eq.s32.totalorder %s30, 1
      %p487 = por %p485, %p486
      %p488 = scmp.ne.s32.totalorder %s480, %s483
      %p489 = scmp.eq.s32.totalorder %s30, 0
      %p490 = por %p488, %p489
      %p491 = scmp.ne.s32.totalorder %s480, %s483
      %p492 = scmp.eq.s32.totalorder %s35, 1
      %p493 = por %p491, %p492
      %p494 = scmp.ne.s32.totalorder %s483, %s484
      %p495 = scmp.eq.s32.totalorder %s35, 0
      %p496 = por %p494, %p495
      %p497 = scmp.ne.s32.totalorder %s483, %s484
      %p498 = scmp.eq.s32.totalorder %s36, 1
      %p499 = por %p497, %p498
      %p501 = scmp.ne.s32.totalorder %s484, %s500
      %p502 = scmp.eq.s32.totalorder %s36, 0
      %p503 = por %p501, %p502
      %p504 = scmp.le.s32.totalorder 1, %s30
      %p505 = scmp.lt.s32.totalorder %s30, 3
      %p506 = pnand %p504, %p505
      %p507 = pneg %p506
      // Predicated region
      $region9: #{tpu_custom_call.1} parent=5 // pred_check
        _
      $region10: #{tpu_custom_call.1} parent=5 // pred_check_branch
        %509 = sbr.rel (%p506) target = $region12
      $region11: #{tpu_custom_call.1} parent=5 // pred_region
        %s510 = ssub.s32 %s30, 1
        // Predicated region
        $region13: #{tpu_custom_call.1} parent=11 // pred_check
          %p511 = pneg %p155
        $region14: #{tpu_custom_call.1} parent=11 // pred_check_branch
          %513 = sbr.rel (%p511) target = $region16
        $region15: #{tpu_custom_call.1} parent=11 // pred_region
          _
        $region16: #{tpu_custom_call.1} parent=11 // pred_fallthru
          _
        // Predicated region
        $region17: #{tpu_custom_call.1} parent=11 // pred_check
          %p514 = pneg %p176
        $region18: #{tpu_custom_call.1} parent=11 // pred_check_branch
          %516 = sbr.rel (%p514) target = $region20
        $region19: #{tpu_custom_call.1} parent=11 // pred_region
          _
        $region20: #{tpu_custom_call.1} parent=11 // pred_fallthru
          _
        // Predicated region
        $region21: #{tpu_custom_call.1} parent=11 // pred_check
          %p517 = pneg %p197
        $region22: #{tpu_custom_call.1} parent=11 // pred_check_branch
          %519 = sbr.rel (%p517) target = $region24
        $region23: #{tpu_custom_call.1} parent=11 // pred_region
          _
        $region24: #{tpu_custom_call.1} parent=11 // pred_fallthru
          _
        // Predicated region
        $region25: #{tpu_custom_call.1} parent=11 // pred_check
          %p520 = pneg %p218
        $region26: #{tpu_custom_call.1} parent=11 // pred_check_branch
          %522 = sbr.rel (%p520) target = $region28
        $region27: #{tpu_custom_call.1} parent=11 // pred_region
          _
        $region28: #{tpu_custom_call.1} parent=11 // pred_fallthru
          _
        // Predicated region
        $region29: #{tpu_custom_call.1} parent=11 // pred_check
          %p523 = pneg %p239
        $region30: #{tpu_custom_call.1} parent=11 // pred_check_branch
          %525 = sbr.rel (%p523) target = $region32
        $region31: #{tpu_custom_call.1} parent=11 // pred_region
          _
        $region32: #{tpu_custom_call.1} parent=11 // pred_fallthru
          _
        // Predicated region
        $region33: #{tpu_custom_call.1} parent=11 // pred_check
          %p526 = pneg %p260
        $region34: #{tpu_custom_call.1} parent=11 // pred_check_branch
          %528 = sbr.rel (%p526) target = $region36
        $region35: #{tpu_custom_call.1} parent=11 // pred_region
          _
        $region36: #{tpu_custom_call.1} parent=11 // pred_fallthru
          _
        // Predicated region
        $region37: #{tpu_custom_call.1} parent=11 // pred_check
          %p529 = pneg %p281
        $region38: #{tpu_custom_call.1} parent=11 // pred_check_branch
          %531 = sbr.rel (%p529) target = $region40
        $region39: #{tpu_custom_call.1} parent=11 // pred_region
          _
        $region40: #{tpu_custom_call.1} parent=11 // pred_fallthru
          _
        // Predicated region
        $region41: #{tpu_custom_call.1} parent=11 // pred_check
          %p532 = pneg %p302
        $region42: #{tpu_custom_call.1} parent=11 // pred_check_branch
          %534 = sbr.rel (%p532) target = $region44
        $region43: #{tpu_custom_call.1} parent=11 // pred_region
          _
        $region44: #{tpu_custom_call.1} parent=11 // pred_fallthru
          _
        // Predicated region
        $region45: #{tpu_custom_call.1} parent=11 // pred_check
          %p535 = pneg %p323
        $region46: #{tpu_custom_call.1} parent=11 // pred_check_branch
          %537 = sbr.rel (%p535) target = $region48
        $region47: #{tpu_custom_call.1} parent=11 // pred_region
          _
        $region48: #{tpu_custom_call.1} parent=11 // pred_fallthru
          _
        // Predicated region
        $region49: #{tpu_custom_call.1} parent=11 // pred_check
          %p538 = pneg %p344
        $region50: #{tpu_custom_call.1} parent=11 // pred_check_branch
          %540 = sbr.rel (%p538) target = $region52
        $region51: #{tpu_custom_call.1} parent=11 // pred_region
          _
        $region52: #{tpu_custom_call.1} parent=11 // pred_fallthru
          _
        // Predicated region
        $region53: #{tpu_custom_call.1} parent=11 // pred_check
          %p541 = pneg %p365
        $region54: #{tpu_custom_call.1} parent=11 // pred_check_branch
          %543 = sbr.rel (%p541) target = $region56
        $region55: #{tpu_custom_call.1} parent=11 // pred_region
          _
        $region56: #{tpu_custom_call.1} parent=11 // pred_fallthru
          _
        // Predicated region
        $region57: #{tpu_custom_call.1} parent=11 // pred_check
          %p544 = pneg %p386
        $region58: #{tpu_custom_call.1} parent=11 // pred_check_branch
          %546 = sbr.rel (%p544) target = $region60
        $region59: #{tpu_custom_call.1} parent=11 // pred_region
          _
        $region60: #{tpu_custom_call.1} parent=11 // pred_fallthru
          _
        // Predicated region
        $region61: #{tpu_custom_call.1} parent=11 // pred_check
          %p547 = pneg %p407
        $region62: #{tpu_custom_call.1} parent=11 // pred_check_branch
          %549 = sbr.rel (%p547) target = $region64
        $region63: #{tpu_custom_call.1} parent=11 // pred_region
          _
        $region64: #{tpu_custom_call.1} parent=11 // pred_fallthru
          _
        // Predicated region
        $region65: #{tpu_custom_call.1} parent=11 // pred_check
          %p550 = pneg %p428
        $region66: #{tpu_custom_call.1} parent=11 // pred_check_branch
          %552 = sbr.rel (%p550) target = $region68
        $region67: #{tpu_custom_call.1} parent=11 // pred_region
          _
        $region68: #{tpu_custom_call.1} parent=11 // pred_fallthru
          _
        // Predicated region
        $region69: #{tpu_custom_call.1} parent=11 // pred_check
          %p553 = pneg %p449
        $region70: #{tpu_custom_call.1} parent=11 // pred_check_branch
          %555 = sbr.rel (%p553) target = $region72
        $region71: #{tpu_custom_call.1} parent=11 // pred_region
          _
        $region72: #{tpu_custom_call.1} parent=11 // pred_fallthru
          _
        // Predicated region
        $region73: #{tpu_custom_call.1} parent=11 // pred_check
          %p556 = pneg %p470
        $region74: #{tpu_custom_call.1} parent=11 // pred_check_branch
          %558 = sbr.rel (%p556) target = $region76
        $region75: #{tpu_custom_call.1} parent=11 // pred_region
          _
        $region76: #{tpu_custom_call.1} parent=11 // pred_fallthru
          _
      $region12: #{tpu_custom_call.1} parent=5 // pred_fallthru
        _
      %p559 = scmp.lt.s32.totalorder %s30, 2
      // Predicated region
      $region77: #{tpu_custom_call.1} parent=5 // pred_check
        %p560 = pneg %p559
      $region78: #{tpu_custom_call.1} parent=5 // pred_check_branch
        %562 = sbr.rel (%p560) target = $region80
      $region79: #{tpu_custom_call.1} parent=5 // pred_region
        // Predicated region
        $region81: #{tpu_custom_call.1} parent=79 // pred_check
          %p563 = pneg %p50
        $region82: #{tpu_custom_call.1} parent=79 // pred_check_branch
          %565 = sbr.rel (%p563) target = $region84
        $region83: #{tpu_custom_call.1} parent=79 // pred_region
          %s566 = smul.u32 8, %s30
          %p567 = scmp.lt.s32.totalorder %s566, 15
          %s568 = scalar_select %p567, %s566, 15
          %s569 = smul.addr %s568, 8
          %s570 = scalar_lea.vmem %s0, %s569
          %s571 = smul.u32 8, %s30
        $region84: #{tpu_custom_call.1} parent=79 // pred_fallthru
          _
        // Predicated region
        $region85: #{tpu_custom_call.1} parent=79 // pred_check
          %p572 = pneg %p76
        $region86: #{tpu_custom_call.1} parent=79 // pred_check_branch
          %574 = sbr.rel (%p572) target = $region88
        $region87: #{tpu_custom_call.1} parent=79 // pred_region
          %p575 = scmp.lt.s32.totalorder %s30, 1
          %s576 = scalar_select %p575, %s30, 1
          %s577 = smul.addr %s576, 8
          %s578 = scalar_lea.vmem %s1, %s577
        $region88: #{tpu_custom_call.1} parent=79 // pred_fallthru
          _
        // Predicated region
        $region89: #{tpu_custom_call.1} parent=79 // pred_check
          %p579 = pneg %p102
        $region90: #{tpu_custom_call.1} parent=79 // pred_check_branch
          %581 = sbr.rel (%p579) target = $region92
        $region91: #{tpu_custom_call.1} parent=79 // pred_region
          %p582 = scmp.lt.s32.totalorder %s30, 1
          %s583 = scalar_select %p582, %s30, 1
          %s584 = smul.addr %s583, 4
          %s585 = scalar_lea.vmem %s2, %s584
        $region92: #{tpu_custom_call.1} parent=79 // pred_fallthru
          _
        // Predicated region
        $region93: #{tpu_custom_call.1} parent=79 // pred_check
          %p586 = pneg %p128
        $region94: #{tpu_custom_call.1} parent=79 // pred_check_branch
          %588 = sbr.rel (%p586) target = $region96
        $region95: #{tpu_custom_call.1} parent=79 // pred_region
          %s589 = smul.u32 8, %s30
          %p590 = scmp.lt.s32.totalorder %s589, 15
          %s591 = scalar_select %p590, %s589, 15
          %s592 = smul.addr %s591, 4
          %s593 = scalar_lea.vmem %s3, %s592
          %s594 = smul.u32 8, %s30
        $region96: #{tpu_custom_call.1} parent=79 // pred_fallthru
          _
      $region80: #{tpu_custom_call.1} parent=5 // pred_fallthru
        _
      %p595 = scmp.le.s32.totalorder 1, %s30
      %p596 = scmp.lt.s32.totalorder %s30, 3
      %p597 = pnand %p595, %p596
      %p598 = pneg %p597
      // Predicated region
      $region97: #{tpu_custom_call.1} parent=5 // pred_check
        _
      $region98: #{tpu_custom_call.1} parent=5 // pred_check_branch
        %600 = sbr.rel (%p597) target = $region100
      $region99: #{tpu_custom_call.1} parent=5 // pred_region
        %s601 = ssub.s32 %s30, 1
        %s602 = smul.u32 8, %s35
        %p603 = scmp.lt.s32.totalorder %s602, 15
        %s604 = scalar_select %p603, %s602, 15
        %s605 = smul.addr %s604, 8
        %s606 = scalar_lea.vmem %s0, %s605
        %p607 = pneg %p56
        %p608 = pneg %p53
        %p609 = scmp.lt.s32.totalorder %s35, 1
        %s610 = scalar_select %p609, %s35, 1
        %s611 = smul.addr %s610, 8
        %s612 = scalar_lea.vmem %s1, %s611
        %p613 = pneg %p82
        %p614 = pneg %p79
        %p615 = scmp.lt.s32.totalorder %s35, 1
        %s616 = scalar_select %p615, %s35, 1
        %s617 = smul.addr %s616, 4
        %s618 = scalar_lea.vmem %s2, %s617
        %p619 = pneg %p108
        %p620 = pneg %p105
        %s621 = smul.u32 8, %s35
        %p622 = scmp.lt.s32.totalorder %s621, 15
        %s623 = scalar_select %p622, %s621, 15
        %s624 = smul.addr %s623, 4
        %s625 = scalar_lea.vmem %s3, %s624
        %p626 = pneg %p134
        %p627 = pneg %p131
        %p628 = pneg %p155
        %p629 = pneg %p152
        %p630 = pneg %p176
        %p631 = pneg %p173
        %p632 = pneg %p197
        %p633 = pneg %p194
        %p634 = pneg %p218
        %p635 = pneg %p215
        %p636 = pneg %p239
        %p637 = pneg %p236
        %p638 = pneg %p260
        %p639 = pneg %p257
        %p640 = pneg %p281
        %p641 = pneg %p278
        %p642 = pneg %p302
        %p643 = pneg %p299
        %p644 = pneg %p323
        %p645 = pneg %p320
        %p646 = pneg %p344
        %p647 = pneg %p341
        %p648 = pneg %p365
        %p649 = pneg %p362
        %p650 = pneg %p386
        %p651 = pneg %p383
        %p652 = pneg %p407
        %p653 = pneg %p404
        %p654 = pneg %p428
        %p655 = pneg %p425
        %p656 = pneg %p449
        %p657 = pneg %p446
        %p658 = pneg %p470
        %p659 = pneg %p467
        %p660 = pneg %p496
        %p661 = pneg %p493
        %s662 = sand.u32 %s483, 1
        %s663 = scalar_lea.sflag [#allocation4], %s662
        %s664 = sand.u32 %s483, 1
        %s665 = smul.addr %s664, 8
        %s666 = scalar_lea.vmem [#allocation3], %s665
        %s667 = smul.u32 8, %s35
        %p668 = scmp.lt.s32.totalorder %s667, 15
        %s669 = scalar_select %p668, %s667, 15
        %s670 = smul.addr %s669, 8
        %s671 = scalar_lea.vmem %s0, %s670
        %s672 = smul.u32 8, %s35
        %p673 = scmp.lt.s32.totalorder %s35, 1
        %s674 = scalar_select %p673, %s35, 1
        %s675 = smul.addr %s674, 8
        %s676 = scalar_lea.vmem %s1, %s675
        %p677 = scmp.lt.s32.totalorder %s35, 1
        %s678 = scalar_select %p677, %s35, 1
        %s679 = smul.addr %s678, 4
        %s680 = scalar_lea.vmem %s2, %s679
        %s681 = smul.u32 8, %s35
        %p682 = scmp.lt.s32.totalorder %s681, 15
        %s683 = scalar_select %p682, %s681, 15
        %s684 = smul.addr %s683, 4
        %s685 = scalar_lea.vmem %s3, %s684
        %s686 = smul.u32 8, %s35
        %v688 = vld [vmem:[%s4] sm:$0xff]
        %v689 = vld [vmem:[%s4 + $0x8] sm:$0x1]
        %v690 = vld [vmem:[%s5] sm:$0xff]
        %v691 = vld [vmem:[%s5 + $0x8] sm:$0xff]
        %v692 = vld [vmem:[%s5 + $0x10] sm:$0x7]
        %v693 = vld [vmem:[%s671] sm:$0xff]
        %v694 = vld [vmem:[%s671 + $0x8] sm:$0xff]
        %v695 = vld [vmem:[%s671 + $0x10] sm:$0xff]
        %v696 = vld [vmem:[%s671 + $0x18] sm:$0xff]
        %v697 = vld [vmem:[%s671 + $0x20] sm:$0xff]
        %v698 = vld [vmem:[%s671 + $0x28] sm:$0xff]
        %v699 = vld [vmem:[%s671 + $0x30] sm:$0xff]
        %v700 = vld [vmem:[%s671 + $0x38] sm:$0xff]
        %v701 = vld [vmem:[%s676] sm:$0xff]
        %v702 = vld [vmem:[%s680] sm:$0xf]
        %v703 = vunpack.c.l.bf16 %v702
        %v704 = vld [vmem:[%s685] sm:$0xf]
        %v705 = vld [vmem:[%s685 + $0x4] sm:$0xf]
        %v706 = vld [vmem:[%s685 + $0x8] sm:$0xf]
        %v707 = vld [vmem:[%s685 + $0xc] sm:$0xf]
        %v708 = vld [vmem:[%s685 + $0x10] sm:$0xf]
        %v709 = vld [vmem:[%s685 + $0x14] sm:$0xf]
        %v710 = vld [vmem:[%s685 + $0x18] sm:$0xf]
        %v711 = vld [vmem:[%s685 + $0x1c] sm:$0xf]
        %v712 = vunpack.c.l.bf16 %v704
        %v713 = vunpack.c.l.bf16 %v705
        %v714 = vunpack.c.l.bf16 %v706
        %v715 = vunpack.c.l.bf16 %v707
        %v716 = vunpack.c.l.bf16 %v708
        %v717 = vunpack.c.l.bf16 %v709
        %v718 = vunpack.c.l.bf16 %v710
        %v719 = vunpack.c.l.bf16 %v711
        %721 = vset.pattern.permute.xlu0 0
        %722 = vperm.xlu0 %721, %v693
        %v723 = vpop.permute.xlu0 %722
        %726 = vset.pattern.permute.xlu0 0
        %727 = vperm.xlu0 %726, %v694
        %v728 = vpop.permute.xlu0 %727
        %731 = vset.pattern.permute.xlu0 0
        %732 = vperm.xlu0 %731, %v695
        %v733 = vpop.permute.xlu0 %732
        %736 = vset.pattern.permute.xlu0 0
        %737 = vperm.xlu0 %736, %v696
        %v738 = vpop.permute.xlu0 %737
        %741 = vset.pattern.permute.xlu0 0
        %742 = vperm.xlu0 %741, %v697
        %v743 = vpop.permute.xlu0 %742
        %746 = vset.pattern.permute.xlu0 0
        %747 = vperm.xlu0 %746, %v698
        %v748 = vpop.permute.xlu0 %747
        %751 = vset.pattern.permute.xlu0 0
        %752 = vperm.xlu0 %751, %v699
        %v753 = vpop.permute.xlu0 %752
        %756 = vset.pattern.permute.xlu0 0
        %757 = vperm.xlu0 %756, %v700
        %v758 = vpop.permute.xlu0 %757
        %v760 = vlaneseq
        %v761 = vshrl.u32 %v760, 7
        %v762 = vsub.s32 0, %v761
        %v763 = vrot.slane %v688, %v762
        %v764 = vmul.f32 %v723, %v763
        %v765 = vmul.f32 %v728, %v763
        %v766 = vmul.f32 %v733, %v763
        %v767 = vmul.f32 %v738, %v763
        %v768 = vmul.f32 %v743, %v763
        %v769 = vmul.f32 %v748, %v763
        %v770 = vmul.f32 %v753, %v763
        %v771 = vmul.f32 %v758, %v763
        %v772 = vlaneseq
        %v773 = vshrl.u32 %v772, 7
        %v774 = vsub.s32 1, %v773
        %v775 = vrot.slane %v688, %v774
        %v776 = vadd.f32 %v764, %v775
        %v777 = vadd.f32 %v765, %v775
        %v778 = vadd.f32 %v766, %v775
        %v779 = vadd.f32 %v767, %v775
        %v780 = vadd.f32 %v768, %v775
        %v781 = vadd.f32 %v769, %v775
        %v782 = vadd.f32 %v770, %v775
        %v783 = vadd.f32 %v771, %v775
        %vm784 = vcmask 130048
        %v785 = vsel %vm784, %v776, 0.0
        %786 = vadd.xlane.f32.xlu0 %v785
        %v787 = vpop.xlane.xlu0 %786
        %v788 = vsel %vm784, %v777, 0.0
        %789 = vadd.xlane.f32.xlu0 %v788
        %v790 = vpop.xlane.xlu0 %789
        %v791 = vsel %vm784, %v778, 0.0
        %792 = vadd.xlane.f32.xlu0 %v791
        %v793 = vpop.xlane.xlu0 %792
        %v794 = vsel %vm784, %v779, 0.0
        %795 = vadd.xlane.f32.xlu0 %v794
        %v796 = vpop.xlane.xlu0 %795
        %v797 = vsel %vm784, %v780, 0.0
        %798 = vadd.xlane.f32.xlu0 %v797
        %v799 = vpop.xlane.xlu0 %798
        %v800 = vsel %vm784, %v781, 0.0
        %801 = vadd.xlane.f32.xlu0 %v800
        %v802 = vpop.xlane.xlu0 %801
        %v803 = vsel %vm784, %v782, 0.0
        %804 = vadd.xlane.f32.xlu0 %v803
        %v805 = vpop.xlane.xlu0 %804
        %v806 = vsel %vm784, %v783, 0.0
        %807 = vadd.xlane.f32.xlu0 %v806
        %v808 = vpop.xlane.xlu0 %807
        %v809 = vrcp.pop 16.0
        %v810 = vmul.f32 %v787, %v809
        %v811 = vmul.f32 %v790, %v809
        %v812 = vmul.f32 %v793, %v809
        %v813 = vmul.f32 %v796, %v809
        %v814 = vmul.f32 %v799, %v809
        %v815 = vmul.f32 %v802, %v809
        %v816 = vmul.f32 %v805, %v809
        %v817 = vmul.f32 %v808, %v809
        %v818 = vsub.f32 %v776, %v810
        %v819 = vsub.f32 %v777, %v811
        %v820 = vsub.f32 %v778, %v812
        %v821 = vsub.f32 %v779, %v813
        %v822 = vsub.f32 %v780, %v814
        %v823 = vsub.f32 %v781, %v815
        %v824 = vsub.f32 %v782, %v816
        %v825 = vsub.f32 %v783, %v817
        %v826 = vmul.f32 %v818, %v818
        %v827 = vmul.f32 %v819, %v819
        %v828 = vmul.f32 %v820, %v820
        %v829 = vmul.f32 %v821, %v821
        %v830 = vmul.f32 %v822, %v822
        %v831 = vmul.f32 %v823, %v823
        %v832 = vmul.f32 %v824, %v824
        %v833 = vmul.f32 %v825, %v825
        %v834 = vsel %vm784, %v826, 0.0
        %835 = vadd.xlane.f32.xlu0 %v834
        %v836 = vpop.xlane.xlu0 %835
        %v837 = vsel %vm784, %v827, 0.0
        %838 = vadd.xlane.f32.xlu0 %v837
        %v839 = vpop.xlane.xlu0 %838
        %v840 = vsel %vm784, %v828, 0.0
        %841 = vadd.xlane.f32.xlu0 %v840
        %v842 = vpop.xlane.xlu0 %841
        %v843 = vsel %vm784, %v829, 0.0
        %844 = vadd.xlane.f32.xlu0 %v843
        %v845 = vpop.xlane.xlu0 %844
        %v846 = vsel %vm784, %v830, 0.0
        %847 = vadd.xlane.f32.xlu0 %v846
        %v848 = vpop.xlane.xlu0 %847
        %v849 = vsel %vm784, %v831, 0.0
        %850 = vadd.xlane.f32.xlu0 %v849
        %v851 = vpop.xlane.xlu0 %850
        %v852 = vsel %vm784, %v832, 0.0
        %853 = vadd.xlane.f32.xlu0 %v852
        %v854 = vpop.xlane.xlu0 %853
        %v855 = vsel %vm784, %v833, 0.0
        %856 = vadd.xlane.f32.xlu0 %v855
        %v857 = vpop.xlane.xlu0 %856
        %v858 = vmul.f32 %v836, %v809
        %v859 = vmul.f32 %v839, %v809
        %v860 = vmul.f32 %v842, %v809
        %v861 = vmul.f32 %v845, %v809
        %v862 = vmul.f32 %v848, %v809
        %v863 = vmul.f32 %v851, %v809
        %v864 = vmul.f32 %v854, %v809
        %v865 = vmul.f32 %v857, %v809
        %v866 = vadd.f32 %v858, 1e-05
        %v867 = vadd.f32 %v859, 1e-05
        %v868 = vadd.f32 %v860, 1e-05
        %v869 = vadd.f32 %v861, 1e-05
        %v870 = vadd.f32 %v862, 1e-05
        %v871 = vadd.f32 %v863, 1e-05
        %v872 = vadd.f32 %v864, 1e-05
        %v873 = vadd.f32 %v865, 1e-05
        %v874 = vrsqrt.pop %v866
        %v875 = vrsqrt.pop %v867
        %v876 = vrsqrt.pop %v868
        %v877 = vrsqrt.pop %v869
        %v878 = vrsqrt.pop %v870
        %v879 = vrsqrt.pop %v871
        %v880 = vrsqrt.pop %v872
        %v881 = vrsqrt.pop %v873
        %v882 = vmul.f32 %v818, %v874
        %v883 = vmul.f32 %v819, %v875
        %v884 = vmul.f32 %v820, %v876
        %v885 = vmul.f32 %v821, %v877
        %v886 = vmul.f32 %v822, %v878
        %v887 = vmul.f32 %v823, %v879
        %v888 = vmul.f32 %v824, %v880
        %v889 = vmul.f32 %v825, %v881
        %v890 = vlaneseq
        %v891 = vshrl.u32 %v890, 7
        %v892 = vsub.s32 2, %v891
        %v893 = vrot.slane %v688, %v892
        %v894 = vmul.f32 %v882, %v893
        %v895 = vmul.f32 %v883, %v893
        %v896 = vmul.f32 %v884, %v893
        %v897 = vmul.f32 %v885, %v893
        %v898 = vmul.f32 %v886, %v893
        %v899 = vmul.f32 %v887, %v893
        %v900 = vmul.f32 %v888, %v893
        %v901 = vmul.f32 %v889, %v893
        %v902 = vlaneseq
        %v903 = vshrl.u32 %v902, 7
        %v904 = vsub.s32 3, %v903
        %v905 = vrot.slane %v688, %v904
        %v906 = vadd.f32 %v894, %v905
        %v907 = vadd.f32 %v895, %v905
        %v908 = vadd.f32 %v896, %v905
        %v909 = vadd.f32 %v897, %v905
        %v910 = vadd.f32 %v898, %v905
        %v911 = vadd.f32 %v899, %v905
        %v912 = vadd.f32 %v900, %v905
        %v913 = vadd.f32 %v901, %v905
        %v914 = vtanh.pop %v906
        %v915 = vtanh.pop %v907
        %v916 = vtanh.pop %v908
        %v917 = vtanh.pop %v909
        %v918 = vtanh.pop %v910
        %v919 = vtanh.pop %v911
        %v920 = vtanh.pop %v912
        %v921 = vtanh.pop %v913
        %v922 = vpack.c.bf16 %v915, %v914
        %v923 = vpack.c.bf16 %v917, %v916
        %v924 = vpack.c.bf16 %v919, %v918
        %v925 = vpack.c.bf16 %v921, %v920
        %v926 = vld [vmem:[%s7] sm:$0xf]
        %v927 = vld [vmem:[%s7 + $0x4] sm:$0xf]
        %v928 = vlaneseq
        %v929 = vshrl.u32 %v928, 7
        %v930 = vsub.s32 0, %v929
        %v931 = vrot.slane %v690, %v930
        %v934 = vunpack.c.l.b16 %v926
        %v935 = vunpack.c.l.b16 %v927
        %v936 = vpack.c.b16 %v935, %v934
        %v939 = vsel %vm784, %v922, 0
        %v942 = vsel %vm784, %v923, 0
        %v945 = vsel %vm784, %v924, 0
        %v948 = vsel %vm784, %v925, 0
        %950 = vmatprep.subr.bf16.mxu0 0
        %951 = vmatpush1.bf16.msra.mxu0 %v936
        %952 = vmatprep.subr.bf16.mxu0 0
        %953 = vmatpush1.bf16.msra.mxu0 0
        %954 = vmatprep.subr.bf16.mxu0 0
        %955 = vmatpush1.bf16.msra.mxu0 0
        %956 = vmatprep.subr.bf16.mxu0 0
        %957 = vmatpush1.bf16.msra.mxu0 0
        %958 = vmatprep.subr.bf16.mxu0 0
        %959 = vmatpush1.bf16.msra.mxu0 0
        %960 = vmatprep.subr.bf16.mxu0 0
        %961 = vmatpush1.bf16.msra.mxu0 0
        %962 = vmatprep.subr.bf16.mxu0 0
        %963 = vmatpush1.bf16.msra.mxu0 0
        %964 = vmatprep.subr.bf16.mxu0 0
        %965 = vmatpush1.bf16.msra.mxu0 0
        %966 = vmatprep.subr.bf16.mxu0 0
        %967 = vmatpush1.bf16.msra.mxu0 0
        %968 = vmatprep.subr.bf16.mxu0 0
        %969 = vmatpush1.bf16.msra.mxu0 0
        %970 = vmatprep.subr.bf16.mxu0 0
        %971 = vmatpush1.bf16.msra.mxu0 0
        %972 = vmatprep.subr.bf16.mxu0 0
        %973 = vmatpush1.bf16.msra.mxu0 0
        %974 = vmatprep.subr.bf16.mxu0 0
        %975 = vmatpush1.bf16.msra.mxu0 0
        %976 = vmatprep.subr.bf16.mxu0 0
        %977 = vmatpush1.bf16.msra.mxu0 0
        %978 = vmatprep.subr.bf16.mxu0 0
        %979 = vmatpush1.bf16.msra.mxu0 0
        %980 = vmatprep.subr.bf16.mxu0 0
        %981 = vmatpush1.bf16.msra.mxu0 0
        %982 = vmatprep.mubr.bf16.mxu0 0
        %983 = vmatmul.mubr.bf16.gmra.mrb[0].mxu0 %v939
        %v984 = vpop.f32.mrb[0].mxu0
        %v985 = vadd.f32 %v931, %v984
        %v986 = vpop.f32.mrb[0].mxu0
        %v987 = vpop.f32.mrb[0].mxu0
        %v988 = vadd.f32 %v931, %v987
        %v989 = vpop.f32.mrb[0].mxu0
        %990 = vmatprep.mubr.bf16.mxu0 0
        %991 = vmatmul.mubr.bf16.gmra.mrb[0].mxu0 %v942
        %v992 = vpop.f32.mrb[0].mxu0
        %v993 = vadd.f32 %v931, %v992
        %v994 = vpop.f32.mrb[0].mxu0
        %v995 = vpop.f32.mrb[0].mxu0
        %v996 = vadd.f32 %v931, %v995
        %v997 = vpop.f32.mrb[0].mxu0
        %998 = vmatprep.mubr.bf16.mxu0 0
        %999 = vmatmul.mubr.bf16.gmra.mrb[0].mxu0 %v945
        %v1000 = vpop.f32.mrb[0].mxu0
        %v1001 = vadd.f32 %v931, %v1000
        %v1002 = vpop.f32.mrb[0].mxu0
        %v1003 = vpop.f32.mrb[0].mxu0
        %v1004 = vadd.f32 %v931, %v1003
        %v1005 = vpop.f32.mrb[0].mxu0
        %1006 = vmatprep.mubr.bf16.mxu0 0
        %1007 = vmatmul.mubr.bf16.gmra.mrb[0].mxu0 %v948
        %v1008 = vpop.f32.mrb[0].mxu0
        %v1009 = vadd.f32 %v931, %v1008
        %v1010 = vpop.f32.mrb[0].mxu0
        %v1011 = vpop.f32.mrb[0].mxu0
        %v1012 = vadd.f32 %v931, %v1011
        %v1013 = vpop.f32.mrb[0].mxu0
        %1014 = vdwg.mxu0
        %vm1015 = vcmask 261120
        %v1016 = vsel %vm1015, %v985, 0.0
        %1017 = vadd.xlane.f32.xlu0 %v1016
        %v1018 = vpop.xlane.xlu0 %1017
        %v1019 = vsel %vm1015, %v988, 0.0
        %1020 = vadd.xlane.f32.xlu0 %v1019
        %v1021 = vpop.xlane.xlu0 %1020
        %v1022 = vsel %vm1015, %v993, 0.0
        %1023 = vadd.xlane.f32.xlu0 %v1022
        %v1024 = vpop.xlane.xlu0 %1023
        %v1025 = vsel %vm1015, %v996, 0.0
        %1026 = vadd.xlane.f32.xlu0 %v1025
        %v1027 = vpop.xlane.xlu0 %1026
        %v1028 = vsel %vm1015, %v1001, 0.0
        %1029 = vadd.xlane.f32.xlu0 %v1028
        %v1030 = vpop.xlane.xlu0 %1029
        %v1031 = vsel %vm1015, %v1004, 0.0
        %1032 = vadd.xlane.f32.xlu0 %v1031
        %v1033 = vpop.xlane.xlu0 %1032
        %v1034 = vsel %vm1015, %v1009, 0.0
        %1035 = vadd.xlane.f32.xlu0 %v1034
        %v1036 = vpop.xlane.xlu0 %1035
        %v1037 = vsel %vm1015, %v1012, 0.0
        %1038 = vadd.xlane.f32.xlu0 %v1037
        %v1039 = vpop.xlane.xlu0 %1038
        %v1040 = vrcp.pop 32.0
        %v1041 = vmul.f32 %v1018, %v1040
        %v1042 = vmul.f32 %v1021, %v1040
        %v1043 = vmul.f32 %v1024, %v1040
        %v1044 = vmul.f32 %v1027, %v1040
        %v1045 = vmul.f32 %v1030, %v1040
        %v1046 = vmul.f32 %v1033, %v1040
        %v1047 = vmul.f32 %v1036, %v1040
        %v1048 = vmul.f32 %v1039, %v1040
        %v1049 = vsub.f32 %v985, %v1041
        %v1050 = vsub.f32 %v988, %v1042
        %v1051 = vsub.f32 %v993, %v1043
        %v1052 = vsub.f32 %v996, %v1044
        %v1053 = vsub.f32 %v1001, %v1045
        %v1054 = vsub.f32 %v1004, %v1046
        %v1055 = vsub.f32 %v1009, %v1047
        %v1056 = vsub.f32 %v1012, %v1048
        %v1057 = vmul.f32 %v1049, %v1049
        %v1058 = vmul.f32 %v1050, %v1050
        %v1059 = vmul.f32 %v1051, %v1051
        %v1060 = vmul.f32 %v1052, %v1052
        %v1061 = vmul.f32 %v1053, %v1053
        %v1062 = vmul.f32 %v1054, %v1054
        %v1063 = vmul.f32 %v1055, %v1055
        %v1064 = vmul.f32 %v1056, %v1056
        %v1065 = vsel %vm1015, %v1057, 0.0
        %1066 = vadd.xlane.f32.xlu0 %v1065
        %v1067 = vpop.xlane.xlu0 %1066
        %v1068 = vsel %vm1015, %v1058, 0.0
        %1069 = vadd.xlane.f32.xlu0 %v1068
        %v1070 = vpop.xlane.xlu0 %1069
        %v1071 = vsel %vm1015, %v1059, 0.0
        %1072 = vadd.xlane.f32.xlu0 %v1071
        %v1073 = vpop.xlane.xlu0 %1072
        %v1074 = vsel %vm1015, %v1060, 0.0
        %1075 = vadd.xlane.f32.xlu0 %v1074
        %v1076 = vpop.xlane.xlu0 %1075
        %v1077 = vsel %vm1015, %v1061, 0.0
        %1078 = vadd.xlane.f32.xlu0 %v1077
        %v1079 = vpop.xlane.xlu0 %1078
        %v1080 = vsel %vm1015, %v1062, 0.0
        %1081 = vadd.xlane.f32.xlu0 %v1080
        %v1082 = vpop.xlane.xlu0 %1081
        %v1083 = vsel %vm1015, %v1063, 0.0
        %1084 = vadd.xlane.f32.xlu0 %v1083
        %v1085 = vpop.xlane.xlu0 %1084
        %v1086 = vsel %vm1015, %v1064, 0.0
        %1087 = vadd.xlane.f32.xlu0 %v1086
        %v1088 = vpop.xlane.xlu0 %1087
        %v1089 = vmul.f32 %v1067, %v1040
        %v1090 = vmul.f32 %v1070, %v1040
        %v1091 = vmul.f32 %v1073, %v1040
        %v1092 = vmul.f32 %v1076, %v1040
        %v1093 = vmul.f32 %v1079, %v1040
        %v1094 = vmul.f32 %v1082, %v1040
        %v1095 = vmul.f32 %v1085, %v1040
        %v1096 = vmul.f32 %v1088, %v1040
        %v1097 = vadd.f32 %v1089, 1e-05
        %v1098 = vadd.f32 %v1090, 1e-05
        %v1099 = vadd.f32 %v1091, 1e-05
        %v1100 = vadd.f32 %v1092, 1e-05
        %v1101 = vadd.f32 %v1093, 1e-05
        %v1102 = vadd.f32 %v1094, 1e-05
        %v1103 = vadd.f32 %v1095, 1e-05
        %v1104 = vadd.f32 %v1096, 1e-05
        %v1105 = vrsqrt.pop %v1097
        %v1106 = vrsqrt.pop %v1098
        %v1107 = vrsqrt.pop %v1099
        %v1108 = vrsqrt.pop %v1100
        %v1109 = vrsqrt.pop %v1101
        %v1110 = vrsqrt.pop %v1102
        %v1111 = vrsqrt.pop %v1103
        %v1112 = vrsqrt.pop %v1104
        %v1113 = vmul.f32 %v1049, %v1105
        %v1114 = vmul.f32 %v1050, %v1106
        %v1115 = vmul.f32 %v1051, %v1107
        %v1116 = vmul.f32 %v1052, %v1108
        %v1117 = vmul.f32 %v1053, %v1109
        %v1118 = vmul.f32 %v1054, %v1110
        %v1119 = vmul.f32 %v1055, %v1111
        %v1120 = vmul.f32 %v1056, %v1112
        %v1121 = vlaneseq
        %v1122 = vshrl.u32 %v1121, 7
        %v1123 = vsub.s32 1, %v1122
        %v1124 = vrot.slane %v690, %v1123
        %v1125 = vmul.f32 %v1113, %v1124
        %v1126 = vmul.f32 %v1114, %v1124
        %v1127 = vmul.f32 %v1115, %v1124
        %v1128 = vmul.f32 %v1116, %v1124
        %v1129 = vmul.f32 %v1117, %v1124
        %v1130 = vmul.f32 %v1118, %v1124
        %v1131 = vmul.f32 %v1119, %v1124
        %v1132 = vmul.f32 %v1120, %v1124
        %v1133 = vlaneseq
        %v1134 = vshrl.u32 %v1133, 7
        %v1135 = vsub.s32 2, %v1134
        %v1136 = vrot.slane %v690, %v1135
        %v1137 = vadd.f32 %v1125, %v1136
        %v1138 = vadd.f32 %v1126, %v1136
        %v1139 = vadd.f32 %v1127, %v1136
        %v1140 = vadd.f32 %v1128, %v1136
        %v1141 = vadd.f32 %v1129, %v1136
        %v1142 = vadd.f32 %v1130, %v1136
        %v1143 = vadd.f32 %v1131, %v1136
        %v1144 = vadd.f32 %v1132, %v1136
        %1145 = vset.pattern.permute.xlu0 1
        %1146 = vperm.xlu0 %1145, %v693
        %v1147 = vpop.permute.xlu0 %1146
        %1149 = vset.pattern.permute.xlu0 1
        %1150 = vperm.xlu0 %1149, %v694
        %v1151 = vpop.permute.xlu0 %1150
        %1153 = vset.pattern.permute.xlu0 1
        %1154 = vperm.xlu0 %1153, %v695
        %v1155 = vpop.permute.xlu0 %1154
        %1157 = vset.pattern.permute.xlu0 1
        %1158 = vperm.xlu0 %1157, %v696
        %v1159 = vpop.permute.xlu0 %1158
        %1161 = vset.pattern.permute.xlu0 1
        %1162 = vperm.xlu0 %1161, %v697
        %v1163 = vpop.permute.xlu0 %1162
        %1165 = vset.pattern.permute.xlu0 1
        %1166 = vperm.xlu0 %1165, %v698
        %v1167 = vpop.permute.xlu0 %1166
        %1169 = vset.pattern.permute.xlu0 1
        %1170 = vperm.xlu0 %1169, %v699
        %v1171 = vpop.permute.xlu0 %1170
        %1173 = vset.pattern.permute.xlu0 1
        %1174 = vperm.xlu0 %1173, %v700
        %v1175 = vpop.permute.xlu0 %1174
        %v1177 = vlaneseq
        %v1178 = vshrl.u32 %v1177, 7
        %v1179 = vsub.s32 4, %v1178
        %v1180 = vrot.slane %v688, %v1179
        %v1181 = vmul.f32 %v1147, %v1180
        %v1182 = vmul.f32 %v1151, %v1180
        %v1183 = vmul.f32 %v1155, %v1180
        %v1184 = vmul.f32 %v1159, %v1180
        %v1185 = vmul.f32 %v1163, %v1180
        %v1186 = vmul.f32 %v1167, %v1180
        %v1187 = vmul.f32 %v1171, %v1180
        %v1188 = vmul.f32 %v1175, %v1180
        %1189 = vset.pattern.permute.xlu0 2
        %1190 = vperm.xlu0 %1189, %v693
        %v1191 = vpop.permute.xlu0 %1190
        %1193 = vset.pattern.permute.xlu0 2
        %1194 = vperm.xlu0 %1193, %v694
        %v1195 = vpop.permute.xlu0 %1194
        %1197 = vset.pattern.permute.xlu0 2
        %1198 = vperm.xlu0 %1197, %v695
        %v1199 = vpop.permute.xlu0 %1198
        %1201 = vset.pattern.permute.xlu0 2
        %1202 = vperm.xlu0 %1201, %v696
        %v1203 = vpop.permute.xlu0 %1202
        %1205 = vset.pattern.permute.xlu0 2
        %1206 = vperm.xlu0 %1205, %v697
        %v1207 = vpop.permute.xlu0 %1206
        %1209 = vset.pattern.permute.xlu0 2
        %1210 = vperm.xlu0 %1209, %v698
        %v1211 = vpop.permute.xlu0 %1210
        %1213 = vset.pattern.permute.xlu0 2
        %1214 = vperm.xlu0 %1213, %v699
        %v1215 = vpop.permute.xlu0 %1214
        %1217 = vset.pattern.permute.xlu0 2
        %1218 = vperm.xlu0 %1217, %v700
        %v1219 = vpop.permute.xlu0 %1218
        %v1221 = vlaneseq
        %v1222 = vshrl.u32 %v1221, 7
        %v1223 = vsub.s32 5, %v1222
        %v1224 = vrot.slane %v688, %v1223
        %v1225 = vmul.f32 %v1191, %v1224
        %v1226 = vmul.f32 %v1195, %v1224
        %v1227 = vmul.f32 %v1199, %v1224
        %v1228 = vmul.f32 %v1203, %v1224
        %v1229 = vmul.f32 %v1207, %v1224
        %v1230 = vmul.f32 %v1211, %v1224
        %v1231 = vmul.f32 %v1215, %v1224
        %v1232 = vmul.f32 %v1219, %v1224
        %v1233 = vadd.f32 %v1181, %v1225
        %v1234 = vadd.f32 %v1182, %v1226
        %v1235 = vadd.f32 %v1183, %v1227
        %v1236 = vadd.f32 %v1184, %v1228
        %v1237 = vadd.f32 %v1185, %v1229
        %v1238 = vadd.f32 %v1186, %v1230
        %v1239 = vadd.f32 %v1187, %v1231
        %v1240 = vadd.f32 %v1188, %v1232
        %v1241 = vlaneseq
        %v1242 = vshrl.u32 %v1241, 7
        %v1243 = vsub.s32 6, %v1242
        %v1244 = vrot.slane %v688, %v1243
        %v1245 = vadd.f32 %v1233, %v1244
        %v1246 = vadd.f32 %v1234, %v1244
        %v1247 = vadd.f32 %v1235, %v1244
        %v1248 = vadd.f32 %v1236, %v1244
        %v1249 = vadd.f32 %v1237, %v1244
        %v1250 = vadd.f32 %v1238, %v1244
        %v1251 = vadd.f32 %v1239, %v1244
        %v1252 = vadd.f32 %v1240, %v1244
        %v1253 = vsel %vm784, %v1245, 0.0
        %1254 = vadd.xlane.f32.xlu0 %v1253
        %v1255 = vpop.xlane.xlu0 %1254
        %v1256 = vsel %vm784, %v1246, 0.0
        %1257 = vadd.xlane.f32.xlu0 %v1256
        %v1258 = vpop.xlane.xlu0 %1257
        %v1259 = vsel %vm784, %v1247, 0.0
        %1260 = vadd.xlane.f32.xlu0 %v1259
        %v1261 = vpop.xlane.xlu0 %1260
        %v1262 = vsel %vm784, %v1248, 0.0
        %1263 = vadd.xlane.f32.xlu0 %v1262
        %v1264 = vpop.xlane.xlu0 %1263
        %v1265 = vsel %vm784, %v1249, 0.0
        %1266 = vadd.xlane.f32.xlu0 %v1265
        %v1267 = vpop.xlane.xlu0 %1266
        %v1268 = vsel %vm784, %v1250, 0.0
        %1269 = vadd.xlane.f32.xlu0 %v1268
        %v1270 = vpop.xlane.xlu0 %1269
        %v1271 = vsel %vm784, %v1251, 0.0
        %1272 = vadd.xlane.f32.xlu0 %v1271
        %v1273 = vpop.xlane.xlu0 %1272
        %v1274 = vsel %vm784, %v1252, 0.0
        %1275 = vadd.xlane.f32.xlu0 %v1274
        %v1276 = vpop.xlane.xlu0 %1275
        %v1277 = vmul.f32 %v1255, %v809
        %v1278 = vmul.f32 %v1258, %v809
        %v1279 = vmul.f32 %v1261, %v809
        %v1280 = vmul.f32 %v1264, %v809
        %v1281 = vmul.f32 %v1267, %v809
        %v1282 = vmul.f32 %v1270, %v809
        %v1283 = vmul.f32 %v1273, %v809
        %v1284 = vmul.f32 %v1276, %v809
        %v1285 = vsub.f32 %v1245, %v1277
        %v1286 = vsub.f32 %v1246, %v1278
        %v1287 = vsub.f32 %v1247, %v1279
        %v1288 = vsub.f32 %v1248, %v1280
        %v1289 = vsub.f32 %v1249, %v1281
        %v1290 = vsub.f32 %v1250, %v1282
        %v1291 = vsub.f32 %v1251, %v1283
        %v1292 = vsub.f32 %v1252, %v1284
        %v1293 = vmul.f32 %v1285, %v1285
        %v1294 = vmul.f32 %v1286, %v1286
        %v1295 = vmul.f32 %v1287, %v1287
        %v1296 = vmul.f32 %v1288, %v1288
        %v1297 = vmul.f32 %v1289, %v1289
        %v1298 = vmul.f32 %v1290, %v1290
        %v1299 = vmul.f32 %v1291, %v1291
        %v1300 = vmul.f32 %v1292, %v1292
        %v1301 = vsel %vm784, %v1293, 0.0
        %1302 = vadd.xlane.f32.xlu0 %v1301
        %v1303 = vpop.xlane.xlu0 %1302
        %v1304 = vsel %vm784, %v1294, 0.0
        %1305 = vadd.xlane.f32.xlu0 %v1304
        %v1306 = vpop.xlane.xlu0 %1305
        %v1307 = vsel %vm784, %v1295, 0.0
        %1308 = vadd.xlane.f32.xlu0 %v1307
        %v1309 = vpop.xlane.xlu0 %1308
        %v1310 = vsel %vm784, %v1296, 0.0
        %1311 = vadd.xlane.f32.xlu0 %v1310
        %v1312 = vpop.xlane.xlu0 %1311
        %v1313 = vsel %vm784, %v1297, 0.0
        %1314 = vadd.xlane.f32.xlu0 %v1313
        %v1315 = vpop.xlane.xlu0 %1314
        %v1316 = vsel %vm784, %v1298, 0.0
        %1317 = vadd.xlane.f32.xlu0 %v1316
        %v1318 = vpop.xlane.xlu0 %1317
        %v1319 = vsel %vm784, %v1299, 0.0
        %1320 = vadd.xlane.f32.xlu0 %v1319
        %v1321 = vpop.xlane.xlu0 %1320
        %v1322 = vsel %vm784, %v1300, 0.0
        %1323 = vadd.xlane.f32.xlu0 %v1322
        %v1324 = vpop.xlane.xlu0 %1323
        %v1325 = vmul.f32 %v1303, %v809
        %v1326 = vmul.f32 %v1306, %v809
        %v1327 = vmul.f32 %v1309, %v809
        %v1328 = vmul.f32 %v1312, %v809
        %v1329 = vmul.f32 %v1315, %v809
        %v1330 = vmul.f32 %v1318, %v809
        %v1331 = vmul.f32 %v1321, %v809
        %v1332 = vmul.f32 %v1324, %v809
        %v1333 = vadd.f32 %v1325, 1e-05
        %v1334 = vadd.f32 %v1326, 1e-05
        %v1335 = vadd.f32 %v1327, 1e-05
        %v1336 = vadd.f32 %v1328, 1e-05
        %v1337 = vadd.f32 %v1329, 1e-05
        %v1338 = vadd.f32 %v1330, 1e-05
        %v1339 = vadd.f32 %v1331, 1e-05
        %v1340 = vadd.f32 %v1332, 1e-05
        %v1341 = vrsqrt.pop %v1333
        %v1342 = vrsqrt.pop %v1334
        %v1343 = vrsqrt.pop %v1335
        %v1344 = vrsqrt.pop %v1336
        %v1345 = vrsqrt.pop %v1337
        %v1346 = vrsqrt.pop %v1338
        %v1347 = vrsqrt.pop %v1339
        %v1348 = vrsqrt.pop %v1340
        %v1349 = vmul.f32 %v1285, %v1341
        %v1350 = vmul.f32 %v1286, %v1342
        %v1351 = vmul.f32 %v1287, %v1343
        %v1352 = vmul.f32 %v1288, %v1344
        %v1353 = vmul.f32 %v1289, %v1345
        %v1354 = vmul.f32 %v1290, %v1346
        %v1355 = vmul.f32 %v1291, %v1347
        %v1356 = vmul.f32 %v1292, %v1348
        %v1357 = vlaneseq
        %v1358 = vshrl.u32 %v1357, 7
        %v1359 = vsub.s32 7, %v1358
        %v1360 = vrot.slane %v688, %v1359
        %v1361 = vmul.f32 %v1349, %v1360
        %v1362 = vmul.f32 %v1350, %v1360
        %v1363 = vmul.f32 %v1351, %v1360
        %v1364 = vmul.f32 %v1352, %v1360
        %v1365 = vmul.f32 %v1353, %v1360
        %v1366 = vmul.f32 %v1354, %v1360
        %v1367 = vmul.f32 %v1355, %v1360
        %v1368 = vmul.f32 %v1356, %v1360
        %v1369 = vlaneseq
        %v1370 = vshrl.u32 %v1369, 7
        %v1371 = vsub.s32 0, %v1370
        %v1372 = vrot.slane %v689, %v1371
        %v1373 = vadd.f32 %v1361, %v1372
        %v1374 = vadd.f32 %v1362, %v1372
        %v1375 = vadd.f32 %v1363, %v1372
        %v1376 = vadd.f32 %v1364, %v1372
        %v1377 = vadd.f32 %v1365, %v1372
        %v1378 = vadd.f32 %v1366, %v1372
        %v1379 = vadd.f32 %v1367, %v1372
        %v1380 = vadd.f32 %v1368, %v1372
        %v1381 = vtanh.pop %v1373
        %v1382 = vtanh.pop %v1374
        %v1383 = vtanh.pop %v1375
        %v1384 = vtanh.pop %v1376
        %v1385 = vtanh.pop %v1377
        %v1386 = vtanh.pop %v1378
        %v1387 = vtanh.pop %v1379
        %v1388 = vtanh.pop %v1380
        %v1389 = vpack.c.bf16 %v1382, %v1381
        %v1390 = vpack.c.bf16 %v1384, %v1383
        %v1391 = vpack.c.bf16 %v1386, %v1385
        %v1392 = vpack.c.bf16 %v1388, %v1387
        %v1393 = vld [vmem:[%s8] sm:$0xf]
        %v1394 = vld [vmem:[%s8 + $0x4] sm:$0xf]
        %v1395 = vlaneseq
        %v1396 = vshrl.u32 %v1395, 7
        %v1397 = vsub.s32 3, %v1396
        %v1398 = vrot.slane %v690, %v1397
        %v1401 = vunpack.c.l.b16 %v1393
        %v1402 = vunpack.c.l.b16 %v1394
        %v1403 = vpack.c.b16 %v1402, %v1401
        %v1406 = vsel %vm784, %v1389, 0
        %v1409 = vsel %vm784, %v1390, 0
        %v1412 = vsel %vm784, %v1391, 0
        %v1415 = vsel %vm784, %v1392, 0
        %1417 = vmatprep.subr.bf16.mxu0 0
        %1418 = vmatpush1.bf16.msra.mxu0 %v1403
        %1419 = vmatprep.subr.bf16.mxu0 0
        %1420 = vmatpush1.bf16.msra.mxu0 0
        %1421 = vmatprep.subr.bf16.mxu0 0
        %1422 = vmatpush1.bf16.msra.mxu0 0
        %1423 = vmatprep.subr.bf16.mxu0 0
        %1424 = vmatpush1.bf16.msra.mxu0 0
        %1425 = vmatprep.subr.bf16.mxu0 0
        %1426 = vmatpush1.bf16.msra.mxu0 0
        %1427 = vmatprep.subr.bf16.mxu0 0
        %1428 = vmatpush1.bf16.msra.mxu0 0
        %1429 = vmatprep.subr.bf16.mxu0 0
        %1430 = vmatpush1.bf16.msra.mxu0 0
        %1431 = vmatprep.subr.bf16.mxu0 0
        %1432 = vmatpush1.bf16.msra.mxu0 0
        %1433 = vmatprep.subr.bf16.mxu0 0
        %1434 = vmatpush1.bf16.msra.mxu0 0
        %1435 = vmatprep.subr.bf16.mxu0 0
        %1436 = vmatpush1.bf16.msra.mxu0 0
        %1437 = vmatprep.subr.bf16.mxu0 0
        %1438 = vmatpush1.bf16.msra.mxu0 0
        %1439 = vmatprep.subr.bf16.mxu0 0
        %1440 = vmatpush1.bf16.msra.mxu0 0
        %1441 = vmatprep.subr.bf16.mxu0 0
        %1442 = vmatpush1.bf16.msra.mxu0 0
        %1443 = vmatprep.subr.bf16.mxu0 0
        %1444 = vmatpush1.bf16.msra.mxu0 0
        %1445 = vmatprep.subr.bf16.mxu0 0
        %1446 = vmatpush1.bf16.msra.mxu0 0
        %1447 = vmatprep.subr.bf16.mxu0 0
        %1448 = vmatpush1.bf16.msra.mxu0 0
        %1449 = vmatprep.mubr.bf16.mxu0 0
        %1450 = vmatmul.mubr.bf16.gmra.mrb[0].mxu0 %v1406
        %v1451 = vpop.f32.mrb[0].mxu0
        %v1452 = vadd.f32 %v1398, %v1451
        %v1453 = vpop.f32.mrb[0].mxu0
        %v1454 = vpop.f32.mrb[0].mxu0
        %v1455 = vadd.f32 %v1398, %v1454
        %v1456 = vpop.f32.mrb[0].mxu0
        %1457 = vmatprep.mubr.bf16.mxu0 0
        %1458 = vmatmul.mubr.bf16.gmra.mrb[0].mxu0 %v1409
        %v1459 = vpop.f32.mrb[0].mxu0
        %v1460 = vadd.f32 %v1398, %v1459
        %v1461 = vpop.f32.mrb[0].mxu0
        %v1462 = vpop.f32.mrb[0].mxu0
        %v1463 = vadd.f32 %v1398, %v1462
        %v1464 = vpop.f32.mrb[0].mxu0
        %1465 = vmatprep.mubr.bf16.mxu0 0
        %1466 = vmatmul.mubr.bf16.gmra.mrb[0].mxu0 %v1412
        %v1467 = vpop.f32.mrb[0].mxu0
        %v1468 = vadd.f32 %v1398, %v1467
        %v1469 = vpop.f32.mrb[0].mxu0
        %v1470 = vpop.f32.mrb[0].mxu0
        %v1471 = vadd.f32 %v1398, %v1470
        %v1472 = vpop.f32.mrb[0].mxu0
        %1473 = vmatprep.mubr.bf16.mxu0 0
        %1474 = vmatmul.mubr.bf16.gmra.mrb[0].mxu0 %v1415
        %v1475 = vpop.f32.mrb[0].mxu0
        %v1476 = vadd.f32 %v1398, %v1475
        %v1477 = vpop.f32.mrb[0].mxu0
        %v1478 = vpop.f32.mrb[0].mxu0
        %v1479 = vadd.f32 %v1398, %v1478
        %v1480 = vpop.f32.mrb[0].mxu0
        %1481 = vdwg.mxu0
        %v1482 = vsel %vm1015, %v1452, 0.0
        %1483 = vadd.xlane.f32.xlu0 %v1482
        %v1484 = vpop.xlane.xlu0 %1483
        %v1485 = vsel %vm1015, %v1455, 0.0
        %1486 = vadd.xlane.f32.xlu0 %v1485
        %v1487 = vpop.xlane.xlu0 %1486
        %v1488 = vsel %vm1015, %v1460, 0.0
        %1489 = vadd.xlane.f32.xlu0 %v1488
        %v1490 = vpop.xlane.xlu0 %1489
        %v1491 = vsel %vm1015, %v1463, 0.0
        %1492 = vadd.xlane.f32.xlu0 %v1491
        %v1493 = vpop.xlane.xlu0 %1492
        %v1494 = vsel %vm1015, %v1468, 0.0
        %1495 = vadd.xlane.f32.xlu0 %v1494
        %v1496 = vpop.xlane.xlu0 %1495
        %v1497 = vsel %vm1015, %v1471, 0.0
        %1498 = vadd.xlane.f32.xlu0 %v1497
        %v1499 = vpop.xlane.xlu0 %1498
        %v1500 = vsel %vm1015, %v1476, 0.0
        %1501 = vadd.xlane.f32.xlu0 %v1500
        %v1502 = vpop.xlane.xlu0 %1501
        %v1503 = vsel %vm1015, %v1479, 0.0
        %1504 = vadd.xlane.f32.xlu0 %v1503
        %v1505 = vpop.xlane.xlu0 %1504
        %v1506 = vmul.f32 %v1484, %v1040
        %v1507 = vmul.f32 %v1487, %v1040
        %v1508 = vmul.f32 %v1490, %v1040
        %v1509 = vmul.f32 %v1493, %v1040
        %v1510 = vmul.f32 %v1496, %v1040
        %v1511 = vmul.f32 %v1499, %v1040
        %v1512 = vmul.f32 %v1502, %v1040
        %v1513 = vmul.f32 %v1505, %v1040
        %v1514 = vsub.f32 %v1452, %v1506
        %v1515 = vsub.f32 %v1455, %v1507
        %v1516 = vsub.f32 %v1460, %v1508
        %v1517 = vsub.f32 %v1463, %v1509
        %v1518 = vsub.f32 %v1468, %v1510
        %v1519 = vsub.f32 %v1471, %v1511
        %v1520 = vsub.f32 %v1476, %v1512
        %v1521 = vsub.f32 %v1479, %v1513
        %v1522 = vmul.f32 %v1514, %v1514
        %v1523 = vmul.f32 %v1515, %v1515
        %v1524 = vmul.f32 %v1516, %v1516
        %v1525 = vmul.f32 %v1517, %v1517
        %v1526 = vmul.f32 %v1518, %v1518
        %v1527 = vmul.f32 %v1519, %v1519
        %v1528 = vmul.f32 %v1520, %v1520
        %v1529 = vmul.f32 %v1521, %v1521
        %v1530 = vsel %vm1015, %v1522, 0.0
        %1531 = vadd.xlane.f32.xlu0 %v1530
        %v1532 = vpop.xlane.xlu0 %1531
        %v1533 = vsel %vm1015, %v1523, 0.0
        %1534 = vadd.xlane.f32.xlu0 %v1533
        %v1535 = vpop.xlane.xlu0 %1534
        %v1536 = vsel %vm1015, %v1524, 0.0
        %1537 = vadd.xlane.f32.xlu0 %v1536
        %v1538 = vpop.xlane.xlu0 %1537
        %v1539 = vsel %vm1015, %v1525, 0.0
        %1540 = vadd.xlane.f32.xlu0 %v1539
        %v1541 = vpop.xlane.xlu0 %1540
        %v1542 = vsel %vm1015, %v1526, 0.0
        %1543 = vadd.xlane.f32.xlu0 %v1542
        %v1544 = vpop.xlane.xlu0 %1543
        %v1545 = vsel %vm1015, %v1527, 0.0
        %1546 = vadd.xlane.f32.xlu0 %v1545
        %v1547 = vpop.xlane.xlu0 %1546
        %v1548 = vsel %vm1015, %v1528, 0.0
        %1549 = vadd.xlane.f32.xlu0 %v1548
        %v1550 = vpop.xlane.xlu0 %1549
        %v1551 = vsel %vm1015, %v1529, 0.0
        %1552 = vadd.xlane.f32.xlu0 %v1551
        %v1553 = vpop.xlane.xlu0 %1552
        %v1554 = vmul.f32 %v1532, %v1040
        %v1555 = vmul.f32 %v1535, %v1040
        %v1556 = vmul.f32 %v1538, %v1040
        %v1557 = vmul.f32 %v1541, %v1040
        %v1558 = vmul.f32 %v1544, %v1040
        %v1559 = vmul.f32 %v1547, %v1040
        %v1560 = vmul.f32 %v1550, %v1040
        %v1561 = vmul.f32 %v1553, %v1040
        %v1562 = vadd.f32 %v1554, 1e-05
        %v1563 = vadd.f32 %v1555, 1e-05
        %v1564 = vadd.f32 %v1556, 1e-05
        %v1565 = vadd.f32 %v1557, 1e-05
        %v1566 = vadd.f32 %v1558, 1e-05
        %v1567 = vadd.f32 %v1559, 1e-05
        %v1568 = vadd.f32 %v1560, 1e-05
        %v1569 = vadd.f32 %v1561, 1e-05
        %v1570 = vrsqrt.pop %v1562
        %v1571 = vrsqrt.pop %v1563
        %v1572 = vrsqrt.pop %v1564
        %v1573 = vrsqrt.pop %v1565
        %v1574 = vrsqrt.pop %v1566
        %v1575 = vrsqrt.pop %v1567
        %v1576 = vrsqrt.pop %v1568
        %v1577 = vrsqrt.pop %v1569
        %v1578 = vmul.f32 %v1514, %v1570
        %v1579 = vmul.f32 %v1515, %v1571
        %v1580 = vmul.f32 %v1516, %v1572
        %v1581 = vmul.f32 %v1517, %v1573
        %v1582 = vmul.f32 %v1518, %v1574
        %v1583 = vmul.f32 %v1519, %v1575
        %v1584 = vmul.f32 %v1520, %v1576
        %v1585 = vmul.f32 %v1521, %v1577
        %v1586 = vlaneseq
        %v1587 = vshrl.u32 %v1586, 7
        %v1588 = vsub.s32 4, %v1587
        %v1589 = vrot.slane %v690, %v1588
        %v1590 = vmul.f32 %v1578, %v1589
        %v1591 = vmul.f32 %v1579, %v1589
        %v1592 = vmul.f32 %v1580, %v1589
        %v1593 = vmul.f32 %v1581, %v1589
        %v1594 = vmul.f32 %v1582, %v1589
        %v1595 = vmul.f32 %v1583, %v1589
        %v1596 = vmul.f32 %v1584, %v1589
        %v1597 = vmul.f32 %v1585, %v1589
        %v1598 = vlaneseq
        %v1599 = vshrl.u32 %v1598, 7
        %v1600 = vsub.s32 5, %v1599
        %v1601 = vrot.slane %v690, %v1600
        %v1602 = vadd.f32 %v1590, %v1601
        %v1603 = vadd.f32 %v1591, %v1601
        %v1604 = vadd.f32 %v1592, %v1601
        %v1605 = vadd.f32 %v1593, %v1601
        %v1606 = vadd.f32 %v1594, %v1601
        %v1607 = vadd.f32 %v1595, %v1601
        %v1608 = vadd.f32 %v1596, %v1601
        %v1609 = vadd.f32 %v1597, %v1601
        %1611 = vset.pattern.permute.xlu0 0
        %1612 = vperm.xlu0 %1611, %v701
        %v1613 = vpop.permute.xlu0 %1612
        %v1615 = vmul.f32 %v1613, %v1180
        %1616 = vset.pattern.permute.xlu0 1
        %1617 = vperm.xlu0 %1616, %v701
        %v1618 = vpop.permute.xlu0 %1617
        %v1620 = vmul.f32 %v1618, %v1224
        %v1621 = vadd.f32 %v1615, %v1620
        %v1622 = vadd.f32 %v1621, %v1244
        %v1623 = vsel %vm784, %v1622, 0.0
        %1624 = vadd.xlane.f32.xlu0 %v1623
        %v1625 = vpop.xlane.xlu0 %1624
        %v1626 = vmul.f32 %v1625, %v809
        %v1627 = vsub.f32 %v1622, %v1626
        %v1628 = vmul.f32 %v1627, %v1627
        %v1629 = vsel %vm784, %v1628, 0.0
        %1630 = vadd.xlane.f32.xlu0 %v1629
        %v1631 = vpop.xlane.xlu0 %1630
        %v1632 = vmul.f32 %v1631, %v809
        %v1633 = vadd.f32 %v1632, 1e-05
        %v1634 = vrsqrt.pop %v1633
        %v1635 = vmul.f32 %v1627, %v1634
        %v1636 = vmul.f32 %v1635, %v1360
        %v1637 = vadd.f32 %v1636, %v1372
        %v1638 = vtanh.pop %v1637
        %v1639 = vpack.c.bf16 %v1638, %v1638
        %v1641 = vsel %vm784, %v1639, 0
        %1643 = vmatprep.subr.bf16.mxu0 0
        %1644 = vmatpush1.bf16.msra.mxu0 %v1403
        %1645 = vmatprep.subr.bf16.mxu0 0
        %1646 = vmatpush1.bf16.msra.mxu0 0
        %1647 = vmatprep.subr.bf16.mxu0 0
        %1648 = vmatpush1.bf16.msra.mxu0 0
        %1649 = vmatprep.subr.bf16.mxu0 0
        %1650 = vmatpush1.bf16.msra.mxu0 0
        %1651 = vmatprep.subr.bf16.mxu0 0
        %1652 = vmatpush1.bf16.msra.mxu0 0
        %1653 = vmatprep.subr.bf16.mxu0 0
        %1654 = vmatpush1.bf16.msra.mxu0 0
        %1655 = vmatprep.subr.bf16.mxu0 0
        %1656 = vmatpush1.bf16.msra.mxu0 0
        %1657 = vmatprep.subr.bf16.mxu0 0
        %1658 = vmatpush1.bf16.msra.mxu0 0
        %1659 = vmatprep.subr.bf16.mxu0 0
        %1660 = vmatpush1.bf16.msra.mxu0 0
        %1661 = vmatprep.subr.bf16.mxu0 0
        %1662 = vmatpush1.bf16.msra.mxu0 0
        %1663 = vmatprep.subr.bf16.mxu0 0
        %1664 = vmatpush1.bf16.msra.mxu0 0
        %1665 = vmatprep.subr.bf16.mxu0 0
        %1666 = vmatpush1.bf16.msra.mxu0 0
        %1667 = vmatprep.subr.bf16.mxu0 0
        %1668 = vmatpush1.bf16.msra.mxu0 0
        %1669 = vmatprep.subr.bf16.mxu0 0
        %1670 = vmatpush1.bf16.msra.mxu0 0
        %1671 = vmatprep.subr.bf16.mxu0 0
        %1672 = vmatpush1.bf16.msra.mxu0 0
        %1673 = vmatprep.subr.bf16.mxu0 0
        %1674 = vmatpush1.bf16.msra.mxu0 0
        %1675 = vmatprep.mubr.bf16.mxu0 0
        %1676 = vmatmul.mubr.bf16.gmra.mrb[0].mxu0 %v1641
        %v1677 = vpop.f32.mrb[0].mxu0
        %v1678 = vadd.f32 %v1398, %v1677
        %v1679 = vpop.f32.mrb[0].mxu0
        %v1680 = vpop.f32.mrb[0].mxu0
        %v1681 = vpop.f32.mrb[0].mxu0
        %1682 = vdwg.mxu0
        %v1683 = vsel %vm1015, %v1678, 0.0
        %1684 = vadd.xlane.f32.xlu0 %v1683
        %v1685 = vpop.xlane.xlu0 %1684
        %v1686 = vmul.f32 %v1685, %v1040
        %v1687 = vsub.f32 %v1678, %v1686
        %v1688 = vmul.f32 %v1687, %v1687
        %v1689 = vsel %vm1015, %v1688, 0.0
        %1690 = vadd.xlane.f32.xlu0 %v1689
        %v1691 = vpop.xlane.xlu0 %1690
        %v1692 = vmul.f32 %v1691, %v1040
        %v1693 = vadd.f32 %v1692, 1e-05
        %v1694 = vrsqrt.pop %v1693
        %v1695 = vmul.f32 %v1687, %v1694
        %v1696 = vmul.f32 %v1695, %v1589
        %v1697 = vadd.f32 %v1696, %v1601
        %v1698 = vadd.f32 %v712, %v1137
        %v1699 = vadd.f32 %v713, %v1138
        %v1700 = vadd.f32 %v714, %v1139
        %v1701 = vadd.f32 %v715, %v1140
        %v1702 = vadd.f32 %v716, %v1141
        %v1703 = vadd.f32 %v717, %v1142
        %v1704 = vadd.f32 %v718, %v1143
        %v1705 = vadd.f32 %v719, %v1144
        %v1706 = vadd.f32 %v1698, %v1602
        %v1707 = vadd.f32 %v1699, %v1603
        %v1708 = vadd.f32 %v1700, %v1604
        %v1709 = vadd.f32 %v1701, %v1605
        %v1710 = vadd.f32 %v1702, %v1606
        %v1711 = vadd.f32 %v1703, %v1607
        %v1712 = vadd.f32 %v1704, %v1608
        %v1713 = vadd.f32 %v1705, %v1609
        %v1714 = vadd.f32 %v703, %v1697
        %v1715 = vsel %vm1015, %v1714, 0.0
        %1716 = vadd.xlane.f32.xlu0 %v1715
        %v1717 = vpop.xlane.xlu0 %1716
        %v1718 = vmul.f32 %v1717, %v1040
        %v1719 = vsub.f32 %v1714, %v1718
        %v1720 = vmul.f32 %v1719, %v1719
        %v1721 = vsel %vm1015, %v1720, 0.0
        %1722 = vadd.xlane.f32.xlu0 %v1721
        %v1723 = vpop.xlane.xlu0 %1722
        %v1724 = vmul.f32 %v1723, %v1040
        %v1725 = vadd.f32 %v1724, 1e-05
        %v1726 = vrsqrt.pop %v1725
        %v1727 = vmul.f32 %v1719, %v1726
        %v1728 = vlaneseq
        %v1729 = vshrl.u32 %v1728, 7
        %v1730 = vsub.s32 6, %v1729
        %v1731 = vrot.slane %v690, %v1730
        %v1732 = vmul.f32 %v1727, %v1731
        %v1733 = vlaneseq
        %v1734 = vshrl.u32 %v1733, 7
        %v1735 = vsub.s32 7, %v1734
        %v1736 = vrot.slane %v690, %v1735
        %v1737 = vadd.f32 %v1732, %v1736
        %v1738 = vsel %vm1015, %v1706, 0.0
        %1739 = vadd.xlane.f32.xlu0 %v1738
        %v1740 = vpop.xlane.xlu0 %1739
        %v1741 = vsel %vm1015, %v1707, 0.0
        %1742 = vadd.xlane.f32.xlu0 %v1741
        %v1743 = vpop.xlane.xlu0 %1742
        %v1744 = vsel %vm1015, %v1708, 0.0
        %1745 = vadd.xlane.f32.xlu0 %v1744
        %v1746 = vpop.xlane.xlu0 %1745
        %v1747 = vsel %vm1015, %v1709, 0.0
        %1748 = vadd.xlane.f32.xlu0 %v1747
        %v1749 = vpop.xlane.xlu0 %1748
        %v1750 = vsel %vm1015, %v1710, 0.0
        %1751 = vadd.xlane.f32.xlu0 %v1750
        %v1752 = vpop.xlane.xlu0 %1751
        %v1753 = vsel %vm1015, %v1711, 0.0
        %1754 = vadd.xlane.f32.xlu0 %v1753
        %v1755 = vpop.xlane.xlu0 %1754
        %v1756 = vsel %vm1015, %v1712, 0.0
        %1757 = vadd.xlane.f32.xlu0 %v1756
        %v1758 = vpop.xlane.xlu0 %1757
        %v1759 = vsel %vm1015, %v1713, 0.0
        %1760 = vadd.xlane.f32.xlu0 %v1759
        %v1761 = vpop.xlane.xlu0 %1760
        %v1762 = vmul.f32 %v1740, %v1040
        %v1763 = vmul.f32 %v1743, %v1040
        %v1764 = vmul.f32 %v1746, %v1040
        %v1765 = vmul.f32 %v1749, %v1040
        %v1766 = vmul.f32 %v1752, %v1040
        %v1767 = vmul.f32 %v1755, %v1040
        %v1768 = vmul.f32 %v1758, %v1040
        %v1769 = vmul.f32 %v1761, %v1040
        %v1770 = vsub.f32 %v1706, %v1762
        %v1771 = vsub.f32 %v1707, %v1763
        %v1772 = vsub.f32 %v1708, %v1764
        %v1773 = vsub.f32 %v1709, %v1765
        %v1774 = vsub.f32 %v1710, %v1766
        %v1775 = vsub.f32 %v1711, %v1767
        %v1776 = vsub.f32 %v1712, %v1768
        %v1777 = vsub.f32 %v1713, %v1769
        %v1778 = vmul.f32 %v1770, %v1770
        %v1779 = vmul.f32 %v1771, %v1771
        %v1780 = vmul.f32 %v1772, %v1772
        %v1781 = vmul.f32 %v1773, %v1773
        %v1782 = vmul.f32 %v1774, %v1774
        %v1783 = vmul.f32 %v1775, %v1775
        %v1784 = vmul.f32 %v1776, %v1776
        %v1785 = vmul.f32 %v1777, %v1777
        %v1786 = vsel %vm1015, %v1778, 0.0
        %1787 = vadd.xlane.f32.xlu0 %v1786
        %v1788 = vpop.xlane.xlu0 %1787
        %v1789 = vsel %vm1015, %v1779, 0.0
        %1790 = vadd.xlane.f32.xlu0 %v1789
        %v1791 = vpop.xlane.xlu0 %1790
        %v1792 = vsel %vm1015, %v1780, 0.0
        %1793 = vadd.xlane.f32.xlu0 %v1792
        %v1794 = vpop.xlane.xlu0 %1793
        %v1795 = vsel %vm1015, %v1781, 0.0
        %1796 = vadd.xlane.f32.xlu0 %v1795
        %v1797 = vpop.xlane.xlu0 %1796
        %v1798 = vsel %vm1015, %v1782, 0.0
        %1799 = vadd.xlane.f32.xlu0 %v1798
        %v1800 = vpop.xlane.xlu0 %1799
        %v1801 = vsel %vm1015, %v1783, 0.0
        %1802 = vadd.xlane.f32.xlu0 %v1801
        %v1803 = vpop.xlane.xlu0 %1802
        %v1804 = vsel %vm1015, %v1784, 0.0
        %1805 = vadd.xlane.f32.xlu0 %v1804
        %v1806 = vpop.xlane.xlu0 %1805
        %v1807 = vsel %vm1015, %v1785, 0.0
        %1808 = vadd.xlane.f32.xlu0 %v1807
        %v1809 = vpop.xlane.xlu0 %1808
        %v1810 = vmul.f32 %v1788, %v1040
        %v1811 = vmul.f32 %v1791, %v1040
        %v1812 = vmul.f32 %v1794, %v1040
        %v1813 = vmul.f32 %v1797, %v1040
        %v1814 = vmul.f32 %v1800, %v1040
        %v1815 = vmul.f32 %v1803, %v1040
        %v1816 = vmul.f32 %v1806, %v1040
        %v1817 = vmul.f32 %v1809, %v1040
        %v1818 = vadd.f32 %v1810, 1e-05
        %v1819 = vadd.f32 %v1811, 1e-05
        %v1820 = vadd.f32 %v1812, 1e-05
        %v1821 = vadd.f32 %v1813, 1e-05
        %v1822 = vadd.f32 %v1814, 1e-05
        %v1823 = vadd.f32 %v1815, 1e-05
        %v1824 = vadd.f32 %v1816, 1e-05
        %v1825 = vadd.f32 %v1817, 1e-05
        %v1826 = vrsqrt.pop %v1818
        %v1827 = vrsqrt.pop %v1819
        %v1828 = vrsqrt.pop %v1820
        %v1829 = vrsqrt.pop %v1821
        %v1830 = vrsqrt.pop %v1822
        %v1831 = vrsqrt.pop %v1823
        %v1832 = vrsqrt.pop %v1824
        %v1833 = vrsqrt.pop %v1825
        %v1834 = vmul.f32 %v1770, %v1826
        %v1835 = vmul.f32 %v1771, %v1827
        %v1836 = vmul.f32 %v1772, %v1828
        %v1837 = vmul.f32 %v1773, %v1829
        %v1838 = vmul.f32 %v1774, %v1830
        %v1839 = vmul.f32 %v1775, %v1831
        %v1840 = vmul.f32 %v1776, %v1832
        %v1841 = vmul.f32 %v1777, %v1833
        %v1842 = vlaneseq
        %v1843 = vshrl.u32 %v1842, 7
        %v1844 = vsub.s32 0, %v1843
        %v1845 = vrot.slane %v691, %v1844
        %v1846 = vmul.f32 %v1834, %v1845
        %v1847 = vmul.f32 %v1835, %v1845
        %v1848 = vmul.f32 %v1836, %v1845
        %v1849 = vmul.f32 %v1837, %v1845
        %v1850 = vmul.f32 %v1838, %v1845
        %v1851 = vmul.f32 %v1839, %v1845
        %v1852 = vmul.f32 %v1840, %v1845
        %v1853 = vmul.f32 %v1841, %v1845
        %v1854 = vlaneseq
        %v1855 = vshrl.u32 %v1854, 7
        %v1856 = vsub.s32 1, %v1855
        %v1857 = vrot.slane %v691, %v1856
        %v1858 = vadd.f32 %v1846, %v1857
        %v1859 = vadd.f32 %v1847, %v1857
        %v1860 = vadd.f32 %v1848, %v1857
        %v1861 = vadd.f32 %v1849, %v1857
        %v1862 = vadd.f32 %v1850, %v1857
        %v1863 = vadd.f32 %v1851, %v1857
        %v1864 = vadd.f32 %v1852, %v1857
        %v1865 = vadd.f32 %v1853, %v1857
        %v1866 = vpack.c.bf16 %v1737, %v1737
        %v1867 = vld [vmem:[%s9] sm:$0xf]
        %v1868 = vld [vmem:[%s9 + $0x4] sm:$0xf]
        %v1869 = vld [vmem:[%s9 + $0x8] sm:$0xf]
        %v1870 = vld [vmem:[%s9 + $0xc] sm:$0xf]
        %v1871 = vlaneseq
        %v1872 = vshrl.u32 %v1871, 7
        %v1873 = vsub.s32 4, %v1872
        %v1874 = vrot.slane %v691, %v1873
        %v1879 = vunpack.c.l.b16 %v1867
        %v1880 = vunpack.c.l.b16 %v1868
        %v1881 = vunpack.c.l.b16 %v1869
        %v1882 = vunpack.c.l.b16 %v1870
        %v1883 = vpack.c.b16 %v1880, %v1879
        %v1884 = vpack.c.b16 %v1882, %v1881
        %v1888 = vsel %vm1015, %v1866, 0
        %1890 = vmatprep.subr.bf16.mxu0 0
        %1891 = vmatpush1.bf16.msra.mxu0 %v1883
        %1892 = vmatprep.subr.bf16.mxu0 0
        %1893 = vmatpush1.bf16.msra.mxu0 %v1884
        %1894 = vmatprep.subr.bf16.mxu0 0
        %1895 = vmatpush1.bf16.msra.mxu0 0
        %1896 = vmatprep.subr.bf16.mxu0 0
        %1897 = vmatpush1.bf16.msra.mxu0 0
        %1898 = vmatprep.subr.bf16.mxu0 0
        %1899 = vmatpush1.bf16.msra.mxu0 0
        %1900 = vmatprep.subr.bf16.mxu0 0
        %1901 = vmatpush1.bf16.msra.mxu0 0
        %1902 = vmatprep.subr.bf16.mxu0 0
        %1903 = vmatpush1.bf16.msra.mxu0 0
        %1904 = vmatprep.subr.bf16.mxu0 0
        %1905 = vmatpush1.bf16.msra.mxu0 0
        %1906 = vmatprep.subr.bf16.mxu0 0
        %1907 = vmatpush1.bf16.msra.mxu0 0
        %1908 = vmatprep.subr.bf16.mxu0 0
        %1909 = vmatpush1.bf16.msra.mxu0 0
        %1910 = vmatprep.subr.bf16.mxu0 0
        %1911 = vmatpush1.bf16.msra.mxu0 0
        %1912 = vmatprep.subr.bf16.mxu0 0
        %1913 = vmatpush1.bf16.msra.mxu0 0
        %1914 = vmatprep.subr.bf16.mxu0 0
        %1915 = vmatpush1.bf16.msra.mxu0 0
        %1916 = vmatprep.subr.bf16.mxu0 0
        %1917 = vmatpush1.bf16.msra.mxu0 0
        %1918 = vmatprep.subr.bf16.mxu0 0
        %1919 = vmatpush1.bf16.msra.mxu0 0
        %1920 = vmatprep.subr.bf16.mxu0 0
        %1921 = vmatpush1.bf16.msra.mxu0 0
        %1922 = vmatprep.mubr.bf16.mxu0 0
        %1923 = vmatmul.mubr.bf16.gmra.mrb[0].mxu0 %v1888
        %v1924 = vpop.f32.mrb[0].mxu0
        %v1925 = vadd.f32 %v1874, %v1924
        %v1926 = vpop.f32.mrb[0].mxu0
        %v1927 = vpop.f32.mrb[0].mxu0
        %v1928 = vpop.f32.mrb[0].mxu0
        %1929 = vdwg.mxu0
        %v1930 = vpack.c.bf16 %v1859, %v1858
        %v1931 = vpack.c.bf16 %v1861, %v1860
        %v1932 = vpack.c.bf16 %v1863, %v1862
        %v1933 = vpack.c.bf16 %v1865, %v1864
        %v1934 = vld [vmem:[%s10] sm:$0xf]
        %v1935 = vld [vmem:[%s10 + $0x4] sm:$0xf]
        %v1936 = vld [vmem:[%s10 + $0x8] sm:$0xf]
        %v1937 = vld [vmem:[%s10 + $0xc] sm:$0xf]
        %v1942 = vunpack.c.l.b16 %v1934
        %v1943 = vunpack.c.l.b16 %v1935
        %v1944 = vunpack.c.l.b16 %v1936
        %v1945 = vunpack.c.l.b16 %v1937
        %v1946 = vpack.c.b16 %v1943, %v1942
        %v1947 = vpack.c.b16 %v1945, %v1944
        %v1951 = vsel %vm1015, %v1930, 0
        %v1954 = vsel %vm1015, %v1931, 0
        %v1957 = vsel %vm1015, %v1932, 0
        %v1960 = vsel %vm1015, %v1933, 0
        %1962 = vmatprep.subr.bf16.mxu0 0
        %1963 = vmatpush1.bf16.msra.mxu0 %v1946
        %1964 = vmatprep.subr.bf16.mxu0 0
        %1965 = vmatpush1.bf16.msra.mxu0 %v1947
        %1966 = vmatprep.subr.bf16.mxu0 0
        %1967 = vmatpush1.bf16.msra.mxu0 0
        %1968 = vmatprep.subr.bf16.mxu0 0
        %1969 = vmatpush1.bf16.msra.mxu0 0
        %1970 = vmatprep.subr.bf16.mxu0 0
        %1971 = vmatpush1.bf16.msra.mxu0 0
        %1972 = vmatprep.subr.bf16.mxu0 0
        %1973 = vmatpush1.bf16.msra.mxu0 0
        %1974 = vmatprep.subr.bf16.mxu0 0
        %1975 = vmatpush1.bf16.msra.mxu0 0
        %1976 = vmatprep.subr.bf16.mxu0 0
        %1977 = vmatpush1.bf16.msra.mxu0 0
        %1978 = vmatprep.subr.bf16.mxu0 0
        %1979 = vmatpush1.bf16.msra.mxu0 0
        %1980 = vmatprep.subr.bf16.mxu0 0
        %1981 = vmatpush1.bf16.msra.mxu0 0
        %1982 = vmatprep.subr.bf16.mxu0 0
        %1983 = vmatpush1.bf16.msra.mxu0 0
        %1984 = vmatprep.subr.bf16.mxu0 0
        %1985 = vmatpush1.bf16.msra.mxu0 0
        %1986 = vmatprep.subr.bf16.mxu0 0
        %1987 = vmatpush1.bf16.msra.mxu0 0
        %1988 = vmatprep.subr.bf16.mxu0 0
        %1989 = vmatpush1.bf16.msra.mxu0 0
        %1990 = vmatprep.subr.bf16.mxu0 0
        %1991 = vmatpush1.bf16.msra.mxu0 0
        %1992 = vmatprep.subr.bf16.mxu0 0
        %1993 = vmatpush1.bf16.msra.mxu0 0
        %1994 = vmatprep.mubr.bf16.mxu0 0
        %1995 = vmatmul.mubr.bf16.gmra.mrb[0].mxu0 %v1951
        %v1996 = vpop.f32.mrb[0].mxu0
        %v1997 = vadd.f32 0.0, %v1996
        %v1998 = vpop.f32.mrb[0].mxu0
        %v1999 = vpop.f32.mrb[0].mxu0
        %v2000 = vadd.f32 0.0, %v1999
        %v2001 = vpop.f32.mrb[0].mxu0
        %2002 = vmatprep.mubr.bf16.mxu0 0
        %2003 = vmatmul.mubr.bf16.gmra.mrb[0].mxu0 %v1954
        %v2004 = vpop.f32.mrb[0].mxu0
        %v2005 = vadd.f32 0.0, %v2004
        %v2006 = vpop.f32.mrb[0].mxu0
        %v2007 = vpop.f32.mrb[0].mxu0
        %v2008 = vadd.f32 0.0, %v2007
        %v2009 = vpop.f32.mrb[0].mxu0
        %2010 = vmatprep.mubr.bf16.mxu0 0
        %2011 = vmatmul.mubr.bf16.gmra.mrb[0].mxu0 %v1957
        %v2012 = vpop.f32.mrb[0].mxu0
        %v2013 = vadd.f32 0.0, %v2012
        %v2014 = vpop.f32.mrb[0].mxu0
        %v2015 = vpop.f32.mrb[0].mxu0
        %v2016 = vadd.f32 0.0, %v2015
        %v2017 = vpop.f32.mrb[0].mxu0
        %2018 = vmatprep.mubr.bf16.mxu0 0
        %2019 = vmatmul.mubr.bf16.gmra.mrb[0].mxu0 %v1960
        %v2020 = vpop.f32.mrb[0].mxu0
        %v2021 = vadd.f32 0.0, %v2020
        %v2022 = vpop.f32.mrb[0].mxu0
        %v2023 = vpop.f32.mrb[0].mxu0
        %v2024 = vadd.f32 0.0, %v2023
        %v2025 = vpop.f32.mrb[0].mxu0
        %2026 = vdwg.mxu0
        %v2027 = vlaneseq
        %v2028 = vshrl.u32 %v2027, 7
        %v2029 = vsub.s32 5, %v2028
        %v2030 = vrot.slane %v691, %v2029
        %v2031 = vadd.f32 %v1997, %v2030
        %v2032 = vadd.f32 %v2000, %v2030
        %v2033 = vadd.f32 %v2005, %v2030
        %v2034 = vadd.f32 %v2008, %v2030
        %v2035 = vadd.f32 %v2013, %v2030
        %v2036 = vadd.f32 %v2016, %v2030
        %v2037 = vadd.f32 %v2021, %v2030
        %v2038 = vadd.f32 %v2024, %v2030
        %v2039 = vlaneseq
        %v2040 = vshrl.u32 %v2039, 7
        %v2041 = vsub.s32 6, %v2040
        %v2042 = vrot.slane %v691, %v2041
        %2044 = vrot.lane.b32.xlu0 %v2042, 32
        %v2045 = vpop.permute.xlu0 %2044
        %v2047 = vadd.f32 %v1997, %v2045
        %v2048 = vadd.f32 %v2000, %v2045
        %v2049 = vadd.f32 %v2005, %v2045
        %v2050 = vadd.f32 %v2008, %v2045
        %v2051 = vadd.f32 %v2013, %v2045
        %v2052 = vadd.f32 %v2016, %v2045
        %v2053 = vadd.f32 %v2021, %v2045
        %v2054 = vadd.f32 %v2024, %v2045
        %v2056 = vcombine.high %v1925, %v1925
        %v2058 = vunpack.c.l.s4 1966171168
        %v2059 = vunpack.c.0.s8 %v2058
        %v2060 = vlaneseq
        %v2061 = vshrl.u32 %v2060, 7
        %v2062 = vsub.s32 %v2059, %v2061
        %v2063 = vrot.slane %v1925, %v2062
        %v2065 = vunpack.c.l.s4 1966171168
        %v2066 = vunpack.c.0.s8 %v2065
        %v2067 = vlaneseq
        %v2068 = vshrl.u32 %v2067, 7
        %v2069 = vsub.s32 %v2066, %v2068
        %v2070 = vrot.slane %v2056, %v2069
        %v2071 = vcombine.high %v2063, %v2063
        %v2072 = vcombine.high %v2070, %v2070
        %v2074 = vunpack.c.l.s4 1966171168
        %v2075 = vunpack.c.0.s8 %v2074
        %v2076 = vlaneseq
        %v2077 = vshrl.u32 %v2076, 7
        %v2078 = vsub.s32 %v2075, %v2077
        %v2079 = vrot.slane %v2063, %v2078
        %v2081 = vunpack.c.l.s4 1966171168
        %v2082 = vunpack.c.0.s8 %v2081
        %v2083 = vlaneseq
        %v2084 = vshrl.u32 %v2083, 7
        %v2085 = vsub.s32 %v2082, %v2084
        %v2086 = vrot.slane %v2070, %v2085
        %v2088 = vunpack.c.l.s4 1966171168
        %v2089 = vunpack.c.0.s8 %v2088
        %v2090 = vlaneseq
        %v2091 = vshrl.u32 %v2090, 7
        %v2092 = vsub.s32 %v2089, %v2091
        %v2093 = vrot.slane %v2071, %v2092
        %v2095 = vunpack.c.l.s4 1966171168
        %v2096 = vunpack.c.0.s8 %v2095
        %v2097 = vlaneseq
        %v2098 = vshrl.u32 %v2097, 7
        %v2099 = vsub.s32 %v2096, %v2098
        %v2100 = vrot.slane %v2072, %v2099
        %v2101 = vcombine.high %v2079, %v2079
        %v2102 = vcombine.high %v2086, %v2086
        %v2103 = vcombine.high %v2093, %v2093
        %v2104 = vcombine.high %v2100, %v2100
        %v2105 = vlaneseq
        %v2106 = vshrl.u32 %v2105, 7
        %v2107 = vsub.s32 0, %v2106
        %v2108 = vrot.slane %v2079, %v2107
        %v2109 = vlaneseq
        %v2110 = vshrl.u32 %v2109, 7
        %v2111 = vsub.s32 0, %v2110
        %v2112 = vrot.slane %v2093, %v2111
        %v2113 = vlaneseq
        %v2114 = vshrl.u32 %v2113, 7
        %v2115 = vsub.s32 0, %v2114
        %v2116 = vrot.slane %v2101, %v2115
        %v2117 = vlaneseq
        %v2118 = vshrl.u32 %v2117, 7
        %v2119 = vsub.s32 0, %v2118
        %v2120 = vrot.slane %v2103, %v2119
        %v2121 = vlaneseq
        %v2122 = vshrl.u32 %v2121, 7
        %v2123 = vsub.s32 0, %v2122
        %v2124 = vrot.slane %v2086, %v2123
        %v2125 = vlaneseq
        %v2126 = vshrl.u32 %v2125, 7
        %v2127 = vsub.s32 0, %v2126
        %v2128 = vrot.slane %v2100, %v2127
        %v2129 = vlaneseq
        %v2130 = vshrl.u32 %v2129, 7
        %v2131 = vsub.s32 0, %v2130
        %v2132 = vrot.slane %v2102, %v2131
        %v2133 = vlaneseq
        %v2134 = vshrl.u32 %v2133, 7
        %v2135 = vsub.s32 0, %v2134
        %v2136 = vrot.slane %v2104, %v2135
        %v2145 = vmul.f32 %v2031, %v2108
        %v2146 = vmul.f32 %v2032, %v2112
        %v2147 = vmul.f32 %v2033, %v2116
        %v2148 = vmul.f32 %v2034, %v2120
        %v2149 = vmul.f32 %v2035, %v2124
        %v2150 = vmul.f32 %v2036, %v2128
        %v2151 = vmul.f32 %v2037, %v2132
        %v2152 = vmul.f32 %v2038, %v2136
        %v2153 = vpack.c.bf16 %v2146, %v2145
        %v2154 = vpack.c.bf16 %v2148, %v2147
        %v2155 = vpack.c.bf16 %v2150, %v2149
        %v2156 = vpack.c.bf16 %v2152, %v2151
        %v2157 = vld [vmem:[%s16] sm:$0xf]
        %v2158 = vld [vmem:[%s16 + $0x4] sm:$0xf]
        %v2159 = vld [vmem:[%s16 + $0x8] sm:$0xf]
        %v2160 = vld [vmem:[%s16 + $0xc] sm:$0xf]
        %v2165 = vunpack.c.l.b16 %v2157
        %v2166 = vunpack.c.l.b16 %v2158
        %v2167 = vunpack.c.l.b16 %v2159
        %v2168 = vunpack.c.l.b16 %v2160
        %v2169 = vpack.c.b16 %v2166, %v2165
        %v2170 = vpack.c.b16 %v2168, %v2167
        %v2174 = vsel %vm1015, %v2153, 0
        %v2177 = vsel %vm1015, %v2154, 0
        %v2180 = vsel %vm1015, %v2155, 0
        %v2183 = vsel %vm1015, %v2156, 0
        %2185 = vmatprep.subr.bf16.mxu0 0
        %2186 = vmatpush1.bf16.msra.mxu0 %v2169
        %2187 = vmatprep.subr.bf16.mxu0 0
        %2188 = vmatpush1.bf16.msra.mxu0 %v2170
        %2189 = vmatprep.subr.bf16.mxu0 0
        %2190 = vmatpush1.bf16.msra.mxu0 0
        %2191 = vmatprep.subr.bf16.mxu0 0
        %2192 = vmatpush1.bf16.msra.mxu0 0
        %2193 = vmatprep.subr.bf16.mxu0 0
        %2194 = vmatpush1.bf16.msra.mxu0 0
        %2195 = vmatprep.subr.bf16.mxu0 0
        %2196 = vmatpush1.bf16.msra.mxu0 0
        %2197 = vmatprep.subr.bf16.mxu0 0
        %2198 = vmatpush1.bf16.msra.mxu0 0
        %2199 = vmatprep.subr.bf16.mxu0 0
        %2200 = vmatpush1.bf16.msra.mxu0 0
        %2201 = vmatprep.subr.bf16.mxu0 0
        %2202 = vmatpush1.bf16.msra.mxu0 0
        %2203 = vmatprep.subr.bf16.mxu0 0
        %2204 = vmatpush1.bf16.msra.mxu0 0
        %2205 = vmatprep.subr.bf16.mxu0 0
        %2206 = vmatpush1.bf16.msra.mxu0 0
        %2207 = vmatprep.subr.bf16.mxu0 0
        %2208 = vmatpush1.bf16.msra.mxu0 0
        %2209 = vmatprep.subr.bf16.mxu0 0
        %2210 = vmatpush1.bf16.msra.mxu0 0
        %2211 = vmatprep.subr.bf16.mxu0 0
        %2212 = vmatpush1.bf16.msra.mxu0 0
        %2213 = vmatprep.subr.bf16.mxu0 0
        %2214 = vmatpush1.bf16.msra.mxu0 0
        %2215 = vmatprep.subr.bf16.mxu0 0
        %2216 = vmatpush1.bf16.msra.mxu0 0
        %2217 = vmatprep.mubr.bf16.mxu0 0
        %2218 = vmatmul.mubr.bf16.gmra.mrb[0].mxu0 %v2174
        %v2219 = vpop.f32.mrb[0].mxu0
        %v2220 = vadd.f32 0.0, %v2219
        %v2221 = vpop.f32.mrb[0].mxu0
        %v2222 = vpop.f32.mrb[0].mxu0
        %v2223 = vadd.f32 0.0, %v2222
        %v2224 = vpop.f32.mrb[0].mxu0
        %2225 = vmatprep.mubr.bf16.mxu0 0
        %2226 = vmatmul.mubr.bf16.gmra.mrb[0].mxu0 %v2177
        %v2227 = vpop.f32.mrb[0].mxu0
        %v2228 = vadd.f32 0.0, %v2227
        %v2229 = vpop.f32.mrb[0].mxu0
        %v2230 = vpop.f32.mrb[0].mxu0
        %v2231 = vadd.f32 0.0, %v2230
        %v2232 = vpop.f32.mrb[0].mxu0
        %2233 = vmatprep.mubr.bf16.mxu0 0
        %2234 = vmatmul.mubr.bf16.gmra.mrb[0].mxu0 %v2180
        %v2235 = vpop.f32.mrb[0].mxu0
        %v2236 = vadd.f32 0.0, %v2235
        %v2237 = vpop.f32.mrb[0].mxu0
        %v2238 = vpop.f32.mrb[0].mxu0
        %v2239 = vadd.f32 0.0, %v2238
        %v2240 = vpop.f32.mrb[0].mxu0
        %2241 = vmatprep.mubr.bf16.mxu0 0
        %2242 = vmatmul.mubr.bf16.gmra.mrb[0].mxu0 %v2183
        %v2243 = vpop.f32.mrb[0].mxu0
        %v2244 = vadd.f32 0.0, %v2243
        %v2245 = vpop.f32.mrb[0].mxu0
        %v2246 = vpop.f32.mrb[0].mxu0
        %v2247 = vadd.f32 0.0, %v2246
        %v2248 = vpop.f32.mrb[0].mxu0
        %2249 = vdwg.mxu0
        %v2250 = vmax.f32 %v2220, -10.0
        %v2251 = vmax.f32 %v2223, -10.0
        %v2252 = vmax.f32 %v2228, -10.0
        %v2253 = vmax.f32 %v2231, -10.0
        %v2254 = vmax.f32 %v2236, -10.0
        %v2255 = vmax.f32 %v2239, -10.0
        %v2256 = vmax.f32 %v2244, -10.0
        %v2257 = vmax.f32 %v2247, -10.0
        %v2258 = vmin.f32 %v2250, 10.0
        %v2259 = vmin.f32 %v2251, 10.0
        %v2260 = vmin.f32 %v2252, 10.0
        %v2261 = vmin.f32 %v2253, 10.0
        %v2262 = vmin.f32 %v2254, 10.0
        %v2263 = vmin.f32 %v2255, 10.0
        %v2264 = vmin.f32 %v2256, 10.0
        %v2265 = vmin.f32 %v2257, 10.0
        %v2266 = vmul.f32 %v2258, 0.35355327
        %v2267 = vmul.f32 %v2259, 0.35355327
        %v2268 = vmul.f32 %v2260, 0.35355327
        %v2269 = vmul.f32 %v2261, 0.35355327
        %v2270 = vmul.f32 %v2262, 0.35355327
        %v2271 = vmul.f32 %v2263, 0.35355327
        %v2272 = vmul.f32 %v2264, 0.35355327
        %v2273 = vmul.f32 %v2265, 0.35355327
        %vm2274 = vcmask 31744
        %v2275 = vsel %vm2274, %v2266, -inf
        %v2276 = vrot.slane %v2275, 4
        %v2277 = vmax.f32 %v2275, %v2276
        %v2278 = vrot.slane %v2277, 2
        %v2279 = vmax.f32 %v2277, %v2278
        %v2280 = vrot.slane %v2279, 1
        %v2281 = vmax.f32 %v2279, %v2280
        %v2282 = vsel %vm2274, %v2267, -inf
        %v2283 = vrot.slane %v2282, 4
        %v2284 = vmax.f32 %v2282, %v2283
        %v2285 = vrot.slane %v2284, 2
        %v2286 = vmax.f32 %v2284, %v2285
        %v2287 = vrot.slane %v2286, 1
        %v2288 = vmax.f32 %v2286, %v2287
        %v2289 = vsel %vm2274, %v2268, -inf
        %v2290 = vrot.slane %v2289, 4
        %v2291 = vmax.f32 %v2289, %v2290
        %v2292 = vrot.slane %v2291, 2
        %v2293 = vmax.f32 %v2291, %v2292
        %v2294 = vrot.slane %v2293, 1
        %v2295 = vmax.f32 %v2293, %v2294
        %v2296 = vsel %vm2274, %v2269, -inf
        %v2297 = vrot.slane %v2296, 4
        %v2298 = vmax.f32 %v2296, %v2297
        %v2299 = vrot.slane %v2298, 2
        %v2300 = vmax.f32 %v2298, %v2299
        %v2301 = vrot.slane %v2300, 1
        %v2302 = vmax.f32 %v2300, %v2301
        %v2303 = vsel %vm2274, %v2270, -inf
        %v2304 = vrot.slane %v2303, 4
        %v2305 = vmax.f32 %v2303, %v2304
        %v2306 = vrot.slane %v2305, 2
        %v2307 = vmax.f32 %v2305, %v2306
        %v2308 = vrot.slane %v2307, 1
        %v2309 = vmax.f32 %v2307, %v2308
        %v2310 = vsel %vm2274, %v2271, -inf
        %v2311 = vrot.slane %v2310, 4
        %v2312 = vmax.f32 %v2310, %v2311
        %v2313 = vrot.slane %v2312, 2
        %v2314 = vmax.f32 %v2312, %v2313
        %v2315 = vrot.slane %v2314, 1
        %v2316 = vmax.f32 %v2314, %v2315
        %v2317 = vsel %vm2274, %v2272, -inf
        %v2318 = vrot.slane %v2317, 4
        %v2319 = vmax.f32 %v2317, %v2318
        %v2320 = vrot.slane %v2319, 2
        %v2321 = vmax.f32 %v2319, %v2320
        %v2322 = vrot.slane %v2321, 1
        %v2323 = vmax.f32 %v2321, %v2322
        %v2324 = vsel %vm2274, %v2273, -inf
        %v2325 = vrot.slane %v2324, 4
        %v2326 = vmax.f32 %v2324, %v2325
        %v2327 = vrot.slane %v2326, 2
        %v2328 = vmax.f32 %v2326, %v2327
        %v2329 = vrot.slane %v2328, 1
        %v2330 = vmax.f32 %v2328, %v2329
        %v2331 = vsub.f32 %v2266, %v2281
        %v2332 = vsub.f32 %v2267, %v2288
        %v2333 = vsub.f32 %v2268, %v2295
        %v2334 = vsub.f32 %v2269, %v2302
        %v2335 = vsub.f32 %v2270, %v2309
        %v2336 = vsub.f32 %v2271, %v2316
        %v2337 = vsub.f32 %v2272, %v2323
        %v2338 = vsub.f32 %v2273, %v2330
        %v2339 = vmul.f32 %v2331, 1.442695
        %v2340 = vpow.pop %v2339
        %v2341 = vmul.f32 %v2332, 1.442695
        %v2342 = vpow.pop %v2341
        %v2343 = vmul.f32 %v2333, 1.442695
        %v2344 = vpow.pop %v2343
        %v2345 = vmul.f32 %v2334, 1.442695
        %v2346 = vpow.pop %v2345
        %v2347 = vmul.f32 %v2335, 1.442695
        %v2348 = vpow.pop %v2347
        %v2349 = vmul.f32 %v2336, 1.442695
        %v2350 = vpow.pop %v2349
        %v2351 = vmul.f32 %v2337, 1.442695
        %v2352 = vpow.pop %v2351
        %v2353 = vmul.f32 %v2338, 1.442695
        %v2354 = vpow.pop %v2353
        %v2355 = vsel %vm2274, %v2340, 0.0
        %v2356 = vrot.slane %v2355, 4
        %v2357 = vadd.f32 %v2355, %v2356
        %v2358 = vrot.slane %v2357, 2
        %v2359 = vadd.f32 %v2357, %v2358
        %v2360 = vrot.slane %v2359, 1
        %v2361 = vadd.f32 %v2359, %v2360
        %v2362 = vsel %vm2274, %v2342, 0.0
        %v2363 = vrot.slane %v2362, 4
        %v2364 = vadd.f32 %v2362, %v2363
        %v2365 = vrot.slane %v2364, 2
        %v2366 = vadd.f32 %v2364, %v2365
        %v2367 = vrot.slane %v2366, 1
        %v2368 = vadd.f32 %v2366, %v2367
        %v2369 = vsel %vm2274, %v2344, 0.0
        %v2370 = vrot.slane %v2369, 4
        %v2371 = vadd.f32 %v2369, %v2370
        %v2372 = vrot.slane %v2371, 2
        %v2373 = vadd.f32 %v2371, %v2372
        %v2374 = vrot.slane %v2373, 1
        %v2375 = vadd.f32 %v2373, %v2374
        %v2376 = vsel %vm2274, %v2346, 0.0
        %v2377 = vrot.slane %v2376, 4
        %v2378 = vadd.f32 %v2376, %v2377
        %v2379 = vrot.slane %v2378, 2
        %v2380 = vadd.f32 %v2378, %v2379
        %v2381 = vrot.slane %v2380, 1
        %v2382 = vadd.f32 %v2380, %v2381
        %v2383 = vsel %vm2274, %v2348, 0.0
        %v2384 = vrot.slane %v2383, 4
        %v2385 = vadd.f32 %v2383, %v2384
        %v2386 = vrot.slane %v2385, 2
        %v2387 = vadd.f32 %v2385, %v2386
        %v2388 = vrot.slane %v2387, 1
        %v2389 = vadd.f32 %v2387, %v2388
        %v2390 = vsel %vm2274, %v2350, 0.0
        %v2391 = vrot.slane %v2390, 4
        %v2392 = vadd.f32 %v2390, %v2391
        %v2393 = vrot.slane %v2392, 2
        %v2394 = vadd.f32 %v2392, %v2393
        %v2395 = vrot.slane %v2394, 1
        %v2396 = vadd.f32 %v2394, %v2395
        %v2397 = vsel %vm2274, %v2352, 0.0
        %v2398 = vrot.slane %v2397, 4
        %v2399 = vadd.f32 %v2397, %v2398
        %v2400 = vrot.slane %v2399, 2
        %v2401 = vadd.f32 %v2399, %v2400
        %v2402 = vrot.slane %v2401, 1
        %v2403 = vadd.f32 %v2401, %v2402
        %v2404 = vsel %vm2274, %v2354, 0.0
        %v2405 = vrot.slane %v2404, 4
        %v2406 = vadd.f32 %v2404, %v2405
        %v2407 = vrot.slane %v2406, 2
        %v2408 = vadd.f32 %v2406, %v2407
        %v2409 = vrot.slane %v2408, 1
        %v2410 = vadd.f32 %v2408, %v2409
        %v2411 = vadd.f32 %v2361, 1e-06
        %v2412 = vadd.f32 %v2368, 1e-06
        %v2413 = vadd.f32 %v2375, 1e-06
        %v2414 = vadd.f32 %v2382, 1e-06
        %v2415 = vadd.f32 %v2389, 1e-06
        %v2416 = vadd.f32 %v2396, 1e-06
        %v2417 = vadd.f32 %v2403, 1e-06
        %v2418 = vadd.f32 %v2410, 1e-06
        %v2419 = vrcp.pop %v2411
        %v2420 = vrcp.pop %v2412
        %v2421 = vrcp.pop %v2413
        %v2422 = vrcp.pop %v2414
        %v2423 = vrcp.pop %v2415
        %v2424 = vrcp.pop %v2416
        %v2425 = vrcp.pop %v2417
        %v2426 = vrcp.pop %v2418
        %v2427 = vmul.f32 %v2340, %v2419
        %v2428 = vmul.f32 %v2342, %v2420
        %v2429 = vmul.f32 %v2344, %v2421
        %v2430 = vmul.f32 %v2346, %v2422
        %v2431 = vmul.f32 %v2348, %v2423
        %v2432 = vmul.f32 %v2350, %v2424
        %v2433 = vmul.f32 %v2352, %v2425
        %v2434 = vmul.f32 %v2354, %v2426
        %vm2435 = vcmp.ne.f32.partialorder %v2427, %v2427
        %vm2436 = vcmp.ne.f32.partialorder %v2428, %v2428
        %vm2437 = vcmp.ne.f32.partialorder %v2429, %v2429
        %vm2438 = vcmp.ne.f32.partialorder %v2430, %v2430
        %vm2439 = vcmp.ne.f32.partialorder %v2431, %v2431
        %vm2440 = vcmp.ne.f32.partialorder %v2432, %v2432
        %vm2441 = vcmp.ne.f32.partialorder %v2433, %v2433
        %vm2442 = vcmp.ne.f32.partialorder %v2434, %v2434
        %v2443 = vsel %vm2435, 0.0, %v2427
        %v2444 = vsel %vm2436, 0.0, %v2428
        %v2445 = vsel %vm2437, 0.0, %v2429
        %v2446 = vsel %vm2438, 0.0, %v2430
        %v2447 = vsel %vm2439, 0.0, %v2431
        %v2448 = vsel %vm2440, 0.0, %v2432
        %v2449 = vsel %vm2441, 0.0, %v2433
        %v2450 = vsel %vm2442, 0.0, %v2434
        %vm2451 = vcmp.eq.f32.partialorder %v2443, inf
        %vm2452 = vcmp.eq.f32.partialorder %v2444, inf
        %vm2453 = vcmp.eq.f32.partialorder %v2445, inf
        %vm2454 = vcmp.eq.f32.partialorder %v2446, inf
        %vm2455 = vcmp.eq.f32.partialorder %v2447, inf
        %vm2456 = vcmp.eq.f32.partialorder %v2448, inf
        %vm2457 = vcmp.eq.f32.partialorder %v2449, inf
        %vm2458 = vcmp.eq.f32.partialorder %v2450, inf
        %v2459 = vsel %vm2451, 3.4028235e+38, %v2443
        %v2460 = vsel %vm2452, 3.4028235e+38, %v2444
        %v2461 = vsel %vm2453, 3.4028235e+38, %v2445
        %v2462 = vsel %vm2454, 3.4028235e+38, %v2446
        %v2463 = vsel %vm2455, 3.4028235e+38, %v2447
        %v2464 = vsel %vm2456, 3.4028235e+38, %v2448
        %v2465 = vsel %vm2457, 3.4028235e+38, %v2449
        %v2466 = vsel %vm2458, 3.4028235e+38, %v2450
        %vm2467 = vcmp.eq.f32.partialorder %v2459, -inf
        %vm2468 = vcmp.eq.f32.partialorder %v2460, -inf
        %vm2469 = vcmp.eq.f32.partialorder %v2461, -inf
        %vm2470 = vcmp.eq.f32.partialorder %v2462, -inf
        %vm2471 = vcmp.eq.f32.partialorder %v2463, -inf
        %vm2472 = vcmp.eq.f32.partialorder %v2464, -inf
        %vm2473 = vcmp.eq.f32.partialorder %v2465, -inf
        %vm2474 = vcmp.eq.f32.partialorder %v2466, -inf
        %v2475 = vsel %vm2467, -3.4028235e+38, %v2459
        %v2476 = vsel %vm2468, -3.4028235e+38, %v2460
        %v2477 = vsel %vm2469, -3.4028235e+38, %v2461
        %v2478 = vsel %vm2470, -3.4028235e+38, %v2462
        %v2479 = vsel %vm2471, -3.4028235e+38, %v2463
        %v2480 = vsel %vm2472, -3.4028235e+38, %v2464
        %v2481 = vsel %vm2473, -3.4028235e+38, %v2465
        %v2482 = vsel %vm2474, -3.4028235e+38, %v2466
        %v2483 = vmax.f32 %v2475, 0.0
        %v2484 = vmax.f32 %v2476, 0.0
        %v2485 = vmax.f32 %v2477, 0.0
        %v2486 = vmax.f32 %v2478, 0.0
        %v2487 = vmax.f32 %v2479, 0.0
        %v2488 = vmax.f32 %v2480, 0.0
        %v2489 = vmax.f32 %v2481, 0.0
        %v2490 = vmax.f32 %v2482, 0.0
        %v2491 = vmin.f32 %v2483, 1.0
        %v2492 = vmin.f32 %v2484, 1.0
        %v2493 = vmin.f32 %v2485, 1.0
        %v2494 = vmin.f32 %v2486, 1.0
        %v2495 = vmin.f32 %v2487, 1.0
        %v2496 = vmin.f32 %v2488, 1.0
        %v2497 = vmin.f32 %v2489, 1.0
        %v2498 = vmin.f32 %v2490, 1.0
        %v2499 = vsel %vm2274, %v2491, 0.0
        %v2500 = vrot.slane %v2499, 4
        %v2501 = vadd.f32 %v2499, %v2500
        %v2502 = vrot.slane %v2501, 2
        %v2503 = vadd.f32 %v2501, %v2502
        %v2504 = vrot.slane %v2503, 1
        %v2505 = vadd.f32 %v2503, %v2504
        %v2506 = vsel %vm2274, %v2492, 0.0
        %v2507 = vrot.slane %v2506, 4
        %v2508 = vadd.f32 %v2506, %v2507
        %v2509 = vrot.slane %v2508, 2
        %v2510 = vadd.f32 %v2508, %v2509
        %v2511 = vrot.slane %v2510, 1
        %v2512 = vadd.f32 %v2510, %v2511
        %v2513 = vsel %vm2274, %v2493, 0.0
        %v2514 = vrot.slane %v2513, 4
        %v2515 = vadd.f32 %v2513, %v2514
        %v2516 = vrot.slane %v2515, 2
        %v2517 = vadd.f32 %v2515, %v2516
        %v2518 = vrot.slane %v2517, 1
        %v2519 = vadd.f32 %v2517, %v2518
        %v2520 = vsel %vm2274, %v2494, 0.0
        %v2521 = vrot.slane %v2520, 4
        %v2522 = vadd.f32 %v2520, %v2521
        %v2523 = vrot.slane %v2522, 2
        %v2524 = vadd.f32 %v2522, %v2523
        %v2525 = vrot.slane %v2524, 1
        %v2526 = vadd.f32 %v2524, %v2525
        %v2527 = vsel %vm2274, %v2495, 0.0
        %v2528 = vrot.slane %v2527, 4
        %v2529 = vadd.f32 %v2527, %v2528
        %v2530 = vrot.slane %v2529, 2
        %v2531 = vadd.f32 %v2529, %v2530
        %v2532 = vrot.slane %v2531, 1
        %v2533 = vadd.f32 %v2531, %v2532
        %v2534 = vsel %vm2274, %v2496, 0.0
        %v2535 = vrot.slane %v2534, 4
        %v2536 = vadd.f32 %v2534, %v2535
        %v2537 = vrot.slane %v2536, 2
        %v2538 = vadd.f32 %v2536, %v2537
        %v2539 = vrot.slane %v2538, 1
        %v2540 = vadd.f32 %v2538, %v2539
        %v2541 = vsel %vm2274, %v2497, 0.0
        %v2542 = vrot.slane %v2541, 4
        %v2543 = vadd.f32 %v2541, %v2542
        %v2544 = vrot.slane %v2543, 2
        %v2545 = vadd.f32 %v2543, %v2544
        %v2546 = vrot.slane %v2545, 1
        %v2547 = vadd.f32 %v2545, %v2546
        %v2548 = vsel %vm2274, %v2498, 0.0
        %v2549 = vrot.slane %v2548, 4
        %v2550 = vadd.f32 %v2548, %v2549
        %v2551 = vrot.slane %v2550, 2
        %v2552 = vadd.f32 %v2550, %v2551
        %v2553 = vrot.slane %v2552, 1
        %v2554 = vadd.f32 %v2552, %v2553
        %v2555 = vadd.f32 %v2505, 1e-06
        %v2556 = vadd.f32 %v2512, 1e-06
        %v2557 = vadd.f32 %v2519, 1e-06
        %v2558 = vadd.f32 %v2526, 1e-06
        %v2559 = vadd.f32 %v2533, 1e-06
        %v2560 = vadd.f32 %v2540, 1e-06
        %v2561 = vadd.f32 %v2547, 1e-06
        %v2562 = vadd.f32 %v2554, 1e-06
        %v2563 = vrcp.pop %v2555
        %v2564 = vrcp.pop %v2556
        %v2565 = vrcp.pop %v2557
        %v2566 = vrcp.pop %v2558
        %v2567 = vrcp.pop %v2559
        %v2568 = vrcp.pop %v2560
        %v2569 = vrcp.pop %v2561
        %v2570 = vrcp.pop %v2562
        %v2571 = vmul.f32 %v2491, %v2563
        %v2572 = vmul.f32 %v2492, %v2564
        %v2573 = vmul.f32 %v2493, %v2565
        %v2574 = vmul.f32 %v2494, %v2566
        %v2575 = vmul.f32 %v2495, %v2567
        %v2576 = vmul.f32 %v2496, %v2568
        %v2577 = vmul.f32 %v2497, %v2569
        %v2578 = vmul.f32 %v2498, %v2570
        %v2579 = vpack.c.bf16 %v2572, %v2571
        %v2580 = vpack.c.bf16 %v2574, %v2573
        %v2581 = vpack.c.bf16 %v2576, %v2575
        %v2582 = vpack.c.bf16 %v2578, %v2577
        %v2583 = vld [vmem:[%s17] sm:$0x3]
        %v2585 = vsel %vm2274, %v2579, 0
        %v2588 = vsel %vm2274, %v2580, 0
        %v2591 = vsel %vm2274, %v2581, 0
        %v2594 = vsel %vm2274, %v2582, 0
        %vm2596 = vcmask 1041408
        %v2598 = vsel %vm2596, %v2583, 0
        %2600 = vmatprep.subr.bf16.mxu0 0
        %2601 = vmatpush1.bf16.msra.mxu0 %v2598
        %2602 = vmatprep.subr.bf16.mxu0 0
        %2603 = vmatpush1.bf16.msra.mxu0 0
        %2604 = vmatprep.subr.bf16.mxu0 0
        %2605 = vmatpush1.bf16.msra.mxu0 0
        %2606 = vmatprep.subr.bf16.mxu0 0
        %2607 = vmatpush1.bf16.msra.mxu0 0
        %2608 = vmatprep.subr.bf16.mxu0 0
        %2609 = vmatpush1.bf16.msra.mxu0 0
        %2610 = vmatprep.subr.bf16.mxu0 0
        %2611 = vmatpush1.bf16.msra.mxu0 0
        %2612 = vmatprep.subr.bf16.mxu0 0
        %2613 = vmatpush1.bf16.msra.mxu0 0
        %2614 = vmatprep.subr.bf16.mxu0 0
        %2615 = vmatpush1.bf16.msra.mxu0 0
        %2616 = vmatprep.subr.bf16.mxu0 0
        %2617 = vmatpush1.bf16.msra.mxu0 0
        %2618 = vmatprep.subr.bf16.mxu0 0
        %2619 = vmatpush1.bf16.msra.mxu0 0
        %2620 = vmatprep.subr.bf16.mxu0 0
        %2621 = vmatpush1.bf16.msra.mxu0 0
        %2622 = vmatprep.subr.bf16.mxu0 0
        %2623 = vmatpush1.bf16.msra.mxu0 0
        %2624 = vmatprep.subr.bf16.mxu0 0
        %2625 = vmatpush1.bf16.msra.mxu0 0
        %2626 = vmatprep.subr.bf16.mxu0 0
        %2627 = vmatpush1.bf16.msra.mxu0 0
        %2628 = vmatprep.subr.bf16.mxu0 0
        %2629 = vmatpush1.bf16.msra.mxu0 0
        %2630 = vmatprep.subr.bf16.mxu0 0
        %2631 = vmatpush1.bf16.msra.mxu0 0
        %2632 = vmatprep.mubr.bf16.mxu0 0
        %2633 = vmatmul.mubr.bf16.gmra.mrb[0].mxu0 %v2585
        %v2634 = vpop.f32.mrb[0].mxu0
        %v2635 = vadd.f32 0.0, %v2634
        %v2636 = vpop.f32.mrb[0].mxu0
        %v2637 = vpop.f32.mrb[0].mxu0
        %v2638 = vadd.f32 0.0, %v2637
        %v2639 = vpop.f32.mrb[0].mxu0
        %2640 = vmatprep.mubr.bf16.mxu0 0
        %2641 = vmatmul.mubr.bf16.gmra.mrb[0].mxu0 %v2588
        %v2642 = vpop.f32.mrb[0].mxu0
        %v2643 = vadd.f32 0.0, %v2642
        %v2644 = vpop.f32.mrb[0].mxu0
        %v2645 = vpop.f32.mrb[0].mxu0
        %v2646 = vadd.f32 0.0, %v2645
        %v2647 = vpop.f32.mrb[0].mxu0
        %2648 = vmatprep.mubr.bf16.mxu0 0
        %2649 = vmatmul.mubr.bf16.gmra.mrb[0].mxu0 %v2591
        %v2650 = vpop.f32.mrb[0].mxu0
        %v2651 = vadd.f32 0.0, %v2650
        %v2652 = vpop.f32.mrb[0].mxu0
        %v2653 = vpop.f32.mrb[0].mxu0
        %v2654 = vadd.f32 0.0, %v2653
        %v2655 = vpop.f32.mrb[0].mxu0
        %2656 = vmatprep.mubr.bf16.mxu0 0
        %2657 = vmatmul.mubr.bf16.gmra.mrb[0].mxu0 %v2594
        %v2658 = vpop.f32.mrb[0].mxu0
        %v2659 = vadd.f32 0.0, %v2658
        %v2660 = vpop.f32.mrb[0].mxu0
        %v2661 = vpop.f32.mrb[0].mxu0
        %v2662 = vadd.f32 0.0, %v2661
        %v2663 = vpop.f32.mrb[0].mxu0
        %2664 = vdwg.mxu0
        %v2665 = vld [vmem:[%s18] sm:$0xf]
        %2674 = vrot.lane.b32.xlu0 %v2047, 96
        %v2675 = vpop.permute.xlu0 %2674
        %2676 = vrot.lane.b32.xlu0 %v2048, 96
        %v2677 = vpop.permute.xlu0 %2676
        %2678 = vrot.lane.b32.xlu0 %v2049, 96
        %v2679 = vpop.permute.xlu0 %2678
        %2680 = vrot.lane.b32.xlu0 %v2050, 96
        %v2681 = vpop.permute.xlu0 %2680
        %2682 = vrot.lane.b32.xlu0 %v2051, 96
        %v2683 = vpop.permute.xlu0 %2682
        %2684 = vrot.lane.b32.xlu0 %v2052, 96
        %v2685 = vpop.permute.xlu0 %2684
        %2686 = vrot.lane.b32.xlu0 %v2053, 96
        %v2687 = vpop.permute.xlu0 %2686
        %2688 = vrot.lane.b32.xlu0 %v2054, 96
        %v2689 = vpop.permute.xlu0 %2688
        %v2698 = vmul.f32 %v2635, %v2675
        %v2699 = vmul.f32 %v2638, %v2677
        %v2700 = vmul.f32 %v2643, %v2679
        %v2701 = vmul.f32 %v2646, %v2681
        %v2702 = vmul.f32 %v2651, %v2683
        %v2703 = vmul.f32 %v2654, %v2685
        %v2704 = vmul.f32 %v2659, %v2687
        %v2705 = vmul.f32 %v2662, %v2689
        %v2706 = vpack.c.bf16 %v2699, %v2698
        %v2707 = vpack.c.bf16 %v2701, %v2700
        %v2708 = vpack.c.bf16 %v2703, %v2702
        %v2709 = vpack.c.bf16 %v2705, %v2704
        %vm2710 = vcmask 523264
        %v2712 = vsel %vm2710, %v2665, 0
        %2714 = vmatprep.subr.bf16.mxu0 0
        %2715 = vmatpush1.bf16.msra.mxu0 %v2706
        %2716 = vmatprep.subr.bf16.mxu0 0
        %2717 = vmatpush1.bf16.msra.mxu0 %v2707
        %2718 = vmatprep.subr.bf16.mxu0 0
        %2719 = vmatpush1.bf16.msra.mxu0 %v2708
        %2720 = vmatprep.subr.bf16.mxu0 0
        %2721 = vmatpush1.bf16.msra.mxu0 %v2709
        %2722 = vmatprep.subr.bf16.mxu0 0
        %2723 = vmatpush1.bf16.msra.mxu0 0
        %2724 = vmatprep.subr.bf16.mxu0 0
        %2725 = vmatpush1.bf16.msra.mxu0 0
        %2726 = vmatprep.subr.bf16.mxu0 0
        %2727 = vmatpush1.bf16.msra.mxu0 0
        %2728 = vmatprep.subr.bf16.mxu0 0
        %2729 = vmatpush1.bf16.msra.mxu0 0
        %2730 = vmatprep.subr.bf16.mxu0 0
        %2731 = vmatpush1.bf16.msra.mxu0 0
        %2732 = vmatprep.subr.bf16.mxu0 0
        %2733 = vmatpush1.bf16.msra.mxu0 0
        %2734 = vmatprep.subr.bf16.mxu0 0
        %2735 = vmatpush1.bf16.msra.mxu0 0
        %2736 = vmatprep.subr.bf16.mxu0 0
        %2737 = vmatpush1.bf16.msra.mxu0 0
        %2738 = vmatprep.subr.bf16.mxu0 0
        %2739 = vmatpush1.bf16.msra.mxu0 0
        %2740 = vmatprep.subr.bf16.mxu0 0
        %2741 = vmatpush1.bf16.msra.mxu0 0
        %2742 = vmatprep.subr.bf16.mxu0 0
        %2743 = vmatpush1.bf16.msra.mxu0 0
        %2744 = vmatprep.subr.bf16.mxu0 0
        %2745 = vmatpush1.bf16.msra.mxu0 0
        %2746 = vmatprep.mubr.bf16.mxu0 0
        %2747 = vmatmul.mubr.bf16.gmra.mrb[0].mxu0 %v2712
        %v2748 = vpop.f32.mrb[0].mxu0
        %v2749 = vadd.f32 0.0, %v2748
        %v2750 = vpop.f32.mrb[0].mxu0
        %v2751 = vpop.f32.mrb[0].mxu0
        %v2752 = vpop.f32.mrb[0].mxu0
        %2753 = vdwg.mxu0
        %2754 = vmatprep.subr.bf16.mxu0 0
        %2755 = vmatpush1.bf16.msra.mxu0 %v1930
        %2756 = vmatprep.subr.bf16.mxu0 0
        %2757 = vmatpush1.bf16.msra.mxu0 %v1931
        %2758 = vmatprep.subr.bf16.mxu0 0
        %2759 = vmatpush1.bf16.msra.mxu0 %v1932
        %2760 = vmatprep.subr.bf16.mxu0 0
        %2761 = vmatpush1.bf16.msra.mxu0 %v1933
        %2762 = vmatprep.subr.bf16.mxu0 0
        %2763 = vmatpush1.bf16.msra.mxu0 0
        %2764 = vmatprep.subr.bf16.mxu0 0
        %2765 = vmatpush1.bf16.msra.mxu0 0
        %2766 = vmatprep.subr.bf16.mxu0 0
        %2767 = vmatpush1.bf16.msra.mxu0 0
        %2768 = vmatprep.subr.bf16.mxu0 0
        %2769 = vmatpush1.bf16.msra.mxu0 0
        %2770 = vmatprep.subr.bf16.mxu0 0
        %2771 = vmatpush1.bf16.msra.mxu0 0
        %2772 = vmatprep.subr.bf16.mxu0 0
        %2773 = vmatpush1.bf16.msra.mxu0 0
        %2774 = vmatprep.subr.bf16.mxu0 0
        %2775 = vmatpush1.bf16.msra.mxu0 0
        %2776 = vmatprep.subr.bf16.mxu0 0
        %2777 = vmatpush1.bf16.msra.mxu0 0
        %2778 = vmatprep.subr.bf16.mxu0 0
        %2779 = vmatpush1.bf16.msra.mxu0 0
        %2780 = vmatprep.subr.bf16.mxu0 0
        %2781 = vmatpush1.bf16.msra.mxu0 0
        %2782 = vmatprep.subr.bf16.mxu0 0
        %2783 = vmatpush1.bf16.msra.mxu0 0
        %2784 = vmatprep.subr.bf16.mxu0 0
        %2785 = vmatpush1.bf16.msra.mxu0 0
        %2786 = vmatprep.mubr.bf16.mxu0 0
        %2787 = vmatmul.mubr.bf16.gmra.mrb[0].mxu0 %v2712
        %v2788 = vpop.f32.mrb[0].mxu0
        %v2789 = vadd.f32 0.0, %v2788
        %v2790 = vpop.f32.mrb[0].mxu0
        %v2791 = vpop.f32.mrb[0].mxu0
        %v2792 = vpop.f32.mrb[0].mxu0
        %2793 = vdwg.mxu0
        %v2794 = vmul.f32 %v2789, 0.125
        %v2795 = vpack.c.bf16 %v2794, %v2794
        %v2796 = vld [vmem:[%s12] sm:$0xf]
        %v2797 = vld [vmem:[%s12 + $0x4] sm:$0xf]
        %v2798 = vld [vmem:[%s12 + $0x8] sm:$0xf]
        %v2799 = vld [vmem:[%s12 + $0xc] sm:$0xf]
        %v2800 = vlaneseq
        %v2801 = vshrl.u32 %v2800, 7
        %v2802 = vsub.s32 0, %v2801
        %v2803 = vrot.slane %v692, %v2802
        %v2808 = vunpack.c.l.b16 %v2796
        %v2809 = vunpack.c.l.b16 %v2797
        %v2810 = vunpack.c.l.b16 %v2798
        %v2811 = vunpack.c.l.b16 %v2799
        %v2812 = vpack.c.b16 %v2809, %v2808
        %v2813 = vpack.c.b16 %v2811, %v2810
        %v2817 = vsel %vm1015, %v2795, 0
        %2819 = vmatprep.subr.bf16.mxu0 0
        %2820 = vmatpush1.bf16.msra.mxu0 %v2812
        %2821 = vmatprep.subr.bf16.mxu0 0
        %2822 = vmatpush1.bf16.msra.mxu0 %v2813
        %2823 = vmatprep.subr.bf16.mxu0 0
        %2824 = vmatpush1.bf16.msra.mxu0 0
        %2825 = vmatprep.subr.bf16.mxu0 0
        %2826 = vmatpush1.bf16.msra.mxu0 0
        %2827 = vmatprep.subr.bf16.mxu0 0
        %2828 = vmatpush1.bf16.msra.mxu0 0
        %2829 = vmatprep.subr.bf16.mxu0 0
        %2830 = vmatpush1.bf16.msra.mxu0 0
        %2831 = vmatprep.subr.bf16.mxu0 0
        %2832 = vmatpush1.bf16.msra.mxu0 0
        %2833 = vmatprep.subr.bf16.mxu0 0
        %2834 = vmatpush1.bf16.msra.mxu0 0
        %2835 = vmatprep.subr.bf16.mxu0 0
        %2836 = vmatpush1.bf16.msra.mxu0 0
        %2837 = vmatprep.subr.bf16.mxu0 0
        %2838 = vmatpush1.bf16.msra.mxu0 0
        %2839 = vmatprep.subr.bf16.mxu0 0
        %2840 = vmatpush1.bf16.msra.mxu0 0
        %2841 = vmatprep.subr.bf16.mxu0 0
        %2842 = vmatpush1.bf16.msra.mxu0 0
        %2843 = vmatprep.subr.bf16.mxu0 0
        %2844 = vmatpush1.bf16.msra.mxu0 0
        %2845 = vmatprep.subr.bf16.mxu0 0
        %2846 = vmatpush1.bf16.msra.mxu0 0
        %2847 = vmatprep.subr.bf16.mxu0 0
        %2848 = vmatpush1.bf16.msra.mxu0 0
        %2849 = vmatprep.subr.bf16.mxu0 0
        %2850 = vmatpush1.bf16.msra.mxu0 0
        %2851 = vmatprep.mubr.bf16.mxu0 0
        %2852 = vmatmul.mubr.bf16.gmra.mrb[0].mxu0 %v2817
        %v2853 = vpop.f32.mrb[0].mxu0
        %v2854 = vadd.f32 %v2803, %v2853
        %v2855 = vpop.f32.mrb[0].mxu0
        %v2856 = vpop.f32.mrb[0].mxu0
        %v2857 = vpop.f32.mrb[0].mxu0
        %2858 = vdwg.mxu0
        %v2859 = vmul.f32 %v2854, 0.5
        %v2860 = vrcp.pop 1.4142135
        %v2861 = vmul.f32 %v2854, %v2860
        %v2862 = verf.f32.pop %v2861
        %v2863 = vadd.f32 %v2862, 1.0
        %v2864 = vmul.f32 %v2859, %v2863
        %v2865 = vpack.c.bf16 %v2864, %v2864
        %v2866 = vld [vmem:[%s13] sm:$0xf]
        %v2867 = vld [vmem:[%s13 + $0x4] sm:$0xf]
        %v2868 = vld [vmem:[%s13 + $0x8] sm:$0xf]
        %v2869 = vld [vmem:[%s13 + $0xc] sm:$0xf]
        %v2870 = vlaneseq
        %v2871 = vshrl.u32 %v2870, 7
        %v2872 = vsub.s32 1, %v2871
        %v2873 = vrot.slane %v692, %v2872
        %v2878 = vunpack.c.l.b16 %v2866
        %v2879 = vunpack.c.l.b16 %v2867
        %v2880 = vunpack.c.l.b16 %v2868
        %v2881 = vunpack.c.l.b16 %v2869
        %v2882 = vpack.c.b16 %v2879, %v2878
        %v2883 = vpack.c.b16 %v2881, %v2880
        %v2887 = vsel %vm1015, %v2865, 0
        %2889 = vmatprep.subr.bf16.mxu0 0
        %2890 = vmatpush1.bf16.msra.mxu0 %v2882
        %2891 = vmatprep.subr.bf16.mxu0 0
        %2892 = vmatpush1.bf16.msra.mxu0 %v2883
        %2893 = vmatprep.subr.bf16.mxu0 0
        %2894 = vmatpush1.bf16.msra.mxu0 0
        %2895 = vmatprep.subr.bf16.mxu0 0
        %2896 = vmatpush1.bf16.msra.mxu0 0
        %2897 = vmatprep.subr.bf16.mxu0 0
        %2898 = vmatpush1.bf16.msra.mxu0 0
        %2899 = vmatprep.subr.bf16.mxu0 0
        %2900 = vmatpush1.bf16.msra.mxu0 0
        %2901 = vmatprep.subr.bf16.mxu0 0
        %2902 = vmatpush1.bf16.msra.mxu0 0
        %2903 = vmatprep.subr.bf16.mxu0 0
        %2904 = vmatpush1.bf16.msra.mxu0 0
        %2905 = vmatprep.subr.bf16.mxu0 0
        %2906 = vmatpush1.bf16.msra.mxu0 0
        %2907 = vmatprep.subr.bf16.mxu0 0
        %2908 = vmatpush1.bf16.msra.mxu0 0
        %2909 = vmatprep.subr.bf16.mxu0 0
        %2910 = vmatpush1.bf16.msra.mxu0 0
        %2911 = vmatprep.subr.bf16.mxu0 0
        %2912 = vmatpush1.bf16.msra.mxu0 0
        %2913 = vmatprep.subr.bf16.mxu0 0
        %2914 = vmatpush1.bf16.msra.mxu0 0
        %2915 = vmatprep.subr.bf16.mxu0 0
        %2916 = vmatpush1.bf16.msra.mxu0 0
        %2917 = vmatprep.subr.bf16.mxu0 0
        %2918 = vmatpush1.bf16.msra.mxu0 0
        %2919 = vmatprep.subr.bf16.mxu0 0
        %2920 = vmatpush1.bf16.msra.mxu0 0
        %2921 = vmatprep.mubr.bf16.mxu0 0
        %2922 = vmatmul.mubr.bf16.gmra.mrb[0].mxu0 %v2887
        %v2923 = vpop.f32.mrb[0].mxu0
        %v2924 = vadd.f32 %v2873, %v2923
        %v2925 = vpop.f32.mrb[0].mxu0
        %v2926 = vpop.f32.mrb[0].mxu0
        %v2927 = vpop.f32.mrb[0].mxu0
        %2928 = vdwg.mxu0
        %v2929 = vpack.c.bf16 %v2749, %v2749
        %v2930 = vld [vmem:[%s11] sm:$0xf]
        %v2931 = vld [vmem:[%s11 + $0x4] sm:$0xf]
        %v2932 = vld [vmem:[%s11 + $0x8] sm:$0xf]
        %v2933 = vld [vmem:[%s11 + $0xc] sm:$0xf]
        %v2934 = vlaneseq
        %v2935 = vshrl.u32 %v2934, 7
        %v2936 = vsub.s32 7, %v2935
        %v2937 = vrot.slane %v691, %v2936
        %v2942 = vunpack.c.l.b16 %v2930
        %v2943 = vunpack.c.l.b16 %v2931
        %v2944 = vunpack.c.l.b16 %v2932
        %v2945 = vunpack.c.l.b16 %v2933
        %v2946 = vpack.c.b16 %v2943, %v2942
        %v2947 = vpack.c.b16 %v2945, %v2944
        %v2951 = vsel %vm1015, %v2929, 0
        %2953 = vmatprep.subr.bf16.mxu0 0
        %2954 = vmatpush1.bf16.msra.mxu0 %v2946
        %2955 = vmatprep.subr.bf16.mxu0 0
        %2956 = vmatpush1.bf16.msra.mxu0 %v2947
        %2957 = vmatprep.subr.bf16.mxu0 0
        %2958 = vmatpush1.bf16.msra.mxu0 0
        %2959 = vmatprep.subr.bf16.mxu0 0
        %2960 = vmatpush1.bf16.msra.mxu0 0
        %2961 = vmatprep.subr.bf16.mxu0 0
        %2962 = vmatpush1.bf16.msra.mxu0 0
        %2963 = vmatprep.subr.bf16.mxu0 0
        %2964 = vmatpush1.bf16.msra.mxu0 0
        %2965 = vmatprep.subr.bf16.mxu0 0
        %2966 = vmatpush1.bf16.msra.mxu0 0
        %2967 = vmatprep.subr.bf16.mxu0 0
        %2968 = vmatpush1.bf16.msra.mxu0 0
        %2969 = vmatprep.subr.bf16.mxu0 0
        %2970 = vmatpush1.bf16.msra.mxu0 0
        %2971 = vmatprep.subr.bf16.mxu0 0
        %2972 = vmatpush1.bf16.msra.mxu0 0
        %2973 = vmatprep.subr.bf16.mxu0 0
        %2974 = vmatpush1.bf16.msra.mxu0 0
        %2975 = vmatprep.subr.bf16.mxu0 0
        %2976 = vmatpush1.bf16.msra.mxu0 0
        %2977 = vmatprep.subr.bf16.mxu0 0
        %2978 = vmatpush1.bf16.msra.mxu0 0
        %2979 = vmatprep.subr.bf16.mxu0 0
        %2980 = vmatpush1.bf16.msra.mxu0 0
        %2981 = vmatprep.subr.bf16.mxu0 0
        %2982 = vmatpush1.bf16.msra.mxu0 0
        %2983 = vmatprep.subr.bf16.mxu0 0
        %2984 = vmatpush1.bf16.msra.mxu0 0
        %2985 = vmatprep.mubr.bf16.mxu0 0
        %2986 = vmatmul.mubr.bf16.gmra.mrb[0].mxu0 %v2951
        %v2987 = vpop.f32.mrb[0].mxu0
        %v2988 = vadd.f32 %v2937, %v2987
        %v2989 = vpop.f32.mrb[0].mxu0
        %v2990 = vpop.f32.mrb[0].mxu0
        %v2991 = vpop.f32.mrb[0].mxu0
        %2992 = vdwg.mxu0
        %s2993 = sld [smem:[#allocation2]]
        %v2994 = vstv %s2993
        %v2995 = vmul.f32 %v2994, %v1714
        %v2996 = vadd.f32 %v2988, %v2995
        %v2997 = vsub.f32 1.0, %v2994
        %v2998 = vmul.f32 %v2997, %v2924
        %v2999 = vadd.f32 %v2996, %v2998
        %v3000 = vsel %vm1015, %v2999, 0.0
        %3001 = vadd.xlane.f32.xlu0 %v3000
        %v3002 = vpop.xlane.xlu0 %3001
        %v3003 = vmul.f32 %v3002, %v1040
        %v3004 = vsub.f32 %v2999, %v3003
        %v3005 = vmul.f32 %v3004, %v3004
        %v3006 = vsel %vm1015, %v3005, 0.0
        %3007 = vadd.xlane.f32.xlu0 %v3006
        %v3008 = vpop.xlane.xlu0 %3007
        %v3009 = vmul.f32 %v3008, %v1040
        %v3010 = vadd.f32 %v3009, 1e-05
        %v3011 = vrsqrt.pop %v3010
        %v3012 = vmul.f32 %v3004, %v3011
        %v3013 = vlaneseq
        %v3014 = vshrl.u32 %v3013, 7
        %v3015 = vsub.s32 2, %v3014
        %v3016 = vrot.slane %v691, %v3015
        %v3017 = vmul.f32 %v3012, %v3016
        %v3018 = vlaneseq
        %v3019 = vshrl.u32 %v3018, 7
        %v3020 = vsub.s32 3, %v3019
        %v3021 = vrot.slane %v691, %v3020
        %v3022 = vadd.f32 %v3017, %v3021
        %v3023 = vpack.c.bf16 %v3022, %v3022
        %v3024 = vld [vmem:[%s14] sm:$0xf]
        %v3025 = vld [vmem:[%s14 + $0x4] sm:$0xf]
        %v3026 = vld [vmem:[%s14 + $0x8] sm:$0xf]
        %v3027 = vld [vmem:[%s14 + $0xc] sm:$0xf]
        %v3028 = vld [vmem:[%s6] sm:$0x1]
        %v3030 = vlaneseq
        %v3031 = vshrl.u32 %v3030, 7
        %v3032 = vsub.s32 0, %v3031
        %v3033 = vrot.slane %v3028, %v3032
        %v3039 = vunpack.c.l.b16 %v3024
        %v3040 = vunpack.c.l.b16 %v3025
        %v3041 = vunpack.c.l.b16 %v3026
        %v3042 = vunpack.c.l.b16 %v3027
        %v3043 = vpack.c.b16 %v3040, %v3039
        %v3044 = vpack.c.b16 %v3042, %v3041
        %v3048 = vsel %vm1015, %v3023, 0
        %3050 = vmatprep.subr.bf16.mxu0 0
        %3051 = vmatpush1.bf16.msra.mxu0 %v3043
        %3052 = vmatprep.subr.bf16.mxu0 0
        %3053 = vmatpush1.bf16.msra.mxu0 %v3044
        %3054 = vmatprep.subr.bf16.mxu0 0
        %3055 = vmatpush1.bf16.msra.mxu0 0
        %3056 = vmatprep.subr.bf16.mxu0 0
        %3057 = vmatpush1.bf16.msra.mxu0 0
        %3058 = vmatprep.subr.bf16.mxu0 0
        %3059 = vmatpush1.bf16.msra.mxu0 0
        %3060 = vmatprep.subr.bf16.mxu0 0
        %3061 = vmatpush1.bf16.msra.mxu0 0
        %3062 = vmatprep.subr.bf16.mxu0 0
        %3063 = vmatpush1.bf16.msra.mxu0 0
        %3064 = vmatprep.subr.bf16.mxu0 0
        %3065 = vmatpush1.bf16.msra.mxu0 0
        %3066 = vmatprep.subr.bf16.mxu0 0
        %3067 = vmatpush1.bf16.msra.mxu0 0
        %3068 = vmatprep.subr.bf16.mxu0 0
        %3069 = vmatpush1.bf16.msra.mxu0 0
        %3070 = vmatprep.subr.bf16.mxu0 0
        %3071 = vmatpush1.bf16.msra.mxu0 0
        %3072 = vmatprep.subr.bf16.mxu0 0
        %3073 = vmatpush1.bf16.msra.mxu0 0
        %3074 = vmatprep.subr.bf16.mxu0 0
        %3075 = vmatpush1.bf16.msra.mxu0 0
        %3076 = vmatprep.subr.bf16.mxu0 0
        %3077 = vmatpush1.bf16.msra.mxu0 0
        %3078 = vmatprep.subr.bf16.mxu0 0
        %3079 = vmatpush1.bf16.msra.mxu0 0
        %3080 = vmatprep.subr.bf16.mxu0 0
        %3081 = vmatpush1.bf16.msra.mxu0 0
        %3082 = vmatprep.mubr.bf16.mxu0 0
        %3083 = vmatmul.mubr.bf16.gmra.mrb[0].mxu0 %v3048
        %v3084 = vpop.f32.mrb[0].mxu0
        %v3085 = vadd.f32 %v3033, %v3084
        %v3086 = vpop.f32.mrb[0].mxu0
        %v3087 = vpop.f32.mrb[0].mxu0
        %v3088 = vpop.f32.mrb[0].mxu0
        %3089 = vdwg.mxu0
        %v3090 = vmul.f32 %v3085, 0.5
        %v3091 = vmul.f32 %v3085, %v2860
        %v3092 = verf.f32.pop %v3091
        %v3093 = vadd.f32 %v3092, 1.0
        %v3094 = vmul.f32 %v3090, %v3093
        %v3095 = vpack.c.bf16 %v3094, %v3094
        %v3096 = vld [vmem:[%s15] sm:$0xf]
        %v3097 = vld [vmem:[%s15 + $0x4] sm:$0xf]
        %v3098 = vld [vmem:[%s15 + $0x8] sm:$0xf]
        %v3099 = vld [vmem:[%s15 + $0xc] sm:$0xf]
        %v3100 = vld [vmem:[%s15 + $0x10] sm:$0xf]
        %v3101 = vld [vmem:[%s15 + $0x14] sm:$0xf]
        %v3102 = vld [vmem:[%s15 + $0x18] sm:$0xf]
        %v3103 = vld [vmem:[%s15 + $0x1c] sm:$0xf]
        %v3104 = vld [vmem:[%s15 + $0x20] sm:$0xf]
        %v3105 = vld [vmem:[%s15 + $0x24] sm:$0xf]
        %v3106 = vld [vmem:[%s15 + $0x28] sm:$0xf]
        %v3107 = vld [vmem:[%s15 + $0x2c] sm:$0xf]
        %v3108 = vld [vmem:[%s15 + $0x30] sm:$0xf]
        %v3109 = vld [vmem:[%s15 + $0x34] sm:$0xf]
        %v3110 = vld [vmem:[%s15 + $0x38] sm:$0xf]
        %v3111 = vld [vmem:[%s15 + $0x3c] sm:$0xf]
        %v3112 = vlaneseq
        %v3113 = vshrl.u32 %v3112, 7
        %v3114 = vsub.s32 2, %v3113
        %v3115 = vrot.slane %v692, %v3114
        %v3132 = vunpack.c.l.b16 %v3096
        %v3133 = vunpack.c.l.b16 %v3097
        %v3134 = vunpack.c.l.b16 %v3098
        %v3135 = vunpack.c.l.b16 %v3099
        %v3136 = vunpack.c.l.b16 %v3100
        %v3137 = vunpack.c.l.b16 %v3101
        %v3138 = vunpack.c.l.b16 %v3102
        %v3139 = vunpack.c.l.b16 %v3103
        %v3140 = vunpack.c.l.b16 %v3104
        %v3141 = vunpack.c.l.b16 %v3105
        %v3142 = vunpack.c.l.b16 %v3106
        %v3143 = vunpack.c.l.b16 %v3107
        %v3144 = vunpack.c.l.b16 %v3108
        %v3145 = vunpack.c.l.b16 %v3109
        %v3146 = vunpack.c.l.b16 %v3110
        %v3147 = vunpack.c.l.b16 %v3111
        %v3148 = vpack.c.b16 %v3133, %v3132
        %v3149 = vpack.c.b16 %v3135, %v3134
        %v3150 = vpack.c.b16 %v3137, %v3136
        %v3151 = vpack.c.b16 %v3139, %v3138
        %v3152 = vpack.c.b16 %v3141, %v3140
        %v3153 = vpack.c.b16 %v3143, %v3142
        %v3154 = vpack.c.b16 %v3145, %v3144
        %v3155 = vpack.c.b16 %v3147, %v3146
        %3164 = vmatprep.subr.bf16.mxu0 0
        %3165 = vmatpush1.bf16.msra.mxu0 %v3148
        %3166 = vmatprep.subr.bf16.mxu0 0
        %3167 = vmatpush1.bf16.msra.mxu0 %v3149
        %3168 = vmatprep.subr.bf16.mxu0 0
        %3169 = vmatpush1.bf16.msra.mxu0 %v3150
        %3170 = vmatprep.subr.bf16.mxu0 0
        %3171 = vmatpush1.bf16.msra.mxu0 %v3151
        %3172 = vmatprep.subr.bf16.mxu0 0
        %3173 = vmatpush1.bf16.msra.mxu0 %v3152
        %3174 = vmatprep.subr.bf16.mxu0 0
        %3175 = vmatpush1.bf16.msra.mxu0 %v3153
        %3176 = vmatprep.subr.bf16.mxu0 0
        %3177 = vmatpush1.bf16.msra.mxu0 %v3154
        %3178 = vmatprep.subr.bf16.mxu0 0
        %3179 = vmatpush1.bf16.msra.mxu0 %v3155
        %3180 = vmatprep.subr.bf16.mxu0 0
        %3181 = vmatpush1.bf16.msra.mxu0 0
        %3182 = vmatprep.subr.bf16.mxu0 0
        %3183 = vmatpush1.bf16.msra.mxu0 0
        %3184 = vmatprep.subr.bf16.mxu0 0
        %3185 = vmatpush1.bf16.msra.mxu0 0
        %3186 = vmatprep.subr.bf16.mxu0 0
        %3187 = vmatpush1.bf16.msra.mxu0 0
        %3188 = vmatprep.subr.bf16.mxu0 0
        %3189 = vmatpush1.bf16.msra.mxu0 0
        %3190 = vmatprep.subr.bf16.mxu0 0
        %3191 = vmatpush1.bf16.msra.mxu0 0
        %3192 = vmatprep.subr.bf16.mxu0 0
        %3193 = vmatpush1.bf16.msra.mxu0 0
        %3194 = vmatprep.subr.bf16.mxu0 0
        %3195 = vmatpush1.bf16.msra.mxu0 0
        %3196 = vmatprep.mubr.bf16.mxu0 0
        %3197 = vmatmul.mubr.bf16.gmra.mrb[0].mxu0 %v3095
        %v3198 = vpop.f32.mrb[0].mxu0
        %v3199 = vadd.f32 %v3115, %v3198
        %v3200 = vpop.f32.mrb[0].mxu0
        %v3201 = vpop.f32.mrb[0].mxu0
        %v3202 = vpop.f32.mrb[0].mxu0
        %3203 = vdwg.mxu0
        %v3204 = vadd.f32 %v3199, %v2999
        %3205 = vst.msk [vmem:[%s666] sm:$0xff] %vm1015, %v3204
        %s3206 = sand.u32 %s483, 1
        %s3207 = scalar_lea.sflag [#allocation4], %s3206
        %s3208 = sand.u32 %s483, 1
        %s3209 = smul.addr %s3208, 8
        %s3210 = scalar_lea.vmem [#allocation3], %s3209
        // Predicated region
        $region101: #{tpu_custom_call.1} parent=99 // pred_check
          %p3211 = pneg %p493
        $region102: #{tpu_custom_call.1} parent=99 // pred_check_branch
          %3213 = sbr.rel (%p3211) target = $region104
        $region103: #{tpu_custom_call.1} parent=99 // pred_region
          %s3215 = ssub.s32 128, 128
          %3216 = vsyncadd %s3207, %s3215
          %s3217 = smul.addr %s35, 128
          %s3218 = scalar_lea.hbm %s20, %s3217
          %s3220 = sshll.u32 %s3210, 4
          %s3221 = int_to_ptr.vmem [resolvable:$true] %s3220
          %3223 = dma.vmem_to_hbm [thread:$0]  %s3221, 128, %s3218, %s3207
        $region104: #{tpu_custom_call.1} parent=99 // pred_fallthru
          _
      $region100: #{tpu_custom_call.1} parent=5 // pred_fallthru
        _
      %p3224 = scmp.le.s32.totalorder 2, %s30
      // Predicated region
      $region105: #{tpu_custom_call.1} parent=5 // pred_check
        %p3225 = pneg %p3224
      $region106: #{tpu_custom_call.1} parent=5 // pred_check_branch
        %3227 = sbr.rel (%p3225) target = $region108
      $region107: #{tpu_custom_call.1} parent=5 // pred_region
        %s3228 = ssub.s32 %s30, 2
        // Predicated region
        $region109: #{tpu_custom_call.1} parent=107 // pred_check
          %p3229 = pneg %p499
        $region110: #{tpu_custom_call.1} parent=107 // pred_check_branch
          %3231 = sbr.rel (%p3229) target = $region112
        $region111: #{tpu_custom_call.1} parent=107 // pred_region
          %s3232 = sand.u32 %s484, 1
          %s3233 = scalar_lea.sflag [#allocation4], %s3232
          %s3234 = sand.u32 %s484, 1
          %s3235 = smul.addr %s3234, 8
          %s3236 = scalar_lea.vmem [#allocation3], %s3235
          %3237 = dma.done %s3233, 128
        $region112: #{tpu_custom_call.1} parent=107 // pred_fallthru
          _
      $region108: #{tpu_custom_call.1} parent=5 // pred_fallthru
        _
    $region6: #{tpu_custom_call.1} parent=1 // loop_footer
      %s34 = sadd.s32 1, %s30
    $region7: #{tpu_custom_call.1} parent=1 // loop_footer_branch
      %29 = sbr.rel target = $region3
    $region8: #{tpu_custom_call.1} parent=1 // loop_exit
      _
    %3238 = vsyncpa [#allocation4], 1
    %s3239 = scalar_lea.sflag [#allocation4], 1
    %3240 = vsyncpa %s3239, 1

// kernel: tpu_custom_call.1
$region0: #{tpu_custom_call.1}
  #allocation0 [shape = 'u32[]', space=smem, size = 0x4, offset = 0x4, fixed_abs, tag = 'smem constant byte address 0x4 - core index']
  #allocation1 [shape = 'u32[144,128]{1,0:T(1,128)}', space=vmem, size = 0x12000, scoped, tag = 'internal scratch']
  #allocation2 [shape = 'f32[1]{0:T(128)S(6)}', space=smem, size = 0x200, scoped, tag = 'scoped memory for tpu_custom_call.1']
  %s0 = inlined_call_operand.vmem [shape: f32[128,4], index: 0, kind: input, shape index: {}]
  %s1 = inlined_call_operand.vmem [shape: f32[16,4], index: 1, kind: input, shape index: {}]
  %s2 = inlined_call_operand.vmem [shape: bf16[16,32], index: 2, kind: input, shape index: {}]
  %s3 = inlined_call_operand.vmem [shape: bf16[128,32], index: 3, kind: input, shape index: {}]
  %s4 = inlined_call_operand.vmem [shape: f32[9,16], index: 4, kind: input, shape index: {}]
  %s5 = inlined_call_operand.vmem [shape: f32[19,32], index: 5, kind: input, shape index: {}]
  %s6 = inlined_call_operand.vmem [shape: f32[1,128], index: 6, kind: input, shape index: {}]
  %s7 = inlined_call_operand.vmem [shape: bf16[16,32], index: 7, kind: input, shape index: {}]
  %s8 = inlined_call_operand.vmem [shape: bf16[16,32], index: 8, kind: input, shape index: {}]
  %s9 = inlined_call_operand.vmem [shape: bf16[32,32], index: 9, kind: input, shape index: {}]
  %s10 = inlined_call_operand.vmem [shape: bf16[32,64], index: 10, kind: input, shape index: {}]
  %s11 = inlined_call_operand.vmem [shape: bf16[32,32], index: 11, kind: input, shape index: {}]
  %s12 = inlined_call_operand.vmem [shape: bf16[32,32], index: 12, kind: input, shape index: {}]
  %s13 = inlined_call_operand.vmem [shape: bf16[32,32], index: 13, kind: input, shape index: {}]
  %s14 = inlined_call_operand.vmem [shape: bf16[32,128], index: 14, kind: input, shape index: {}]
  %s15 = inlined_call_operand.vmem [shape: bf16[128,32], index: 15, kind: input, shape index: {}]
  %s16 = inlined_call_operand.vmem [shape: bf16[32,4], index: 16, kind: input, shape index: {}]
  %s17 = inlined_call_operand.vmem [shape: bf16[4,32], index: 17, kind: input, shape index: {}]
  %s18 = inlined_call_operand.vmem [shape: bf16[8,64], index: 18, kind: input, shape index: {}]
  %s19 = inlined_call_operand.<no memory space> [shape: f32[1], index: 19, kind: input, shape index: {}]
  %s20 = inlined_call_operand.hbm [shape: f32[16,32], index: 20, kind: output, shape index: {}]
  %s21 = sld [smem:[#allocation0]]
  $region113: #{tpu_custom_call.1} parent=0
    _
  %s23 = ssub.s32 1, %s21
  %s24 = scalar_select 0, %s23, %s21
  %25 = sst [smem:[#allocation2]] %s19
  $region1: #{tpu_custom_call.1} parent=0
    #allocation3 [shape = 'u8[8192]{0}', space=vmem, size = 0x2000, scoped, tag = 'output window, operand 0']
    #allocation4 [shape = 's32[2]{0}', space=sflag, size = 0x8, scoped, tag = 'scoped memory for tpu_custom_call.1']
    %26 = vsyncpa [#allocation4], 0
    %s27 = scalar_lea.sflag [#allocation4], 1
    %28 = vsyncpa %s27, 0
    loop: start=0, step=1, limit=4
    $region2: #{tpu_custom_call.1} parent=1 // loop_pre_header
      _
    $region3: #{tpu_custom_call.1} parent=1 // loop_header
      %s30 = sphi 0, %s34
      %p31 = scmp.ge.s32.totalorder %s30, 4
      %s40 = sphi 0, %s42
      %s43 = sphi 0, %s40
      %s44 = sphi 0, %s43
      %s60 = sphi 0, %s44
      %s66 = sphi 0, %s68
      %s69 = sphi 0, %s66
      %s70 = sphi 0, %s69
      %s86 = sphi 0, %s70
      %s92 = sphi 0, %s94
      %s95 = sphi 0, %s92
      %s96 = sphi 0, %s95
      %s112 = sphi 0, %s96
      %s118 = sphi 0, %s120
      %s121 = sphi 0, %s118
      %s122 = sphi 0, %s121
      %s138 = sphi 0, %s122
      %s142 = sphi 0, %s142
      %s144 = sphi 0, %s142
      %s145 = sphi 0, %s144
      %s159 = sphi 0, %s145
      %s163 = sphi 0, %s163
      %s165 = sphi 0, %s163
      %s166 = sphi 0, %s165
      %s180 = sphi 0, %s166
      %s184 = sphi 0, %s184
      %s186 = sphi 0, %s184
      %s187 = sphi 0, %s186
      %s201 = sphi 0, %s187
      %s205 = sphi 0, %s205
      %s207 = sphi 0, %s205
      %s208 = sphi 0, %s207
      %s222 = sphi 0, %s208
      %s226 = sphi 0, %s226
      %s228 = sphi 0, %s226
      %s229 = sphi 0, %s228
      %s243 = sphi 0, %s229
      %s247 = sphi 0, %s247
      %s249 = sphi 0, %s247
      %s250 = sphi 0, %s249
      %s264 = sphi 0, %s250
      %s268 = sphi 0, %s268
      %s270 = sphi 0, %s268
      %s271 = sphi 0, %s270
      %s285 = sphi 0, %s271
      %s289 = sphi 0, %s289
      %s291 = sphi 0, %s289
      %s292 = sphi 0, %s291
      %s306 = sphi 0, %s292
      %s310 = sphi 0, %s310
      %s312 = sphi 0, %s310
      %s313 = sphi 0, %s312
      %s327 = sphi 0, %s313
      %s331 = sphi 0, %s331
      %s333 = sphi 0, %s331
      %s334 = sphi 0, %s333
      %s348 = sphi 0, %s334
      %s352 = sphi 0, %s352
      %s354 = sphi 0, %s352
      %s355 = sphi 0, %s354
      %s369 = sphi 0, %s355
      %s373 = sphi 0, %s373
      %s375 = sphi 0, %s373
      %s376 = sphi 0, %s375
      %s390 = sphi 0, %s376
      %s394 = sphi 0, %s394
      %s396 = sphi 0, %s394
      %s397 = sphi 0, %s396
      %s411 = sphi 0, %s397
      %s415 = sphi 0, %s415
      %s417 = sphi 0, %s415
      %s418 = sphi 0, %s417
      %s432 = sphi 0, %s418
      %s436 = sphi 0, %s436
      %s438 = sphi 0, %s436
      %s439 = sphi 0, %s438
      %s453 = sphi 0, %s439
      %s457 = sphi 0, %s457
      %s459 = sphi 0, %s457
      %s460 = sphi 0, %s459
      %s474 = sphi 0, %s460
      %s480 = sphi 0, %s482
      %s483 = sphi 0, %s480
      %s484 = sphi 0, %s483
      %s500 = sphi 0, %s484
    $region4: #{tpu_custom_call.1} parent=1 // loop_header_branch
      %33 = sbr.rel (%p31) target = $region8
    $region5: #{tpu_custom_call.1} parent=1 // loop_body
      %s35 = ssub.s32 %s30, 1
      %s36 = ssub.s32 %s30, 2
      %s37 = sadd.s32 %s30, 1
      %s38 = ssub.s32 %s30, %s37
      %p39 = scmp.eq.s32.totalorder %s38, 0
      %s41 = sadd.s32 %s40, 1
      %s42 = scalar_select %p39, %s40, %s41
      %p45 = pneg %p39
      %p46 = scmp.eq.s32.totalorder %s30, 1
      %p47 = por %p45, %p46
      %p48 = scmp.ne.s32.totalorder %s40, %s43
      %p49 = scmp.eq.s32.totalorder %s30, 0
      %p50 = por %p48, %p49
      %p51 = scmp.ne.s32.totalorder %s40, %s43
      %p52 = scmp.eq.s32.totalorder %s35, 1
      %p53 = por %p51, %p52
      %p54 = scmp.ne.s32.totalorder %s43, %s44
      %p55 = scmp.eq.s32.totalorder %s35, 0
      %p56 = por %p54, %p55
      %p57 = scmp.ne.s32.totalorder %s43, %s44
      %p58 = scmp.eq.s32.totalorder %s36, 1
      %p59 = por %p57, %p58
      %p61 = scmp.ne.s32.totalorder %s44, %s60
      %p62 = scmp.eq.s32.totalorder %s36, 0
      %p63 = por %p61, %p62
      %s64 = ssub.s32 %s30, %s37
      %p65 = scmp.eq.s32.totalorder %s64, 0
      %s67 = sadd.s32 %s66, 1
      %s68 = scalar_select %p65, %s66, %s67
      %p71 = pneg %p65
      %p72 = scmp.eq.s32.totalorder %s30, 1
      %p73 = por %p71, %p72
      %p74 = scmp.ne.s32.totalorder %s66, %s69
      %p75 = scmp.eq.s32.totalorder %s30, 0
      %p76 = por %p74, %p75
      %p77 = scmp.ne.s32.totalorder %s66, %s69
      %p78 = scmp.eq.s32.totalorder %s35, 1
      %p79 = por %p77, %p78
      %p80 = scmp.ne.s32.totalorder %s69, %s70
      %p81 = scmp.eq.s32.totalorder %s35, 0
      %p82 = por %p80, %p81
      %p83 = scmp.ne.s32.totalorder %s69, %s70
      %p84 = scmp.eq.s32.totalorder %s36, 1
      %p85 = por %p83, %p84
      %p87 = scmp.ne.s32.totalorder %s70, %s86
      %p88 = scmp.eq.s32.totalorder %s36, 0
      %p89 = por %p87, %p88
      %s90 = ssub.s32 %s30, %s37
      %p91 = scmp.eq.s32.totalorder %s90, 0
      %s93 = sadd.s32 %s92, 1
      %s94 = scalar_select %p91, %s92, %s93
      %p97 = pneg %p91
      %p98 = scmp.eq.s32.totalorder %s30, 1
      %p99 = por %p97, %p98
      %p100 = scmp.ne.s32.totalorder %s92, %s95
      %p101 = scmp.eq.s32.totalorder %s30, 0
      %p102 = por %p100, %p101
      %p103 = scmp.ne.s32.totalorder %s92, %s95
      %p104 = scmp.eq.s32.totalorder %s35, 1
      %p105 = por %p103, %p104
      %p106 = scmp.ne.s32.totalorder %s95, %s96
      %p107 = scmp.eq.s32.totalorder %s35, 0
      %p108 = por %p106, %p107
      %p109 = scmp.ne.s32.totalorder %s95, %s96
      %p110 = scmp.eq.s32.totalorder %s36, 1
      %p111 = por %p109, %p110
      %p113 = scmp.ne.s32.totalorder %s96, %s112
      %p114 = scmp.eq.s32.totalorder %s36, 0
      %p115 = por %p113, %p114
      %s116 = ssub.s32 %s30, %s37
      %p117 = scmp.eq.s32.totalorder %s116, 0
      %s119 = sadd.s32 %s118, 1
      %s120 = scalar_select %p117, %s118, %s119
      %p123 = pneg %p117
      %p124 = scmp.eq.s32.totalorder %s30, 1
      %p125 = por %p123, %p124
      %p126 = scmp.ne.s32.totalorder %s118, %s121
      %p127 = scmp.eq.s32.totalorder %s30, 0
      %p128 = por %p126, %p127
      %p129 = scmp.ne.s32.totalorder %s118, %s121
      %p130 = scmp.eq.s32.totalorder %s35, 1
      %p131 = por %p129, %p130
      %p132 = scmp.ne.s32.totalorder %s121, %s122
      %p133 = scmp.eq.s32.totalorder %s35, 0
      %p134 = por %p132, %p133
      %p135 = scmp.ne.s32.totalorder %s121, %s122
      %p136 = scmp.eq.s32.totalorder %s36, 1
      %p137 = por %p135, %p136
      %p139 = scmp.ne.s32.totalorder %s122, %s138
      %p140 = scmp.eq.s32.totalorder %s36, 0
      %p141 = por %p139, %p140
      %s143 = sadd.s32 %s142, 1
      %p146 = scmp.eq.s32.totalorder %s30, 1
      %p147 = scmp.ne.s32.totalorder %s142, %s144
      %p148 = scmp.eq.s32.totalorder %s30, 0
      %p149 = por %p147, %p148
      %p150 = scmp.ne.s32.totalorder %s142, %s144
      %p151 = scmp.eq.s32.totalorder %s35, 1
      %p152 = por %p150, %p151
      %p153 = scmp.ne.s32.totalorder %s144, %s145
      %p154 = scmp.eq.s32.totalorder %s35, 0
      %p155 = por %p153, %p154
      %p156 = scmp.ne.s32.totalorder %s144, %s145
      %p157 = scmp.eq.s32.totalorder %s36, 1
      %p158 = por %p156, %p157
      %p160 = scmp.ne.s32.totalorder %s145, %s159
      %p161 = scmp.eq.s32.totalorder %s36, 0
      %p162 = por %p160, %p161
      %s164 = sadd.s32 %s163, 1
      %p167 = scmp.eq.s32.totalorder %s30, 1
      %p168 = scmp.ne.s32.totalorder %s163, %s165
      %p169 = scmp.eq.s32.totalorder %s30, 0
      %p170 = por %p168, %p169
      %p171 = scmp.ne.s32.totalorder %s163, %s165
      %p172 = scmp.eq.s32.totalorder %s35, 1
      %p173 = por %p171, %p172
      %p174 = scmp.ne.s32.totalorder %s165, %s166
      %p175 = scmp.eq.s32.totalorder %s35, 0
      %p176 = por %p174, %p175
      %p177 = scmp.ne.s32.totalorder %s165, %s166
      %p178 = scmp.eq.s32.totalorder %s36, 1
      %p179 = por %p177, %p178
      %p181 = scmp.ne.s32.totalorder %s166, %s180
      %p182 = scmp.eq.s32.totalorder %s36, 0
      %p183 = por %p181, %p182
      %s185 = sadd.s32 %s184, 1
      %p188 = scmp.eq.s32.totalorder %s30, 1
      %p189 = scmp.ne.s32.totalorder %s184, %s186
      %p190 = scmp.eq.s32.totalorder %s30, 0
      %p191 = por %p189, %p190
      %p192 = scmp.ne.s32.totalorder %s184, %s186
      %p193 = scmp.eq.s32.totalorder %s35, 1
      %p194 = por %p192, %p193
      %p195 = scmp.ne.s32.totalorder %s186, %s187
      %p196 = scmp.eq.s32.totalorder %s35, 0
      %p197 = por %p195, %p196
      %p198 = scmp.ne.s32.totalorder %s186, %s187
      %p199 = scmp.eq.s32.totalorder %s36, 1
      %p200 = por %p198, %p199
      %p202 = scmp.ne.s32.totalorder %s187, %s201
      %p203 = scmp.eq.s32.totalorder %s36, 0
      %p204 = por %p202, %p203
      %s206 = sadd.s32 %s205, 1
      %p209 = scmp.eq.s32.totalorder %s30, 1
      %p210 = scmp.ne.s32.totalorder %s205, %s207
      %p211 = scmp.eq.s32.totalorder %s30, 0
      %p212 = por %p210, %p211
      %p213 = scmp.ne.s32.totalorder %s205, %s207
      %p214 = scmp.eq.s32.totalorder %s35, 1
      %p215 = por %p213, %p214
      %p216 = scmp.ne.s32.totalorder %s207, %s208
      %p217 = scmp.eq.s32.totalorder %s35, 0
      %p218 = por %p216, %p217
      %p219 = scmp.ne.s32.totalorder %s207, %s208
      %p220 = scmp.eq.s32.totalorder %s36, 1
      %p221 = por %p219, %p220
      %p223 = scmp.ne.s32.totalorder %s208, %s222
      %p224 = scmp.eq.s32.totalorder %s36, 0
      %p225 = por %p223, %p224
      %s227 = sadd.s32 %s226, 1
      %p230 = scmp.eq.s32.totalorder %s30, 1
      %p231 = scmp.ne.s32.totalorder %s226, %s228
      %p232 = scmp.eq.s32.totalorder %s30, 0
      %p233 = por %p231, %p232
      %p234 = scmp.ne.s32.totalorder %s226, %s228
      %p235 = scmp.eq.s32.totalorder %s35, 1
      %p236 = por %p234, %p235
      %p237 = scmp.ne.s32.totalorder %s228, %s229
      %p238 = scmp.eq.s32.totalorder %s35, 0
      %p239 = por %p237, %p238
      %p240 = scmp.ne.s32.totalorder %s228, %s229
      %p241 = scmp.eq.s32.totalorder %s36, 1
      %p242 = por %p240, %p241
      %p244 = scmp.ne.s32.totalorder %s229, %s243
      %p245 = scmp.eq.s32.totalorder %s36, 0
      %p246 = por %p244, %p245
      %s248 = sadd.s32 %s247, 1
      %p251 = scmp.eq.s32.totalorder %s30, 1
      %p252 = scmp.ne.s32.totalorder %s247, %s249
      %p253 = scmp.eq.s32.totalorder %s30, 0
      %p254 = por %p252, %p253
      %p255 = scmp.ne.s32.totalorder %s247, %s249
      %p256 = scmp.eq.s32.totalorder %s35, 1
      %p257 = por %p255, %p256
      %p258 = scmp.ne.s32.totalorder %s249, %s250
      %p259 = scmp.eq.s32.totalorder %s35, 0
      %p260 = por %p258, %p259
      %p261 = scmp.ne.s32.totalorder %s249, %s250
      %p262 = scmp.eq.s32.totalorder %s36, 1
      %p263 = por %p261, %p262
      %p265 = scmp.ne.s32.totalorder %s250, %s264
      %p266 = scmp.eq.s32.totalorder %s36, 0
      %p267 = por %p265, %p266
      %s269 = sadd.s32 %s268, 1
      %p272 = scmp.eq.s32.totalorder %s30, 1
      %p273 = scmp.ne.s32.totalorder %s268, %s270
      %p274 = scmp.eq.s32.totalorder %s30, 0
      %p275 = por %p273, %p274
      %p276 = scmp.ne.s32.totalorder %s268, %s270
      %p277 = scmp.eq.s32.totalorder %s35, 1
      %p278 = por %p276, %p277
      %p279 = scmp.ne.s32.totalorder %s270, %s271
      %p280 = scmp.eq.s32.totalorder %s35, 0
      %p281 = por %p279, %p280
      %p282 = scmp.ne.s32.totalorder %s270, %s271
      %p283 = scmp.eq.s32.totalorder %s36, 1
      %p284 = por %p282, %p283
      %p286 = scmp.ne.s32.totalorder %s271, %s285
      %p287 = scmp.eq.s32.totalorder %s36, 0
      %p288 = por %p286, %p287
      %s290 = sadd.s32 %s289, 1
      %p293 = scmp.eq.s32.totalorder %s30, 1
      %p294 = scmp.ne.s32.totalorder %s289, %s291
      %p295 = scmp.eq.s32.totalorder %s30, 0
      %p296 = por %p294, %p295
      %p297 = scmp.ne.s32.totalorder %s289, %s291
      %p298 = scmp.eq.s32.totalorder %s35, 1
      %p299 = por %p297, %p298
      %p300 = scmp.ne.s32.totalorder %s291, %s292
      %p301 = scmp.eq.s32.totalorder %s35, 0
      %p302 = por %p300, %p301
      %p303 = scmp.ne.s32.totalorder %s291, %s292
      %p304 = scmp.eq.s32.totalorder %s36, 1
      %p305 = por %p303, %p304
      %p307 = scmp.ne.s32.totalorder %s292, %s306
      %p308 = scmp.eq.s32.totalorder %s36, 0
      %p309 = por %p307, %p308
      %s311 = sadd.s32 %s310, 1
      %p314 = scmp.eq.s32.totalorder %s30, 1
      %p315 = scmp.ne.s32.totalorder %s310, %s312
      %p316 = scmp.eq.s32.totalorder %s30, 0
      %p317 = por %p315, %p316
      %p318 = scmp.ne.s32.totalorder %s310, %s312
      %p319 = scmp.eq.s32.totalorder %s35, 1
      %p320 = por %p318, %p319
      %p321 = scmp.ne.s32.totalorder %s312, %s313
      %p322 = scmp.eq.s32.totalorder %s35, 0
      %p323 = por %p321, %p322
      %p324 = scmp.ne.s32.totalorder %s312, %s313
      %p325 = scmp.eq.s32.totalorder %s36, 1
      %p326 = por %p324, %p325
      %p328 = scmp.ne.s32.totalorder %s313, %s327
      %p329 = scmp.eq.s32.totalorder %s36, 0
      %p330 = por %p328, %p329
      %s332 = sadd.s32 %s331, 1
      %p335 = scmp.eq.s32.totalorder %s30, 1
      %p336 = scmp.ne.s32.totalorder %s331, %s333
      %p337 = scmp.eq.s32.totalorder %s30, 0
      %p338 = por %p336, %p337
      %p339 = scmp.ne.s32.totalorder %s331, %s333
      %p340 = scmp.eq.s32.totalorder %s35, 1
      %p341 = por %p339, %p340
      %p342 = scmp.ne.s32.totalorder %s333, %s334
      %p343 = scmp.eq.s32.totalorder %s35, 0
      %p344 = por %p342, %p343
      %p345 = scmp.ne.s32.totalorder %s333, %s334
      %p346 = scmp.eq.s32.totalorder %s36, 1
      %p347 = por %p345, %p346
      %p349 = scmp.ne.s32.totalorder %s334, %s348
      %p350 = scmp.eq.s32.totalorder %s36, 0
      %p351 = por %p349, %p350
      %s353 = sadd.s32 %s352, 1
      %p356 = scmp.eq.s32.totalorder %s30, 1
      %p357 = scmp.ne.s32.totalorder %s352, %s354
      %p358 = scmp.eq.s32.totalorder %s30, 0
      %p359 = por %p357, %p358
      %p360 = scmp.ne.s32.totalorder %s352, %s354
      %p361 = scmp.eq.s32.totalorder %s35, 1
      %p362 = por %p360, %p361
      %p363 = scmp.ne.s32.totalorder %s354, %s355
      %p364 = scmp.eq.s32.totalorder %s35, 0
      %p365 = por %p363, %p364
      %p366 = scmp.ne.s32.totalorder %s354, %s355
      %p367 = scmp.eq.s32.totalorder %s36, 1
      %p368 = por %p366, %p367
      %p370 = scmp.ne.s32.totalorder %s355, %s369
      %p371 = scmp.eq.s32.totalorder %s36, 0
      %p372 = por %p370, %p371
      %s374 = sadd.s32 %s373, 1
      %p377 = scmp.eq.s32.totalorder %s30, 1
      %p378 = scmp.ne.s32.totalorder %s373, %s375
      %p379 = scmp.eq.s32.totalorder %s30, 0
      %p380 = por %p378, %p379
      %p381 = scmp.ne.s32.totalorder %s373, %s375
      %p382 = scmp.eq.s32.totalorder %s35, 1
      %p383 = por %p381, %p382
      %p384 = scmp.ne.s32.totalorder %s375, %s376
      %p385 = scmp.eq.s32.totalorder %s35, 0
      %p386 = por %p384, %p385
      %p387 = scmp.ne.s32.totalorder %s375, %s376
      %p388 = scmp.eq.s32.totalorder %s36, 1
      %p389 = por %p387, %p388
      %p391 = scmp.ne.s32.totalorder %s376, %s390
      %p392 = scmp.eq.s32.totalorder %s36, 0
      %p393 = por %p391, %p392
      %s395 = sadd.s32 %s394, 1
      %p398 = scmp.eq.s32.totalorder %s30, 1
      %p399 = scmp.ne.s32.totalorder %s394, %s396
      %p400 = scmp.eq.s32.totalorder %s30, 0
      %p401 = por %p399, %p400
      %p402 = scmp.ne.s32.totalorder %s394, %s396
      %p403 = scmp.eq.s32.totalorder %s35, 1
      %p404 = por %p402, %p403
      %p405 = scmp.ne.s32.totalorder %s396, %s397
      %p406 = scmp.eq.s32.totalorder %s35, 0
      %p407 = por %p405, %p406
      %p408 = scmp.ne.s32.totalorder %s396, %s397
      %p409 = scmp.eq.s32.totalorder %s36, 1
      %p410 = por %p408, %p409
      %p412 = scmp.ne.s32.totalorder %s397, %s411
      %p413 = scmp.eq.s32.totalorder %s36, 0
      %p414 = por %p412, %p413
      %s416 = sadd.s32 %s415, 1
      %p419 = scmp.eq.s32.totalorder %s30, 1
      %p420 = scmp.ne.s32.totalorder %s415, %s417
      %p421 = scmp.eq.s32.totalorder %s30, 0
      %p422 = por %p420, %p421
      %p423 = scmp.ne.s32.totalorder %s415, %s417
      %p424 = scmp.eq.s32.totalorder %s35, 1
      %p425 = por %p423, %p424
      %p426 = scmp.ne.s32.totalorder %s417, %s418
      %p427 = scmp.eq.s32.totalorder %s35, 0
      %p428 = por %p426, %p427
      %p429 = scmp.ne.s32.totalorder %s417, %s418
      %p430 = scmp.eq.s32.totalorder %s36, 1
      %p431 = por %p429, %p430
      %p433 = scmp.ne.s32.totalorder %s418, %s432
      %p434 = scmp.eq.s32.totalorder %s36, 0
      %p435 = por %p433, %p434
      %s437 = sadd.s32 %s436, 1
      %p440 = scmp.eq.s32.totalorder %s30, 1
      %p441 = scmp.ne.s32.totalorder %s436, %s438
      %p442 = scmp.eq.s32.totalorder %s30, 0
      %p443 = por %p441, %p442
      %p444 = scmp.ne.s32.totalorder %s436, %s438
      %p445 = scmp.eq.s32.totalorder %s35, 1
      %p446 = por %p444, %p445
      %p447 = scmp.ne.s32.totalorder %s438, %s439
      %p448 = scmp.eq.s32.totalorder %s35, 0
      %p449 = por %p447, %p448
      %p450 = scmp.ne.s32.totalorder %s438, %s439
      %p451 = scmp.eq.s32.totalorder %s36, 1
      %p452 = por %p450, %p451
      %p454 = scmp.ne.s32.totalorder %s439, %s453
      %p455 = scmp.eq.s32.totalorder %s36, 0
      %p456 = por %p454, %p455
      %s458 = sadd.s32 %s457, 1
      %p461 = scmp.eq.s32.totalorder %s30, 1
      %p462 = scmp.ne.s32.totalorder %s457, %s459
      %p463 = scmp.eq.s32.totalorder %s30, 0
      %p464 = por %p462, %p463
      %p465 = scmp.ne.s32.totalorder %s457, %s459
      %p466 = scmp.eq.s32.totalorder %s35, 1
      %p467 = por %p465, %p466
      %p468 = scmp.ne.s32.totalorder %s459, %s460
      %p469 = scmp.eq.s32.totalorder %s35, 0
      %p470 = por %p468, %p469
      %p471 = scmp.ne.s32.totalorder %s459, %s460
      %p472 = scmp.eq.s32.totalorder %s36, 1
      %p473 = por %p471, %p472
      %p475 = scmp.ne.s32.totalorder %s460, %s474
      %p476 = scmp.eq.s32.totalorder %s36, 0
      %p477 = por %p475, %p476
      %s478 = ssub.s32 %s30, %s37
      %p479 = scmp.eq.s32.totalorder %s478, 0
      %s481 = sadd.s32 %s480, 1
      %s482 = scalar_select %p479, %s480, %s481
      %p485 = pneg %p479
      %p486 = scmp.eq.s32.totalorder %s30, 1
      %p487 = por %p485, %p486
      %p488 = scmp.ne.s32.totalorder %s480, %s483
      %p489 = scmp.eq.s32.totalorder %s30, 0
      %p490 = por %p488, %p489
      %p491 = scmp.ne.s32.totalorder %s480, %s483
      %p492 = scmp.eq.s32.totalorder %s35, 1
      %p493 = por %p491, %p492
      %p494 = scmp.ne.s32.totalorder %s483, %s484
      %p495 = scmp.eq.s32.totalorder %s35, 0
      %p496 = por %p494, %p495
      %p497 = scmp.ne.s32.totalorder %s483, %s484
      %p498 = scmp.eq.s32.totalorder %s36, 1
      %p499 = por %p497, %p498
      %p501 = scmp.ne.s32.totalorder %s484, %s500
      %p502 = scmp.eq.s32.totalorder %s36, 0
      %p503 = por %p501, %p502
      %p504 = scmp.le.s32.totalorder 1, %s30
      %p505 = scmp.lt.s32.totalorder %s30, 3
      %p506 = pnand %p504, %p505
      %p507 = pneg %p506
      // Predicated region
      $region9: #{tpu_custom_call.1} parent=5 // pred_check
        _
      $region10: #{tpu_custom_call.1} parent=5 // pred_check_branch
        %509 = sbr.rel (%p506) target = $region12
      $region11: #{tpu_custom_call.1} parent=5 // pred_region
        %s510 = ssub.s32 %s30, 1
        // Predicated region
        $region13: #{tpu_custom_call.1} parent=11 // pred_check
          %p511 = pneg %p155
        $region14: #{tpu_custom_call.1} parent=11 // pred_check_branch
          %513 = sbr.rel (%p511) target = $region16
        $region15: #{tpu_custom_call.1} parent=11 // pred_region
          _
        $region16: #{tpu_custom_call.1} parent=11 // pred_fallthru
          _
        // Predicated region
        $region17: #{tpu_custom_call.1} parent=11 // pred_check
          %p514 = pneg %p176
        $region18: #{tpu_custom_call.1} parent=11 // pred_check_branch
          %516 = sbr.rel (%p514) target = $region20
        $region19: #{tpu_custom_call.1} parent=11 // pred_region
          _
        $region20: #{tpu_custom_call.1} parent=11 // pred_fallthru
          _
        // Predicated region
        $region21: #{tpu_custom_call.1} parent=11 // pred_check
          %p517 = pneg %p197
        $region22: #{tpu_custom_call.1} parent=11 // pred_check_branch
          %519 = sbr.rel (%p517) target = $region24
        $region23: #{tpu_custom_call.1} parent=11 // pred_region
          _
        $region24: #{tpu_custom_call.1} parent=11 // pred_fallthru
          _
        // Predicated region
        $region25: #{tpu_custom_call.1} parent=11 // pred_check
          %p520 = pneg %p218
        $region26: #{tpu_custom_call.1} parent=11 // pred_check_branch
          %522 = sbr.rel (%p520) target = $region28
        $region27: #{tpu_custom_call.1} parent=11 // pred_region
          _
        $region28: #{tpu_custom_call.1} parent=11 // pred_fallthru
          _
        // Predicated region
        $region29: #{tpu_custom_call.1} parent=11 // pred_check
          %p523 = pneg %p239
        $region30: #{tpu_custom_call.1} parent=11 // pred_check_branch
          %525 = sbr.rel (%p523) target = $region32
        $region31: #{tpu_custom_call.1} parent=11 // pred_region
          _
        $region32: #{tpu_custom_call.1} parent=11 // pred_fallthru
          _
        // Predicated region
        $region33: #{tpu_custom_call.1} parent=11 // pred_check
          %p526 = pneg %p260
        $region34: #{tpu_custom_call.1} parent=11 // pred_check_branch
          %528 = sbr.rel (%p526) target = $region36
        $region35: #{tpu_custom_call.1} parent=11 // pred_region
          _
        $region36: #{tpu_custom_call.1} parent=11 // pred_fallthru
          _
        // Predicated region
        $region37: #{tpu_custom_call.1} parent=11 // pred_check
          %p529 = pneg %p281
        $region38: #{tpu_custom_call.1} parent=11 // pred_check_branch
          %531 = sbr.rel (%p529) target = $region40
        $region39: #{tpu_custom_call.1} parent=11 // pred_region
          _
        $region40: #{tpu_custom_call.1} parent=11 // pred_fallthru
          _
        // Predicated region
        $region41: #{tpu_custom_call.1} parent=11 // pred_check
          %p532 = pneg %p302
        $region42: #{tpu_custom_call.1} parent=11 // pred_check_branch
          %534 = sbr.rel (%p532) target = $region44
        $region43: #{tpu_custom_call.1} parent=11 // pred_region
          _
        $region44: #{tpu_custom_call.1} parent=11 // pred_fallthru
          _
        // Predicated region
        $region45: #{tpu_custom_call.1} parent=11 // pred_check
          %p535 = pneg %p323
        $region46: #{tpu_custom_call.1} parent=11 // pred_check_branch
          %537 = sbr.rel (%p535) target = $region48
        $region47: #{tpu_custom_call.1} parent=11 // pred_region
          _
        $region48: #{tpu_custom_call.1} parent=11 // pred_fallthru
          _
        // Predicated region
        $region49: #{tpu_custom_call.1} parent=11 // pred_check
          %p538 = pneg %p344
        $region50: #{tpu_custom_call.1} parent=11 // pred_check_branch
          %540 = sbr.rel (%p538) target = $region52
        $region51: #{tpu_custom_call.1} parent=11 // pred_region
          _
        $region52: #{tpu_custom_call.1} parent=11 // pred_fallthru
          _
        // Predicated region
        $region53: #{tpu_custom_call.1} parent=11 // pred_check
          %p541 = pneg %p365
        $region54: #{tpu_custom_call.1} parent=11 // pred_check_branch
          %543 = sbr.rel (%p541) target = $region56
        $region55: #{tpu_custom_call.1} parent=11 // pred_region
          _
        $region56: #{tpu_custom_call.1} parent=11 // pred_fallthru
          _
        // Predicated region
        $region57: #{tpu_custom_call.1} parent=11 // pred_check
          %p544 = pneg %p386
        $region58: #{tpu_custom_call.1} parent=11 // pred_check_branch
          %546 = sbr.rel (%p544) target = $region60
        $region59: #{tpu_custom_call.1} parent=11 // pred_region
          _
        $region60: #{tpu_custom_call.1} parent=11 // pred_fallthru
          _
        // Predicated region
        $region61: #{tpu_custom_call.1} parent=11 // pred_check
          %p547 = pneg %p407
        $region62: #{tpu_custom_call.1} parent=11 // pred_check_branch
          %549 = sbr.rel (%p547) target = $region64
        $region63: #{tpu_custom_call.1} parent=11 // pred_region
          _
        $region64: #{tpu_custom_call.1} parent=11 // pred_fallthru
          _
        // Predicated region
        $region65: #{tpu_custom_call.1} parent=11 // pred_check
          %p550 = pneg %p428
        $region66: #{tpu_custom_call.1} parent=11 // pred_check_branch
          %552 = sbr.rel (%p550) target = $region68
        $region67: #{tpu_custom_call.1} parent=11 // pred_region
          _
        $region68: #{tpu_custom_call.1} parent=11 // pred_fallthru
          _
        // Predicated region
        $region69: #{tpu_custom_call.1} parent=11 // pred_check
          %p553 = pneg %p449
        $region70: #{tpu_custom_call.1} parent=11 // pred_check_branch
          %555 = sbr.rel (%p553) target = $region72
        $region71: #{tpu_custom_call.1} parent=11 // pred_region
          _
        $region72: #{tpu_custom_call.1} parent=11 // pred_fallthru
          _
        // Predicated region
        $region73: #{tpu_custom_call.1} parent=11 // pred_check
          %p556 = pneg %p470
        $region74: #{tpu_custom_call.1} parent=11 // pred_check_branch
          %558 = sbr.rel (%p556) target = $region76
        $region75: #{tpu_custom_call.1} parent=11 // pred_region
          _
        $region76: #{tpu_custom_call.1} parent=11 // pred_fallthru
          _
      $region12: #{tpu_custom_call.1} parent=5 // pred_fallthru
        _
      %p559 = scmp.lt.s32.totalorder %s30, 2
      // Predicated region
      $region77: #{tpu_custom_call.1} parent=5 // pred_check
        %p560 = pneg %p559
      $region78: #{tpu_custom_call.1} parent=5 // pred_check_branch
        %562 = sbr.rel (%p560) target = $region80
      $region79: #{tpu_custom_call.1} parent=5 // pred_region
        // Predicated region
        $region81: #{tpu_custom_call.1} parent=79 // pred_check
          %p563 = pneg %p50
        $region82: #{tpu_custom_call.1} parent=79 // pred_check_branch
          %565 = sbr.rel (%p563) target = $region84
        $region83: #{tpu_custom_call.1} parent=79 // pred_region
          %s566 = smul.u32 8, %s30
          %p567 = scmp.lt.s32.totalorder %s566, 15
          %s568 = scalar_select %p567, %s566, 15
          %s569 = smul.addr %s568, 8
          %s570 = scalar_lea.vmem %s0, %s569
          %s571 = smul.u32 8, %s30
        $region84: #{tpu_custom_call.1} parent=79 // pred_fallthru
          _
        // Predicated region
        $region85: #{tpu_custom_call.1} parent=79 // pred_check
          %p572 = pneg %p76
        $region86: #{tpu_custom_call.1} parent=79 // pred_check_branch
          %574 = sbr.rel (%p572) target = $region88
        $region87: #{tpu_custom_call.1} parent=79 // pred_region
          %p575 = scmp.lt.s32.totalorder %s30, 1
          %s576 = scalar_select %p575, %s30, 1
          %s577 = smul.addr %s576, 8
          %s578 = scalar_lea.vmem %s1, %s577
        $region88: #{tpu_custom_call.1} parent=79 // pred_fallthru
          _
        // Predicated region
        $region89: #{tpu_custom_call.1} parent=79 // pred_check
          %p579 = pneg %p102
        $region90: #{tpu_custom_call.1} parent=79 // pred_check_branch
          %581 = sbr.rel (%p579) target = $region92
        $region91: #{tpu_custom_call.1} parent=79 // pred_region
          %p582 = scmp.lt.s32.totalorder %s30, 1
          %s583 = scalar_select %p582, %s30, 1
          %s584 = smul.addr %s583, 4
          %s585 = scalar_lea.vmem %s2, %s584
        $region92: #{tpu_custom_call.1} parent=79 // pred_fallthru
          _
        // Predicated region
        $region93: #{tpu_custom_call.1} parent=79 // pred_check
          %p586 = pneg %p128
        $region94: #{tpu_custom_call.1} parent=79 // pred_check_branch
          %588 = sbr.rel (%p586) target = $region96
        $region95: #{tpu_custom_call.1} parent=79 // pred_region
          %s589 = smul.u32 8, %s30
          %p590 = scmp.lt.s32.totalorder %s589, 15
          %s591 = scalar_select %p590, %s589, 15
          %s592 = smul.addr %s591, 4
          %s593 = scalar_lea.vmem %s3, %s592
          %s594 = smul.u32 8, %s30
        $region96: #{tpu_custom_call.1} parent=79 // pred_fallthru
          _
      $region80: #{tpu_custom_call.1} parent=5 // pred_fallthru
        _
      %p595 = scmp.le.s32.totalorder 1, %s30
      %p596 = scmp.lt.s32.totalorder %s30, 3
      %p597 = pnand %p595, %p596
      %p598 = pneg %p597
      // Predicated region
      $region97: #{tpu_custom_call.1} parent=5 // pred_check
        _
      $region98: #{tpu_custom_call.1} parent=5 // pred_check_branch
        %600 = sbr.rel (%p597) target = $region100
      $region99: #{tpu_custom_call.1} parent=5 // pred_region
        %s601 = ssub.s32 %s30, 1
        %s602 = smul.u32 8, %s35
        %p603 = scmp.lt.s32.totalorder %s602, 15
        %s604 = scalar_select %p603, %s602, 15
        %s605 = smul.addr %s604, 8
        %s606 = scalar_lea.vmem %s0, %s605
        %p607 = pneg %p56
        %p608 = pneg %p53
        %p609 = scmp.lt.s32.totalorder %s35, 1
        %s610 = scalar_select %p609, %s35, 1
        %s611 = smul.addr %s610, 8
        %s612 = scalar_lea.vmem %s1, %s611
        %p613 = pneg %p82
        %p614 = pneg %p79
        %p615 = scmp.lt.s32.totalorder %s35, 1
        %s616 = scalar_select %p615, %s35, 1
        %s617 = smul.addr %s616, 4
        %s618 = scalar_lea.vmem %s2, %s617
        %p619 = pneg %p108
        %p620 = pneg %p105
        %s621 = smul.u32 8, %s35
        %p622 = scmp.lt.s32.totalorder %s621, 15
        %s623 = scalar_select %p622, %s621, 15
        %s624 = smul.addr %s623, 4
        %s625 = scalar_lea.vmem %s3, %s624
        %p626 = pneg %p134
        %p627 = pneg %p131
        %p628 = pneg %p155
        %p629 = pneg %p152
        %p630 = pneg %p176
        %p631 = pneg %p173
        %p632 = pneg %p197
        %p633 = pneg %p194
        %p634 = pneg %p218
        %p635 = pneg %p215
        %p636 = pneg %p239
        %p637 = pneg %p236
        %p638 = pneg %p260
        %p639 = pneg %p257
        %p640 = pneg %p281
        %p641 = pneg %p278
        %p642 = pneg %p302
        %p643 = pneg %p299
        %p644 = pneg %p323
        %p645 = pneg %p320
        %p646 = pneg %p344
        %p647 = pneg %p341
        %p648 = pneg %p365
        %p649 = pneg %p362
        %p650 = pneg %p386
        %p651 = pneg %p383
        %p652 = pneg %p407
        %p653 = pneg %p404
        %p654 = pneg %p428
        %p655 = pneg %p425
        %p656 = pneg %p449
        %p657 = pneg %p446
        %p658 = pneg %p470
        %p659 = pneg %p467
        %p660 = pneg %p496
        %p661 = pneg %p493
        %s662 = sand.u32 %s483, 1
        %s663 = scalar_lea.sflag [#allocation4], %s662
        %s664 = sand.u32 %s483, 1
        %s665 = smul.addr %s664, 8
        %s666 = scalar_lea.vmem [#allocation3], %s665
        %s667 = smul.u32 8, %s35
        %p668 = scmp.lt.s32.totalorder %s667, 15
        %s669 = scalar_select %p668, %s667, 15
        %s670 = smul.addr %s669, 8
        %s671 = scalar_lea.vmem %s0, %s670
        %s672 = smul.u32 8, %s35
        %p673 = scmp.lt.s32.totalorder %s35, 1
        %s674 = scalar_select %p673, %s35, 1
        %s675 = smul.addr %s674, 8
        %s676 = scalar_lea.vmem %s1, %s675
        %p677 = scmp.lt.s32.totalorder %s35, 1
        %s678 = scalar_select %p677, %s35, 1
        %s679 = smul.addr %s678, 4
        %s680 = scalar_lea.vmem %s2, %s679
        %s681 = smul.u32 8, %s35
        %p682 = scmp.lt.s32.totalorder %s681, 15
        %s683 = scalar_select %p682, %s681, 15
        %s684 = smul.addr %s683, 4
        %s685 = scalar_lea.vmem %s3, %s684
        %s686 = smul.u32 8, %s35
        %v688 = vld [vmem:[%s4] sm:$0xff]
        %v689 = vld [vmem:[%s4 + $0x8] sm:$0x1]
        %v690 = vld [vmem:[%s5] sm:$0xff]
        %v691 = vld [vmem:[%s5 + $0x8] sm:$0xff]
        %v692 = vld [vmem:[%s5 + $0x10] sm:$0x7]
        %v693 = vld [vmem:[%s671] sm:$0xff]
        %v694 = vld [vmem:[%s671 + $0x8] sm:$0xff]
        %v695 = vld [vmem:[%s671 + $0x10] sm:$0xff]
        %v696 = vld [vmem:[%s671 + $0x18] sm:$0xff]
        %v697 = vld [vmem:[%s671 + $0x20] sm:$0xff]
        %v698 = vld [vmem:[%s671 + $0x28] sm:$0xff]
        %v699 = vld [vmem:[%s671 + $0x30] sm:$0xff]
        %v700 = vld [vmem:[%s671 + $0x38] sm:$0xff]
        %v701 = vld [vmem:[%s676] sm:$0xff]
        %v702 = vld [vmem:[%s680] sm:$0xf]
        %v703 = vunpack.c.l.bf16 %v702
        %v704 = vld [vmem:[%s685] sm:$0xf]
        %v705 = vld [vmem:[%s685 + $0x4] sm:$0xf]
        %v706 = vld [vmem:[%s685 + $0x8] sm:$0xf]
        %v707 = vld [vmem:[%s685 + $0xc] sm:$0xf]
        %v708 = vld [vmem:[%s685 + $0x10] sm:$0xf]
        %v709 = vld [vmem:[%s685 + $0x14] sm:$0xf]
        %v710 = vld [vmem:[%s685 + $0x18] sm:$0xf]
        %v711 = vld [vmem:[%s685 + $0x1c] sm:$0xf]
        %v712 = vunpack.c.l.bf16 %v704
        %v713 = vunpack.c.l.bf16 %v705
        %v714 = vunpack.c.l.bf16 %v706
        %v715 = vunpack.c.l.bf16 %v707
        %v716 = vunpack.c.l.bf16 %v708
        %v717 = vunpack.c.l.bf16 %v709
        %v718 = vunpack.c.l.bf16 %v710
        %v719 = vunpack.c.l.bf16 %v711
        %721 = vset.pattern.permute.xlu0 0
        %722 = vperm.xlu0 %721, %v693
        %v723 = vpop.permute.xlu0 %722
        %726 = vset.pattern.permute.xlu0 0
        %727 = vperm.xlu0 %726, %v694
        %v728 = vpop.permute.xlu0 %727
        %731 = vset.pattern.permute.xlu0 0
        %732 = vperm.xlu0 %731, %v695
        %v733 = vpop.permute.xlu0 %732
        %736 = vset.pattern.permute.xlu0 0
        %737 = vperm.xlu0 %736, %v696
        %v738 = vpop.permute.xlu0 %737
        %741 = vset.pattern.permute.xlu0 0
        %742 = vperm.xlu0 %741, %v697
        %v743 = vpop.permute.xlu0 %742
        %746 = vset.pattern.permute.xlu0 0
        %747 = vperm.xlu0 %746, %v698
        %v748 = vpop.permute.xlu0 %747
        %751 = vset.pattern.permute.xlu0 0
        %752 = vperm.xlu0 %751, %v699
        %v753 = vpop.permute.xlu0 %752
        %756 = vset.pattern.permute.xlu0 0
        %757 = vperm.xlu0 %756, %v700
        %v758 = vpop.permute.xlu0 %757
        %v760 = vlaneseq
        %v761 = vshrl.u32 %v760, 7
        %v762 = vsub.s32 0, %v761
        %v763 = vrot.slane %v688, %v762
        %v764 = vmul.f32 %v723, %v763
        %v765 = vmul.f32 %v728, %v763
        %v766 = vmul.f32 %v733, %v763
        %v767 = vmul.f32 %v738, %v763
        %v768 = vmul.f32 %v743, %v763
        %v769 = vmul.f32 %v748, %v763
        %v770 = vmul.f32 %v753, %v763
        %v771 = vmul.f32 %v758, %v763
        %v772 = vlaneseq
        %v773 = vshrl.u32 %v772, 7
        %v774 = vsub.s32 1, %v773
        %v775 = vrot.slane %v688, %v774
        %v776 = vadd.f32 %v764, %v775
        %v777 = vadd.f32 %v765, %v775
        %v778 = vadd.f32 %v766, %v775
        %v779 = vadd.f32 %v767, %v775
        %v780 = vadd.f32 %v768, %v775
        %v781 = vadd.f32 %v769, %v775
        %v782 = vadd.f32 %v770, %v775
        %v783 = vadd.f32 %v771, %v775
        %vm784 = vcmask 130048
        %v785 = vsel %vm784, %v776, 0.0
        %786 = vadd.xlane.f32.xlu0 %v785
        %v787 = vpop.xlane.xlu0 %786
        %v788 = vsel %vm784, %v777, 0.0
        %789 = vadd.xlane.f32.xlu0 %v788
        %v790 = vpop.xlane.xlu0 %789
        %v791 = vsel %vm784, %v778, 0.0
        %792 = vadd.xlane.f32.xlu0 %v791
        %v793 = vpop.xlane.xlu0 %792
        %v794 = vsel %vm784, %v779, 0.0
        %795 = vadd.xlane.f32.xlu0 %v794
        %v796 = vpop.xlane.xlu0 %795
        %v797 = vsel %vm784, %v780, 0.0
        %798 = vadd.xlane.f32.xlu0 %v797
        %v799 = vpop.xlane.xlu0 %798
        %v800 = vsel %vm784, %v781, 0.0
        %801 = vadd.xlane.f32.xlu0 %v800
        %v802 = vpop.xlane.xlu0 %801
        %v803 = vsel %vm784, %v782, 0.0
        %804 = vadd.xlane.f32.xlu0 %v803
        %v805 = vpop.xlane.xlu0 %804
        %v806 = vsel %vm784, %v783, 0.0
        %807 = vadd.xlane.f32.xlu0 %v806
        %v808 = vpop.xlane.xlu0 %807
        %v809 = vrcp.pop 16.0
        %v810 = vmul.f32 %v787, %v809
        %v811 = vmul.f32 %v790, %v809
        %v812 = vmul.f32 %v793, %v809
        %v813 = vmul.f32 %v796, %v809
        %v814 = vmul.f32 %v799, %v809
        %v815 = vmul.f32 %v802, %v809
        %v816 = vmul.f32 %v805, %v809
        %v817 = vmul.f32 %v808, %v809
        %v818 = vsub.f32 %v776, %v810
        %v819 = vsub.f32 %v777, %v811
        %v820 = vsub.f32 %v778, %v812
        %v821 = vsub.f32 %v779, %v813
        %v822 = vsub.f32 %v780, %v814
        %v823 = vsub.f32 %v781, %v815
        %v824 = vsub.f32 %v782, %v816
        %v825 = vsub.f32 %v783, %v817
        %v826 = vmul.f32 %v818, %v818
        %v827 = vmul.f32 %v819, %v819
        %v828 = vmul.f32 %v820, %v820
        %v829 = vmul.f32 %v821, %v821
        %v830 = vmul.f32 %v822, %v822
        %v831 = vmul.f32 %v823, %v823
        %v832 = vmul.f32 %v824, %v824
        %v833 = vmul.f32 %v825, %v825
        %v834 = vsel %vm784, %v826, 0.0
        %835 = vadd.xlane.f32.xlu0 %v834
        %v836 = vpop.xlane.xlu0 %835
        %v837 = vsel %vm784, %v827, 0.0
        %838 = vadd.xlane.f32.xlu0 %v837
        %v839 = vpop.xlane.xlu0 %838
        %v840 = vsel %vm784, %v828, 0.0
        %841 = vadd.xlane.f32.xlu0 %v840
        %v842 = vpop.xlane.xlu0 %841
        %v843 = vsel %vm784, %v829, 0.0
        %844 = vadd.xlane.f32.xlu0 %v843
        %v845 = vpop.xlane.xlu0 %844
        %v846 = vsel %vm784, %v830, 0.0
        %847 = vadd.xlane.f32.xlu0 %v846
        %v848 = vpop.xlane.xlu0 %847
        %v849 = vsel %vm784, %v831, 0.0
        %850 = vadd.xlane.f32.xlu0 %v849
        %v851 = vpop.xlane.xlu0 %850
        %v852 = vsel %vm784, %v832, 0.0
        %853 = vadd.xlane.f32.xlu0 %v852
        %v854 = vpop.xlane.xlu0 %853
        %v855 = vsel %vm784, %v833, 0.0
        %856 = vadd.xlane.f32.xlu0 %v855
        %v857 = vpop.xlane.xlu0 %856
        %v858 = vmul.f32 %v836, %v809
        %v859 = vmul.f32 %v839, %v809
        %v860 = vmul.f32 %v842, %v809
        %v861 = vmul.f32 %v845, %v809
        %v862 = vmul.f32 %v848, %v809
        %v863 = vmul.f32 %v851, %v809
        %v864 = vmul.f32 %v854, %v809
        %v865 = vmul.f32 %v857, %v809
        %v866 = vadd.f32 %v858, 1e-05
        %v867 = vadd.f32 %v859, 1e-05
        %v868 = vadd.f32 %v860, 1e-05
        %v869 = vadd.f32 %v861, 1e-05
        %v870 = vadd.f32 %v862, 1e-05
        %v871 = vadd.f32 %v863, 1e-05
        %v872 = vadd.f32 %v864, 1e-05
        %v873 = vadd.f32 %v865, 1e-05
        %v874 = vrsqrt.pop %v866
        %v875 = vrsqrt.pop %v867
        %v876 = vrsqrt.pop %v868
        %v877 = vrsqrt.pop %v869
        %v878 = vrsqrt.pop %v870
        %v879 = vrsqrt.pop %v871
        %v880 = vrsqrt.pop %v872
        %v881 = vrsqrt.pop %v873
        %v882 = vmul.f32 %v818, %v874
        %v883 = vmul.f32 %v819, %v875
        %v884 = vmul.f32 %v820, %v876
        %v885 = vmul.f32 %v821, %v877
        %v886 = vmul.f32 %v822, %v878
        %v887 = vmul.f32 %v823, %v879
        %v888 = vmul.f32 %v824, %v880
        %v889 = vmul.f32 %v825, %v881
        %v890 = vlaneseq
        %v891 = vshrl.u32 %v890, 7
        %v892 = vsub.s32 2, %v891
        %v893 = vrot.slane %v688, %v892
        %v894 = vmul.f32 %v882, %v893
        %v895 = vmul.f32 %v883, %v893
        %v896 = vmul.f32 %v884, %v893
        %v897 = vmul.f32 %v885, %v893
        %v898 = vmul.f32 %v886, %v893
        %v899 = vmul.f32 %v887, %v893
        %v900 = vmul.f32 %v888, %v893
        %v901 = vmul.f32 %v889, %v893
        %v902 = vlaneseq
        %v903 = vshrl.u32 %v902, 7
        %v904 = vsub.s32 3, %v903
        %v905 = vrot.slane %v688, %v904
        %v906 = vadd.f32 %v894, %v905
        %v907 = vadd.f32 %v895, %v905
        %v908 = vadd.f32 %v896, %v905
        %v909 = vadd.f32 %v897, %v905
        %v910 = vadd.f32 %v898, %v905
        %v911 = vadd.f32 %v899, %v905
        %v912 = vadd.f32 %v900, %v905
        %v913 = vadd.f32 %v901, %v905
        %v914 = vtanh.pop %v906
        %v915 = vtanh.pop %v907
        %v916 = vtanh.pop %v908
        %v917 = vtanh.pop %v909
        %v918 = vtanh.pop %v910
        %v919 = vtanh.pop %v911
        %v920 = vtanh.pop %v912
        %v921 = vtanh.pop %v913
        %v922 = vpack.c.bf16 %v915, %v914
        %v923 = vpack.c.bf16 %v917, %v916
        %v924 = vpack.c.bf16 %v919, %v918
        %v925 = vpack.c.bf16 %v921, %v920
        %v926 = vld [vmem:[%s7] sm:$0xf]
        %v927 = vld [vmem:[%s7 + $0x4] sm:$0xf]
        %v928 = vlaneseq
        %v929 = vshrl.u32 %v928, 7
        %v930 = vsub.s32 0, %v929
        %v931 = vrot.slane %v690, %v930
        %v934 = vunpack.c.l.b16 %v926
        %v935 = vunpack.c.l.b16 %v927
        %v936 = vpack.c.b16 %v935, %v934
        %v939 = vsel %vm784, %v922, 0
        %v942 = vsel %vm784, %v923, 0
        %v945 = vsel %vm784, %v924, 0
        %v948 = vsel %vm784, %v925, 0
        %950 = vmatprep.subr.bf16.mxu0 0
        %951 = vmatpush1.bf16.msra.mxu0 %v936
        %952 = vmatprep.subr.bf16.mxu0 0
        %953 = vmatpush1.bf16.msra.mxu0 0
        %954 = vmatprep.subr.bf16.mxu0 0
        %955 = vmatpush1.bf16.msra.mxu0 0
        %956 = vmatprep.subr.bf16.mxu0 0
        %957 = vmatpush1.bf16.msra.mxu0 0
        %958 = vmatprep.subr.bf16.mxu0 0
        %959 = vmatpush1.bf16.msra.mxu0 0
        %960 = vmatprep.subr.bf16.mxu0 0
        %961 = vmatpush1.bf16.msra.mxu0 0
        %962 = vmatprep.subr.bf16.mxu0 0
        %963 = vmatpush1.bf16.msra.mxu0 0
        %964 = vmatprep.subr.bf16.mxu0 0
        %965 = vmatpush1.bf16.msra.mxu0 0
        %966 = vmatprep.subr.bf16.mxu0 0
        %967 = vmatpush1.bf16.msra.mxu0 0
        %968 = vmatprep.subr.bf16.mxu0 0
        %969 = vmatpush1.bf16.msra.mxu0 0
        %970 = vmatprep.subr.bf16.mxu0 0
        %971 = vmatpush1.bf16.msra.mxu0 0
        %972 = vmatprep.subr.bf16.mxu0 0
        %973 = vmatpush1.bf16.msra.mxu0 0
        %974 = vmatprep.subr.bf16.mxu0 0
        %975 = vmatpush1.bf16.msra.mxu0 0
        %976 = vmatprep.subr.bf16.mxu0 0
        %977 = vmatpush1.bf16.msra.mxu0 0
        %978 = vmatprep.subr.bf16.mxu0 0
        %979 = vmatpush1.bf16.msra.mxu0 0
        %980 = vmatprep.subr.bf16.mxu0 0
        %981 = vmatpush1.bf16.msra.mxu0 0
        %982 = vmatprep.mubr.bf16.mxu0 0
        %983 = vmatmul.mubr.bf16.gmra.mrb[0].mxu0 %v939
        %v984 = vpop.f32.mrb[0].mxu0
        %v985 = vadd.f32 %v931, %v984
        %v986 = vpop.f32.mrb[0].mxu0
        %v987 = vpop.f32.mrb[0].mxu0
        %v988 = vadd.f32 %v931, %v987
        %v989 = vpop.f32.mrb[0].mxu0
        %990 = vmatprep.mubr.bf16.mxu0 0
        %991 = vmatmul.mubr.bf16.gmra.mrb[0].mxu0 %v942
        %v992 = vpop.f32.mrb[0].mxu0
        %v993 = vadd.f32 %v931, %v992
        %v994 = vpop.f32.mrb[0].mxu0
        %v995 = vpop.f32.mrb[0].mxu0
        %v996 = vadd.f32 %v931, %v995
        %v997 = vpop.f32.mrb[0].mxu0
        %998 = vmatprep.mubr.bf16.mxu0 0
        %999 = vmatmul.mubr.bf16.gmra.mrb[0].mxu0 %v945
        %v1000 = vpop.f32.mrb[0].mxu0
        %v1001 = vadd.f32 %v931, %v1000
        %v1002 = vpop.f32.mrb[0].mxu0
        %v1003 = vpop.f32.mrb[0].mxu0
        %v1004 = vadd.f32 %v931, %v1003
        %v1005 = vpop.f32.mrb[0].mxu0
        %1006 = vmatprep.mubr.bf16.mxu0 0
        %1007 = vmatmul.mubr.bf16.gmra.mrb[0].mxu0 %v948
        %v1008 = vpop.f32.mrb[0].mxu0
        %v1009 = vadd.f32 %v931, %v1008
        %v1010 = vpop.f32.mrb[0].mxu0
        %v1011 = vpop.f32.mrb[0].mxu0
        %v1012 = vadd.f32 %v931, %v1011
        %v1013 = vpop.f32.mrb[0].mxu0
        %1014 = vdwg.mxu0
        %vm1015 = vcmask 261120
        %v1016 = vsel %vm1015, %v985, 0.0
        %1017 = vadd.xlane.f32.xlu0 %v1016
        %v1018 = vpop.xlane.xlu0 %1017
        %v1019 = vsel %vm1015, %v988, 0.0
        %1020 = vadd.xlane.f32.xlu0 %v1019
        %v1021 = vpop.xlane.xlu0 %1020
        %v1022 = vsel %vm1015, %v993, 0.0
        %1023 = vadd.xlane.f32.xlu0 %v1022
        %v1024 = vpop.xlane.xlu0 %1023
        %v1025 = vsel %vm1015, %v996, 0.0
        %1026 = vadd.xlane.f32.xlu0 %v1025
        %v1027 = vpop.xlane.xlu0 %1026
        %v1028 = vsel %vm1015, %v1001, 0.0
        %1029 = vadd.xlane.f32.xlu0 %v1028
        %v1030 = vpop.xlane.xlu0 %1029
        %v1031 = vsel %vm1015, %v1004, 0.0
        %1032 = vadd.xlane.f32.xlu0 %v1031
        %v1033 = vpop.xlane.xlu0 %1032
        %v1034 = vsel %vm1015, %v1009, 0.0
        %1035 = vadd.xlane.f32.xlu0 %v1034
        %v1036 = vpop.xlane.xlu0 %1035
        %v1037 = vsel %vm1015, %v1012, 0.0
        %1038 = vadd.xlane.f32.xlu0 %v1037
        %v1039 = vpop.xlane.xlu0 %1038
        %v1040 = vrcp.pop 32.0
        %v1041 = vmul.f32 %v1018, %v1040
        %v1042 = vmul.f32 %v1021, %v1040
        %v1043 = vmul.f32 %v1024, %v1040
        %v1044 = vmul.f32 %v1027, %v1040
        %v1045 = vmul.f32 %v1030, %v1040
        %v1046 = vmul.f32 %v1033, %v1040
        %v1047 = vmul.f32 %v1036, %v1040
        %v1048 = vmul.f32 %v1039, %v1040
        %v1049 = vsub.f32 %v985, %v1041
        %v1050 = vsub.f32 %v988, %v1042
        %v1051 = vsub.f32 %v993, %v1043
        %v1052 = vsub.f32 %v996, %v1044
        %v1053 = vsub.f32 %v1001, %v1045
        %v1054 = vsub.f32 %v1004, %v1046
        %v1055 = vsub.f32 %v1009, %v1047
        %v1056 = vsub.f32 %v1012, %v1048
        %v1057 = vmul.f32 %v1049, %v1049
        %v1058 = vmul.f32 %v1050, %v1050
        %v1059 = vmul.f32 %v1051, %v1051
        %v1060 = vmul.f32 %v1052, %v1052
        %v1061 = vmul.f32 %v1053, %v1053
        %v1062 = vmul.f32 %v1054, %v1054
        %v1063 = vmul.f32 %v1055, %v1055
        %v1064 = vmul.f32 %v1056, %v1056
        %v1065 = vsel %vm1015, %v1057, 0.0
        %1066 = vadd.xlane.f32.xlu0 %v1065
        %v1067 = vpop.xlane.xlu0 %1066
        %v1068 = vsel %vm1015, %v1058, 0.0
        %1069 = vadd.xlane.f32.xlu0 %v1068
        %v1070 = vpop.xlane.xlu0 %1069
        %v1071 = vsel %vm1015, %v1059, 0.0
        %1072 = vadd.xlane.f32.xlu0 %v1071
        %v1073 = vpop.xlane.xlu0 %1072
        %v1074 = vsel %vm1015, %v1060, 0.0
        %1075 = vadd.xlane.f32.xlu0 %v1074
        %v1076 = vpop.xlane.xlu0 %1075
        %v1077 = vsel %vm1015, %v1061, 0.0
        %1078 = vadd.xlane.f32.xlu0 %v1077
        %v1079 = vpop.xlane.xlu0 %1078
        %v1080 = vsel %vm1015, %v1062, 0.0
        %1081 = vadd.xlane.f32.xlu0 %v1080
        %v1082 = vpop.xlane.xlu0 %1081
        %v1083 = vsel %vm1015, %v1063, 0.0
        %1084 = vadd.xlane.f32.xlu0 %v1083
        %v1085 = vpop.xlane.xlu0 %1084
        %v1086 = vsel %vm1015, %v1064, 0.0
        %1087 = vadd.xlane.f32.xlu0 %v1086
        %v1088 = vpop.xlane.xlu0 %1087
        %v1089 = vmul.f32 %v1067, %v1040
        %v1090 = vmul.f32 %v1070, %v1040
        %v1091 = vmul.f32 %v1073, %v1040
        %v1092 = vmul.f32 %v1076, %v1040
        %v1093 = vmul.f32 %v1079, %v1040
        %v1094 = vmul.f32 %v1082, %v1040
        %v1095 = vmul.f32 %v1085, %v1040
        %v1096 = vmul.f32 %v1088, %v1040
        %v1097 = vadd.f32 %v1089, 1e-05
        %v1098 = vadd.f32 %v1090, 1e-05
        %v1099 = vadd.f32 %v1091, 1e-05
        %v1100 = vadd.f32 %v1092, 1e-05
        %v1101 = vadd.f32 %v1093, 1e-05
        %v1102 = vadd.f32 %v1094, 1e-05
        %v1103 = vadd.f32 %v1095, 1e-05
        %v1104 = vadd.f32 %v1096, 1e-05
        %v1105 = vrsqrt.pop %v1097
        %v1106 = vrsqrt.pop %v1098
        %v1107 = vrsqrt.pop %v1099
        %v1108 = vrsqrt.pop %v1100
        %v1109 = vrsqrt.pop %v1101
        %v1110 = vrsqrt.pop %v1102
        %v1111 = vrsqrt.pop %v1103
        %v1112 = vrsqrt.pop %v1104
        %v1113 = vmul.f32 %v1049, %v1105
        %v1114 = vmul.f32 %v1050, %v1106
        %v1115 = vmul.f32 %v1051, %v1107
        %v1116 = vmul.f32 %v1052, %v1108
        %v1117 = vmul.f32 %v1053, %v1109
        %v1118 = vmul.f32 %v1054, %v1110
        %v1119 = vmul.f32 %v1055, %v1111
        %v1120 = vmul.f32 %v1056, %v1112
        %v1121 = vlaneseq
        %v1122 = vshrl.u32 %v1121, 7
        %v1123 = vsub.s32 1, %v1122
        %v1124 = vrot.slane %v690, %v1123
        %v1125 = vmul.f32 %v1113, %v1124
        %v1126 = vmul.f32 %v1114, %v1124
        %v1127 = vmul.f32 %v1115, %v1124
        %v1128 = vmul.f32 %v1116, %v1124
        %v1129 = vmul.f32 %v1117, %v1124
        %v1130 = vmul.f32 %v1118, %v1124
        %v1131 = vmul.f32 %v1119, %v1124
        %v1132 = vmul.f32 %v1120, %v1124
        %v1133 = vlaneseq
        %v1134 = vshrl.u32 %v1133, 7
        %v1135 = vsub.s32 2, %v1134
        %v1136 = vrot.slane %v690, %v1135
        %v1137 = vadd.f32 %v1125, %v1136
        %v1138 = vadd.f32 %v1126, %v1136
        %v1139 = vadd.f32 %v1127, %v1136
        %v1140 = vadd.f32 %v1128, %v1136
        %v1141 = vadd.f32 %v1129, %v1136
        %v1142 = vadd.f32 %v1130, %v1136
        %v1143 = vadd.f32 %v1131, %v1136
        %v1144 = vadd.f32 %v1132, %v1136
        %1145 = vset.pattern.permute.xlu0 1
        %1146 = vperm.xlu0 %1145, %v693
        %v1147 = vpop.permute.xlu0 %1146
        %1149 = vset.pattern.permute.xlu0 1
        %1150 = vperm.xlu0 %1149, %v694
        %v1151 = vpop.permute.xlu0 %1150
        %1153 = vset.pattern.permute.xlu0 1
        %1154 = vperm.xlu0 %1153, %v695
        %v1155 = vpop.permute.xlu0 %1154
        %1157 = vset.pattern.permute.xlu0 1
        %1158 = vperm.xlu0 %1157, %v696
        %v1159 = vpop.permute.xlu0 %1158
        %1161 = vset.pattern.permute.xlu0 1
        %1162 = vperm.xlu0 %1161, %v697
        %v1163 = vpop.permute.xlu0 %1162
        %1165 = vset.pattern.permute.xlu0 1
        %1166 = vperm.xlu0 %1165, %v698
        %v1167 = vpop.permute.xlu0 %1166
        %1169 = vset.pattern.permute.xlu0 1
        %1170 = vperm.xlu0 %1169, %v699
        %v1171 = vpop.permute.xlu0 %1170
        %1173 = vset.pattern.permute.xlu0 1
        %1174 = vperm.xlu0 %1173, %v700
        %v1175 = vpop.permute.xlu0 %1174
        %v1177 = vlaneseq
        %v1178 = vshrl.u32 %v1177, 7
        %v1179 = vsub.s32 4, %v1178
        %v1180 = vrot.slane %v688, %v1179
        %v1181 = vmul.f32 %v1147, %v1180
        %v1182 = vmul.f32 %v1151, %v1180
        %v1183 = vmul.f32 %v1155, %v1180
        %v1184 = vmul.f32 %v1159, %v1180
        %v1185 = vmul.f32 %v1163, %v1180
        %v1186 = vmul.f32 %v1167, %v1180
        %v1187 = vmul.f32 %v1171, %v1180
        %v1188 = vmul.f32 %v1175, %v1180
        %1189 = vset.pattern.permute.xlu0 2
        %1190 = vperm.xlu0 %1189, %v693
        %v1191 = vpop.permute.xlu0 %1190
        %1193 = vset.pattern.permute.xlu0 2
        %1194 = vperm.xlu0 %1193, %v694
        %v1195 = vpop.permute.xlu0 %1194
        %1197 = vset.pattern.permute.xlu0 2
        %1198 = vperm.xlu0 %1197, %v695
        %v1199 = vpop.permute.xlu0 %1198
        %1201 = vset.pattern.permute.xlu0 2
        %1202 = vperm.xlu0 %1201, %v696
        %v1203 = vpop.permute.xlu0 %1202
        %1205 = vset.pattern.permute.xlu0 2
        %1206 = vperm.xlu0 %1205, %v697
        %v1207 = vpop.permute.xlu0 %1206
        %1209 = vset.pattern.permute.xlu0 2
        %1210 = vperm.xlu0 %1209, %v698
        %v1211 = vpop.permute.xlu0 %1210
        %1213 = vset.pattern.permute.xlu0 2
        %1214 = vperm.xlu0 %1213, %v699
        %v1215 = vpop.permute.xlu0 %1214
        %1217 = vset.pattern.permute.xlu0 2
        %1218 = vperm.xlu0 %1217, %v700
        %v1219 = vpop.permute.xlu0 %1218
        %v1221 = vlaneseq
        %v1222 = vshrl.u32 %v1221, 7
        %v1223 = vsub.s32 5, %v1222
        %v1224 = vrot.slane %v688, %v1223
        %v1225 = vmul.f32 %v1191, %v1224
        %v1226 = vmul.f32 %v1195, %v1224
        %v1227 = vmul.f32 %v1199, %v1224
        %v1228 = vmul.f32 %v1203, %v1224
        %v1229 = vmul.f32 %v1207, %v1224
        %v1230 = vmul.f32 %v1211, %v1224
        %v1231 = vmul.f32 %v1215, %v1224
        %v1232 = vmul.f32 %v1219, %v1224
        %v1233 = vadd.f32 %v1181, %v1225
        %v1234 = vadd.f32 %v1182, %v1226
        %v1235 = vadd.f32 %v1183, %v1227
        %v1236 = vadd.f32 %v1184, %v1228
        %v1237 = vadd.f32 %v1185, %v1229
        %v1238 = vadd.f32 %v1186, %v1230
        %v1239 = vadd.f32 %v1187, %v1231
        %v1240 = vadd.f32 %v1188, %v1232
        %v1241 = vlaneseq
        %v1242 = vshrl.u32 %v1241, 7
        %v1243 = vsub.s32 6, %v1242
        %v1244 = vrot.slane %v688, %v1243
        %v1245 = vadd.f32 %v1233, %v1244
        %v1246 = vadd.f32 %v1234, %v1244
        %v1247 = vadd.f32 %v1235, %v1244
        %v1248 = vadd.f32 %v1236, %v1244
        %v1249 = vadd.f32 %v1237, %v1244
        %v1250 = vadd.f32 %v1238, %v1244
        %v1251 = vadd.f32 %v1239, %v1244
        %v1252 = vadd.f32 %v1240, %v1244
        %v1253 = vsel %vm784, %v1245, 0.0
        %1254 = vadd.xlane.f32.xlu0 %v1253
        %v1255 = vpop.xlane.xlu0 %1254
        %v1256 = vsel %vm784, %v1246, 0.0
        %1257 = vadd.xlane.f32.xlu0 %v1256
        %v1258 = vpop.xlane.xlu0 %1257
        %v1259 = vsel %vm784, %v1247, 0.0
        %1260 = vadd.xlane.f32.xlu0 %v1259
        %v1261 = vpop.xlane.xlu0 %1260
        %v1262 = vsel %vm784, %v1248, 0.0
        %1263 = vadd.xlane.f32.xlu0 %v1262
        %v1264 = vpop.xlane.xlu0 %1263
        %v1265 = vsel %vm784, %v1249, 0.0
        %1266 = vadd.xlane.f32.xlu0 %v1265
        %v1267 = vpop.xlane.xlu0 %1266
        %v1268 = vsel %vm784, %v1250, 0.0
        %1269 = vadd.xlane.f32.xlu0 %v1268
        %v1270 = vpop.xlane.xlu0 %1269
        %v1271 = vsel %vm784, %v1251, 0.0
        %1272 = vadd.xlane.f32.xlu0 %v1271
        %v1273 = vpop.xlane.xlu0 %1272
        %v1274 = vsel %vm784, %v1252, 0.0
        %1275 = vadd.xlane.f32.xlu0 %v1274
        %v1276 = vpop.xlane.xlu0 %1275
        %v1277 = vmul.f32 %v1255, %v809
        %v1278 = vmul.f32 %v1258, %v809
        %v1279 = vmul.f32 %v1261, %v809
        %v1280 = vmul.f32 %v1264, %v809
        %v1281 = vmul.f32 %v1267, %v809
        %v1282 = vmul.f32 %v1270, %v809
        %v1283 = vmul.f32 %v1273, %v809
        %v1284 = vmul.f32 %v1276, %v809
        %v1285 = vsub.f32 %v1245, %v1277
        %v1286 = vsub.f32 %v1246, %v1278
        %v1287 = vsub.f32 %v1247, %v1279
        %v1288 = vsub.f32 %v1248, %v1280
        %v1289 = vsub.f32 %v1249, %v1281
        %v1290 = vsub.f32 %v1250, %v1282
        %v1291 = vsub.f32 %v1251, %v1283
        %v1292 = vsub.f32 %v1252, %v1284
        %v1293 = vmul.f32 %v1285, %v1285
        %v1294 = vmul.f32 %v1286, %v1286
        %v1295 = vmul.f32 %v1287, %v1287
        %v1296 = vmul.f32 %v1288, %v1288
        %v1297 = vmul.f32 %v1289, %v1289
        %v1298 = vmul.f32 %v1290, %v1290
        %v1299 = vmul.f32 %v1291, %v1291
        %v1300 = vmul.f32 %v1292, %v1292
        %v1301 = vsel %vm784, %v1293, 0.0
        %1302 = vadd.xlane.f32.xlu0 %v1301
        %v1303 = vpop.xlane.xlu0 %1302
        %v1304 = vsel %vm784, %v1294, 0.0
        %1305 = vadd.xlane.f32.xlu0 %v1304
        %v1306 = vpop.xlane.xlu0 %1305
        %v1307 = vsel %vm784, %v1295, 0.0
        %1308 = vadd.xlane.f32.xlu0 %v1307
        %v1309 = vpop.xlane.xlu0 %1308
        %v1310 = vsel %vm784, %v1296, 0.0
        %1311 = vadd.xlane.f32.xlu0 %v1310
        %v1312 = vpop.xlane.xlu0 %1311
        %v1313 = vsel %vm784, %v1297, 0.0
        %1314 = vadd.xlane.f32.xlu0 %v1313
        %v1315 = vpop.xlane.xlu0 %1314
        %v1316 = vsel %vm784, %v1298, 0.0
        %1317 = vadd.xlane.f32.xlu0 %v1316
        %v1318 = vpop.xlane.xlu0 %1317
        %v1319 = vsel %vm784, %v1299, 0.0
        %1320 = vadd.xlane.f32.xlu0 %v1319
        %v1321 = vpop.xlane.xlu0 %1320
        %v1322 = vsel %vm784, %v1300, 0.0
        %1323 = vadd.xlane.f32.xlu0 %v1322
        %v1324 = vpop.xlane.xlu0 %1323
        %v1325 = vmul.f32 %v1303, %v809
        %v1326 = vmul.f32 %v1306, %v809
        %v1327 = vmul.f32 %v1309, %v809
        %v1328 = vmul.f32 %v1312, %v809
        %v1329 = vmul.f32 %v1315, %v809
        %v1330 = vmul.f32 %v1318, %v809
        %v1331 = vmul.f32 %v1321, %v809
        %v1332 = vmul.f32 %v1324, %v809
        %v1333 = vadd.f32 %v1325, 1e-05
        %v1334 = vadd.f32 %v1326, 1e-05
        %v1335 = vadd.f32 %v1327, 1e-05
        %v1336 = vadd.f32 %v1328, 1e-05
        %v1337 = vadd.f32 %v1329, 1e-05
        %v1338 = vadd.f32 %v1330, 1e-05
        %v1339 = vadd.f32 %v1331, 1e-05
        %v1340 = vadd.f32 %v1332, 1e-05
        %v1341 = vrsqrt.pop %v1333
        %v1342 = vrsqrt.pop %v1334
        %v1343 = vrsqrt.pop %v1335
        %v1344 = vrsqrt.pop %v1336
        %v1345 = vrsqrt.pop %v1337
        %v1346 = vrsqrt.pop %v1338
        %v1347 = vrsqrt.pop %v1339
        %v1348 = vrsqrt.pop %v1340
        %v1349 = vmul.f32 %v1285, %v1341
        %v1350 = vmul.f32 %v1286, %v1342
        %v1351 = vmul.f32 %v1287, %v1343
        %v1352 = vmul.f32 %v1288, %v1344
        %v1353 = vmul.f32 %v1289, %v1345
        %v1354 = vmul.f32 %v1290, %v1346
        %v1355 = vmul.f32 %v1291, %v1347
        %v1356 = vmul.f32 %v1292, %v1348
        %v1357 = vlaneseq
        %v1358 = vshrl.u32 %v1357, 7
        %v1359 = vsub.s32 7, %v1358
        %v1360 = vrot.slane %v688, %v1359
        %v1361 = vmul.f32 %v1349, %v1360
        %v1362 = vmul.f32 %v1350, %v1360
        %v1363 = vmul.f32 %v1351, %v1360
        %v1364 = vmul.f32 %v1352, %v1360
        %v1365 = vmul.f32 %v1353, %v1360
        %v1366 = vmul.f32 %v1354, %v1360
        %v1367 = vmul.f32 %v1355, %v1360
        %v1368 = vmul.f32 %v1356, %v1360
        %v1369 = vlaneseq
        %v1370 = vshrl.u32 %v1369, 7
        %v1371 = vsub.s32 0, %v1370
        %v1372 = vrot.slane %v689, %v1371
        %v1373 = vadd.f32 %v1361, %v1372
        %v1374 = vadd.f32 %v1362, %v1372
        %v1375 = vadd.f32 %v1363, %v1372
        %v1376 = vadd.f32 %v1364, %v1372
        %v1377 = vadd.f32 %v1365, %v1372
        %v1378 = vadd.f32 %v1366, %v1372
        %v1379 = vadd.f32 %v1367, %v1372
        %v1380 = vadd.f32 %v1368, %v1372
        %v1381 = vtanh.pop %v1373
        %v1382 = vtanh.pop %v1374
        %v1383 = vtanh.pop %v1375
        %v1384 = vtanh.pop %v1376
        %v1385 = vtanh.pop %v1377
        %v1386 = vtanh.pop %v1378
        %v1387 = vtanh.pop %v1379
        %v1388 = vtanh.pop %v1380
        %v1389 = vpack.c.bf16 %v1382, %v1381
        %v1390 = vpack.c.bf16 %v1384, %v1383
        %v1391 = vpack.c.bf16 %v1386, %v1385
        %v1392 = vpack.c.bf16 %v1388, %v1387
        %v1393 = vld [vmem:[%s8] sm:$0xf]
        %v1394 = vld [vmem:[%s8 + $0x4] sm:$0xf]
        %v1395 = vlaneseq
        %v1396 = vshrl.u32 %v1395, 7
        %v1397 = vsub.s32 3, %v1396
        %v1398 = vrot.slane %v690, %v1397
        %v1401 = vunpack.c.l.b16 %v1393
        %v1402 = vunpack.c.l.b16 %v1394
        %v1403 = vpack.c.b16 %v1402, %v1401
        %v1406 = vsel %vm784, %v1389, 0
        %v1409 = vsel %vm784, %v1390, 0
        %v1412 = vsel %vm784, %v1391, 0
        %v1415 = vsel %vm784, %v1392, 0
        %1417 = vmatprep.subr.bf16.mxu0 0
        %1418 = vmatpush1.bf16.msra.mxu0 %v1403
        %1419 = vmatprep.subr.bf16.mxu0 0
        %1420 = vmatpush1.bf16.msra.mxu0 0
        %1421 = vmatprep.subr.bf16.mxu0 0
        %1422 = vmatpush1.bf16.msra.mxu0 0
        %1423 = vmatprep.subr.bf16.mxu0 0
        %1424 = vmatpush1.bf16.msra.mxu0 0
        %1425 = vmatprep.subr.bf16.mxu0 0
        %1426 = vmatpush1.bf16.msra.mxu0 0
        %1427 = vmatprep.subr.bf16.mxu0 0
        %1428 = vmatpush1.bf16.msra.mxu0 0
        %1429 = vmatprep.subr.bf16.mxu0 0
        %1430 = vmatpush1.bf16.msra.mxu0 0
        %1431 = vmatprep.subr.bf16.mxu0 0
        %1432 = vmatpush1.bf16.msra.mxu0 0
        %1433 = vmatprep.subr.bf16.mxu0 0
        %1434 = vmatpush1.bf16.msra.mxu0 0
        %1435 = vmatprep.subr.bf16.mxu0 0
        %1436 = vmatpush1.bf16.msra.mxu0 0
        %1437 = vmatprep.subr.bf16.mxu0 0
        %1438 = vmatpush1.bf16.msra.mxu0 0
        %1439 = vmatprep.subr.bf16.mxu0 0
        %1440 = vmatpush1.bf16.msra.mxu0 0
        %1441 = vmatprep.subr.bf16.mxu0 0
        %1442 = vmatpush1.bf16.msra.mxu0 0
        %1443 = vmatprep.subr.bf16.mxu0 0
        %1444 = vmatpush1.bf16.msra.mxu0 0
        %1445 = vmatprep.subr.bf16.mxu0 0
        %1446 = vmatpush1.bf16.msra.mxu0 0
        %1447 = vmatprep.subr.bf16.mxu0 0
        %1448 = vmatpush1.bf16.msra.mxu0 0
        %1449 = vmatprep.mubr.bf16.mxu0 0
        %1450 = vmatmul.mubr.bf16.gmra.mrb[0].mxu0 %v1406
        %v1451 = vpop.f32.mrb[0].mxu0
        %v1452 = vadd.f32 %v1398, %v1451
        %v1453 = vpop.f32.mrb[0].mxu0
        %v1454 = vpop.f32.mrb[0].mxu0
        %v1455 = vadd.f32 %v1398, %v1454
        %v1456 = vpop.f32.mrb[0].mxu0
        %1457 = vmatprep.mubr.bf16.mxu0 0
        %1458 = vmatmul.mubr.bf16.gmra.mrb[0].mxu0 %v1409
        %v1459 = vpop.f32.mrb[0].mxu0
        %v1460 = vadd.f32 %v1398, %v1459
        %v1461 = vpop.f32.mrb[0].mxu0
        %v1462 = vpop.f32.mrb[0].mxu0
        %v1463 = vadd.f32 %v1398, %v1462
        %v1464 = vpop.f32.mrb[0].mxu0
        %1465 = vmatprep.mubr.bf16.mxu0 0
        %1466 = vmatmul.mubr.bf16.gmra.mrb[0].mxu0 %v1412
        %v1467 = vpop.f32.mrb[0].mxu0
        %v1468 = vadd.f32 %v1398, %v1467
        %v1469 = vpop.f32.mrb[0].mxu0
        %v1470 = vpop.f32.mrb[0].mxu0
        %v1471 = vadd.f32 %v1398, %v1470
        %v1472 = vpop.f32.mrb[0].mxu0
        %1473 = vmatprep.mubr.bf16.mxu0 0
        %1474 = vmatmul.mubr.bf16.gmra.mrb[0].mxu0 %v1415
        %v1475 = vpop.f32.mrb[0].mxu0
        %v1476 = vadd.f32 %v1398, %v1475
        %v1477 = vpop.f32.mrb[0].mxu0
        %v1478 = vpop.f32.mrb[0].mxu0
        %v1479 = vadd.f32 %v1398, %v1478
        %v1480 = vpop.f32.mrb[0].mxu0
        %1481 = vdwg.mxu0
        %v1482 = vsel %vm1015, %v1452, 0.0
        %1483 = vadd.xlane.f32.xlu0 %v1482
        %v1484 = vpop.xlane.xlu0 %1483
        %v1485 = vsel %vm1015, %v1455, 0.0
        %1486 = vadd.xlane.f32.xlu0 %v1485
        %v1487 = vpop.xlane.xlu0 %1486
        %v1488 = vsel %vm1015, %v1460, 0.0
        %1489 = vadd.xlane.f32.xlu0 %v1488
        %v1490 = vpop.xlane.xlu0 %1489
        %v1491 = vsel %vm1015, %v1463, 0.0
        %1492 = vadd.xlane.f32.xlu0 %v1491
        %v1493 = vpop.xlane.xlu0 %1492
        %v1494 = vsel %vm1015, %v1468, 0.0
        %1495 = vadd.xlane.f32.xlu0 %v1494
        %v1496 = vpop.xlane.xlu0 %1495
        %v1497 = vsel %vm1015, %v1471, 0.0
        %1498 = vadd.xlane.f32.xlu0 %v1497
        %v1499 = vpop.xlane.xlu0 %1498
        %v1500 = vsel %vm1015, %v1476, 0.0
        %1501 = vadd.xlane.f32.xlu0 %v1500
        %v1502 = vpop.xlane.xlu0 %1501
        %v1503 = vsel %vm1015, %v1479, 0.0
        %1504 = vadd.xlane.f32.xlu0 %v1503
        %v1505 = vpop.xlane.xlu0 %1504
        %v1506 = vmul.f32 %v1484, %v1040
        %v1507 = vmul.f32 %v1487, %v1040
        %v1508 = vmul.f32 %v1490, %v1040
        %v1509 = vmul.f32 %v1493, %v1040
        %v1510 = vmul.f32 %v1496, %v1040
        %v1511 = vmul.f32 %v1499, %v1040
        %v1512 = vmul.f32 %v1502, %v1040
        %v1513 = vmul.f32 %v1505, %v1040
        %v1514 = vsub.f32 %v1452, %v1506
        %v1515 = vsub.f32 %v1455, %v1507
        %v1516 = vsub.f32 %v1460, %v1508
        %v1517 = vsub.f32 %v1463, %v1509
        %v1518 = vsub.f32 %v1468, %v1510
        %v1519 = vsub.f32 %v1471, %v1511
        %v1520 = vsub.f32 %v1476, %v1512
        %v1521 = vsub.f32 %v1479, %v1513
        %v1522 = vmul.f32 %v1514, %v1514
        %v1523 = vmul.f32 %v1515, %v1515
        %v1524 = vmul.f32 %v1516, %v1516
        %v1525 = vmul.f32 %v1517, %v1517
        %v1526 = vmul.f32 %v1518, %v1518
        %v1527 = vmul.f32 %v1519, %v1519
        %v1528 = vmul.f32 %v1520, %v1520
        %v1529 = vmul.f32 %v1521, %v1521
        %v1530 = vsel %vm1015, %v1522, 0.0
        %1531 = vadd.xlane.f32.xlu0 %v1530
        %v1532 = vpop.xlane.xlu0 %1531
        %v1533 = vsel %vm1015, %v1523, 0.0
        %1534 = vadd.xlane.f32.xlu0 %v1533
        %v1535 = vpop.xlane.xlu0 %1534
        %v1536 = vsel %vm1015, %v1524, 0.0
        %1537 = vadd.xlane.f32.xlu0 %v1536
        %v1538 = vpop.xlane.xlu0 %1537
        %v1539 = vsel %vm1015, %v1525, 0.0
        %1540 = vadd.xlane.f32.xlu0 %v1539
        %v1541 = vpop.xlane.xlu0 %1540
        %v1542 = vsel %vm1015, %v1526, 0.0
        %1543 = vadd.xlane.f32.xlu0 %v1542
        %v1544 = vpop.xlane.xlu0 %1543
        %v1545 = vsel %vm1015, %v1527, 0.0
        %1546 = vadd.xlane.f32.xlu0 %v1545
        %v1547 = vpop.xlane.xlu0 %1546
        %v1548 = vsel %vm1015, %v1528, 0.0
        %1549 = vadd.xlane.f32.xlu0 %v1548
        %v1550 = vpop.xlane.xlu0 %1549
        %v1551 = vsel %vm1015, %v1529, 0.0
        %1552 = vadd.xlane.f32.xlu0 %v1551
        %v1553 = vpop.xlane.xlu0 %1552
        %v1554 = vmul.f32 %v1532, %v1040
        %v1555 = vmul.f32 %v1535, %v1040
        %v1556 = vmul.f32 %v1538, %v1040
        %v1557 = vmul.f32 %v1541, %v1040
        %v1558 = vmul.f32 %v1544, %v1040
        %v1559 = vmul.f32 %v1547, %v1040
        %v1560 = vmul.f32 %v1550, %v1040
        %v1561 = vmul.f32 %v1553, %v1040
        %v1562 = vadd.f32 %v1554, 1e-05
        %v1563 = vadd.f32 %v1555, 1e-05
        %v1564 = vadd.f32 %v1556, 1e-05
        %v1565 = vadd.f32 %v1557, 1e-05
        %v1566 = vadd.f32 %v1558, 1e-05
        %v1567 = vadd.f32 %v1559, 1e-05
        %v1568 = vadd.f32 %v1560, 1e-05
        %v1569 = vadd.f32 %v1561, 1e-05
        %v1570 = vrsqrt.pop %v1562
        %v1571 = vrsqrt.pop %v1563
        %v1572 = vrsqrt.pop %v1564
        %v1573 = vrsqrt.pop %v1565
        %v1574 = vrsqrt.pop %v1566
        %v1575 = vrsqrt.pop %v1567
        %v1576 = vrsqrt.pop %v1568
        %v1577 = vrsqrt.pop %v1569
        %v1578 = vmul.f32 %v1514, %v1570
        %v1579 = vmul.f32 %v1515, %v1571
        %v1580 = vmul.f32 %v1516, %v1572
        %v1581 = vmul.f32 %v1517, %v1573
        %v1582 = vmul.f32 %v1518, %v1574
        %v1583 = vmul.f32 %v1519, %v1575
        %v1584 = vmul.f32 %v1520, %v1576
        %v1585 = vmul.f32 %v1521, %v1577
        %v1586 = vlaneseq
        %v1587 = vshrl.u32 %v1586, 7
        %v1588 = vsub.s32 4, %v1587
        %v1589 = vrot.slane %v690, %v1588
        %v1590 = vmul.f32 %v1578, %v1589
        %v1591 = vmul.f32 %v1579, %v1589
        %v1592 = vmul.f32 %v1580, %v1589
        %v1593 = vmul.f32 %v1581, %v1589
        %v1594 = vmul.f32 %v1582, %v1589
        %v1595 = vmul.f32 %v1583, %v1589
        %v1596 = vmul.f32 %v1584, %v1589
        %v1597 = vmul.f32 %v1585, %v1589
        %v1598 = vlaneseq
        %v1599 = vshrl.u32 %v1598, 7
        %v1600 = vsub.s32 5, %v1599
        %v1601 = vrot.slane %v690, %v1600
        %v1602 = vadd.f32 %v1590, %v1601
        %v1603 = vadd.f32 %v1591, %v1601
        %v1604 = vadd.f32 %v1592, %v1601
        %v1605 = vadd.f32 %v1593, %v1601
        %v1606 = vadd.f32 %v1594, %v1601
        %v1607 = vadd.f32 %v1595, %v1601
        %v1608 = vadd.f32 %v1596, %v1601
        %v1609 = vadd.f32 %v1597, %v1601
        %1611 = vset.pattern.permute.xlu0 0
        %1612 = vperm.xlu0 %1611, %v701
        %v1613 = vpop.permute.xlu0 %1612
        %v1615 = vmul.f32 %v1613, %v1180
        %1616 = vset.pattern.permute.xlu0 1
        %1617 = vperm.xlu0 %1616, %v701
        %v1618 = vpop.permute.xlu0 %1617
        %v1620 = vmul.f32 %v1618, %v1224
        %v1621 = vadd.f32 %v1615, %v1620
        %v1622 = vadd.f32 %v1621, %v1244
        %v1623 = vsel %vm784, %v1622, 0.0
        %1624 = vadd.xlane.f32.xlu0 %v1623
        %v1625 = vpop.xlane.xlu0 %1624
        %v1626 = vmul.f32 %v1625, %v809
        %v1627 = vsub.f32 %v1622, %v1626
        %v1628 = vmul.f32 %v1627, %v1627
        %v1629 = vsel %vm784, %v1628, 0.0
        %1630 = vadd.xlane.f32.xlu0 %v1629
        %v1631 = vpop.xlane.xlu0 %1630
        %v1632 = vmul.f32 %v1631, %v809
        %v1633 = vadd.f32 %v1632, 1e-05
        %v1634 = vrsqrt.pop %v1633
        %v1635 = vmul.f32 %v1627, %v1634
        %v1636 = vmul.f32 %v1635, %v1360
        %v1637 = vadd.f32 %v1636, %v1372
        %v1638 = vtanh.pop %v1637
        %v1639 = vpack.c.bf16 %v1638, %v1638
        %v1641 = vsel %vm784, %v1639, 0
        %1643 = vmatprep.subr.bf16.mxu0 0
        %1644 = vmatpush1.bf16.msra.mxu0 %v1403
        %1645 = vmatprep.subr.bf16.mxu0 0
        %1646 = vmatpush1.bf16.msra.mxu0 0
        %1647 = vmatprep.subr.bf16.mxu0 0
        %1648 = vmatpush1.bf16.msra.mxu0 0
        %1649 = vmatprep.subr.bf16.mxu0 0
        %1650 = vmatpush1.bf16.msra.mxu0 0
        %1651 = vmatprep.subr.bf16.mxu0 0
        %1652 = vmatpush1.bf16.msra.mxu0 0
        %1653 = vmatprep.subr.bf16.mxu0 0
        %1654 = vmatpush1.bf16.msra.mxu0 0
        %1655 = vmatprep.subr.bf16.mxu0 0
        %1656 = vmatpush1.bf16.msra.mxu0 0
        %1657 = vmatprep.subr.bf16.mxu0 0
        %1658 = vmatpush1.bf16.msra.mxu0 0
        %1659 = vmatprep.subr.bf16.mxu0 0
        %1660 = vmatpush1.bf16.msra.mxu0 0
        %1661 = vmatprep.subr.bf16.mxu0 0
        %1662 = vmatpush1.bf16.msra.mxu0 0
        %1663 = vmatprep.subr.bf16.mxu0 0
        %1664 = vmatpush1.bf16.msra.mxu0 0
        %1665 = vmatprep.subr.bf16.mxu0 0
        %1666 = vmatpush1.bf16.msra.mxu0 0
        %1667 = vmatprep.subr.bf16.mxu0 0
        %1668 = vmatpush1.bf16.msra.mxu0 0
        %1669 = vmatprep.subr.bf16.mxu0 0
        %1670 = vmatpush1.bf16.msra.mxu0 0
        %1671 = vmatprep.subr.bf16.mxu0 0
        %1672 = vmatpush1.bf16.msra.mxu0 0
        %1673 = vmatprep.subr.bf16.mxu0 0
        %1674 = vmatpush1.bf16.msra.mxu0 0
        %1675 = vmatprep.mubr.bf16.mxu0 0
        %1676 = vmatmul.mubr.bf16.gmra.mrb[0].mxu0 %v1641
        %v1677 = vpop.f32.mrb[0].mxu0
        %v1678 = vadd.f32 %v1398, %v1677
        %v1679 = vpop.f32.mrb[0].mxu0
        %v1680 = vpop.f32.mrb[0].mxu0
        %v1681 = vpop.f32.mrb[0].mxu0
        %1682 = vdwg.mxu0
        %v1683 = vsel %vm1015, %v1678, 0.0
        %1684 = vadd.xlane.f32.xlu0 %v1683
        %v1685 = vpop.xlane.xlu0 %1684
        %v1686 = vmul.f32 %v1685, %v1040
        %v1687 = vsub.f32 %v1678, %v1686
        %v1688 = vmul.f32 %v1687, %v1687
        %v1689 = vsel %vm1015, %v1688, 0.0
        %1690 = vadd.xlane.f32.xlu0 %v1689
        %v1691 = vpop.xlane.xlu0 %1690
        %v1692 = vmul.f32 %v1691, %v1040
        %v1693 = vadd.f32 %v1692, 1e-05
        %v1694 = vrsqrt.pop %v1693
        %v1695 = vmul.f32 %v1687, %v1694
        %v1696 = vmul.f32 %v1695, %v1589
        %v1697 = vadd.f32 %v1696, %v1601
        %v1698 = vadd.f32 %v712, %v1137
        %v1699 = vadd.f32 %v713, %v1138
        %v1700 = vadd.f32 %v714, %v1139
        %v1701 = vadd.f32 %v715, %v1140
        %v1702 = vadd.f32 %v716, %v1141
        %v1703 = vadd.f32 %v717, %v1142
        %v1704 = vadd.f32 %v718, %v1143
        %v1705 = vadd.f32 %v719, %v1144
        %v1706 = vadd.f32 %v1698, %v1602
        %v1707 = vadd.f32 %v1699, %v1603
        %v1708 = vadd.f32 %v1700, %v1604
        %v1709 = vadd.f32 %v1701, %v1605
        %v1710 = vadd.f32 %v1702, %v1606
        %v1711 = vadd.f32 %v1703, %v1607
        %v1712 = vadd.f32 %v1704, %v1608
        %v1713 = vadd.f32 %v1705, %v1609
        %v1714 = vadd.f32 %v703, %v1697
        %v1715 = vsel %vm1015, %v1714, 0.0
        %1716 = vadd.xlane.f32.xlu0 %v1715
        %v1717 = vpop.xlane.xlu0 %1716
        %v1718 = vmul.f32 %v1717, %v1040
        %v1719 = vsub.f32 %v1714, %v1718
        %v1720 = vmul.f32 %v1719, %v1719
        %v1721 = vsel %vm1015, %v1720, 0.0
        %1722 = vadd.xlane.f32.xlu0 %v1721
        %v1723 = vpop.xlane.xlu0 %1722
        %v1724 = vmul.f32 %v1723, %v1040
        %v1725 = vadd.f32 %v1724, 1e-05
        %v1726 = vrsqrt.pop %v1725
        %v1727 = vmul.f32 %v1719, %v1726
        %v1728 = vlaneseq
        %v1729 = vshrl.u32 %v1728, 7
        %v1730 = vsub.s32 6, %v1729
        %v1731 = vrot.slane %v690, %v1730
        %v1732 = vmul.f32 %v1727, %v1731
        %v1733 = vlaneseq
        %v1734 = vshrl.u32 %v1733, 7
        %v1735 = vsub.s32 7, %v1734
        %v1736 = vrot.slane %v690, %v1735
        %v1737 = vadd.f32 %v1732, %v1736
        %v1738 = vsel %vm1015, %v1706, 0.0
        %1739 = vadd.xlane.f32.xlu0 %v1738
        %v1740 = vpop.xlane.xlu0 %1739
        %v1741 = vsel %vm1015, %v1707, 0.0
        %1742 = vadd.xlane.f32.xlu0 %v1741
        %v1743 = vpop.xlane.xlu0 %1742
        %v1744 = vsel %vm1015, %v1708, 0.0
        %1745 = vadd.xlane.f32.xlu0 %v1744
        %v1746 = vpop.xlane.xlu0 %1745
        %v1747 = vsel %vm1015, %v1709, 0.0
        %1748 = vadd.xlane.f32.xlu0 %v1747
        %v1749 = vpop.xlane.xlu0 %1748
        %v1750 = vsel %vm1015, %v1710, 0.0
        %1751 = vadd.xlane.f32.xlu0 %v1750
        %v1752 = vpop.xlane.xlu0 %1751
        %v1753 = vsel %vm1015, %v1711, 0.0
        %1754 = vadd.xlane.f32.xlu0 %v1753
        %v1755 = vpop.xlane.xlu0 %1754
        %v1756 = vsel %vm1015, %v1712, 0.0
        %1757 = vadd.xlane.f32.xlu0 %v1756
        %v1758 = vpop.xlane.xlu0 %1757
        %v1759 = vsel %vm1015, %v1713, 0.0
        %1760 = vadd.xlane.f32.xlu0 %v1759
        %v1761 = vpop.xlane.xlu0 %1760
        %v1762 = vmul.f32 %v1740, %v1040
        %v1763 = vmul.f32 %v1743, %v1040
        %v1764 = vmul.f32 %v1746, %v1040
        %v1765 = vmul.f32 %v1749, %v1040
        %v1766 = vmul.f32 %v1752, %v1040
        %v1767 = vmul.f32 %v1755, %v1040
        %v1768 = vmul.f32 %v1758, %v1040
        %v1769 = vmul.f32 %v1761, %v1040
        %v1770 = vsub.f32 %v1706, %v1762
        %v1771 = vsub.f32 %v1707, %v1763
        %v1772 = vsub.f32 %v1708, %v1764
        %v1773 = vsub.f32 %v1709, %v1765
        %v1774 = vsub.f32 %v1710, %v1766
        %v1775 = vsub.f32 %v1711, %v1767
        %v1776 = vsub.f32 %v1712, %v1768
        %v1777 = vsub.f32 %v1713, %v1769
        %v1778 = vmul.f32 %v1770, %v1770
        %v1779 = vmul.f32 %v1771, %v1771
        %v1780 = vmul.f32 %v1772, %v1772
        %v1781 = vmul.f32 %v1773, %v1773
        %v1782 = vmul.f32 %v1774, %v1774
        %v1783 = vmul.f32 %v1775, %v1775
        %v1784 = vmul.f32 %v1776, %v1776
        %v1785 = vmul.f32 %v1777, %v1777
        %v1786 = vsel %vm1015, %v1778, 0.0
        %1787 = vadd.xlane.f32.xlu0 %v1786
        %v1788 = vpop.xlane.xlu0 %1787
        %v1789 = vsel %vm1015, %v1779, 0.0
        %1790 = vadd.xlane.f32.xlu0 %v1789
        %v1791 = vpop.xlane.xlu0 %1790
        %v1792 = vsel %vm1015, %v1780, 0.0
        %1793 = vadd.xlane.f32.xlu0 %v1792
        %v1794 = vpop.xlane.xlu0 %1793
        %v1795 = vsel %vm1015, %v1781, 0.0
        %1796 = vadd.xlane.f32.xlu0 %v1795
        %v1797 = vpop.xlane.xlu0 %1796
        %v1798 = vsel %vm1015, %v1782, 0.0
        %1799 = vadd.xlane.f32.xlu0 %v1798
        %v1800 = vpop.xlane.xlu0 %1799
        %v1801 = vsel %vm1015, %v1783, 0.0
        %1802 = vadd.xlane.f32.xlu0 %v1801
        %v1803 = vpop.xlane.xlu0 %1802
        %v1804 = vsel %vm1015, %v1784, 0.0
        %1805 = vadd.xlane.f32.xlu0 %v1804
        %v1806 = vpop.xlane.xlu0 %1805
        %v1807 = vsel %vm1015, %v1785, 0.0
        %1808 = vadd.xlane.f32.xlu0 %v1807
        %v1809 = vpop.xlane.xlu0 %1808
        %v1810 = vmul.f32 %v1788, %v1040
        %v1811 = vmul.f32 %v1791, %v1040
        %v1812 = vmul.f32 %v1794, %v1040
        %v1813 = vmul.f32 %v1797, %v1040
        %v1814 = vmul.f32 %v1800, %v1040
        %v1815 = vmul.f32 %v1803, %v1040
        %v1816 = vmul.f32 %v1806, %v1040
        %v1817 = vmul.f32 %v1809, %v1040
        %v1818 = vadd.f32 %v1810, 1e-05
        %v1819 = vadd.f32 %v1811, 1e-05
        %v1820 = vadd.f32 %v1812, 1e-05
        %v1821 = vadd.f32 %v1813, 1e-05
        %v1822 = vadd.f32 %v1814, 1e-05
        %v1823 = vadd.f32 %v1815, 1e-05
        %v1824 = vadd.f32 %v1816, 1e-05
        %v1825 = vadd.f32 %v1817, 1e-05
        %v1826 = vrsqrt.pop %v1818
        %v1827 = vrsqrt.pop %v1819
        %v1828 = vrsqrt.pop %v1820
        %v1829 = vrsqrt.pop %v1821
        %v1830 = vrsqrt.pop %v1822
        %v1831 = vrsqrt.pop %v1823
        %v1832 = vrsqrt.pop %v1824
        %v1833 = vrsqrt.pop %v1825
        %v1834 = vmul.f32 %v1770, %v1826
        %v1835 = vmul.f32 %v1771, %v1827
        %v1836 = vmul.f32 %v1772, %v1828
        %v1837 = vmul.f32 %v1773, %v1829
        %v1838 = vmul.f32 %v1774, %v1830
        %v1839 = vmul.f32 %v1775, %v1831
        %v1840 = vmul.f32 %v1776, %v1832
        %v1841 = vmul.f32 %v1777, %v1833
        %v1842 = vlaneseq
        %v1843 = vshrl.u32 %v1842, 7
        %v1844 = vsub.s32 0, %v1843
        %v1845 = vrot.slane %v691, %v1844
        %v1846 = vmul.f32 %v1834, %v1845
        %v1847 = vmul.f32 %v1835, %v1845
        %v1848 = vmul.f32 %v1836, %v1845
        %v1849 = vmul.f32 %v1837, %v1845
        %v1850 = vmul.f32 %v1838, %v1845
        %v1851 = vmul.f32 %v1839, %v1845
        %v1852 = vmul.f32 %v1840, %v1845
        %v1853 = vmul.f32 %v1841, %v1845
        %v1854 = vlaneseq
        %v1855 = vshrl.u32 %v1854, 7
        %v1856 = vsub.s32 1, %v1855
        %v1857 = vrot.slane %v691, %v1856
        %v1858 = vadd.f32 %v1846, %v1857
        %v1859 = vadd.f32 %v1847, %v1857
        %v1860 = vadd.f32 %v1848, %v1857
        %v1861 = vadd.f32 %v1849, %v1857
        %v1862 = vadd.f32 %v1850, %v1857
        %v1863 = vadd.f32 %v1851, %v1857
        %v1864 = vadd.f32 %v1852, %v1857
        %v1865 = vadd.f32 %v1853, %v1857
        %v1866 = vpack.c.bf16 %v1737, %v1737
        %v1867 = vld [vmem:[%s9] sm:$0xf]
        %v1868 = vld [vmem:[%s9 + $0x4] sm:$0xf]
        %v1869 = vld [vmem:[%s9 + $0x8] sm:$0xf]
        %v1870 = vld [vmem:[%s9 + $0xc] sm:$0xf]
        %v1871 = vlaneseq
        %v1872 = vshrl.u32 %v1871, 7
        %v1873 = vsub.s32 4, %v1872
        %v1874 = vrot.slane %v691, %v1873
        %v1879 = vunpack.c.l.b16 %v1867
        %v1880 = vunpack.c.l.b16 %v1868
        %v1881 = vunpack.c.l.b16 %v1869
        %v1882 = vunpack.c.l.b16 %v1870
        %v1883 = vpack.c.b16 %v1880, %v1879
        %v1884 = vpack.c.b16 %v1882, %v1881
        %v1888 = vsel %vm1015, %v1866, 0
        %1890 = vmatprep.subr.bf16.mxu0 0
        %1891 = vmatpush1.bf16.msra.mxu0 %v1883
        %1892 = vmatprep.subr.bf16.mxu0 0
        %1893 = vmatpush1.bf16.msra.mxu0 %v1884
        %1894 = vmatprep.subr.bf16.mxu0 0
        %1895 = vmatpush1.bf16.msra.mxu0 0
        %1896 = vmatprep.subr.bf16.mxu0 0
        %1897 = vmatpush1.bf16.msra.mxu0 0
        %1898 = vmatprep.subr.bf16.mxu0 0
        %1899 = vmatpush1.bf16.msra.mxu0 0
        %1900 = vmatprep.subr.bf16.mxu0 0
        %1901 = vmatpush1.bf16.msra.mxu0 0
        %1902 = vmatprep.subr.bf16.mxu0 0
        %1903 = vmatpush1.bf16.msra.mxu0 0
        %1904 = vmatprep.subr.bf16.mxu0 0
        %1905 = vmatpush1.bf16.msra.mxu0 0
        %1906 = vmatprep.subr.bf16.mxu0 0
        %1907 = vmatpush1.bf16.msra.mxu0 0
        %1908 = vmatprep.subr.bf16.mxu0 0
        %1909 = vmatpush1.bf16.msra.mxu0 0
        %1910 = vmatprep.subr.bf16.mxu0 0
        %1911 = vmatpush1.bf16.msra.mxu0 0
        %1912 = vmatprep.subr.bf16.mxu0 0
        %1913 = vmatpush1.bf16.msra.mxu0 0
        %1914 = vmatprep.subr.bf16.mxu0 0
        %1915 = vmatpush1.bf16.msra.mxu0 0
        %1916 = vmatprep.subr.bf16.mxu0 0
        %1917 = vmatpush1.bf16.msra.mxu0 0
        %1918 = vmatprep.subr.bf16.mxu0 0
        %1919 = vmatpush1.bf16.msra.mxu0 0
        %1920 = vmatprep.subr.bf16.mxu0 0
        %1921 = vmatpush1.bf16.msra.mxu0 0
        %1922 = vmatprep.mubr.bf16.mxu0 0
        %1923 = vmatmul.mubr.bf16.gmra.mrb[0].mxu0 %v1888
        %v1924 = vpop.f32.mrb[0].mxu0
        %v1925 = vadd.f32 %v1874, %v1924
        %v1926 = vpop.f32.mrb[0].mxu0
        %v1927 = vpop.f32.mrb[0].mxu0
        %v1928 = vpop.f32.mrb[0].mxu0
        %1929 = vdwg.mxu0
        %v1930 = vpack.c.bf16 %v1859, %v1858
        %v1931 = vpack.c.bf16 %v1861, %v1860
        %v1932 = vpack.c.bf16 %v1863, %v1862
        %v1933 = vpack.c.bf16 %v1865, %v1864
        %v1934 = vld [vmem:[%s10] sm:$0xf]
        %v1935 = vld [vmem:[%s10 + $0x4] sm:$0xf]
        %v1936 = vld [vmem:[%s10 + $0x8] sm:$0xf]
        %v1937 = vld [vmem:[%s10 + $0xc] sm:$0xf]
        %v1942 = vunpack.c.l.b16 %v1934
        %v1943 = vunpack.c.l.b16 %v1935
        %v1944 = vunpack.c.l.b16 %v1936
        %v1945 = vunpack.c.l.b16 %v1937
        %v1946 = vpack.c.b16 %v1943, %v1942
        %v1947 = vpack.c.b16 %v1945, %v1944
        %v1951 = vsel %vm1015, %v1930, 0
        %v1954 = vsel %vm1015, %v1931, 0
        %v1957 = vsel %vm1015, %v1932, 0
        %v1960 = vsel %vm1015, %v1933, 0
        %1962 = vmatprep.subr.bf16.mxu0 0
        %1963 = vmatpush1.bf16.msra.mxu0 %v1946
        %1964 = vmatprep.subr.bf16.mxu0 0
        %1965 = vmatpush1.bf16.msra.mxu0 %v1947
        %1966 = vmatprep.subr.bf16.mxu0 0
        %1967 = vmatpush1.bf16.msra.mxu0 0
        %1968 = vmatprep.subr.bf16.mxu0 0
        %1969 = vmatpush1.bf16.msra.mxu0 0
        %1970 = vmatprep.subr.bf16.mxu0 0
        %1971 = vmatpush1.bf16.msra.mxu0 0
        %1972 = vmatprep.subr.bf16.mxu0 0
        %1973 = vmatpush1.bf16.msra.mxu0 0
        %1974 = vmatprep.subr.bf16.mxu0 0
        %1975 = vmatpush1.bf16.msra.mxu0 0
        %1976 = vmatprep.subr.bf16.mxu0 0
        %1977 = vmatpush1.bf16.msra.mxu0 0
        %1978 = vmatprep.subr.bf16.mxu0 0
        %1979 = vmatpush1.bf16.msra.mxu0 0
        %1980 = vmatprep.subr.bf16.mxu0 0
        %1981 = vmatpush1.bf16.msra.mxu0 0
        %1982 = vmatprep.subr.bf16.mxu0 0
        %1983 = vmatpush1.bf16.msra.mxu0 0
        %1984 = vmatprep.subr.bf16.mxu0 0
        %1985 = vmatpush1.bf16.msra.mxu0 0
        %1986 = vmatprep.subr.bf16.mxu0 0
        %1987 = vmatpush1.bf16.msra.mxu0 0
        %1988 = vmatprep.subr.bf16.mxu0 0
        %1989 = vmatpush1.bf16.msra.mxu0 0
        %1990 = vmatprep.subr.bf16.mxu0 0
        %1991 = vmatpush1.bf16.msra.mxu0 0
        %1992 = vmatprep.subr.bf16.mxu0 0
        %1993 = vmatpush1.bf16.msra.mxu0 0
        %1994 = vmatprep.mubr.bf16.mxu0 0
        %1995 = vmatmul.mubr.bf16.gmra.mrb[0].mxu0 %v1951
        %v1996 = vpop.f32.mrb[0].mxu0
        %v1997 = vadd.f32 0.0, %v1996
        %v1998 = vpop.f32.mrb[0].mxu0
        %v1999 = vpop.f32.mrb[0].mxu0
        %v2000 = vadd.f32 0.0, %v1999
        %v2001 = vpop.f32.mrb[0].mxu0
        %2002 = vmatprep.mubr.bf16.mxu0 0
        %2003 = vmatmul.mubr.bf16.gmra.mrb[0].mxu0 %v1954
        %v2004 = vpop.f32.mrb[0].mxu0
        %v2005 = vadd.f32 0.0, %v2004
        %v2006 = vpop.f32.mrb[0].mxu0
        %v2007 = vpop.f32.mrb[0].mxu0
        %v2008 = vadd.f32 0.0, %v2007
        %v2009 = vpop.f32.mrb[0].mxu0
        %2010 = vmatprep.mubr.bf16.mxu0 0
        %2011 = vmatmul.mubr.bf16.gmra.mrb[0].mxu0 %v1957
        %v2012 = vpop.f32.mrb[0].mxu0
        %v2013 = vadd.f32 0.0, %v2012
        %v2014 = vpop.f32.mrb[0].mxu0
        %v2015 = vpop.f32.mrb[0].mxu0
        %v2016 = vadd.f32 0.0, %v2015
        %v2017 = vpop.f32.mrb[0].mxu0
        %2018 = vmatprep.mubr.bf16.mxu0 0
        %2019 = vmatmul.mubr.bf16.gmra.mrb[0].mxu0 %v1960
        %v2020 = vpop.f32.mrb[0].mxu0
        %v2021 = vadd.f32 0.0, %v2020
        %v2022 = vpop.f32.mrb[0].mxu0
        %v2023 = vpop.f32.mrb[0].mxu0
        %v2024 = vadd.f32 0.0, %v2023
        %v2025 = vpop.f32.mrb[0].mxu0
        %2026 = vdwg.mxu0
        %v2027 = vlaneseq
        %v2028 = vshrl.u32 %v2027, 7
        %v2029 = vsub.s32 5, %v2028
        %v2030 = vrot.slane %v691, %v2029
        %v2031 = vadd.f32 %v1997, %v2030
        %v2032 = vadd.f32 %v2000, %v2030
        %v2033 = vadd.f32 %v2005, %v2030
        %v2034 = vadd.f32 %v2008, %v2030
        %v2035 = vadd.f32 %v2013, %v2030
        %v2036 = vadd.f32 %v2016, %v2030
        %v2037 = vadd.f32 %v2021, %v2030
        %v2038 = vadd.f32 %v2024, %v2030
        %v2039 = vlaneseq
        %v2040 = vshrl.u32 %v2039, 7
        %v2041 = vsub.s32 6, %v2040
        %v2042 = vrot.slane %v691, %v2041
        %2044 = vrot.lane.b32.xlu0 %v2042, 32
        %v2045 = vpop.permute.xlu0 %2044
        %v2047 = vadd.f32 %v1997, %v2045
        %v2048 = vadd.f32 %v2000, %v2045
        %v2049 = vadd.f32 %v2005, %v2045
        %v2050 = vadd.f32 %v2008, %v2045
        %v2051 = vadd.f32 %v2013, %v2045
        %v2052 = vadd.f32 %v2016, %v2045
        %v2053 = vadd.f32 %v2021, %v2045
        %v2054 = vadd.f32 %v2024, %v2045
        %v2056 = vcombine.high %v1925, %v1925
        %v2058 = vunpack.c.l.s4 1966171168
        %v2059 = vunpack.c.0.s8 %v2058
        %v2060 = vlaneseq
        %v2061 = vshrl.u32 %v2060, 7
        %v2062 = vsub.s32 %v2059, %v2061
        %v2063 = vrot.slane %v1925, %v2062
        %v2065 = vunpack.c.l.s4 1966171168
        %v2066 = vunpack.c.0.s8 %v2065
        %v2067 = vlaneseq
        %v2068 = vshrl.u32 %v2067, 7
        %v2069 = vsub.s32 %v2066, %v2068
        %v2070 = vrot.slane %v2056, %v2069
        %v2071 = vcombine.high %v2063, %v2063
        %v2072 = vcombine.high %v2070, %v2070
        %v2074 = vunpack.c.l.s4 1966171168
        %v2075 = vunpack.c.0.s8 %v2074
        %v2076 = vlaneseq
        %v2077 = vshrl.u32 %v2076, 7
        %v2078 = vsub.s32 %v2075, %v2077
        %v2079 = vrot.slane %v2063, %v2078
        %v2081 = vunpack.c.l.s4 1966171168
        %v2082 = vunpack.c.0.s8 %v2081
        %v2083 = vlaneseq
        %v2084 = vshrl.u32 %v2083, 7
        %v2085 = vsub.s32 %v2082, %v2084
        %v2086 = vrot.slane %v2070, %v2085
        %v2088 = vunpack.c.l.s4 1966171168
        %v2089 = vunpack.c.0.s8 %v2088
        %v2090 = vlaneseq
        %v2091 = vshrl.u32 %v2090, 7
        %v2092 = vsub.s32 %v2089, %v2091
        %v2093 = vrot.slane %v2071, %v2092
        %v2095 = vunpack.c.l.s4 1966171168
        %v2096 = vunpack.c.0.s8 %v2095
        %v2097 = vlaneseq
        %v2098 = vshrl.u32 %v2097, 7
        %v2099 = vsub.s32 %v2096, %v2098
        %v2100 = vrot.slane %v2072, %v2099
        %v2101 = vcombine.high %v2079, %v2079
        %v2102 = vcombine.high %v2086, %v2086
        %v2103 = vcombine.high %v2093, %v2093
        %v2104 = vcombine.high %v2100, %v2100
        %v2105 = vlaneseq
        %v2106 = vshrl.u32 %v2105, 7
        %v2107 = vsub.s32 0, %v2106
        %v2108 = vrot.slane %v2079, %v2107
        %v2109 = vlaneseq
        %v2110 = vshrl.u32 %v2109, 7
        %v2111 = vsub.s32 0, %v2110
        %v2112 = vrot.slane %v2093, %v2111
        %v2113 = vlaneseq
        %v2114 = vshrl.u32 %v2113, 7
        %v2115 = vsub.s32 0, %v2114
        %v2116 = vrot.slane %v2101, %v2115
        %v2117 = vlaneseq
        %v2118 = vshrl.u32 %v2117, 7
        %v2119 = vsub.s32 0, %v2118
        %v2120 = vrot.slane %v2103, %v2119
        %v2121 = vlaneseq
        %v2122 = vshrl.u32 %v2121, 7
        %v2123 = vsub.s32 0, %v2122
        %v2124 = vrot.slane %v2086, %v2123
        %v2125 = vlaneseq
        %v2126 = vshrl.u32 %v2125, 7
        %v2127 = vsub.s32 0, %v2126
        %v2128 = vrot.slane %v2100, %v2127
        %v2129 = vlaneseq
        %v2130 = vshrl.u32 %v2129, 7
        %v2131 = vsub.s32 0, %v2130
        %v2132 = vrot.slane %v2102, %v2131
        %v2133 = vlaneseq
        %v2134 = vshrl.u32 %v2133, 7
        %v2135 = vsub.s32 0, %v2134
        %v2136 = vrot.slane %v2104, %v2135
        %v2145 = vmul.f32 %v2031, %v2108
        %v2146 = vmul.f32 %v2032, %v2112
        %v2147 = vmul.f32 %v2033, %v2116
        %v2148 = vmul.f32 %v2034, %v2120
        %v2149 = vmul.f32 %v2035, %v2124
        %v2150 = vmul.f32 %v2036, %v2128
        %v2151 = vmul.f32 %v2037, %v2132
        %v2152 = vmul.f32 %v2038, %v2136
        %v2153 = vpack.c.bf16 %v2146, %v2145
        %v2154 = vpack.c.bf16 %v2148, %v2147
        %v2155 = vpack.c.bf16 %v2150, %v2149
        %v2156 = vpack.c.bf16 %v2152, %v2151
        %v2157 = vld [vmem:[%s16] sm:$0xf]
        %v2158 = vld [vmem:[%s16 + $0x4] sm:$0xf]
        %v2159 = vld [vmem:[%s16 + $0x8] sm:$0xf]
        %v2160 = vld [vmem:[%s16 + $0xc] sm:$0xf]
        %v2165 = vunpack.c.l.b16 %v2157
        %v2166 = vunpack.c.l.b16 %v2158
        %v2167 = vunpack.c.l.b16 %v2159
        %v2168 = vunpack.c.l.b16 %v2160
        %v2169 = vpack.c.b16 %v2166, %v2165
        %v2170 = vpack.c.b16 %v2168, %v2167
        %v2174 = vsel %vm1015, %v2153, 0
        %v2177 = vsel %vm1015, %v2154, 0
        %v2180 = vsel %vm1015, %v2155, 0
        %v2183 = vsel %vm1015, %v2156, 0
        %2185 = vmatprep.subr.bf16.mxu0 0
        %2186 = vmatpush1.bf16.msra.mxu0 %v2169
        %2187 = vmatprep.subr.bf16.mxu0 0
        %2188 = vmatpush1.bf16.msra.mxu0 %v2170
        %2189 = vmatprep.subr.bf16.mxu0 0
        %2190 = vmatpush1.bf16.msra.mxu0 0
        %2191 = vmatprep.subr.bf16.mxu0 0
        %2192 = vmatpush1.bf16.msra.mxu0 0
        %2193 = vmatprep.subr.bf16.mxu0 0
        %2194 = vmatpush1.bf16.msra.mxu0 0
        %2195 = vmatprep.subr.bf16.mxu0 0
        %2196 = vmatpush1.bf16.msra.mxu0 0
        %2197 = vmatprep.subr.bf16.mxu0 0
        %2198 = vmatpush1.bf16.msra.mxu0 0
        %2199 = vmatprep.subr.bf16.mxu0 0
        %2200 = vmatpush1.bf16.msra.mxu0 0
        %2201 = vmatprep.subr.bf16.mxu0 0
        %2202 = vmatpush1.bf16.msra.mxu0 0
        %2203 = vmatprep.subr.bf16.mxu0 0
        %2204 = vmatpush1.bf16.msra.mxu0 0
        %2205 = vmatprep.subr.bf16.mxu0 0
        %2206 = vmatpush1.bf16.msra.mxu0 0
        %2207 = vmatprep.subr.bf16.mxu0 0
        %2208 = vmatpush1.bf16.msra.mxu0 0
        %2209 = vmatprep.subr.bf16.mxu0 0
        %2210 = vmatpush1.bf16.msra.mxu0 0
        %2211 = vmatprep.subr.bf16.mxu0 0
        %2212 = vmatpush1.bf16.msra.mxu0 0
        %2213 = vmatprep.subr.bf16.mxu0 0
        %2214 = vmatpush1.bf16.msra.mxu0 0
        %2215 = vmatprep.subr.bf16.mxu0 0
        %2216 = vmatpush1.bf16.msra.mxu0 0
        %2217 = vmatprep.mubr.bf16.mxu0 0
        %2218 = vmatmul.mubr.bf16.gmra.mrb[0].mxu0 %v2174
        %v2219 = vpop.f32.mrb[0].mxu0
        %v2220 = vadd.f32 0.0, %v2219
        %v2221 = vpop.f32.mrb[0].mxu0
        %v2222 = vpop.f32.mrb[0].mxu0
        %v2223 = vadd.f32 0.0, %v2222
        %v2224 = vpop.f32.mrb[0].mxu0
        %2225 = vmatprep.mubr.bf16.mxu0 0
        %2226 = vmatmul.mubr.bf16.gmra.mrb[0].mxu0 %v2177
        %v2227 = vpop.f32.mrb[0].mxu0
        %v2228 = vadd.f32 0.0, %v2227
        %v2229 = vpop.f32.mrb[0].mxu0
        %v2230 = vpop.f32.mrb[0].mxu0
        %v2231 = vadd.f32 0.0, %v2230
        %v2232 = vpop.f32.mrb[0].mxu0
        %2233 = vmatprep.mubr.bf16.mxu0 0
        %2234 = vmatmul.mubr.bf16.gmra.mrb[0].mxu0 %v2180
        %v2235 = vpop.f32.mrb[0].mxu0
        %v2236 = vadd.f32 0.0, %v2235
        %v2237 = vpop.f32.mrb[0].mxu0
        %v2238 = vpop.f32.mrb[0].mxu0
        %v2239 = vadd.f32 0.0, %v2238
        %v2240 = vpop.f32.mrb[0].mxu0
        %2241 = vmatprep.mubr.bf16.mxu0 0
        %2242 = vmatmul.mubr.bf16.gmra.mrb[0].mxu0 %v2183
        %v2243 = vpop.f32.mrb[0].mxu0
        %v2244 = vadd.f32 0.0, %v2243
        %v2245 = vpop.f32.mrb[0].mxu0
        %v2246 = vpop.f32.mrb[0].mxu0
        %v2247 = vadd.f32 0.0, %v2246
        %v2248 = vpop.f32.mrb[0].mxu0
        %2249 = vdwg.mxu0
        %v2250 = vmax.f32 %v2220, -10.0
        %v2251 = vmax.f32 %v2223, -10.0
        %v2252 = vmax.f32 %v2228, -10.0
        %v2253 = vmax.f32 %v2231, -10.0
        %v2254 = vmax.f32 %v2236, -10.0
        %v2255 = vmax.f32 %v2239, -10.0
        %v2256 = vmax.f32 %v2244, -10.0
        %v2257 = vmax.f32 %v2247, -10.0
        %v2258 = vmin.f32 %v2250, 10.0
        %v2259 = vmin.f32 %v2251, 10.0
        %v2260 = vmin.f32 %v2252, 10.0
        %v2261 = vmin.f32 %v2253, 10.0
        %v2262 = vmin.f32 %v2254, 10.0
        %v2263 = vmin.f32 %v2255, 10.0
        %v2264 = vmin.f32 %v2256, 10.0
        %v2265 = vmin.f32 %v2257, 10.0
        %v2266 = vmul.f32 %v2258, 0.35355327
        %v2267 = vmul.f32 %v2259, 0.35355327
        %v2268 = vmul.f32 %v2260, 0.35355327
        %v2269 = vmul.f32 %v2261, 0.35355327
        %v2270 = vmul.f32 %v2262, 0.35355327
        %v2271 = vmul.f32 %v2263, 0.35355327
        %v2272 = vmul.f32 %v2264, 0.35355327
        %v2273 = vmul.f32 %v2265, 0.35355327
        %vm2274 = vcmask 31744
        %v2275 = vsel %vm2274, %v2266, -inf
        %v2276 = vrot.slane %v2275, 4
        %v2277 = vmax.f32 %v2275, %v2276
        %v2278 = vrot.slane %v2277, 2
        %v2279 = vmax.f32 %v2277, %v2278
        %v2280 = vrot.slane %v2279, 1
        %v2281 = vmax.f32 %v2279, %v2280
        %v2282 = vsel %vm2274, %v2267, -inf
        %v2283 = vrot.slane %v2282, 4
        %v2284 = vmax.f32 %v2282, %v2283
        %v2285 = vrot.slane %v2284, 2
        %v2286 = vmax.f32 %v2284, %v2285
        %v2287 = vrot.slane %v2286, 1
        %v2288 = vmax.f32 %v2286, %v2287
        %v2289 = vsel %vm2274, %v2268, -inf
        %v2290 = vrot.slane %v2289, 4
        %v2291 = vmax.f32 %v2289, %v2290
        %v2292 = vrot.slane %v2291, 2
        %v2293 = vmax.f32 %v2291, %v2292
        %v2294 = vrot.slane %v2293, 1
        %v2295 = vmax.f32 %v2293, %v2294
        %v2296 = vsel %vm2274, %v2269, -inf
        %v2297 = vrot.slane %v2296, 4
        %v2298 = vmax.f32 %v2296, %v2297
        %v2299 = vrot.slane %v2298, 2
        %v2300 = vmax.f32 %v2298, %v2299
        %v2301 = vrot.slane %v2300, 1
        %v2302 = vmax.f32 %v2300, %v2301
        %v2303 = vsel %vm2274, %v2270, -inf
        %v2304 = vrot.slane %v2303, 4
        %v2305 = vmax.f32 %v2303, %v2304
        %v2306 = vrot.slane %v2305, 2
        %v2307 = vmax.f32 %v2305, %v2306
        %v2308 = vrot.slane %v2307, 1
        %v2309 = vmax.f32 %v2307, %v2308
        %v2310 = vsel %vm2274, %v2271, -inf
        %v2311 = vrot.slane %v2310, 4
        %v2312 = vmax.f32 %v2310, %v2311
        %v2313 = vrot.slane %v2312, 2
        %v2314 = vmax.f32 %v2312, %v2313
        %v2315 = vrot.slane %v2314, 1
        %v2316 = vmax.f32 %v2314, %v2315
        %v2317 = vsel %vm2274, %v2272, -inf
        %v2318 = vrot.slane %v2317, 4
        %v2319 = vmax.f32 %v2317, %v2318
        %v2320 = vrot.slane %v2319, 2
        %v2321 = vmax.f32 %v2319, %v2320
        %v2322 = vrot.slane %v2321, 1
        %v2323 = vmax.f32 %v2321, %v2322
        %v2324 = vsel %vm2274, %v2273, -inf
        %v2325 = vrot.slane %v2324, 4
        %v2326 = vmax.f32 %v2324, %v2325
        %v2327 = vrot.slane %v2326, 2
        %v2328 = vmax.f32 %v2326, %v2327
        %v2329 = vrot.slane %v2328, 1
        %v2330 = vmax.f32 %v2328, %v2329
        %v2331 = vsub.f32 %v2266, %v2281
        %v2332 = vsub.f32 %v2267, %v2288
        %v2333 = vsub.f32 %v2268, %v2295
        %v2334 = vsub.f32 %v2269, %v2302
        %v2335 = vsub.f32 %v2270, %v2309
        %v2336 = vsub.f32 %v2271, %v2316
        %v2337 = vsub.f32 %v2272, %v2323
        %v2338 = vsub.f32 %v2273, %v2330
        %v2339 = vmul.f32 %v2331, 1.442695
        %v2340 = vpow.pop %v2339
        %v2341 = vmul.f32 %v2332, 1.442695
        %v2342 = vpow.pop %v2341
        %v2343 = vmul.f32 %v2333, 1.442695
        %v2344 = vpow.pop %v2343
        %v2345 = vmul.f32 %v2334, 1.442695
        %v2346 = vpow.pop %v2345
        %v2347 = vmul.f32 %v2335, 1.442695
        %v2348 = vpow.pop %v2347
        %v2349 = vmul.f32 %v2336, 1.442695
        %v2350 = vpow.pop %v2349
        %v2351 = vmul.f32 %v2337, 1.442695
        %v2352 = vpow.pop %v2351
        %v2353 = vmul.f32 %v2338, 1.442695
        %v2354 = vpow.pop %v2353
        %v2355 = vsel %vm2274, %v2340, 0.0
        %v2356 = vrot.slane %v2355, 4
        %v2357 = vadd.f32 %v2355, %v2356
        %v2358 = vrot.slane %v2357, 2
        %v2359 = vadd.f32 %v2357, %v2358
        %v2360 = vrot.slane %v2359, 1
        %v2361 = vadd.f32 %v2359, %v2360
        %v2362 = vsel %vm2274, %v2342, 0.0
        %v2363 = vrot.slane %v2362, 4
        %v2364 = vadd.f32 %v2362, %v2363
        %v2365 = vrot.slane %v2364, 2
        %v2366 = vadd.f32 %v2364, %v2365
        %v2367 = vrot.slane %v2366, 1
        %v2368 = vadd.f32 %v2366, %v2367
        %v2369 = vsel %vm2274, %v2344, 0.0
        %v2370 = vrot.slane %v2369, 4
        %v2371 = vadd.f32 %v2369, %v2370
        %v2372 = vrot.slane %v2371, 2
        %v2373 = vadd.f32 %v2371, %v2372
        %v2374 = vrot.slane %v2373, 1
        %v2375 = vadd.f32 %v2373, %v2374
        %v2376 = vsel %vm2274, %v2346, 0.0
        %v2377 = vrot.slane %v2376, 4
        %v2378 = vadd.f32 %v2376, %v2377
        %v2379 = vrot.slane %v2378, 2
        %v2380 = vadd.f32 %v2378, %v2379
        %v2381 = vrot.slane %v2380, 1
        %v2382 = vadd.f32 %v2380, %v2381
        %v2383 = vsel %vm2274, %v2348, 0.0
        %v2384 = vrot.slane %v2383, 4
        %v2385 = vadd.f32 %v2383, %v2384
        %v2386 = vrot.slane %v2385, 2
        %v2387 = vadd.f32 %v2385, %v2386
        %v2388 = vrot.slane %v2387, 1
        %v2389 = vadd.f32 %v2387, %v2388
        %v2390 = vsel %vm2274, %v2350, 0.0
        %v2391 = vrot.slane %v2390, 4
        %v2392 = vadd.f32 %v2390, %v2391
        %v2393 = vrot.slane %v2392, 2
        %v2394 = vadd.f32 %v2392, %v2393
        %v2395 = vrot.slane %v2394, 1
        %v2396 = vadd.f32 %v2394, %v2395
        %v2397 = vsel %vm2274, %v2352, 0.0
        %v2398 = vrot.slane %v2397, 4
        %v2399 = vadd.f32 %v2397, %v2398
        %v2400 = vrot.slane %v2399, 2
        %v2401 = vadd.f32 %v2399, %v2400
        %v2402 = vrot.slane %v2401, 1
        %v2403 = vadd.f32 %v2401, %v2402
        %v2404 = vsel %vm2274, %v2354, 0.0
        %v2405 = vrot.slane %v2404, 4
        %v2406 = vadd.f32 %v2404, %v2405
        %v2407 = vrot.slane %v2406, 2
        %v2408 = vadd.f32 %v2406, %v2407
        %v2409 = vrot.slane %v2408, 1
        %v2410 = vadd.f32 %v2408, %v2409
        %v2411 = vadd.f32 %v2361, 1e-06
        %v2412 = vadd.f32 %v2368, 1e-06
        %v2413 = vadd.f32 %v2375, 1e-06
        %v2414 = vadd.f32 %v2382, 1e-06
        %v2415 = vadd.f32 %v2389, 1e-06
        %v2416 = vadd.f32 %v2396, 1e-06
        %v2417 = vadd.f32 %v2403, 1e-06
        %v2418 = vadd.f32 %v2410, 1e-06
        %v2419 = vrcp.pop %v2411
        %v2420 = vrcp.pop %v2412
        %v2421 = vrcp.pop %v2413
        %v2422 = vrcp.pop %v2414
        %v2423 = vrcp.pop %v2415
        %v2424 = vrcp.pop %v2416
        %v2425 = vrcp.pop %v2417
        %v2426 = vrcp.pop %v2418
        %v2427 = vmul.f32 %v2340, %v2419
        %v2428 = vmul.f32 %v2342, %v2420
        %v2429 = vmul.f32 %v2344, %v2421
        %v2430 = vmul.f32 %v2346, %v2422
        %v2431 = vmul.f32 %v2348, %v2423
        %v2432 = vmul.f32 %v2350, %v2424
        %v2433 = vmul.f32 %v2352, %v2425
        %v2434 = vmul.f32 %v2354, %v2426
        %vm2435 = vcmp.ne.f32.partialorder %v2427, %v2427
        %vm2436 = vcmp.ne.f32.partialorder %v2428, %v2428
        %vm2437 = vcmp.ne.f32.partialorder %v2429, %v2429
        %vm2438 = vcmp.ne.f32.partialorder %v2430, %v2430
        %vm2439 = vcmp.ne.f32.partialorder %v2431, %v2431
        %vm2440 = vcmp.ne.f32.partialorder %v2432, %v2432
        %vm2441 = vcmp.ne.f32.partialorder %v2433, %v2433
        %vm2442 = vcmp.ne.f32.partialorder %v2434, %v2434
        %v2443 = vsel %vm2435, 0.0, %v2427
        %v2444 = vsel %vm2436, 0.0, %v2428
        %v2445 = vsel %vm2437, 0.0, %v2429
        %v2446 = vsel %vm2438, 0.0, %v2430
        %v2447 = vsel %vm2439, 0.0, %v2431
        %v2448 = vsel %vm2440, 0.0, %v2432
        %v2449 = vsel %vm2441, 0.0, %v2433
        %v2450 = vsel %vm2442, 0.0, %v2434
        %vm2451 = vcmp.eq.f32.partialorder %v2443, inf
        %vm2452 = vcmp.eq.f32.partialorder %v2444, inf
        %vm2453 = vcmp.eq.f32.partialorder %v2445, inf
        %vm2454 = vcmp.eq.f32.partialorder %v2446, inf
        %vm2455 = vcmp.eq.f32.partialorder %v2447, inf
        %vm2456 = vcmp.eq.f32.partialorder %v2448, inf
        %vm2457 = vcmp.eq.f32.partialorder %v2449, inf
        %vm2458 = vcmp.eq.f32.partialorder %v2450, inf
        %v2459 = vsel %vm2451, 3.4028235e+38, %v2443
        %v2460 = vsel %vm2452, 3.4028235e+38, %v2444
        %v2461 = vsel %vm2453, 3.4028235e+38, %v2445
        %v2462 = vsel %vm2454, 3.4028235e+38, %v2446
        %v2463 = vsel %vm2455, 3.4028235e+38, %v2447
        %v2464 = vsel %vm2456, 3.4028235e+38, %v2448
        %v2465 = vsel %vm2457, 3.4028235e+38, %v2449
        %v2466 = vsel %vm2458, 3.4028235e+38, %v2450
        %vm2467 = vcmp.eq.f32.partialorder %v2459, -inf
        %vm2468 = vcmp.eq.f32.partialorder %v2460, -inf
        %vm2469 = vcmp.eq.f32.partialorder %v2461, -inf
        %vm2470 = vcmp.eq.f32.partialorder %v2462, -inf
        %vm2471 = vcmp.eq.f32.partialorder %v2463, -inf
        %vm2472 = vcmp.eq.f32.partialorder %v2464, -inf
        %vm2473 = vcmp.eq.f32.partialorder %v2465, -inf
        %vm2474 = vcmp.eq.f32.partialorder %v2466, -inf
        %v2475 = vsel %vm2467, -3.4028235e+38, %v2459
        %v2476 = vsel %vm2468, -3.4028235e+38, %v2460
        %v2477 = vsel %vm2469, -3.4028235e+38, %v2461
        %v2478 = vsel %vm2470, -3.4028235e+38, %v2462
        %v2479 = vsel %vm2471, -3.4028235e+38, %v2463
        %v2480 = vsel %vm2472, -3.4028235e+38, %v2464
        %v2481 = vsel %vm2473, -3.4028235e+38, %v2465
        %v2482 = vsel %vm2474, -3.4028235e+38, %v2466
        %v2483 = vmax.f32 %v2475, 0.0
        %v2484 = vmax.f32 %v2476, 0.0
        %v2485 = vmax.f32 %v2477, 0.0
        %v2486 = vmax.f32 %v2478, 0.0
        %v2487 = vmax.f32 %v2479, 0.0
        %v2488 = vmax.f32 %v2480, 0.0
        %v2489 = vmax.f32 %v2481, 0.0
        %v2490 = vmax.f32 %v2482, 0.0
        %v2491 = vmin.f32 %v2483, 1.0
        %v2492 = vmin.f32 %v2484, 1.0
        %v2493 = vmin.f32 %v2485, 1.0
        %v2494 = vmin.f32 %v2486, 1.0
        %v2495 = vmin.f32 %v2487, 1.0
        %v2496 = vmin.f32 %v2488, 1.0
        %v2497 = vmin.f32 %v2489, 1.0
        %v2498 = vmin.f32 %v2490, 1.0
        %v2499 = vsel %vm2274, %v2491, 0.0
        %v2500 = vrot.slane %v2499, 4
        %v2501 = vadd.f32 %v2499, %v2500
        %v2502 = vrot.slane %v2501, 2
        %v2503 = vadd.f32 %v2501, %v2502
        %v2504 = vrot.slane %v2503, 1
        %v2505 = vadd.f32 %v2503, %v2504
        %v2506 = vsel %vm2274, %v2492, 0.0
        %v2507 = vrot.slane %v2506, 4
        %v2508 = vadd.f32 %v2506, %v2507
        %v2509 = vrot.slane %v2508, 2
        %v2510 = vadd.f32 %v2508, %v2509
        %v2511 = vrot.slane %v2510, 1
        %v2512 = vadd.f32 %v2510, %v2511
        %v2513 = vsel %vm2274, %v2493, 0.0
        %v2514 = vrot.slane %v2513, 4
        %v2515 = vadd.f32 %v2513, %v2514
        %v2516 = vrot.slane %v2515, 2
        %v2517 = vadd.f32 %v2515, %v2516
        %v2518 = vrot.slane %v2517, 1
        %v2519 = vadd.f32 %v2517, %v2518
        %v2520 = vsel %vm2274, %v2494, 0.0
        %v2521 = vrot.slane %v2520, 4
        %v2522 = vadd.f32 %v2520, %v2521
        %v2523 = vrot.slane %v2522, 2
        %v2524 = vadd.f32 %v2522, %v2523
        %v2525 = vrot.slane %v2524, 1
        %v2526 = vadd.f32 %v2524, %v2525
        %v2527 = vsel %vm2274, %v2495, 0.0
        %v2528 = vrot.slane %v2527, 4
        %v2529 = vadd.f32 %v2527, %v2528
        %v2530 = vrot.slane %v2529, 2
        %v2531 = vadd.f32 %v2529, %v2530
        %v2532 = vrot.slane %v2531, 1
        %v2533 = vadd.f32 %v2531, %v2532
        %v2534 = vsel %vm2274, %v2496, 0.0
        %v2535 = vrot.slane %v2534, 4
        %v2536 = vadd.f32 %v2534, %v2535
        %v2537 = vrot.slane %v2536, 2
        %v2538 = vadd.f32 %v2536, %v2537
        %v2539 = vrot.slane %v2538, 1
        %v2540 = vadd.f32 %v2538, %v2539
        %v2541 = vsel %vm2274, %v2497, 0.0
        %v2542 = vrot.slane %v2541, 4
        %v2543 = vadd.f32 %v2541, %v2542
        %v2544 = vrot.slane %v2543, 2
        %v2545 = vadd.f32 %v2543, %v2544
        %v2546 = vrot.slane %v2545, 1
        %v2547 = vadd.f32 %v2545, %v2546
        %v2548 = vsel %vm2274, %v2498, 0.0
        %v2549 = vrot.slane %v2548, 4
        %v2550 = vadd.f32 %v2548, %v2549
        %v2551 = vrot.slane %v2550, 2
        %v2552 = vadd.f32 %v2550, %v2551
        %v2553 = vrot.slane %v2552, 1
        %v2554 = vadd.f32 %v2552, %v2553
        %v2555 = vadd.f32 %v2505, 1e-06
        %v2556 = vadd.f32 %v2512, 1e-06
        %v2557 = vadd.f32 %v2519, 1e-06
        %v2558 = vadd.f32 %v2526, 1e-06
        %v2559 = vadd.f32 %v2533, 1e-06
        %v2560 = vadd.f32 %v2540, 1e-06
        %v2561 = vadd.f32 %v2547, 1e-06
        %v2562 = vadd.f32 %v2554, 1e-06
        %v2563 = vrcp.pop %v2555
        %v2564 = vrcp.pop %v2556
        %v2565 = vrcp.pop %v2557
        %v2566 = vrcp.pop %v2558
        %v2567 = vrcp.pop %v2559
        %v2568 = vrcp.pop %v2560
        %v2569 = vrcp.pop %v2561
        %v2570 = vrcp.pop %v2562
        %v2571 = vmul.f32 %v2491, %v2563
        %v2572 = vmul.f32 %v2492, %v2564
        %v2573 = vmul.f32 %v2493, %v2565
        %v2574 = vmul.f32 %v2494, %v2566
        %v2575 = vmul.f32 %v2495, %v2567
        %v2576 = vmul.f32 %v2496, %v2568
        %v2577 = vmul.f32 %v2497, %v2569
        %v2578 = vmul.f32 %v2498, %v2570
        %v2579 = vpack.c.bf16 %v2572, %v2571
        %v2580 = vpack.c.bf16 %v2574, %v2573
        %v2581 = vpack.c.bf16 %v2576, %v2575
        %v2582 = vpack.c.bf16 %v2578, %v2577
        %v2583 = vld [vmem:[%s17] sm:$0x3]
        %v2585 = vsel %vm2274, %v2579, 0
        %v2588 = vsel %vm2274, %v2580, 0
        %v2591 = vsel %vm2274, %v2581, 0
        %v2594 = vsel %vm2274, %v2582, 0
        %vm2596 = vcmask 1041408
        %v2598 = vsel %vm2596, %v2583, 0
        %2600 = vmatprep.subr.bf16.mxu0 0
        %2601 = vmatpush1.bf16.msra.mxu0 %v2598
        %2602 = vmatprep.subr.bf16.mxu0 0
        %2603 = vmatpush1.bf16.msra.mxu0 0
        %2604 = vmatprep.subr.bf16.mxu0 0
        %2605 = vmatpush1.bf16.msra.mxu0 0
        %2606 = vmatprep.subr.bf16.mxu0 0
        %2607 = vmatpush1.bf16.msra.mxu0 0
        %2608 = vmatprep.subr.bf16.mxu0 0
        %2609 = vmatpush1.bf16.msra.mxu0 0
        %2610 = vmatprep.subr.bf16.mxu0 0
        %2611 = vmatpush1.bf16.msra.mxu0 0
        %2612 = vmatprep.subr.bf16.mxu0 0
        %2613 = vmatpush1.bf16.msra.mxu0 0
        %2614 = vmatprep.subr.bf16.mxu0 0
        %2615 = vmatpush1.bf16.msra.mxu0 0
        %2616 = vmatprep.subr.bf16.mxu0 0
        %2617 = vmatpush1.bf16.msra.mxu0 0
        %2618 = vmatprep.subr.bf16.mxu0 0
        %2619 = vmatpush1.bf16.msra.mxu0 0
        %2620 = vmatprep.subr.bf16.mxu0 0
        %2621 = vmatpush1.bf16.msra.mxu0 0
        %2622 = vmatprep.subr.bf16.mxu0 0
        %2623 = vmatpush1.bf16.msra.mxu0 0
        %2624 = vmatprep.subr.bf16.mxu0 0
        %2625 = vmatpush1.bf16.msra.mxu0 0
        %2626 = vmatprep.subr.bf16.mxu0 0
        %2627 = vmatpush1.bf16.msra.mxu0 0
        %2628 = vmatprep.subr.bf16.mxu0 0
        %2629 = vmatpush1.bf16.msra.mxu0 0
        %2630 = vmatprep.subr.bf16.mxu0 0
        %2631 = vmatpush1.bf16.msra.mxu0 0
        %2632 = vmatprep.mubr.bf16.mxu0 0
        %2633 = vmatmul.mubr.bf16.gmra.mrb[0].mxu0 %v2585
        %v2634 = vpop.f32.mrb[0].mxu0
        %v2635 = vadd.f32 0.0, %v2634
        %v2636 = vpop.f32.mrb[0].mxu0
        %v2637 = vpop.f32.mrb[0].mxu0
        %v2638 = vadd.f32 0.0, %v2637
        %v2639 = vpop.f32.mrb[0].mxu0
        %2640 = vmatprep.mubr.bf16.mxu0 0
        %2641 = vmatmul.mubr.bf16.gmra.mrb[0].mxu0 %v2588
        %v2642 = vpop.f32.mrb[0].mxu0
        %v2643 = vadd.f32 0.0, %v2642
        %v2644 = vpop.f32.mrb[0].mxu0
        %v2645 = vpop.f32.mrb[0].mxu0
        %v2646 = vadd.f32 0.0, %v2645
        %v2647 = vpop.f32.mrb[0].mxu0
        %2648 = vmatprep.mubr.bf16.mxu0 0
        %2649 = vmatmul.mubr.bf16.gmra.mrb[0].mxu0 %v2591
        %v2650 = vpop.f32.mrb[0].mxu0
        %v2651 = vadd.f32 0.0, %v2650
        %v2652 = vpop.f32.mrb[0].mxu0
        %v2653 = vpop.f32.mrb[0].mxu0
        %v2654 = vadd.f32 0.0, %v2653
        %v2655 = vpop.f32.mrb[0].mxu0
        %2656 = vmatprep.mubr.bf16.mxu0 0
        %2657 = vmatmul.mubr.bf16.gmra.mrb[0].mxu0 %v2594
        %v2658 = vpop.f32.mrb[0].mxu0
        %v2659 = vadd.f32 0.0, %v2658
        %v2660 = vpop.f32.mrb[0].mxu0
        %v2661 = vpop.f32.mrb[0].mxu0
        %v2662 = vadd.f32 0.0, %v2661
        %v2663 = vpop.f32.mrb[0].mxu0
        %2664 = vdwg.mxu0
        %v2665 = vld [vmem:[%s18] sm:$0xf]
        %2674 = vrot.lane.b32.xlu0 %v2047, 96
        %v2675 = vpop.permute.xlu0 %2674
        %2676 = vrot.lane.b32.xlu0 %v2048, 96
        %v2677 = vpop.permute.xlu0 %2676
        %2678 = vrot.lane.b32.xlu0 %v2049, 96
        %v2679 = vpop.permute.xlu0 %2678
        %2680 = vrot.lane.b32.xlu0 %v2050, 96
        %v2681 = vpop.permute.xlu0 %2680
        %2682 = vrot.lane.b32.xlu0 %v2051, 96
        %v2683 = vpop.permute.xlu0 %2682
        %2684 = vrot.lane.b32.xlu0 %v2052, 96
        %v2685 = vpop.permute.xlu0 %2684
        %2686 = vrot.lane.b32.xlu0 %v2053, 96
        %v2687 = vpop.permute.xlu0 %2686
        %2688 = vrot.lane.b32.xlu0 %v2054, 96
        %v2689 = vpop.permute.xlu0 %2688
        %v2698 = vmul.f32 %v2635, %v2675
        %v2699 = vmul.f32 %v2638, %v2677
        %v2700 = vmul.f32 %v2643, %v2679
        %v2701 = vmul.f32 %v2646, %v2681
        %v2702 = vmul.f32 %v2651, %v2683
        %v2703 = vmul.f32 %v2654, %v2685
        %v2704 = vmul.f32 %v2659, %v2687
        %v2705 = vmul.f32 %v2662, %v2689
        %v2706 = vpack.c.bf16 %v2699, %v2698
        %v2707 = vpack.c.bf16 %v2701, %v2700
        %v2708 = vpack.c.bf16 %v2703, %v2702
        %v2709 = vpack.c.bf16 %v2705, %v2704
        %vm2710 = vcmask 523264
        %v2712 = vsel %vm2710, %v2665, 0
        %2714 = vmatprep.subr.bf16.mxu0 0
        %2715 = vmatpush1.bf16.msra.mxu0 %v2706
        %2716 = vmatprep.subr.bf16.mxu0 0
        %2717 = vmatpush1.bf16.msra.mxu0 %v2707
        %2718 = vmatprep.subr.bf16.mxu0 0
        %2719 = vmatpush1.bf16.msra.mxu0 %v2708
        %2720 = vmatprep.subr.bf16.mxu0 0
        %2721 = vmatpush1.bf16.msra.mxu0 %v2709
        %2722 = vmatprep.subr.bf16.mxu0 0
        %2723 = vmatpush1.bf16.msra.mxu0 0
        %2724 = vmatprep.subr.bf16.mxu0 0
        %2725 = vmatpush1.bf16.msra.mxu0 0
        %2726 = vmatprep.subr.bf16.mxu0 0
        %2727 = vmatpush1.bf16.msra.mxu0 0
        %2728 = vmatprep.subr.bf16.mxu0 0
        %2729 = vmatpush1.bf16.msra.mxu0 0
        %2730 = vmatprep.subr.bf16.mxu0 0
        %2731 = vmatpush1.bf16.msra.mxu0 0
        %2732 = vmatprep.subr.bf16.mxu0 0
        %2733 = vmatpush1.bf16.msra.mxu0 0
        %2734 = vmatprep.subr.bf16.mxu0 0
        %2735 = vmatpush1.bf16.msra.mxu0 0
        %2736 = vmatprep.subr.bf16.mxu0 0
        %2737 = vmatpush1.bf16.msra.mxu0 0
        %2738 = vmatprep.subr.bf16.mxu0 0
        %2739 = vmatpush1.bf16.msra.mxu0 0
        %2740 = vmatprep.subr.bf16.mxu0 0
        %2741 = vmatpush1.bf16.msra.mxu0 0
        %2742 = vmatprep.subr.bf16.mxu0 0
        %2743 = vmatpush1.bf16.msra.mxu0 0
        %2744 = vmatprep.subr.bf16.mxu0 0
        %2745 = vmatpush1.bf16.msra.mxu0 0
        %2746 = vmatprep.mubr.bf16.mxu0 0
        %2747 = vmatmul.mubr.bf16.gmra.mrb[0].mxu0 %v2712
        %v2748 = vpop.f32.mrb[0].mxu0
        %v2749 = vadd.f32 0.0, %v2748
        %v2750 = vpop.f32.mrb[0].mxu0
        %v2751 = vpop.f32.mrb[0].mxu0
        %v2752 = vpop.f32.mrb[0].mxu0
        %2753 = vdwg.mxu0
        %2754 = vmatprep.subr.bf16.mxu0 0
        %2755 = vmatpush1.bf16.msra.mxu0 %v1930
        %2756 = vmatprep.subr.bf16.mxu0 0
        %2757 = vmatpush1.bf16.msra.mxu0 %v1931
        %2758 = vmatprep.subr.bf16.mxu0 0
        %2759 = vmatpush1.bf16.msra.mxu0 %v1932
        %2760 = vmatprep.subr.bf16.mxu0 0
        %2761 = vmatpush1.bf16.msra.mxu0 %v1933
        %2762 = vmatprep.subr.bf16.mxu0 0
        %2763 = vmatpush1.bf16.msra.mxu0 0
        %2764 = vmatprep.subr.bf16.mxu0 0
        %2765 = vmatpush1.bf16.msra.mxu0 0
        %2766 = vmatprep.subr.bf16.mxu0 0
        %2767 = vmatpush1.bf16.msra.mxu0 0
        %2768 = vmatprep.subr.bf16.mxu0 0
        %2769 = vmatpush1.bf16.msra.mxu0 0
        %2770 = vmatprep.subr.bf16.mxu0 0
        %2771 = vmatpush1.bf16.msra.mxu0 0
        %2772 = vmatprep.subr.bf16.mxu0 0
        %2773 = vmatpush1.bf16.msra.mxu0 0
        %2774 = vmatprep.subr.bf16.mxu0 0
        %2775 = vmatpush1.bf16.msra.mxu0 0
        %2776 = vmatprep.subr.bf16.mxu0 0
        %2777 = vmatpush1.bf16.msra.mxu0 0
        %2778 = vmatprep.subr.bf16.mxu0 0
        %2779 = vmatpush1.bf16.msra.mxu0 0
        %2780 = vmatprep.subr.bf16.mxu0 0
        %2781 = vmatpush1.bf16.msra.mxu0 0
        %2782 = vmatprep.subr.bf16.mxu0 0
        %2783 = vmatpush1.bf16.msra.mxu0 0
        %2784 = vmatprep.subr.bf16.mxu0 0
        %2785 = vmatpush1.bf16.msra.mxu0 0
        %2786 = vmatprep.mubr.bf16.mxu0 0
        %2787 = vmatmul.mubr.bf16.gmra.mrb[0].mxu0 %v2712
        %v2788 = vpop.f32.mrb[0].mxu0
        %v2789 = vadd.f32 0.0, %v2788
        %v2790 = vpop.f32.mrb[0].mxu0
        %v2791 = vpop.f32.mrb[0].mxu0
        %v2792 = vpop.f32.mrb[0].mxu0
        %2793 = vdwg.mxu0
        %v2794 = vmul.f32 %v2789, 0.125
        %v2795 = vpack.c.bf16 %v2794, %v2794
        %v2796 = vld [vmem:[%s12] sm:$0xf]
        %v2797 = vld [vmem:[%s12 + $0x4] sm:$0xf]
        %v2798 = vld [vmem:[%s12 + $0x8] sm:$0xf]
        %v2799 = vld [vmem:[%s12 + $0xc] sm:$0xf]
        %v2800 = vlaneseq
        %v2801 = vshrl.u32 %v2800, 7
        %v2802 = vsub.s32 0, %v2801
        %v2803 = vrot.slane %v692, %v2802
        %v2808 = vunpack.c.l.b16 %v2796
        %v2809 = vunpack.c.l.b16 %v2797
        %v2810 = vunpack.c.l.b16 %v2798
        %v2811 = vunpack.c.l.b16 %v2799
        %v2812 = vpack.c.b16 %v2809, %v2808
        %v2813 = vpack.c.b16 %v2811, %v2810
        %v2817 = vsel %vm1015, %v2795, 0
        %2819 = vmatprep.subr.bf16.mxu0 0
        %2820 = vmatpush1.bf16.msra.mxu0 %v2812
        %2821 = vmatprep.subr.bf16.mxu0 0
        %2822 = vmatpush1.bf16.msra.mxu0 %v2813
        %2823 = vmatprep.subr.bf16.mxu0 0
        %2824 = vmatpush1.bf16.msra.mxu0 0
        %2825 = vmatprep.subr.bf16.mxu0 0
        %2826 = vmatpush1.bf16.msra.mxu0 0
        %2827 = vmatprep.subr.bf16.mxu0 0
        %2828 = vmatpush1.bf16.msra.mxu0 0
        %2829 = vmatprep.subr.bf16.mxu0 0
        %2830 = vmatpush1.bf16.msra.mxu0 0
        %2831 = vmatprep.subr.bf16.mxu0 0
        %2832 = vmatpush1.bf16.msra.mxu0 0
        %2833 = vmatprep.subr.bf16.mxu0 0
        %2834 = vmatpush1.bf16.msra.mxu0 0
        %2835 = vmatprep.subr.bf16.mxu0 0
        %2836 = vmatpush1.bf16.msra.mxu0 0
        %2837 = vmatprep.subr.bf16.mxu0 0
        %2838 = vmatpush1.bf16.msra.mxu0 0
        %2839 = vmatprep.subr.bf16.mxu0 0
        %2840 = vmatpush1.bf16.msra.mxu0 0
        %2841 = vmatprep.subr.bf16.mxu0 0
        %2842 = vmatpush1.bf16.msra.mxu0 0
        %2843 = vmatprep.subr.bf16.mxu0 0
        %2844 = vmatpush1.bf16.msra.mxu0 0
        %2845 = vmatprep.subr.bf16.mxu0 0
        %2846 = vmatpush1.bf16.msra.mxu0 0
        %2847 = vmatprep.subr.bf16.mxu0 0
        %2848 = vmatpush1.bf16.msra.mxu0 0
        %2849 = vmatprep.subr.bf16.mxu0 0
        %2850 = vmatpush1.bf16.msra.mxu0 0
        %2851 = vmatprep.mubr.bf16.mxu0 0
        %2852 = vmatmul.mubr.bf16.gmra.mrb[0].mxu0 %v2817
        %v2853 = vpop.f32.mrb[0].mxu0
        %v2854 = vadd.f32 %v2803, %v2853
        %v2855 = vpop.f32.mrb[0].mxu0
        %v2856 = vpop.f32.mrb[0].mxu0
        %v2857 = vpop.f32.mrb[0].mxu0
        %2858 = vdwg.mxu0
        %v2859 = vmul.f32 %v2854, 0.5
        %v2860 = vrcp.pop 1.4142135
        %v2861 = vmul.f32 %v2854, %v2860
        %v2862 = verf.f32.pop %v2861
        %v2863 = vadd.f32 %v2862, 1.0
        %v2864 = vmul.f32 %v2859, %v2863
        %v2865 = vpack.c.bf16 %v2864, %v2864
        %v2866 = vld [vmem:[%s13] sm:$0xf]
        %v2867 = vld [vmem:[%s13 + $0x4] sm:$0xf]
        %v2868 = vld [vmem:[%s13 + $0x8] sm:$0xf]
        %v2869 = vld [vmem:[%s13 + $0xc] sm:$0xf]
        %v2870 = vlaneseq
        %v2871 = vshrl.u32 %v2870, 7
        %v2872 = vsub.s32 1, %v2871
        %v2873 = vrot.slane %v692, %v2872
        %v2878 = vunpack.c.l.b16 %v2866
        %v2879 = vunpack.c.l.b16 %v2867
        %v2880 = vunpack.c.l.b16 %v2868
        %v2881 = vunpack.c.l.b16 %v2869
        %v2882 = vpack.c.b16 %v2879, %v2878
        %v2883 = vpack.c.b16 %v2881, %v2880
        %v2887 = vsel %vm1015, %v2865, 0
        %2889 = vmatprep.subr.bf16.mxu0 0
        %2890 = vmatpush1.bf16.msra.mxu0 %v2882
        %2891 = vmatprep.subr.bf16.mxu0 0
        %2892 = vmatpush1.bf16.msra.mxu0 %v2883
        %2893 = vmatprep.subr.bf16.mxu0 0
        %2894 = vmatpush1.bf16.msra.mxu0 0
        %2895 = vmatprep.subr.bf16.mxu0 0
        %2896 = vmatpush1.bf16.msra.mxu0 0
        %2897 = vmatprep.subr.bf16.mxu0 0
        %2898 = vmatpush1.bf16.msra.mxu0 0
        %2899 = vmatprep.subr.bf16.mxu0 0
        %2900 = vmatpush1.bf16.msra.mxu0 0
        %2901 = vmatprep.subr.bf16.mxu0 0
        %2902 = vmatpush1.bf16.msra.mxu0 0
        %2903 = vmatprep.subr.bf16.mxu0 0
        %2904 = vmatpush1.bf16.msra.mxu0 0
        %2905 = vmatprep.subr.bf16.mxu0 0
        %2906 = vmatpush1.bf16.msra.mxu0 0
        %2907 = vmatprep.subr.bf16.mxu0 0
        %2908 = vmatpush1.bf16.msra.mxu0 0
        %2909 = vmatprep.subr.bf16.mxu0 0
        %2910 = vmatpush1.bf16.msra.mxu0 0
        %2911 = vmatprep.subr.bf16.mxu0 0
        %2912 = vmatpush1.bf16.msra.mxu0 0
        %2913 = vmatprep.subr.bf16.mxu0 0
        %2914 = vmatpush1.bf16.msra.mxu0 0
        %2915 = vmatprep.subr.bf16.mxu0 0
        %2916 = vmatpush1.bf16.msra.mxu0 0
        %2917 = vmatprep.subr.bf16.mxu0 0
        %2918 = vmatpush1.bf16.msra.mxu0 0
        %2919 = vmatprep.subr.bf16.mxu0 0
        %2920 = vmatpush1.bf16.msra.mxu0 0
        %2921 = vmatprep.mubr.bf16.mxu0 0
        %2922 = vmatmul.mubr.bf16.gmra.mrb[0].mxu0 %v2887
        %v2923 = vpop.f32.mrb[0].mxu0
        %v2924 = vadd.f32 %v2873, %v2923
        %v2925 = vpop.f32.mrb[0].mxu0
        %v2926 = vpop.f32.mrb[0].mxu0
        %v2927 = vpop.f32.mrb[0].mxu0
        %2928 = vdwg.mxu0
        %v2929 = vpack.c.bf16 %v2749, %v2749
        %v2930 = vld [vmem:[%s11] sm:$0xf]
        %v2931 = vld [vmem:[%s11 + $0x4] sm:$0xf]
        %v2932 = vld [vmem:[%s11 + $0x8] sm:$0xf]
        %v2933 = vld [vmem:[%s11 + $0xc] sm:$0xf]
        %v2934 = vlaneseq
        %v2935 = vshrl.u32 %v2934, 7
        %v2936 = vsub.s32 7, %v2935
        %v2937 = vrot.slane %v691, %v2936
        %v2942 = vunpack.c.l.b16 %v2930
        %v2943 = vunpack.c.l.b16 %v2931
        %v2944 = vunpack.c.l.b16 %v2932
        %v2945 = vunpack.c.l.b16 %v2933
        %v2946 = vpack.c.b16 %v2943, %v2942
        %v2947 = vpack.c.b16 %v2945, %v2944
        %v2951 = vsel %vm1015, %v2929, 0
        %2953 = vmatprep.subr.bf16.mxu0 0
        %2954 = vmatpush1.bf16.msra.mxu0 %v2946
        %2955 = vmatprep.subr.bf16.mxu0 0
        %2956 = vmatpush1.bf16.msra.mxu0 %v2947
        %2957 = vmatprep.subr.bf16.mxu0 0
        %2958 = vmatpush1.bf16.msra.mxu0 0
        %2959 = vmatprep.subr.bf16.mxu0 0
        %2960 = vmatpush1.bf16.msra.mxu0 0
        %2961 = vmatprep.subr.bf16.mxu0 0
        %2962 = vmatpush1.bf16.msra.mxu0 0
        %2963 = vmatprep.subr.bf16.mxu0 0
        %2964 = vmatpush1.bf16.msra.mxu0 0
        %2965 = vmatprep.subr.bf16.mxu0 0
        %2966 = vmatpush1.bf16.msra.mxu0 0
        %2967 = vmatprep.subr.bf16.mxu0 0
        %2968 = vmatpush1.bf16.msra.mxu0 0
        %2969 = vmatprep.subr.bf16.mxu0 0
        %2970 = vmatpush1.bf16.msra.mxu0 0
        %2971 = vmatprep.subr.bf16.mxu0 0
        %2972 = vmatpush1.bf16.msra.mxu0 0
        %2973 = vmatprep.subr.bf16.mxu0 0
        %2974 = vmatpush1.bf16.msra.mxu0 0
        %2975 = vmatprep.subr.bf16.mxu0 0
        %2976 = vmatpush1.bf16.msra.mxu0 0
        %2977 = vmatprep.subr.bf16.mxu0 0
        %2978 = vmatpush1.bf16.msra.mxu0 0
        %2979 = vmatprep.subr.bf16.mxu0 0
        %2980 = vmatpush1.bf16.msra.mxu0 0
        %2981 = vmatprep.subr.bf16.mxu0 0
        %2982 = vmatpush1.bf16.msra.mxu0 0
        %2983 = vmatprep.subr.bf16.mxu0 0
        %2984 = vmatpush1.bf16.msra.mxu0 0
        %2985 = vmatprep.mubr.bf16.mxu0 0
        %2986 = vmatmul.mubr.bf16.gmra.mrb[0].mxu0 %v2951
        %v2987 = vpop.f32.mrb[0].mxu0
        %v2988 = vadd.f32 %v2937, %v2987
        %v2989 = vpop.f32.mrb[0].mxu0
        %v2990 = vpop.f32.mrb[0].mxu0
        %v2991 = vpop.f32.mrb[0].mxu0
        %2992 = vdwg.mxu0
        %s2993 = sld [smem:[#allocation2]]
        %v2994 = vstv %s2993
        %v2995 = vmul.f32 %v2994, %v1714
        %v2996 = vadd.f32 %v2988, %v2995
        %v2997 = vsub.f32 1.0, %v2994
        %v2998 = vmul.f32 %v2997, %v2924
        %v2999 = vadd.f32 %v2996, %v2998
        %v3000 = vsel %vm1015, %v2999, 0.0
        %3001 = vadd.xlane.f32.xlu0 %v3000
        %v3002 = vpop.xlane.xlu0 %3001
        %v3003 = vmul.f32 %v3002, %v1040
        %v3004 = vsub.f32 %v2999, %v3003
        %v3005 = vmul.f32 %v3004, %v3004
        %v3006 = vsel %vm1015, %v3005, 0.0
        %3007 = vadd.xlane.f32.xlu0 %v3006
        %v3008 = vpop.xlane.xlu0 %3007
        %v3009 = vmul.f32 %v3008, %v1040
        %v3010 = vadd.f32 %v3009, 1e-05
        %v3011 = vrsqrt.pop %v3010
        %v3012 = vmul.f32 %v3004, %v3011
        %v3013 = vlaneseq
        %v3014 = vshrl.u32 %v3013, 7
        %v3015 = vsub.s32 2, %v3014
        %v3016 = vrot.slane %v691, %v3015
        %v3017 = vmul.f32 %v3012, %v3016
        %v3018 = vlaneseq
        %v3019 = vshrl.u32 %v3018, 7
        %v3020 = vsub.s32 3, %v3019
        %v3021 = vrot.slane %v691, %v3020
        %v3022 = vadd.f32 %v3017, %v3021
        %v3023 = vpack.c.bf16 %v3022, %v3022
        %v3024 = vld [vmem:[%s14] sm:$0xf]
        %v3025 = vld [vmem:[%s14 + $0x4] sm:$0xf]
        %v3026 = vld [vmem:[%s14 + $0x8] sm:$0xf]
        %v3027 = vld [vmem:[%s14 + $0xc] sm:$0xf]
        %v3028 = vld [vmem:[%s6] sm:$0x1]
        %v3030 = vlaneseq
        %v3031 = vshrl.u32 %v3030, 7
        %v3032 = vsub.s32 0, %v3031
        %v3033 = vrot.slane %v3028, %v3032
        %v3039 = vunpack.c.l.b16 %v3024
        %v3040 = vunpack.c.l.b16 %v3025
        %v3041 = vunpack.c.l.b16 %v3026
        %v3042 = vunpack.c.l.b16 %v3027
        %v3043 = vpack.c.b16 %v3040, %v3039
        %v3044 = vpack.c.b16 %v3042, %v3041
        %v3048 = vsel %vm1015, %v3023, 0
        %3050 = vmatprep.subr.bf16.mxu0 0
        %3051 = vmatpush1.bf16.msra.mxu0 %v3043
        %3052 = vmatprep.subr.bf16.mxu0 0
        %3053 = vmatpush1.bf16.msra.mxu0 %v3044
        %3054 = vmatprep.subr.bf16.mxu0 0
        %3055 = vmatpush1.bf16.msra.mxu0 0
        %3056 = vmatprep.subr.bf16.mxu0 0
        %3057 = vmatpush1.bf16.msra.mxu0 0
        %3058 = vmatprep.subr.bf16.mxu0 0
        %3059 = vmatpush1.bf16.msra.mxu0 0
        %3060 = vmatprep.subr.bf16.mxu0 0
        %3061 = vmatpush1.bf16.msra.mxu0 0
        %3062 = vmatprep.subr.bf16.mxu0 0
        %3063 = vmatpush1.bf16.msra.mxu0 0
        %3064 = vmatprep.subr.bf16.mxu0 0
        %3065 = vmatpush1.bf16.msra.mxu0 0
        %3066 = vmatprep.subr.bf16.mxu0 0
        %3067 = vmatpush1.bf16.msra.mxu0 0
        %3068 = vmatprep.subr.bf16.mxu0 0
        %3069 = vmatpush1.bf16.msra.mxu0 0
        %3070 = vmatprep.subr.bf16.mxu0 0
        %3071 = vmatpush1.bf16.msra.mxu0 0
        %3072 = vmatprep.subr.bf16.mxu0 0
        %3073 = vmatpush1.bf16.msra.mxu0 0
        %3074 = vmatprep.subr.bf16.mxu0 0
        %3075 = vmatpush1.bf16.msra.mxu0 0
        %3076 = vmatprep.subr.bf16.mxu0 0
        %3077 = vmatpush1.bf16.msra.mxu0 0
        %3078 = vmatprep.subr.bf16.mxu0 0
        %3079 = vmatpush1.bf16.msra.mxu0 0
        %3080 = vmatprep.subr.bf16.mxu0 0
        %3081 = vmatpush1.bf16.msra.mxu0 0
        %3082 = vmatprep.mubr.bf16.mxu0 0
        %3083 = vmatmul.mubr.bf16.gmra.mrb[0].mxu0 %v3048
        %v3084 = vpop.f32.mrb[0].mxu0
        %v3085 = vadd.f32 %v3033, %v3084
        %v3086 = vpop.f32.mrb[0].mxu0
        %v3087 = vpop.f32.mrb[0].mxu0
        %v3088 = vpop.f32.mrb[0].mxu0
        %3089 = vdwg.mxu0
        %v3090 = vmul.f32 %v3085, 0.5
        %v3091 = vmul.f32 %v3085, %v2860
        %v3092 = verf.f32.pop %v3091
        %v3093 = vadd.f32 %v3092, 1.0
        %v3094 = vmul.f32 %v3090, %v3093
        %v3095 = vpack.c.bf16 %v3094, %v3094
        %v3096 = vld [vmem:[%s15] sm:$0xf]
        %v3097 = vld [vmem:[%s15 + $0x4] sm:$0xf]
        %v3098 = vld [vmem:[%s15 + $0x8] sm:$0xf]
        %v3099 = vld [vmem:[%s15 + $0xc] sm:$0xf]
        %v3100 = vld [vmem:[%s15 + $0x10] sm:$0xf]
        %v3101 = vld [vmem:[%s15 + $0x14] sm:$0xf]
        %v3102 = vld [vmem:[%s15 + $0x18] sm:$0xf]
        %v3103 = vld [vmem:[%s15 + $0x1c] sm:$0xf]
        %v3104 = vld [vmem:[%s15 + $0x20] sm:$0xf]
        %v3105 = vld [vmem:[%s15 + $0x24] sm:$0xf]
        %v3106 = vld [vmem:[%s15 + $0x28] sm:$0xf]
        %v3107 = vld [vmem:[%s15 + $0x2c] sm:$0xf]
        %v3108 = vld [vmem:[%s15 + $0x30] sm:$0xf]
        %v3109 = vld [vmem:[%s15 + $0x34] sm:$0xf]
        %v3110 = vld [vmem:[%s15 + $0x38] sm:$0xf]
        %v3111 = vld [vmem:[%s15 + $0x3c] sm:$0xf]
        %v3112 = vlaneseq
        %v3113 = vshrl.u32 %v3112, 7
        %v3114 = vsub.s32 2, %v3113
        %v3115 = vrot.slane %v692, %v3114
        %v3132 = vunpack.c.l.b16 %v3096
        %v3133 = vunpack.c.l.b16 %v3097
        %v3134 = vunpack.c.l.b16 %v3098
        %v3135 = vunpack.c.l.b16 %v3099
        %v3136 = vunpack.c.l.b16 %v3100
        %v3137 = vunpack.c.l.b16 %v3101
        %v3138 = vunpack.c.l.b16 %v3102
        %v3139 = vunpack.c.l.b16 %v3103
        %v3140 = vunpack.c.l.b16 %v3104
        %v3141 = vunpack.c.l.b16 %v3105
        %v3142 = vunpack.c.l.b16 %v3106
        %v3143 = vunpack.c.l.b16 %v3107
        %v3144 = vunpack.c.l.b16 %v3108
        %v3145 = vunpack.c.l.b16 %v3109
        %v3146 = vunpack.c.l.b16 %v3110
        %v3147 = vunpack.c.l.b16 %v3111
        %v3148 = vpack.c.b16 %v3133, %v3132
        %v3149 = vpack.c.b16 %v3135, %v3134
        %v3150 = vpack.c.b16 %v3137, %v3136
        %v3151 = vpack.c.b16 %v3139, %v3138
        %v3152 = vpack.c.b16 %v3141, %v3140
        %v3153 = vpack.c.b16 %v3143, %v3142
        %v3154 = vpack.c.b16 %v3145, %v3144
        %v3155 = vpack.c.b16 %v3147, %v3146
        %3164 = vmatprep.subr.bf16.mxu0 0
        %3165 = vmatpush1.bf16.msra.mxu0 %v3148
        %3166 = vmatprep.subr.bf16.mxu0 0
        %3167 = vmatpush1.bf16.msra.mxu0 %v3149
        %3168 = vmatprep.subr.bf16.mxu0 0
        %3169 = vmatpush1.bf16.msra.mxu0 %v3150
        %3170 = vmatprep.subr.bf16.mxu0 0
        %3171 = vmatpush1.bf16.msra.mxu0 %v3151
        %3172 = vmatprep.subr.bf16.mxu0 0
        %3173 = vmatpush1.bf16.msra.mxu0 %v3152
        %3174 = vmatprep.subr.bf16.mxu0 0
        %3175 = vmatpush1.bf16.msra.mxu0 %v3153
        %3176 = vmatprep.subr.bf16.mxu0 0
        %3177 = vmatpush1.bf16.msra.mxu0 %v3154
        %3178 = vmatprep.subr.bf16.mxu0 0
        %3179 = vmatpush1.bf16.msra.mxu0 %v3155
        %3180 = vmatprep.subr.bf16.mxu0 0
        %3181 = vmatpush1.bf16.msra.mxu0 0
        %3182 = vmatprep.subr.bf16.mxu0 0
        %3183 = vmatpush1.bf16.msra.mxu0 0
        %3184 = vmatprep.subr.bf16.mxu0 0
        %3185 = vmatpush1.bf16.msra.mxu0 0
        %3186 = vmatprep.subr.bf16.mxu0 0
        %3187 = vmatpush1.bf16.msra.mxu0 0
        %3188 = vmatprep.subr.bf16.mxu0 0
        %3189 = vmatpush1.bf16.msra.mxu0 0
        %3190 = vmatprep.subr.bf16.mxu0 0
        %3191 = vmatpush1.bf16.msra.mxu0 0
        %3192 = vmatprep.subr.bf16.mxu0 0
        %3193 = vmatpush1.bf16.msra.mxu0 0
        %3194 = vmatprep.subr.bf16.mxu0 0
        %3195 = vmatpush1.bf16.msra.mxu0 0
        %3196 = vmatprep.mubr.bf16.mxu0 0
        %3197 = vmatmul.mubr.bf16.gmra.mrb[0].mxu0 %v3095
        %v3198 = vpop.f32.mrb[0].mxu0
        %v3199 = vadd.f32 %v3115, %v3198
        %v3200 = vpop.f32.mrb[0].mxu0
        %v3201 = vpop.f32.mrb[0].mxu0
        %v3202 = vpop.f32.mrb[0].mxu0
        %3203 = vdwg.mxu0
        %v3204 = vadd.f32 %v3199, %v2999
        %3205 = vst.msk [vmem:[%s666] sm:$0xff] %vm1015, %v3204
        %s3206 = sand.u32 %s483, 1
        %s3207 = scalar_lea.sflag [#allocation4], %s3206
        %s3208 = sand.u32 %s483, 1
        %s3209 = smul.addr %s3208, 8
        %s3210 = scalar_lea.vmem [#allocation3], %s3209
        // Predicated region
        $region101: #{tpu_custom_call.1} parent=99 // pred_check
          %p3211 = pneg %p493
        $region102: #{tpu_custom_call.1} parent=99 // pred_check_branch
          %3213 = sbr.rel (%p3211) target = $region104
        $region103: #{tpu_custom_call.1} parent=99 // pred_region
          %s3215 = ssub.s32 128, 128
          %3216 = vsyncadd %s3207, %s3215
          %s3217 = smul.addr %s35, 128
          %s3218 = scalar_lea.hbm %s20, %s3217
          %s3220 = sshll.u32 %s3210, 4
          %s3221 = int_to_ptr.vmem [resolvable:$true] %s3220
          %3223 = dma.vmem_to_hbm [thread:$0]  %s3221, 128, %s3218, %s3207
        $region104: #{tpu_custom_call.1} parent=99 // pred_fallthru
          _
      $region100: #{tpu_custom_call.1} parent=5 // pred_fallthru
        _
      %p3224 = scmp.le.s32.totalorder 2, %s30
      // Predicated region
      $region105: #{tpu_custom_call.1} parent=5 // pred_check
        %p3225 = pneg %p3224
      $region106: #{tpu_custom_call.1} parent=5 // pred_check_branch
        %3227 = sbr.rel (%p3225) target = $region108
      $region107: #{tpu_custom_call.1} parent=5 // pred_region
        %s3228 = ssub.s32 %s30, 2
        // Predicated region
        $region109: #{tpu_custom_call.1} parent=107 // pred_check
          %p3229 = pneg %p499
        $region110: #{tpu_custom_call.1} parent=107 // pred_check_branch
          %3231 = sbr.rel (%p3229) target = $region112
        $region111: #{tpu_custom_call.1} parent=107 // pred_region
          %s3232 = sand.u32 %s484, 1
          %s3233 = scalar_lea.sflag [#allocation4], %s3232
          %s3234 = sand.u32 %s484, 1
          %s3235 = smul.addr %s3234, 8
          %s3236 = scalar_lea.vmem [#allocation3], %s3235
          %3237 = dma.done %s3233, 128
        $region112: #{tpu_custom_call.1} parent=107 // pred_fallthru
          _
      $region108: #{tpu_custom_call.1} parent=5 // pred_fallthru
        _
    $region6: #{tpu_custom_call.1} parent=1 // loop_footer
      %s34 = sadd.s32 1, %s30
    $region7: #{tpu_custom_call.1} parent=1 // loop_footer_branch
      %29 = sbr.rel target = $region3
    $region8: #{tpu_custom_call.1} parent=1 // loop_exit
      _
    %3238 = vsyncpa [#allocation4], 1
    %s3239 = scalar_lea.sflag [#allocation4], 1
    %3240 = vsyncpa %s3239, 1

</llo_original>
